<compile_context>
chip_gen: v6e
topology: v6e:2x2x1
jax: 0.10.0
libtpu: 0.0.40
codegen_flags: <defaults>
</compile_context>

<pallas_src>
import functools

import jax
import jax.numpy as jnp
from jax import lax
from jax.experimental import pallas as pl
from jax.experimental.pallas import tpu as pltpu

LEAKY_SLOPE = 0.1
HALO = 3  # input rows/cols of halo consumed by the fused conv1->conv2->conv3 chain


# ----------------------------- kernel helpers ------------------------------ #

def _leaky(v):
    return jnp.where(v >= 0, v, LEAKY_SLOPE * v)


def _edge_mask(row0, eh, ew, col_off, height, width):
    """Boolean (eh, ew, 1) mask: True where the local position maps inside the
    real image (used to re-create the module's zero padding under tiling)."""
    r = lax.broadcasted_iota(jnp.int32, (eh, ew, 1), 0) + row0
    c = lax.broadcasted_iota(jnp.int32, (eh, ew, 1), 1) - col_off
    return (r >= 0) & (r < height) & (c >= 0) & (c < width)


def _im2col3x3(pat_ref, src, eh, ew, cin):
    """Assemble the (eh*ew, 9*cin) im2col patch matrix in VMEM scratch so the
    3x3 conv becomes a single MXU matmul (contraction dim = 9*cin)."""
    k = 0
    for dh in range(3):
        for dw in range(3):
            pat_ref[:, :, k * cin:(k + 1) * cin] = src[dh:dh + eh, dw:dw + ew, :]
            k += 1
    return pat_ref[...].reshape(eh * ew, 9 * cin)


# ----------------------------- fused kernel -------------------------------- #

def _csp_tiny_fused_kernel(x_ref, w1_ref, b1_ref, w2_ref, b2_ref, w3_ref,
                           b3_ref, w4_ref, b4_ref, pool_ref, x3_ref,
                           pat1_ref, pat2_ref, pat3_ref,
                           *, th, height, width, planes):
    half = planes // 2
    cin = x_ref.shape[-1]
    he1, we1 = th + 4, width + 4     # x1 tile with 2-row / 2-col halo
    he2, we2 = th + 2, width + 2     # x2 tile with 1-row / 1-col halo
    r0 = pl.multiple_of(pl.program_id(1) * th, th)   # first output row of tile

    # ---- conv1: 3x3, cin -> planes, over the halo-extended tile ------------
    xin = x_ref[0, pl.ds(r0, th + 2 * HALO)]          # (th+6, W+6, cin) bf16
    p1 = _im2col3x3(pat1_ref, xin, he1, we1, cin)
    x1 = _leaky(jnp.dot(p1, w1_ref[...], preferred_element_type=jnp.float32)
                + b1_ref[...]).reshape(he1, we1, planes)
    # Zero positions outside the real image so conv2 sees exactly the zero
    # padding the reference module applies.
    x1 = jnp.where(_edge_mask(r0 - 2, he1, we1, 2, height, width), x1, 0.0)

    # ---- conv2: 3x3 on the second channel half of x1 (torch.split(...)[1]) -
    p2 = _im2col3x3(pat2_ref, x1[:, :, half:].astype(jnp.bfloat16),
                    he2, we2, half)
    x2 = _leaky(jnp.dot(p2, w2_ref[...], preferred_element_type=jnp.float32)
                + b2_ref[...]).reshape(he2, we2, half)
    x2 = jnp.where(_edge_mask(r0 - 1, he2, we2, 1, height, width), x2, 0.0)

    # ---- conv3: 3x3 -> exact tile rows -------------------------------------
    p3 = _im2col3x3(pat3_ref, x2.astype(jnp.bfloat16), th, width, half)
    y3 = _leaky(jnp.dot(p3, w3_ref[...], preferred_element_type=jnp.float32)
                + b3_ref[...])                            # (th*W, half) f32

    # ---- conv4: 1x1 on concat([y3, x2]); expressed as two dots so nothing
    #      is concatenated along the lane dimension ---------------------------
    x2i = x2[1:th + 1, 1:width + 1, :].reshape(th * width, half)
    a4 = (jnp.dot(y3.astype(jnp.bfloat16), w4_ref[:half, :],
                  preferred_element_type=jnp.float32)
          + jnp.dot(x2i.astype(jnp.bfloat16), w4_ref[half:, :],
                    preferred_element_type=jnp.float32))
    x3 = _leaky(a4 + b4_ref[...])                         # (th*W, planes) f32
    x3_ref[...] = x3.reshape(1, th, width, planes).astype(x3_ref.dtype)

    # ---- concat([x1, x3]) + 2x2 maxpool: pool each half and write it into
    #      its channel sub-range of the output block --------------------------
    def _pool2x2(v):
        v5 = v.reshape(th // 2, 2, width // 2, 2, planes)
        return jnp.max(jnp.max(v5, axis=3), axis=1)       # (th/2, W/2, planes)

    x1i = x1[2:th + 2, 2:width + 2, :]                    # (th, W, planes)
    pool_ref[0, :, :, :planes] = _pool2x2(x1i).astype(pool_ref.dtype)
    pool_ref[0, :, :, planes:] = _pool2x2(
        x3.reshape(th, width, planes)).astype(pool_ref.dtype)


# ----------------------------- wrapper -------------------------------------- #

def _pick_row_tile(height, target):
    th = min(target, height)
    while height % th or th % 2:   # terminates at 2 for even heights
        th -= 1
    return th


@functools.partial(jax.jit, static_argnames=("planes", "row_tile"))
def csp_darknet_tiny_block(x_nchw, params, *, planes, row_tile=8):
    n, cin, height, width = x_nchw.shape
    half = planes // 2
    assert height % 2 == 0 and width % 2 == 0, "2x2 maxpool needs even H, W"
    th = _pick_row_tile(height, row_tile)
    n_h = height // th

    # Single input layout pass: NCHW -> NHWC, pad the fused chain's halo once,
    # cast to the MXU operand dtype (fused by XLA into one copy).
    x = jnp.transpose(x_nchw, (0, 2, 3, 1))
    xp = jnp.pad(x, ((0, 0), (HALO, HALO), (HALO, HALO), (0, 0)))
    xp = xp.astype(jnp.bfloat16)

    w1, b1 = params["conv1"]
    w2, b2 = params["conv2"]
    w3, b3 = params["conv3"]
    w4, b4 = params["conv4"]
    w1m = w1.reshape(9 * cin, planes).astype(jnp.bfloat16)
    w2m = w2.reshape(9 * half, half).astype(jnp.bfloat16)
    w3m = w3.reshape(9 * half, half).astype(jnp.bfloat16)
    w4m = w4.reshape(planes, planes).astype(jnp.bfloat16)
    b1m, b2m, b3m, b4m = (b.reshape(1, -1).astype(jnp.float32)
                          for b in (b1, b2, b3, b4))

    kernel = functools.partial(_csp_tiny_fused_kernel, th=th, height=height,
                               width=width, planes=planes)
    const2d = lambda n_, h_: (0, 0)

    pooled, x3 = pl.pallas_call(
        kernel,
        grid=(n, n_h),
        in_specs=[
            # Whole padded image per batch element; block index is constant in
            # h so Pallas does not re-DMA it across row tiles.
            pl.BlockSpec((1, height + 2 * HALO, width + 2 * HALO, cin),
                         lambda n_, h_: (n_, 0, 0, 0)),
            pl.BlockSpec((9 * cin, planes), const2d),
            pl.BlockSpec((1, planes), const2d),
            pl.BlockSpec((9 * half, half), const2d),
            pl.BlockSpec((1, half), const2d),
            pl.BlockSpec((9 * half, half), const2d),
            pl.BlockSpec((1, half), const2d),
            pl.BlockSpec((planes, planes), const2d),
            pl.BlockSpec((1, planes), const2d),
        ],
        out_specs=(
            pl.BlockSpec((1, th // 2, width // 2, 2 * planes),
                         lambda n_, h_: (n_, h_, 0, 0)),
            pl.BlockSpec((1, th, width, planes),
                         lambda n_, h_: (n_, h_, 0, 0)),
        ),
        out_shape=(
            jax.ShapeDtypeStruct((n, height // 2, width // 2, 2 * planes),
                                 jnp.float32),
            jax.ShapeDtypeStruct((n, height, width, planes), jnp.float32),
        ),
        scratch_shapes=(
            pltpu.VMEM((th + 4, width + 4, 9 * cin), jnp.bfloat16),
            pltpu.VMEM((th + 2, width + 2, 9 * half), jnp.bfloat16),
            pltpu.VMEM((th, width, 9 * half), jnp.bfloat16),
        ),
        compiler_params=pltpu.CompilerParams(
            dimension_semantics=("parallel", "parallel"),
            vmem_limit_bytes=32 * 1024 * 1024,  # fits v7x's 64 MiB physical VMEM
        ),
    )(xp, w1m, b1m, w2m, b2m, w3m, b3m, w4m, b4m)

    # Back to the module's NCHW convention (one layout pass per output).
    return (jnp.transpose(pooled, (0, 3, 1, 2)),
            jnp.transpose(x3, (0, 3, 1, 2)))


# ----------------------------- params (deterministic) ---------------------- #

def init_conv_bn_params(key, cin, cout, ksize):
    kw, kb, kg, km, kv = jax.random.split(key, 5)
    w = jax.random.normal(kw, (ksize, ksize, cin, cout), jnp.float32) * 0.1  # HWIO
    gamma = jax.random.uniform(kg, (cout,), jnp.float32, 0.5, 1.5)
    beta = jax.random.normal(kb, (cout,), jnp.float32) * 0.1
    mean = jax.random.normal(km, (cout,), jnp.float32) * 0.1
    var = jax.random.uniform(kv, (cout,), jnp.float32, 0.5, 1.5)
    eps = 1e-5
    scale = gamma / jnp.sqrt(var + eps)           # eval-mode BN fold
    return w * scale, beta - mean * scale


# ----------------------------- pure-JAX reference -------------------------- #

def _ref_conv_bn_lrelu(x_nchw, w_hwio, b, pad):
    # Same arithmetic as the kernel: bf16 matmul operands, f32 accumulation,
    # bias + LeakyReLU in f32.
    w_oihw = jnp.transpose(w_hwio, (3, 2, 0, 1)).astype(jnp.bfloat16)
    y = lax.conv_general_dilated(x_nchw.astype(jnp.bfloat16), w_oihw, (1, 1),
                                 [(pad, pad)] * 2,
                                 dimension_numbers=("NCHW", "OIHW", "NCHW"),
                                 preferred_element_type=jnp.float32)
    y = y + b[None, :, None, None]
    return jnp.where(y >= 0, y, LEAKY_SLOPE * y)


def ref_forward(x_nchw, params, planes):
    half = planes // 2
    w1, b1 = params["conv1"]
    w2, b2 = params["conv2"]
    w3, b3 = params["conv3"]
    w4, b4 = params["conv4"]
    x1 = _ref_conv_bn_lrelu(x_nchw, w1, b1, 1)
    xs = x1[:, half:]
    x2 = _ref_conv_bn_lrelu(xs, w2, b2, 1)
    y3 = _ref_conv_bn_lrelu(x2, w3, b3, 1)
    cat = jnp.concatenate([y3, x2], axis=1)
    x3 = _ref_conv_bn_lrelu(cat, w4, b4, 0)
    cat2 = jnp.concatenate([x1, x3], axis=1)
    nb, c, h, w = cat2.shape
    pooled = cat2.reshape(nb, c, h // 2, 2, w // 2, 2).max(axis=(3, 5))
    return pooled, x3


# ----------------------------- main ---------------------------------------- #

if __name__ == "__main__":
    inplanes, planes = 4, 8
    key = jax.random.PRNGKey(0)
    kx, k1, k2, k3, k4 = jax.random.split(key, 5)

    x = jax.random.normal(kx, (2, inplanes, 16, 16), jnp.float32)   # NCHW
    params = {
        "conv1": init_conv_bn_params(k1, inplanes, planes, 3),
        "conv2": init_conv_bn_params(k2, planes // 2, planes // 2, 3),
        "conv3": init_conv_bn_params(k3, planes // 2, planes // 2, 3),
        "conv4": init_conv_bn_params(k4, planes, planes, 1),
    }

    # row_tile=8 -> grid (2 images, 2 row tiles) so the halo/masking path and
    # the software pipeline are exercised even at the toy shape.
    out, x3 = csp_darknet_tiny_block(x, params, planes=planes, row_tile=8)
    jax.block_until_ready((out, x3))

    ref_out, ref_x3 = ref_forward(x, params, planes)
    assert out.shape == (2, 2 * planes, 8, 8), out.shape
    assert x3.shape == (2, planes, 16, 16), x3.shape
    assert jnp.allclose(out, ref_out, atol=1e-2, rtol=1e-2), \
        float(jnp.max(jnp.abs(out - ref_out)))
    assert jnp.allclose(x3, ref_x3, atol=1e-2, rtol=1e-2), \
        float(jnp.max(jnp.abs(x3 - ref_x3)))

    print("KERNEL_OK")
</pallas_src>

<mosaic_0001>
module attributes {stable_mosaic.version = 11 : i64} {
  func.func @_csp_tiny_fused_kernel(%arg0: i32, %arg1: i32, %arg2: memref<1x22x22x4xbf16, #tpu.memory_space<vmem>>, %arg3: memref<36x8xbf16, #tpu.memory_space<vmem>>, %arg4: memref<1x8xf32, #tpu.memory_space<vmem>>, %arg5: memref<36x4xbf16, #tpu.memory_space<vmem>>, %arg6: memref<1x4xf32, #tpu.memory_space<vmem>>, %arg7: memref<36x4xbf16, #tpu.memory_space<vmem>>, %arg8: memref<1x4xf32, #tpu.memory_space<vmem>>, %arg9: memref<8x8xbf16, #tpu.memory_space<vmem>>, %arg10: memref<1x8xf32, #tpu.memory_space<vmem>>, %arg11: memref<1x4x8x16xf32, #tpu.memory_space<vmem>>, %arg12: memref<1x8x16x8xf32, #tpu.memory_space<vmem>>, %arg13: memref<12x20x36xbf16, #tpu.memory_space<vmem>>, %arg14: memref<10x18x36xbf16, #tpu.memory_space<vmem>>, %arg15: memref<8x16x36xbf16, #tpu.memory_space<vmem>>) attributes {dimension_semantics = [#tpu.dimension_semantics<parallel>, #tpu.dimension_semantics<parallel>], iteration_bounds = array<i64: 2, 2>, scalar_prefetch = 0 : i64, scratch_operands = 3 : i64, tpu.core_type = #tpu.core_type<tc>, window_params = [{transform_indices = @transform_0, window_bounds = array<i64: 1, 22, 22, 4>}, {pipeline_mode = #tpu.pipeline_mode<synchronous>, transform_indices = @transform_1, window_bounds = array<i64: 36, 8>}, {pipeline_mode = #tpu.pipeline_mode<synchronous>, transform_indices = @transform_2, window_bounds = array<i64: 1, 8>}, {pipeline_mode = #tpu.pipeline_mode<synchronous>, transform_indices = @transform_3, window_bounds = array<i64: 36, 4>}, {pipeline_mode = #tpu.pipeline_mode<synchronous>, transform_indices = @transform_4, window_bounds = array<i64: 1, 4>}, {pipeline_mode = #tpu.pipeline_mode<synchronous>, transform_indices = @transform_5, window_bounds = array<i64: 36, 4>}, {pipeline_mode = #tpu.pipeline_mode<synchronous>, transform_indices = @transform_6, window_bounds = array<i64: 1, 4>}, {pipeline_mode = #tpu.pipeline_mode<synchronous>, transform_indices = @transform_7, window_bounds = array<i64: 8, 8>}, {pipeline_mode = #tpu.pipeline_mode<synchronous>, transform_indices = @transform_8, window_bounds = array<i64: 1, 8>}, {transform_indices = @transform_9, window_bounds = array<i64: 1, 4, 8, 16>}, {transform_indices = @transform_10, window_bounds = array<i64: 1, 8, 16, 8>}]} {
    %c8_i32 = arith.constant 8 : i32
    %0 = arith.muli %arg1, %c8_i32 : i32
    %1 = tpu.assume_multiple %0, 8 : i32
    %c0 = arith.constant 0 : index
    %2 = arith.index_cast %1 : i32 to index
    %c0_0 = arith.constant 0 : index
    %c0_1 = arith.constant 0 : index
    %3 = vector.load %arg2[%c0, %2, %c0_0, %c0_1] : memref<1x22x22x4xbf16, #tpu.memory_space<vmem>>, vector<1x14x22x4xbf16>
    %4 = vector.shape_cast %3 : vector<1x14x22x4xbf16> to vector<14x22x4xbf16>
    %5 = vector.extract_strided_slice %4 {offsets = [0, 0, 0], sizes = [12, 20, 4], strides = [1, 1, 1]} : vector<14x22x4xbf16> to vector<12x20x4xbf16>
    %c0_2 = arith.constant 0 : index
    %c0_3 = arith.constant 0 : index
    %c0_4 = arith.constant 0 : index
    %6 = vector.load %arg13[%c0_2, %c0_3, %c0_4] : memref<12x20x36xbf16, #tpu.memory_space<vmem>>, vector<12x20x4xbf16>
    tpu.vector_store %arg13[%c0_2, %c0_3, %c0_4], %5 {strides = array<i32>} : memref<12x20x36xbf16, #tpu.memory_space<vmem>>, vector<12x20x4xbf16>,
    %7 = vector.extract_strided_slice %4 {offsets = [0, 1, 0], sizes = [12, 20, 4], strides = [1, 1, 1]} : vector<14x22x4xbf16> to vector<12x20x4xbf16>
    %c0_5 = arith.constant 0 : index
    %c0_6 = arith.constant 0 : index
    %c4 = arith.constant 4 : index
    %8 = vector.load %arg13[%c0_5, %c0_6, %c4] : memref<12x20x36xbf16, #tpu.memory_space<vmem>>, vector<12x20x4xbf16>
    tpu.vector_store %arg13[%c0_5, %c0_6, %c4], %7 {strides = array<i32>} : memref<12x20x36xbf16, #tpu.memory_space<vmem>>, vector<12x20x4xbf16>,
    %9 = vector.extract_strided_slice %4 {offsets = [0, 2, 0], sizes = [12, 20, 4], strides = [1, 1, 1]} : vector<14x22x4xbf16> to vector<12x20x4xbf16>
    %c0_7 = arith.constant 0 : index
    %c0_8 = arith.constant 0 : index
    %c8 = arith.constant 8 : index
    %10 = vector.load %arg13[%c0_7, %c0_8, %c8] : memref<12x20x36xbf16, #tpu.memory_space<vmem>>, vector<12x20x4xbf16>
    tpu.vector_store %arg13[%c0_7, %c0_8, %c8], %9 {strides = array<i32>} : memref<12x20x36xbf16, #tpu.memory_space<vmem>>, vector<12x20x4xbf16>,
    %11 = vector.extract_strided_slice %4 {offsets = [1, 0, 0], sizes = [12, 20, 4], strides = [1, 1, 1]} : vector<14x22x4xbf16> to vector<12x20x4xbf16>
    %c0_9 = arith.constant 0 : index
    %c0_10 = arith.constant 0 : index
    %c12 = arith.constant 12 : index
    %12 = vector.load %arg13[%c0_9, %c0_10, %c12] : memref<12x20x36xbf16, #tpu.memory_space<vmem>>, vector<12x20x4xbf16>
    tpu.vector_store %arg13[%c0_9, %c0_10, %c12], %11 {strides = array<i32>} : memref<12x20x36xbf16, #tpu.memory_space<vmem>>, vector<12x20x4xbf16>,
    %13 = vector.extract_strided_slice %4 {offsets = [1, 1, 0], sizes = [12, 20, 4], strides = [1, 1, 1]} : vector<14x22x4xbf16> to vector<12x20x4xbf16>
    %c0_11 = arith.constant 0 : index
    %c0_12 = arith.constant 0 : index
    %c16 = arith.constant 16 : index
    %14 = vector.load %arg13[%c0_11, %c0_12, %c16] : memref<12x20x36xbf16, #tpu.memory_space<vmem>>, vector<12x20x4xbf16>
    tpu.vector_store %arg13[%c0_11, %c0_12, %c16], %13 {strides = array<i32>} : memref<12x20x36xbf16, #tpu.memory_space<vmem>>, vector<12x20x4xbf16>,
    %15 = vector.extract_strided_slice %4 {offsets = [1, 2, 0], sizes = [12, 20, 4], strides = [1, 1, 1]} : vector<14x22x4xbf16> to vector<12x20x4xbf16>
    %c0_13 = arith.constant 0 : index
    %c0_14 = arith.constant 0 : index
    %c20 = arith.constant 20 : index
    %16 = vector.load %arg13[%c0_13, %c0_14, %c20] : memref<12x20x36xbf16, #tpu.memory_space<vmem>>, vector<12x20x4xbf16>
    tpu.vector_store %arg13[%c0_13, %c0_14, %c20], %15 {strides = array<i32>} : memref<12x20x36xbf16, #tpu.memory_space<vmem>>, vector<12x20x4xbf16>,
    %17 = vector.extract_strided_slice %4 {offsets = [2, 0, 0], sizes = [12, 20, 4], strides = [1, 1, 1]} : vector<14x22x4xbf16> to vector<12x20x4xbf16>
    %c0_15 = arith.constant 0 : index
    %c0_16 = arith.constant 0 : index
    %c24 = arith.constant 24 : index
    %18 = vector.load %arg13[%c0_15, %c0_16, %c24] : memref<12x20x36xbf16, #tpu.memory_space<vmem>>, vector<12x20x4xbf16>
    tpu.vector_store %arg13[%c0_15, %c0_16, %c24], %17 {strides = array<i32>} : memref<12x20x36xbf16, #tpu.memory_space<vmem>>, vector<12x20x4xbf16>,
    %19 = vector.extract_strided_slice %4 {offsets = [2, 1, 0], sizes = [12, 20, 4], strides = [1, 1, 1]} : vector<14x22x4xbf16> to vector<12x20x4xbf16>
    %c0_17 = arith.constant 0 : index
    %c0_18 = arith.constant 0 : index
    %c28 = arith.constant 28 : index
    %20 = vector.load %arg13[%c0_17, %c0_18, %c28] : memref<12x20x36xbf16, #tpu.memory_space<vmem>>, vector<12x20x4xbf16>
    tpu.vector_store %arg13[%c0_17, %c0_18, %c28], %19 {strides = array<i32>} : memref<12x20x36xbf16, #tpu.memory_space<vmem>>, vector<12x20x4xbf16>,
    %21 = vector.extract_strided_slice %4 {offsets = [2, 2, 0], sizes = [12, 20, 4], strides = [1, 1, 1]} : vector<14x22x4xbf16> to vector<12x20x4xbf16>
    %c0_19 = arith.constant 0 : index
    %c0_20 = arith.constant 0 : index
    %c32 = arith.constant 32 : index
    %22 = vector.load %arg13[%c0_19, %c0_20, %c32] : memref<12x20x36xbf16, #tpu.memory_space<vmem>>, vector<12x20x4xbf16>
    tpu.vector_store %arg13[%c0_19, %c0_20, %c32], %21 {strides = array<i32>} : memref<12x20x36xbf16, #tpu.memory_space<vmem>>, vector<12x20x4xbf16>,
    %c0_21 = arith.constant 0 : index
    %c0_22 = arith.constant 0 : index
    %c0_23 = arith.constant 0 : index
    %23 = vector.load %arg13[%c0_21, %c0_22, %c0_23] : memref<12x20x36xbf16, #tpu.memory_space<vmem>>, vector<12x20x36xbf16>
    %24 = vector.shape_cast %23 : vector<12x20x36xbf16> to vector<240x36xbf16>
    %c0_24 = arith.constant 0 : index
    %c0_25 = arith.constant 0 : index
    %25 = vector.load %arg3[%c0_24, %c0_25] : memref<36x8xbf16, #tpu.memory_space<vmem>>, vector<36x8xbf16>
    %cst = arith.constant dense<0.000000e+00> : vector<240x8xf32>
    %26 = tpu.matmul %24, %25, %cst {dimension_numbers = #tpu.dot_dimension_numbers<[1], [0], [0], [1], [0, 0, 1, 1], [], []>} : vector<240x36xbf16>, vector<36x8xbf16>, vector<240x8xf32> -> vector<240x8xf32>
    %c0_26 = arith.constant 0 : index
    %c0_27 = arith.constant 0 : index
    %27 = vector.load %arg4[%c0_26, %c0_27] : memref<1x8xf32, #tpu.memory_space<vmem>>, vector<1x8xf32>
    %28 = vector.broadcast %27 : vector<1x8xf32> to vector<240x8xf32>
    %29 = arith.addf %26, %28 : vector<240x8xf32>
    %cst_28 = arith.constant 0.000000e+00 : f32
    %30 = vector.broadcast %cst_28 : f32 to vector<240x8xf32>
    %31 = arith.cmpf oge, %29, %30 : vector<240x8xf32>
    %cst_29 = arith.constant 1.000000e-01 : f32
    %32 = vector.broadcast %cst_29 : f32 to vector<240x8xf32>
    %33 = arith.mulf %32, %29 : vector<240x8xf32>
    %34 = arith.select %31, %29, %33 : vector<240x8xi1>, vector<240x8xf32>
    %35 = vector.shape_cast %34 : vector<240x8xf32> to vector<12x20x8xf32>
    %c2_i32 = arith.constant 2 : i32
    %36 = arith.subi %1, %c2_i32 : i32
    %37 = tpu.iota {dimensions = array<i32: 0>} : vector<12x20x1xi32>
    %38 = vector.broadcast %36 : i32 to vector<12x20x1xi32>
    %39 = arith.addi %37, %38 : vector<12x20x1xi32>
    %40 = tpu.iota {dimensions = array<i32: 1>} : vector<12x20x1xi32>
    %c2_i32_30 = arith.constant 2 : i32
    %41 = vector.broadcast %c2_i32_30 : i32 to vector<12x20x1xi32>
    %42 = arith.subi %40, %41 : vector<12x20x1xi32>
    %c0_i32 = arith.constant 0 : i32
    %43 = vector.broadcast %c0_i32 : i32 to vector<12x20x1xi32>
    %44 = arith.cmpi sge, %39, %43 : vector<12x20x1xi32>
    %c16_i32 = arith.constant 16 : i32
    %45 = vector.broadcast %c16_i32 : i32 to vector<12x20x1xi32>
    %46 = arith.cmpi slt, %39, %45 : vector<12x20x1xi32>
    %47 = arith.andi %44, %46 : vector<12x20x1xi1>
    %c0_i32_31 = arith.constant 0 : i32
    %48 = vector.broadcast %c0_i32_31 : i32 to vector<12x20x1xi32>
    %49 = arith.cmpi sge, %42, %48 : vector<12x20x1xi32>
    %50 = arith.andi %47, %49 : vector<12x20x1xi1>
    %c16_i32_32 = arith.constant 16 : i32
    %51 = vector.broadcast %c16_i32_32 : i32 to vector<12x20x1xi32>
    %52 = arith.cmpi slt, %42, %51 : vector<12x20x1xi32>
    %53 = arith.andi %50, %52 : vector<12x20x1xi1>
    %cst_33 = arith.constant 0.000000e+00 : f32
    %54 = vector.shape_cast %53 : vector<12x20x1xi1> to vector<12x20x1xi1>
    %55 = vector.broadcast %54 : vector<12x20x1xi1> to vector<12x20x8xi1>
    %56 = vector.broadcast %cst_33 : f32 to vector<12x20x8xf32>
    %57 = arith.select %55, %35, %56 : vector<12x20x8xi1>, vector<12x20x8xf32>
    %58 = vector.extract_strided_slice %57 {offsets = [0, 0, 4], sizes = [12, 20, 4], strides = [1, 1, 1]} : vector<12x20x8xf32> to vector<12x20x4xf32>
    %59 = arith.truncf %58 : vector<12x20x4xf32> to vector<12x20x4xbf16>
    %60 = vector.extract_strided_slice %59 {offsets = [0, 0, 0], sizes = [10, 18, 4], strides = [1, 1, 1]} : vector<12x20x4xbf16> to vector<10x18x4xbf16>
    %c0_34 = arith.constant 0 : index
    %c0_35 = arith.constant 0 : index
    %c0_36 = arith.constant 0 : index
    %61 = vector.load %arg14[%c0_34, %c0_35, %c0_36] : memref<10x18x36xbf16, #tpu.memory_space<vmem>>, vector<10x18x4xbf16>
    tpu.vector_store %arg14[%c0_34, %c0_35, %c0_36], %60 {strides = array<i32>} : memref<10x18x36xbf16, #tpu.memory_space<vmem>>, vector<10x18x4xbf16>,
    %62 = vector.extract_strided_slice %59 {offsets = [0, 1, 0], sizes = [10, 18, 4], strides = [1, 1, 1]} : vector<12x20x4xbf16> to vector<10x18x4xbf16>
    %c0_37 = arith.constant 0 : index
    %c0_38 = arith.constant 0 : index
    %c4_39 = arith.constant 4 : index
    %63 = vector.load %arg14[%c0_37, %c0_38, %c4_39] : memref<10x18x36xbf16, #tpu.memory_space<vmem>>, vector<10x18x4xbf16>
    tpu.vector_store %arg14[%c0_37, %c0_38, %c4_39], %62 {strides = array<i32>} : memref<10x18x36xbf16, #tpu.memory_space<vmem>>, vector<10x18x4xbf16>,
    %64 = vector.extract_strided_slice %59 {offsets = [0, 2, 0], sizes = [10, 18, 4], strides = [1, 1, 1]} : vector<12x20x4xbf16> to vector<10x18x4xbf16>
    %c0_40 = arith.constant 0 : index
    %c0_41 = arith.constant 0 : index
    %c8_42 = arith.constant 8 : index
    %65 = vector.load %arg14[%c0_40, %c0_41, %c8_42] : memref<10x18x36xbf16, #tpu.memory_space<vmem>>, vector<10x18x4xbf16>
    tpu.vector_store %arg14[%c0_40, %c0_41, %c8_42], %64 {strides = array<i32>} : memref<10x18x36xbf16, #tpu.memory_space<vmem>>, vector<10x18x4xbf16>,
    %66 = vector.extract_strided_slice %59 {offsets = [1, 0, 0], sizes = [10, 18, 4], strides = [1, 1, 1]} : vector<12x20x4xbf16> to vector<10x18x4xbf16>
    %c0_43 = arith.constant 0 : index
    %c0_44 = arith.constant 0 : index
    %c12_45 = arith.constant 12 : index
    %67 = vector.load %arg14[%c0_43, %c0_44, %c12_45] : memref<10x18x36xbf16, #tpu.memory_space<vmem>>, vector<10x18x4xbf16>
    tpu.vector_store %arg14[%c0_43, %c0_44, %c12_45], %66 {strides = array<i32>} : memref<10x18x36xbf16, #tpu.memory_space<vmem>>, vector<10x18x4xbf16>,
    %68 = vector.extract_strided_slice %59 {offsets = [1, 1, 0], sizes = [10, 18, 4], strides = [1, 1, 1]} : vector<12x20x4xbf16> to vector<10x18x4xbf16>
    %c0_46 = arith.constant 0 : index
    %c0_47 = arith.constant 0 : index
    %c16_48 = arith.constant 16 : index
    %69 = vector.load %arg14[%c0_46, %c0_47, %c16_48] : memref<10x18x36xbf16, #tpu.memory_space<vmem>>, vector<10x18x4xbf16>
    tpu.vector_store %arg14[%c0_46, %c0_47, %c16_48], %68 {strides = array<i32>} : memref<10x18x36xbf16, #tpu.memory_space<vmem>>, vector<10x18x4xbf16>,
    %70 = vector.extract_strided_slice %59 {offsets = [1, 2, 0], sizes = [10, 18, 4], strides = [1, 1, 1]} : vector<12x20x4xbf16> to vector<10x18x4xbf16>
    %c0_49 = arith.constant 0 : index
    %c0_50 = arith.constant 0 : index
    %c20_51 = arith.constant 20 : index
    %71 = vector.load %arg14[%c0_49, %c0_50, %c20_51] : memref<10x18x36xbf16, #tpu.memory_space<vmem>>, vector<10x18x4xbf16>
    tpu.vector_store %arg14[%c0_49, %c0_50, %c20_51], %70 {strides = array<i32>} : memref<10x18x36xbf16, #tpu.memory_space<vmem>>, vector<10x18x4xbf16>,
    %72 = vector.extract_strided_slice %59 {offsets = [2, 0, 0], sizes = [10, 18, 4], strides = [1, 1, 1]} : vector<12x20x4xbf16> to vector<10x18x4xbf16>
    %c0_52 = arith.constant 0 : index
    %c0_53 = arith.constant 0 : index
    %c24_54 = arith.constant 24 : index
    %73 = vector.load %arg14[%c0_52, %c0_53, %c24_54] : memref<10x18x36xbf16, #tpu.memory_space<vmem>>, vector<10x18x4xbf16>
    tpu.vector_store %arg14[%c0_52, %c0_53, %c24_54], %72 {strides = array<i32>} : memref<10x18x36xbf16, #tpu.memory_space<vmem>>, vector<10x18x4xbf16>,
    %74 = vector.extract_strided_slice %59 {offsets = [2, 1, 0], sizes = [10, 18, 4], strides = [1, 1, 1]} : vector<12x20x4xbf16> to vector<10x18x4xbf16>
    %c0_55 = arith.constant 0 : index
    %c0_56 = arith.constant 0 : index
    %c28_57 = arith.constant 28 : index
    %75 = vector.load %arg14[%c0_55, %c0_56, %c28_57] : memref<10x18x36xbf16, #tpu.memory_space<vmem>>, vector<10x18x4xbf16>
    tpu.vector_store %arg14[%c0_55, %c0_56, %c28_57], %74 {strides = array<i32>} : memref<10x18x36xbf16, #tpu.memory_space<vmem>>, vector<10x18x4xbf16>,
    %76 = vector.extract_strided_slice %59 {offsets = [2, 2, 0], sizes = [10, 18, 4], strides = [1, 1, 1]} : vector<12x20x4xbf16> to vector<10x18x4xbf16>
    %c0_58 = arith.constant 0 : index
    %c0_59 = arith.constant 0 : index
    %c32_60 = arith.constant 32 : index
    %77 = vector.load %arg14[%c0_58, %c0_59, %c32_60] : memref<10x18x36xbf16, #tpu.memory_space<vmem>>, vector<10x18x4xbf16>
    tpu.vector_store %arg14[%c0_58, %c0_59, %c32_60], %76 {strides = array<i32>} : memref<10x18x36xbf16, #tpu.memory_space<vmem>>, vector<10x18x4xbf16>,
    %c0_61 = arith.constant 0 : index
    %c0_62 = arith.constant 0 : index
    %c0_63 = arith.constant 0 : index
    %78 = vector.load %arg14[%c0_61, %c0_62, %c0_63] : memref<10x18x36xbf16, #tpu.memory_space<vmem>>, vector<10x18x36xbf16>
    %79 = vector.shape_cast %78 : vector<10x18x36xbf16> to vector<180x36xbf16>
    %c0_64 = arith.constant 0 : index
    %c0_65 = arith.constant 0 : index
    %80 = vector.load %arg5[%c0_64, %c0_65] : memref<36x4xbf16, #tpu.memory_space<vmem>>, vector<36x4xbf16>
    %cst_66 = arith.constant dense<0.000000e+00> : vector<180x4xf32>
    %81 = tpu.matmul %79, %80, %cst_66 {dimension_numbers = #tpu.dot_dimension_numbers<[1], [0], [0], [1], [0, 0, 1, 1], [], []>} : vector<180x36xbf16>, vector<36x4xbf16>, vector<180x4xf32> -> vector<180x4xf32>
    %c0_67 = arith.constant 0 : index
    %c0_68 = arith.constant 0 : index
    %82 = vector.load %arg6[%c0_67, %c0_68] : memref<1x4xf32, #tpu.memory_space<vmem>>, vector<1x4xf32>
    %83 = vector.broadcast %82 : vector<1x4xf32> to vector<180x4xf32>
    %84 = arith.addf %81, %83 : vector<180x4xf32>
    %cst_69 = arith.constant 0.000000e+00 : f32
    %85 = vector.broadcast %cst_69 : f32 to vector<180x4xf32>
    %86 = arith.cmpf oge, %84, %85 : vector<180x4xf32>
    %cst_70 = arith.constant 1.000000e-01 : f32
    %87 = vector.broadcast %cst_70 : f32 to vector<180x4xf32>
    %88 = arith.mulf %87, %84 : vector<180x4xf32>
    %89 = arith.select %86, %84, %88 : vector<180x4xi1>, vector<180x4xf32>
    %90 = vector.shape_cast %89 : vector<180x4xf32> to vector<10x18x4xf32>
    %c1_i32 = arith.constant 1 : i32
    %91 = arith.subi %1, %c1_i32 : i32
    %92 = tpu.iota {dimensions = array<i32: 0>} : vector<10x18x1xi32>
    %93 = vector.broadcast %91 : i32 to vector<10x18x1xi32>
    %94 = arith.addi %92, %93 : vector<10x18x1xi32>
    %95 = tpu.iota {dimensions = array<i32: 1>} : vector<10x18x1xi32>
    %c1_i32_71 = arith.constant 1 : i32
    %96 = vector.broadcast %c1_i32_71 : i32 to vector<10x18x1xi32>
    %97 = arith.subi %95, %96 : vector<10x18x1xi32>
    %c0_i32_72 = arith.constant 0 : i32
    %98 = vector.broadcast %c0_i32_72 : i32 to vector<10x18x1xi32>
    %99 = arith.cmpi sge, %94, %98 : vector<10x18x1xi32>
    %c16_i32_73 = arith.constant 16 : i32
    %100 = vector.broadcast %c16_i32_73 : i32 to vector<10x18x1xi32>
    %101 = arith.cmpi slt, %94, %100 : vector<10x18x1xi32>
    %102 = arith.andi %99, %101 : vector<10x18x1xi1>
    %c0_i32_74 = arith.constant 0 : i32
    %103 = vector.broadcast %c0_i32_74 : i32 to vector<10x18x1xi32>
    %104 = arith.cmpi sge, %97, %103 : vector<10x18x1xi32>
    %105 = arith.andi %102, %104 : vector<10x18x1xi1>
    %c16_i32_75 = arith.constant 16 : i32
    %106 = vector.broadcast %c16_i32_75 : i32 to vector<10x18x1xi32>
    %107 = arith.cmpi slt, %97, %106 : vector<10x18x1xi32>
    %108 = arith.andi %105, %107 : vector<10x18x1xi1>
    %cst_76 = arith.constant 0.000000e+00 : f32
    %109 = vector.shape_cast %108 : vector<10x18x1xi1> to vector<10x18x1xi1>
    %110 = vector.broadcast %109 : vector<10x18x1xi1> to vector<10x18x4xi1>
    %111 = vector.broadcast %cst_76 : f32 to vector<10x18x4xf32>
    %112 = arith.select %110, %90, %111 : vector<10x18x4xi1>, vector<10x18x4xf32>
    %113 = arith.truncf %112 : vector<10x18x4xf32> to vector<10x18x4xbf16>
    %114 = vector.extract_strided_slice %113 {offsets = [0, 0, 0], sizes = [8, 16, 4], strides = [1, 1, 1]} : vector<10x18x4xbf16> to vector<8x16x4xbf16>
    %c0_77 = arith.constant 0 : index
    %c0_78 = arith.constant 0 : index
    %c0_79 = arith.constant 0 : index
    %115 = vector.load %arg15[%c0_77, %c0_78, %c0_79] : memref<8x16x36xbf16, #tpu.memory_space<vmem>>, vector<8x16x4xbf16>
    tpu.vector_store %arg15[%c0_77, %c0_78, %c0_79], %114 {strides = array<i32>} : memref<8x16x36xbf16, #tpu.memory_space<vmem>>, vector<8x16x4xbf16>,
    %116 = vector.extract_strided_slice %113 {offsets = [0, 1, 0], sizes = [8, 16, 4], strides = [1, 1, 1]} : vector<10x18x4xbf16> to vector<8x16x4xbf16>
    %c0_80 = arith.constant 0 : index
    %c0_81 = arith.constant 0 : index
    %c4_82 = arith.constant 4 : index
    %117 = vector.load %arg15[%c0_80, %c0_81, %c4_82] : memref<8x16x36xbf16, #tpu.memory_space<vmem>>, vector<8x16x4xbf16>
    tpu.vector_store %arg15[%c0_80, %c0_81, %c4_82], %116 {strides = array<i32>} : memref<8x16x36xbf16, #tpu.memory_space<vmem>>, vector<8x16x4xbf16>,
    %118 = vector.extract_strided_slice %113 {offsets = [0, 2, 0], sizes = [8, 16, 4], strides = [1, 1, 1]} : vector<10x18x4xbf16> to vector<8x16x4xbf16>
    %c0_83 = arith.constant 0 : index
    %c0_84 = arith.constant 0 : index
    %c8_85 = arith.constant 8 : index
    %119 = vector.load %arg15[%c0_83, %c0_84, %c8_85] : memref<8x16x36xbf16, #tpu.memory_space<vmem>>, vector<8x16x4xbf16>
    tpu.vector_store %arg15[%c0_83, %c0_84, %c8_85], %118 {strides = array<i32>} : memref<8x16x36xbf16, #tpu.memory_space<vmem>>, vector<8x16x4xbf16>,
    %120 = vector.extract_strided_slice %113 {offsets = [1, 0, 0], sizes = [8, 16, 4], strides = [1, 1, 1]} : vector<10x18x4xbf16> to vector<8x16x4xbf16>
    %c0_86 = arith.constant 0 : index
    %c0_87 = arith.constant 0 : index
    %c12_88 = arith.constant 12 : index
    %121 = vector.load %arg15[%c0_86, %c0_87, %c12_88] : memref<8x16x36xbf16, #tpu.memory_space<vmem>>, vector<8x16x4xbf16>
    tpu.vector_store %arg15[%c0_86, %c0_87, %c12_88], %120 {strides = array<i32>} : memref<8x16x36xbf16, #tpu.memory_space<vmem>>, vector<8x16x4xbf16>,
    %122 = vector.extract_strided_slice %113 {offsets = [1, 1, 0], sizes = [8, 16, 4], strides = [1, 1, 1]} : vector<10x18x4xbf16> to vector<8x16x4xbf16>
    %c0_89 = arith.constant 0 : index
    %c0_90 = arith.constant 0 : index
    %c16_91 = arith.constant 16 : index
    %123 = vector.load %arg15[%c0_89, %c0_90, %c16_91] : memref<8x16x36xbf16, #tpu.memory_space<vmem>>, vector<8x16x4xbf16>
    tpu.vector_store %arg15[%c0_89, %c0_90, %c16_91], %122 {strides = array<i32>} : memref<8x16x36xbf16, #tpu.memory_space<vmem>>, vector<8x16x4xbf16>,
    %124 = vector.extract_strided_slice %113 {offsets = [1, 2, 0], sizes = [8, 16, 4], strides = [1, 1, 1]} : vector<10x18x4xbf16> to vector<8x16x4xbf16>
    %c0_92 = arith.constant 0 : index
    %c0_93 = arith.constant 0 : index
    %c20_94 = arith.constant 20 : index
    %125 = vector.load %arg15[%c0_92, %c0_93, %c20_94] : memref<8x16x36xbf16, #tpu.memory_space<vmem>>, vector<8x16x4xbf16>
    tpu.vector_store %arg15[%c0_92, %c0_93, %c20_94], %124 {strides = array<i32>} : memref<8x16x36xbf16, #tpu.memory_space<vmem>>, vector<8x16x4xbf16>,
    %126 = vector.extract_strided_slice %113 {offsets = [2, 0, 0], sizes = [8, 16, 4], strides = [1, 1, 1]} : vector<10x18x4xbf16> to vector<8x16x4xbf16>
    %c0_95 = arith.constant 0 : index
    %c0_96 = arith.constant 0 : index
    %c24_97 = arith.constant 24 : index
    %127 = vector.load %arg15[%c0_95, %c0_96, %c24_97] : memref<8x16x36xbf16, #tpu.memory_space<vmem>>, vector<8x16x4xbf16>
    tpu.vector_store %arg15[%c0_95, %c0_96, %c24_97], %126 {strides = array<i32>} : memref<8x16x36xbf16, #tpu.memory_space<vmem>>, vector<8x16x4xbf16>,
    %128 = vector.extract_strided_slice %113 {offsets = [2, 1, 0], sizes = [8, 16, 4], strides = [1, 1, 1]} : vector<10x18x4xbf16> to vector<8x16x4xbf16>
    %c0_98 = arith.constant 0 : index
    %c0_99 = arith.constant 0 : index
    %c28_100 = arith.constant 28 : index
    %129 = vector.load %arg15[%c0_98, %c0_99, %c28_100] : memref<8x16x36xbf16, #tpu.memory_space<vmem>>, vector<8x16x4xbf16>
    tpu.vector_store %arg15[%c0_98, %c0_99, %c28_100], %128 {strides = array<i32>} : memref<8x16x36xbf16, #tpu.memory_space<vmem>>, vector<8x16x4xbf16>,
    %130 = vector.extract_strided_slice %113 {offsets = [2, 2, 0], sizes = [8, 16, 4], strides = [1, 1, 1]} : vector<10x18x4xbf16> to vector<8x16x4xbf16>
    %c0_101 = arith.constant 0 : index
    %c0_102 = arith.constant 0 : index
    %c32_103 = arith.constant 32 : index
    %131 = vector.load %arg15[%c0_101, %c0_102, %c32_103] : memref<8x16x36xbf16, #tpu.memory_space<vmem>>, vector<8x16x4xbf16>
    tpu.vector_store %arg15[%c0_101, %c0_102, %c32_103], %130 {strides = array<i32>} : memref<8x16x36xbf16, #tpu.memory_space<vmem>>, vector<8x16x4xbf16>,
    %c0_104 = arith.constant 0 : index
    %c0_105 = arith.constant 0 : index
    %c0_106 = arith.constant 0 : index
    %132 = vector.load %arg15[%c0_104, %c0_105, %c0_106] : memref<8x16x36xbf16, #tpu.memory_space<vmem>>, vector<8x16x36xbf16>
    %133 = vector.shape_cast %132 : vector<8x16x36xbf16> to vector<128x36xbf16>
    %c0_107 = arith.constant 0 : index
    %c0_108 = arith.constant 0 : index
    %134 = vector.load %arg7[%c0_107, %c0_108] : memref<36x4xbf16, #tpu.memory_space<vmem>>, vector<36x4xbf16>
    %cst_109 = arith.constant dense<0.000000e+00> : vector<128x4xf32>
    %135 = tpu.matmul %133, %134, %cst_109 {dimension_numbers = #tpu.dot_dimension_numbers<[1], [0], [0], [1], [0, 0, 1, 1], [], []>} : vector<128x36xbf16>, vector<36x4xbf16>, vector<128x4xf32> -> vector<128x4xf32>
    %c0_110 = arith.constant 0 : index
    %c0_111 = arith.constant 0 : index
    %136 = vector.load %arg8[%c0_110, %c0_111] : memref<1x4xf32, #tpu.memory_space<vmem>>, vector<1x4xf32>
    %137 = vector.broadcast %136 : vector<1x4xf32> to vector<128x4xf32>
    %138 = arith.addf %135, %137 : vector<128x4xf32>
    %cst_112 = arith.constant 0.000000e+00 : f32
    %139 = vector.broadcast %cst_112 : f32 to vector<128x4xf32>
    %140 = arith.cmpf oge, %138, %139 : vector<128x4xf32>
    %cst_113 = arith.constant 1.000000e-01 : f32
    %141 = vector.broadcast %cst_113 : f32 to vector<128x4xf32>
    %142 = arith.mulf %141, %138 : vector<128x4xf32>
    %143 = arith.select %140, %138, %142 : vector<128x4xi1>, vector<128x4xf32>
    %144 = vector.extract_strided_slice %112 {offsets = [1, 1, 0], sizes = [8, 16, 4], strides = [1, 1, 1]} : vector<10x18x4xf32> to vector<8x16x4xf32>
    %145 = vector.shape_cast %144 : vector<8x16x4xf32> to vector<128x4xf32>
    %146 = arith.truncf %143 : vector<128x4xf32> to vector<128x4xbf16>
    %c0_114 = arith.constant 0 : index
    %c0_115 = arith.constant 0 : index
    %147 = vector.load %arg9[%c0_114, %c0_115] : memref<8x8xbf16, #tpu.memory_space<vmem>>, vector<4x8xbf16>
    %cst_116 = arith.constant dense<0.000000e+00> : vector<128x8xf32>
    %148 = tpu.matmul %146, %147, %cst_116 {dimension_numbers = #tpu.dot_dimension_numbers<[1], [0], [0], [1], [0, 0, 1, 1], [], []>} : vector<128x4xbf16>, vector<4x8xbf16>, vector<128x8xf32> -> vector<128x8xf32>
    %149 = arith.truncf %145 : vector<128x4xf32> to vector<128x4xbf16>
    %c4_117 = arith.constant 4 : index
    %c0_118 = arith.constant 0 : index
    %150 = vector.load %arg9[%c4_117, %c0_118] : memref<8x8xbf16, #tpu.memory_space<vmem>>, vector<4x8xbf16>
    %cst_119 = arith.constant dense<0.000000e+00> : vector<128x8xf32>
    %151 = tpu.matmul %149, %150, %cst_119 {dimension_numbers = #tpu.dot_dimension_numbers<[1], [0], [0], [1], [0, 0, 1, 1], [], []>} : vector<128x4xbf16>, vector<4x8xbf16>, vector<128x8xf32> -> vector<128x8xf32>
    %152 = arith.addf %148, %151 : vector<128x8xf32>
    %c0_120 = arith.constant 0 : index
    %c0_121 = arith.constant 0 : index
    %153 = vector.load %arg10[%c0_120, %c0_121] : memref<1x8xf32, #tpu.memory_space<vmem>>, vector<1x8xf32>
    %154 = vector.broadcast %153 : vector<1x8xf32> to vector<128x8xf32>
    %155 = arith.addf %152, %154 : vector<128x8xf32>
    %cst_122 = arith.constant 0.000000e+00 : f32
    %156 = vector.broadcast %cst_122 : f32 to vector<128x8xf32>
    %157 = arith.cmpf oge, %155, %156 : vector<128x8xf32>
    %cst_123 = arith.constant 1.000000e-01 : f32
    %158 = vector.broadcast %cst_123 : f32 to vector<128x8xf32>
    %159 = arith.mulf %158, %155 : vector<128x8xf32>
    %160 = arith.select %157, %155, %159 : vector<128x8xi1>, vector<128x8xf32>
    %161 = vector.shape_cast %160 : vector<128x8xf32> to vector<1x8x16x8xf32>
    %c0_124 = arith.constant 0 : index
    %c0_125 = arith.constant 0 : index
    %c0_126 = arith.constant 0 : index
    %c0_127 = arith.constant 0 : index
    %162 = vector.load %arg12[%c0_124, %c0_125, %c0_126, %c0_127] : memref<1x8x16x8xf32, #tpu.memory_space<vmem>>, vector<1x8x16x8xf32>
    tpu.vector_store %arg12[%c0_124, %c0_125, %c0_126, %c0_127], %161 {strides = array<i32>} : memref<1x8x16x8xf32, #tpu.memory_space<vmem>>, vector<1x8x16x8xf32>,
    %163 = vector.extract_strided_slice %57 {offsets = [2, 2, 0], sizes = [8, 16, 8], strides = [1, 1, 1]} : vector<12x20x8xf32> to vector<8x16x8xf32>
    %164 = vector.shape_cast %163 : vector<8x16x8xf32> to vector<4x2x8x2x8xf32>
    %cst_128 = arith.constant dense<0xFF800000> : vector<4x2x8x8xf32>
    %165 = vector.multi_reduction <maximumf>, %164, %cst_128 [3] : vector<4x2x8x2x8xf32> to vector<4x2x8x8xf32>
    %cst_129 = arith.constant dense<0xFF800000> : vector<4x8x8xf32>
    %166 = vector.multi_reduction <maximumf>, %165, %cst_129 [1] : vector<4x2x8x8xf32> to vector<4x8x8xf32>
    %c0_130 = arith.constant 0 : index
    %c0_131 = arith.constant 0 : index
    %c0_132 = arith.constant 0 : index
    %c0_133 = arith.constant 0 : index
    %167 = vector.load %arg11[%c0_130, %c0_131, %c0_132, %c0_133] : memref<1x4x8x16xf32, #tpu.memory_space<vmem>>, vector<1x4x8x8xf32>
    %168 = vector.shape_cast %167 : vector<1x4x8x8xf32> to vector<4x8x8xf32>
    %169 = vector.shape_cast %166 : vector<4x8x8xf32> to vector<1x4x8x8xf32>
    tpu.vector_store %arg11[%c0_130, %c0_131, %c0_132, %c0_133], %169 {strides = array<i32>} : memref<1x4x8x16xf32, #tpu.memory_space<vmem>>, vector<1x4x8x8xf32>,
    %170 = vector.shape_cast %160 : vector<128x8xf32> to vector<8x16x8xf32>
    %171 = vector.shape_cast %170 : vector<8x16x8xf32> to vector<4x2x8x2x8xf32>
    %cst_134 = arith.constant dense<0xFF800000> : vector<4x2x8x8xf32>
    %172 = vector.multi_reduction <maximumf>, %171, %cst_134 [3] : vector<4x2x8x2x8xf32> to vector<4x2x8x8xf32>
    %cst_135 = arith.constant dense<0xFF800000> : vector<4x8x8xf32>
    %173 = vector.multi_reduction <maximumf>, %172, %cst_135 [1] : vector<4x2x8x8xf32> to vector<4x8x8xf32>
    %c0_136 = arith.constant 0 : index
    %c0_137 = arith.constant 0 : index
    %c0_138 = arith.constant 0 : index
    %c8_139 = arith.constant 8 : index
    %174 = vector.load %arg11[%c0_136, %c0_137, %c0_138, %c8_139] : memref<1x4x8x16xf32, #tpu.memory_space<vmem>>, vector<1x4x8x8xf32>
    %175 = vector.shape_cast %174 : vector<1x4x8x8xf32> to vector<4x8x8xf32>
    %176 = vector.shape_cast %173 : vector<4x8x8xf32> to vector<1x4x8x8xf32>
    tpu.vector_store %arg11[%c0_136, %c0_137, %c0_138, %c8_139], %176 {strides = array<i32>} : memref<1x4x8x16xf32, #tpu.memory_space<vmem>>, vector<1x4x8x8xf32>,
    return
  }
  func.func @transform_0(%arg0: i32, %arg1: i32) -> (i32, i32, i32, i32) {
    %c0_i32 = arith.constant 0 : i32
    %c0_i32_0 = arith.constant 0 : i32
    %c0_i32_1 = arith.constant 0 : i32
    %c0_i32_2 = arith.constant 0 : i32
    return %arg0, %c0_i32, %c0_i32_0, %c0_i32_1 : i32, i32, i32, i32
  }
  func.func @transform_1(%arg0: i32, %arg1: i32) -> (i32, i32) {
    %c0_i32 = arith.constant 0 : i32
    %c0_i32_0 = arith.constant 0 : i32
    %c0_i32_1 = arith.constant 0 : i32
    return %c0_i32, %c0_i32_0 : i32, i32
  }
  func.func @transform_2(%arg0: i32, %arg1: i32) -> (i32, i32) {
    %c0_i32 = arith.constant 0 : i32
    %c0_i32_0 = arith.constant 0 : i32
    %c0_i32_1 = arith.constant 0 : i32
    return %c0_i32, %c0_i32_0 : i32, i32
  }
  func.func @transform_3(%arg0: i32, %arg1: i32) -> (i32, i32) {
    %c0_i32 = arith.constant 0 : i32
    %c0_i32_0 = arith.constant 0 : i32
    %c0_i32_1 = arith.constant 0 : i32
    return %c0_i32, %c0_i32_0 : i32, i32
  }
  func.func @transform_4(%arg0: i32, %arg1: i32) -> (i32, i32) {
    %c0_i32 = arith.constant 0 : i32
    %c0_i32_0 = arith.constant 0 : i32
    %c0_i32_1 = arith.constant 0 : i32
    return %c0_i32, %c0_i32_0 : i32, i32
  }
  func.func @transform_5(%arg0: i32, %arg1: i32) -> (i32, i32) {
    %c0_i32 = arith.constant 0 : i32
    %c0_i32_0 = arith.constant 0 : i32
    %c0_i32_1 = arith.constant 0 : i32
    return %c0_i32, %c0_i32_0 : i32, i32
  }
  func.func @transform_6(%arg0: i32, %arg1: i32) -> (i32, i32) {
    %c0_i32 = arith.constant 0 : i32
    %c0_i32_0 = arith.constant 0 : i32
    %c0_i32_1 = arith.constant 0 : i32
    return %c0_i32, %c0_i32_0 : i32, i32
  }
  func.func @transform_7(%arg0: i32, %arg1: i32) -> (i32, i32) {
    %c0_i32 = arith.constant 0 : i32
    %c0_i32_0 = arith.constant 0 : i32
    %c0_i32_1 = arith.constant 0 : i32
    return %c0_i32, %c0_i32_0 : i32, i32
  }
  func.func @transform_8(%arg0: i32, %arg1: i32) -> (i32, i32) {
    %c0_i32 = arith.constant 0 : i32
    %c0_i32_0 = arith.constant 0 : i32
    %c0_i32_1 = arith.constant 0 : i32
    return %c0_i32, %c0_i32_0 : i32, i32
  }
  func.func @transform_9(%arg0: i32, %arg1: i32) -> (i32, i32, i32, i32) {
    %c0_i32 = arith.constant 0 : i32
    %c0_i32_0 = arith.constant 0 : i32
    %c0_i32_1 = arith.constant 0 : i32
    return %arg0, %arg1, %c0_i32, %c0_i32_0 : i32, i32, i32, i32
  }
  func.func @transform_10(%arg0: i32, %arg1: i32) -> (i32, i32, i32, i32) {
    %c0_i32 = arith.constant 0 : i32
    %c0_i32_0 = arith.constant 0 : i32
    %c0_i32_1 = arith.constant 0 : i32
    return %arg0, %arg1, %c0_i32, %c0_i32_0 : i32, i32, i32, i32
  }
}

</mosaic_0001>

<llo_original>
// kernel: csp_darknet_tiny_block.1
$region0: #{csp_darknet_tiny_block.1}
  #allocation0 [shape = 'u32[]', space=smem, size = 0x4, offset = 0x4, fixed_abs, tag = 'smem constant byte address 0x4 - core index']
  #allocation1 [shape = 'u32[144,128]{1,0:T(1,128)}', space=vmem, size = 0x12000, scoped, tag = 'internal scratch']
  #allocation2 [shape = 'bf16[12,20,36]{2,1,0:T(8,128)(2,1)}', space=vmem, size = 0x12000, scoped, tag = 'scratch operand']
  #allocation3 [shape = 'bf16[10,18,36]{2,1,0:T(8,128)(2,1)}', space=vmem, size = 0xf000, scoped, tag = 'scratch operand']
  #allocation4 [shape = 'bf16[8,16,36]{2,1,0:T(8,128)(2,1)}', space=vmem, size = 0x8000, scoped, tag = 'scratch operand']
  %s0 = inlined_call_operand.vmem [shape: bf16[2,22,22,4], index: 0, kind: input, shape index: {}]
  %s1 = inlined_call_operand.vmem [shape: bf16[36,8], index: 1, kind: input, shape index: {}]
  %s2 = inlined_call_operand.vmem [shape: f32[1,8], index: 2, kind: input, shape index: {}]
  %s3 = inlined_call_operand.vmem [shape: bf16[36,4], index: 3, kind: input, shape index: {}]
  %s4 = inlined_call_operand.vmem [shape: f32[1,4], index: 4, kind: input, shape index: {}]
  %s5 = inlined_call_operand.vmem [shape: bf16[36,4], index: 5, kind: input, shape index: {}]
  %s6 = inlined_call_operand.vmem [shape: f32[1,4], index: 6, kind: input, shape index: {}]
  %s7 = inlined_call_operand.vmem [shape: bf16[8,8], index: 7, kind: input, shape index: {}]
  %s8 = inlined_call_operand.vmem [shape: f32[1,8], index: 8, kind: input, shape index: {}]
  %s9 = inlined_call_operand.hbm [shape: f32[2,8,8,16], index: 9, kind: output, shape index: {0}]
  %s10 = inlined_call_operand.vmem [shape: f32[2,16,16,8], index: 10, kind: output, shape index: {1}]
  %11 = xla_tuple %s9, %s10
  %s12 = sld [smem:[#allocation0]]
  $region77: #{csp_darknet_tiny_block.1} parent=0
    _
  %s14 = ssub.s32 1, %s12
  %s15 = scalar_select 0, %s14, %s12
  $region1: #{csp_darknet_tiny_block.1} parent=0
    #allocation5 [shape = 'u8[32768]{0}', space=vmem, size = 0x8000, scoped, tag = 'output window, operand 0']
    #allocation6 [shape = 's32[2]{0}', space=sflag, size = 0x8, scoped, tag = 'scoped memory for csp_darknet_tiny_block.1']
    %16 = vsyncpa [#allocation6], 0
    %s17 = scalar_lea.sflag [#allocation6], 1
    %18 = vsyncpa %s17, 0
    loop: start=0, step=1, limit=6
    $region2: #{csp_darknet_tiny_block.1} parent=1 // loop_pre_header
      _
    $region3: #{csp_darknet_tiny_block.1} parent=1 // loop_header
      %s20 = sphi 0, %s24
      %p21 = scmp.ge.s32.totalorder %s20, 6
      %s27 = sphi 0, %s39
      %s28 = sphi 0, %s35
      %s29 = sphi 0, %s27
      %s30 = sphi 0, %s28
      %s31 = sphi 0, %s29
      %s32 = sphi 0, %s30
      %s42 = sphi 0, %s44
      %s45 = sphi 0, %s42
      %s46 = sphi 0, %s45
      %s62 = sphi 0, %s46
      %s66 = sphi 0, %s66
      %s68 = sphi 0, %s66
      %s69 = sphi 0, %s68
      %s83 = sphi 0, %s69
      %s87 = sphi 0, %s87
      %s89 = sphi 0, %s87
      %s90 = sphi 0, %s89
      %s104 = sphi 0, %s90
      %s108 = sphi 0, %s108
      %s110 = sphi 0, %s108
      %s111 = sphi 0, %s110
      %s125 = sphi 0, %s111
      %s129 = sphi 0, %s129
      %s131 = sphi 0, %s129
      %s132 = sphi 0, %s131
      %s146 = sphi 0, %s132
      %s150 = sphi 0, %s150
      %s152 = sphi 0, %s150
      %s153 = sphi 0, %s152
      %s167 = sphi 0, %s153
      %s171 = sphi 0, %s171
      %s173 = sphi 0, %s171
      %s174 = sphi 0, %s173
      %s188 = sphi 0, %s174
      %s192 = sphi 0, %s192
      %s194 = sphi 0, %s192
      %s195 = sphi 0, %s194
      %s209 = sphi 0, %s195
      %s213 = sphi 0, %s213
      %s215 = sphi 0, %s213
      %s216 = sphi 0, %s215
      %s230 = sphi 0, %s216
      %s238 = sphi 0, %s240
      %s241 = sphi 0, %s238
      %s242 = sphi 0, %s241
      %s258 = sphi 0, %s242
      %s266 = sphi 0, %s268
      %s269 = sphi 0, %s266
      %s270 = sphi 0, %s269
      %s286 = sphi 0, %s270
    $region4: #{csp_darknet_tiny_block.1} parent=1 // loop_header_branch
      %23 = sbr.rel (%p21) target = $region8
    $region5: #{csp_darknet_tiny_block.1} parent=1 // loop_body
      %s25 = ssub.s32 %s20, 1
      %s26 = ssub.s32 %s20, 2
      %s33 = sadd.s32 1, %s28
      %p34 = scmp.ge.s32.totalorder %s33, 2
      %s35 = scalar_select %p34, 0, %s33
      %s36 = sadd.s32 1, %s27
      %s37 = scalar_select %p34, %s36, %s27
      %p38 = scmp.ge.s32.totalorder %s37, 2
      %s39 = scalar_select %p38, 0, %s37
      %s40 = ssub.s32 %s27, %s39
      %p41 = scmp.eq.s32.totalorder %s40, 0
      %s43 = sadd.s32 %s42, 1
      %s44 = scalar_select %p41, %s42, %s43
      %p47 = pneg %p41
      %p48 = scmp.eq.s32.totalorder %s20, 3
      %p49 = por %p47, %p48
      %p50 = scmp.ne.s32.totalorder %s42, %s45
      %p51 = scmp.eq.s32.totalorder %s20, 0
      %p52 = por %p50, %p51
      %p53 = scmp.ne.s32.totalorder %s42, %s45
      %p54 = scmp.eq.s32.totalorder %s25, 3
      %p55 = por %p53, %p54
      %p56 = scmp.ne.s32.totalorder %s45, %s46
      %p57 = scmp.eq.s32.totalorder %s25, 0
      %p58 = por %p56, %p57
      %p59 = scmp.ne.s32.totalorder %s45, %s46
      %p60 = scmp.eq.s32.totalorder %s26, 3
      %p61 = por %p59, %p60
      %p63 = scmp.ne.s32.totalorder %s46, %s62
      %p64 = scmp.eq.s32.totalorder %s26, 0
      %p65 = por %p63, %p64
      %s67 = sadd.s32 %s66, 1
      %p70 = scmp.eq.s32.totalorder %s20, 3
      %p71 = scmp.ne.s32.totalorder %s66, %s68
      %p72 = scmp.eq.s32.totalorder %s20, 0
      %p73 = por %p71, %p72
      %p74 = scmp.ne.s32.totalorder %s66, %s68
      %p75 = scmp.eq.s32.totalorder %s25, 3
      %p76 = por %p74, %p75
      %p77 = scmp.ne.s32.totalorder %s68, %s69
      %p78 = scmp.eq.s32.totalorder %s25, 0
      %p79 = por %p77, %p78
      %p80 = scmp.ne.s32.totalorder %s68, %s69
      %p81 = scmp.eq.s32.totalorder %s26, 3
      %p82 = por %p80, %p81
      %p84 = scmp.ne.s32.totalorder %s69, %s83
      %p85 = scmp.eq.s32.totalorder %s26, 0
      %p86 = por %p84, %p85
      %s88 = sadd.s32 %s87, 1
      %p91 = scmp.eq.s32.totalorder %s20, 3
      %p92 = scmp.ne.s32.totalorder %s87, %s89
      %p93 = scmp.eq.s32.totalorder %s20, 0
      %p94 = por %p92, %p93
      %p95 = scmp.ne.s32.totalorder %s87, %s89
      %p96 = scmp.eq.s32.totalorder %s25, 3
      %p97 = por %p95, %p96
      %p98 = scmp.ne.s32.totalorder %s89, %s90
      %p99 = scmp.eq.s32.totalorder %s25, 0
      %p100 = por %p98, %p99
      %p101 = scmp.ne.s32.totalorder %s89, %s90
      %p102 = scmp.eq.s32.totalorder %s26, 3
      %p103 = por %p101, %p102
      %p105 = scmp.ne.s32.totalorder %s90, %s104
      %p106 = scmp.eq.s32.totalorder %s26, 0
      %p107 = por %p105, %p106
      %s109 = sadd.s32 %s108, 1
      %p112 = scmp.eq.s32.totalorder %s20, 3
      %p113 = scmp.ne.s32.totalorder %s108, %s110
      %p114 = scmp.eq.s32.totalorder %s20, 0
      %p115 = por %p113, %p114
      %p116 = scmp.ne.s32.totalorder %s108, %s110
      %p117 = scmp.eq.s32.totalorder %s25, 3
      %p118 = por %p116, %p117
      %p119 = scmp.ne.s32.totalorder %s110, %s111
      %p120 = scmp.eq.s32.totalorder %s25, 0
      %p121 = por %p119, %p120
      %p122 = scmp.ne.s32.totalorder %s110, %s111
      %p123 = scmp.eq.s32.totalorder %s26, 3
      %p124 = por %p122, %p123
      %p126 = scmp.ne.s32.totalorder %s111, %s125
      %p127 = scmp.eq.s32.totalorder %s26, 0
      %p128 = por %p126, %p127
      %s130 = sadd.s32 %s129, 1
      %p133 = scmp.eq.s32.totalorder %s20, 3
      %p134 = scmp.ne.s32.totalorder %s129, %s131
      %p135 = scmp.eq.s32.totalorder %s20, 0
      %p136 = por %p134, %p135
      %p137 = scmp.ne.s32.totalorder %s129, %s131
      %p138 = scmp.eq.s32.totalorder %s25, 3
      %p139 = por %p137, %p138
      %p140 = scmp.ne.s32.totalorder %s131, %s132
      %p141 = scmp.eq.s32.totalorder %s25, 0
      %p142 = por %p140, %p141
      %p143 = scmp.ne.s32.totalorder %s131, %s132
      %p144 = scmp.eq.s32.totalorder %s26, 3
      %p145 = por %p143, %p144
      %p147 = scmp.ne.s32.totalorder %s132, %s146
      %p148 = scmp.eq.s32.totalorder %s26, 0
      %p149 = por %p147, %p148
      %s151 = sadd.s32 %s150, 1
      %p154 = scmp.eq.s32.totalorder %s20, 3
      %p155 = scmp.ne.s32.totalorder %s150, %s152
      %p156 = scmp.eq.s32.totalorder %s20, 0
      %p157 = por %p155, %p156
      %p158 = scmp.ne.s32.totalorder %s150, %s152
      %p159 = scmp.eq.s32.totalorder %s25, 3
      %p160 = por %p158, %p159
      %p161 = scmp.ne.s32.totalorder %s152, %s153
      %p162 = scmp.eq.s32.totalorder %s25, 0
      %p163 = por %p161, %p162
      %p164 = scmp.ne.s32.totalorder %s152, %s153
      %p165 = scmp.eq.s32.totalorder %s26, 3
      %p166 = por %p164, %p165
      %p168 = scmp.ne.s32.totalorder %s153, %s167
      %p169 = scmp.eq.s32.totalorder %s26, 0
      %p170 = por %p168, %p169
      %s172 = sadd.s32 %s171, 1
      %p175 = scmp.eq.s32.totalorder %s20, 3
      %p176 = scmp.ne.s32.totalorder %s171, %s173
      %p177 = scmp.eq.s32.totalorder %s20, 0
      %p178 = por %p176, %p177
      %p179 = scmp.ne.s32.totalorder %s171, %s173
      %p180 = scmp.eq.s32.totalorder %s25, 3
      %p181 = por %p179, %p180
      %p182 = scmp.ne.s32.totalorder %s173, %s174
      %p183 = scmp.eq.s32.totalorder %s25, 0
      %p184 = por %p182, %p183
      %p185 = scmp.ne.s32.totalorder %s173, %s174
      %p186 = scmp.eq.s32.totalorder %s26, 3
      %p187 = por %p185, %p186
      %p189 = scmp.ne.s32.totalorder %s174, %s188
      %p190 = scmp.eq.s32.totalorder %s26, 0
      %p191 = por %p189, %p190
      %s193 = sadd.s32 %s192, 1
      %p196 = scmp.eq.s32.totalorder %s20, 3
      %p197 = scmp.ne.s32.totalorder %s192, %s194
      %p198 = scmp.eq.s32.totalorder %s20, 0
      %p199 = por %p197, %p198
      %p200 = scmp.ne.s32.totalorder %s192, %s194
      %p201 = scmp.eq.s32.totalorder %s25, 3
      %p202 = por %p200, %p201
      %p203 = scmp.ne.s32.totalorder %s194, %s195
      %p204 = scmp.eq.s32.totalorder %s25, 0
      %p205 = por %p203, %p204
      %p206 = scmp.ne.s32.totalorder %s194, %s195
      %p207 = scmp.eq.s32.totalorder %s26, 3
      %p208 = por %p206, %p207
      %p210 = scmp.ne.s32.totalorder %s195, %s209
      %p211 = scmp.eq.s32.totalorder %s26, 0
      %p212 = por %p210, %p211
      %s214 = sadd.s32 %s213, 1
      %p217 = scmp.eq.s32.totalorder %s20, 3
      %p218 = scmp.ne.s32.totalorder %s213, %s215
      %p219 = scmp.eq.s32.totalorder %s20, 0
      %p220 = por %p218, %p219
      %p221 = scmp.ne.s32.totalorder %s213, %s215
      %p222 = scmp.eq.s32.totalorder %s25, 3
      %p223 = por %p221, %p222
      %p224 = scmp.ne.s32.totalorder %s215, %s216
      %p225 = scmp.eq.s32.totalorder %s25, 0
      %p226 = por %p224, %p225
      %p227 = scmp.ne.s32.totalorder %s215, %s216
      %p228 = scmp.eq.s32.totalorder %s26, 3
      %p229 = por %p227, %p228
      %p231 = scmp.ne.s32.totalorder %s216, %s230
      %p232 = scmp.eq.s32.totalorder %s26, 0
      %p233 = por %p231, %p232
      %s234 = ssub.s32 %s27, %s39
      %s235 = ssub.s32 %s28, %s35
      %s236 = sor.u32 %s234, %s235
      %p237 = scmp.eq.s32.totalorder %s236, 0
      %s239 = sadd.s32 %s238, 1
      %s240 = scalar_select %p237, %s238, %s239
      %p243 = pneg %p237
      %p244 = scmp.eq.s32.totalorder %s20, 3
      %p245 = por %p243, %p244
      %p246 = scmp.ne.s32.totalorder %s238, %s241
      %p247 = scmp.eq.s32.totalorder %s20, 0
      %p248 = por %p246, %p247
      %p249 = scmp.ne.s32.totalorder %s238, %s241
      %p250 = scmp.eq.s32.totalorder %s25, 3
      %p251 = por %p249, %p250
      %p252 = scmp.ne.s32.totalorder %s241, %s242
      %p253 = scmp.eq.s32.totalorder %s25, 0
      %p254 = por %p252, %p253
      %p255 = scmp.ne.s32.totalorder %s241, %s242
      %p256 = scmp.eq.s32.totalorder %s26, 3
      %p257 = por %p255, %p256
      %p259 = scmp.ne.s32.totalorder %s242, %s258
      %p260 = scmp.eq.s32.totalorder %s26, 0
      %p261 = por %p259, %p260
      %s262 = ssub.s32 %s27, %s39
      %s263 = ssub.s32 %s28, %s35
      %s264 = sor.u32 %s262, %s263
      %p265 = scmp.eq.s32.totalorder %s264, 0
      %s267 = sadd.s32 %s266, 1
      %s268 = scalar_select %p265, %s266, %s267
      %p271 = pneg %p265
      %p272 = scmp.eq.s32.totalorder %s20, 3
      %p273 = por %p271, %p272
      %p274 = scmp.ne.s32.totalorder %s266, %s269
      %p275 = scmp.eq.s32.totalorder %s20, 0
      %p276 = por %p274, %p275
      %p277 = scmp.ne.s32.totalorder %s266, %s269
      %p278 = scmp.eq.s32.totalorder %s25, 3
      %p279 = por %p277, %p278
      %p280 = scmp.ne.s32.totalorder %s269, %s270
      %p281 = scmp.eq.s32.totalorder %s25, 0
      %p282 = por %p280, %p281
      %p283 = scmp.ne.s32.totalorder %s269, %s270
      %p284 = scmp.eq.s32.totalorder %s26, 3
      %p285 = por %p283, %p284
      %p287 = scmp.ne.s32.totalorder %s270, %s286
      %p288 = scmp.eq.s32.totalorder %s26, 0
      %p289 = por %p287, %p288
      %p290 = scmp.le.s32.totalorder 1, %s20
      %p291 = scmp.lt.s32.totalorder %s20, 5
      %p292 = pnand %p290, %p291
      %p293 = pneg %p292
      // Predicated region
      $region9: #{csp_darknet_tiny_block.1} parent=5 // pred_check
        _
      $region10: #{csp_darknet_tiny_block.1} parent=5 // pred_check_branch
        %295 = sbr.rel (%p292) target = $region12
      $region11: #{csp_darknet_tiny_block.1} parent=5 // pred_region
        %s296 = ssub.s32 %s20, 1
        // Predicated region
        $region13: #{csp_darknet_tiny_block.1} parent=11 // pred_check
          %p297 = pneg %p79
        $region14: #{csp_darknet_tiny_block.1} parent=11 // pred_check_branch
          %299 = sbr.rel (%p297) target = $region16
        $region15: #{csp_darknet_tiny_block.1} parent=11 // pred_region
          _
        $region16: #{csp_darknet_tiny_block.1} parent=11 // pred_fallthru
          _
        // Predicated region
        $region17: #{csp_darknet_tiny_block.1} parent=11 // pred_check
          %p300 = pneg %p100
        $region18: #{csp_darknet_tiny_block.1} parent=11 // pred_check_branch
          %302 = sbr.rel (%p300) target = $region20
        $region19: #{csp_darknet_tiny_block.1} parent=11 // pred_region
          _
        $region20: #{csp_darknet_tiny_block.1} parent=11 // pred_fallthru
          _
        // Predicated region
        $region21: #{csp_darknet_tiny_block.1} parent=11 // pred_check
          %p303 = pneg %p121
        $region22: #{csp_darknet_tiny_block.1} parent=11 // pred_check_branch
          %305 = sbr.rel (%p303) target = $region24
        $region23: #{csp_darknet_tiny_block.1} parent=11 // pred_region
          _
        $region24: #{csp_darknet_tiny_block.1} parent=11 // pred_fallthru
          _
        // Predicated region
        $region25: #{csp_darknet_tiny_block.1} parent=11 // pred_check
          %p306 = pneg %p142
        $region26: #{csp_darknet_tiny_block.1} parent=11 // pred_check_branch
          %308 = sbr.rel (%p306) target = $region28
        $region27: #{csp_darknet_tiny_block.1} parent=11 // pred_region
          _
        $region28: #{csp_darknet_tiny_block.1} parent=11 // pred_fallthru
          _
        // Predicated region
        $region29: #{csp_darknet_tiny_block.1} parent=11 // pred_check
          %p309 = pneg %p163
        $region30: #{csp_darknet_tiny_block.1} parent=11 // pred_check_branch
          %311 = sbr.rel (%p309) target = $region32
        $region31: #{csp_darknet_tiny_block.1} parent=11 // pred_region
          _
        $region32: #{csp_darknet_tiny_block.1} parent=11 // pred_fallthru
          _
        // Predicated region
        $region33: #{csp_darknet_tiny_block.1} parent=11 // pred_check
          %p312 = pneg %p184
        $region34: #{csp_darknet_tiny_block.1} parent=11 // pred_check_branch
          %314 = sbr.rel (%p312) target = $region36
        $region35: #{csp_darknet_tiny_block.1} parent=11 // pred_region
          _
        $region36: #{csp_darknet_tiny_block.1} parent=11 // pred_fallthru
          _
        // Predicated region
        $region37: #{csp_darknet_tiny_block.1} parent=11 // pred_check
          %p315 = pneg %p205
        $region38: #{csp_darknet_tiny_block.1} parent=11 // pred_check_branch
          %317 = sbr.rel (%p315) target = $region40
        $region39: #{csp_darknet_tiny_block.1} parent=11 // pred_region
          _
        $region40: #{csp_darknet_tiny_block.1} parent=11 // pred_fallthru
          _
        // Predicated region
        $region41: #{csp_darknet_tiny_block.1} parent=11 // pred_check
          %p318 = pneg %p226
        $region42: #{csp_darknet_tiny_block.1} parent=11 // pred_check_branch
          %320 = sbr.rel (%p318) target = $region44
        $region43: #{csp_darknet_tiny_block.1} parent=11 // pred_region
          _
        $region44: #{csp_darknet_tiny_block.1} parent=11 // pred_fallthru
          _
      $region12: #{csp_darknet_tiny_block.1} parent=5 // pred_fallthru
        _
      %p321 = scmp.lt.s32.totalorder %s20, 4
      // Predicated region
      $region45: #{csp_darknet_tiny_block.1} parent=5 // pred_check
        %p322 = pneg %p321
      $region46: #{csp_darknet_tiny_block.1} parent=5 // pred_check_branch
        %324 = sbr.rel (%p322) target = $region48
      $region47: #{csp_darknet_tiny_block.1} parent=5 // pred_region
        // Predicated region
        $region49: #{csp_darknet_tiny_block.1} parent=47 // pred_check
          %p325 = pneg %p52
        $region50: #{csp_darknet_tiny_block.1} parent=47 // pred_check_branch
          %327 = sbr.rel (%p325) target = $region52
        $region51: #{csp_darknet_tiny_block.1} parent=47 // pred_region
          %p328 = scmp.lt.s32.totalorder %s27, 1
          %s329 = scalar_select %p328, %s27, 1
          %s330 = smul.addr %s329, 66
          %s331 = smul.addr %s330, 4
          %s332 = scalar_lea.vmem %s0, %s331
        $region52: #{csp_darknet_tiny_block.1} parent=47 // pred_fallthru
          _
      $region48: #{csp_darknet_tiny_block.1} parent=5 // pred_fallthru
        _
      %p333 = scmp.le.s32.totalorder 1, %s20
      %p334 = scmp.lt.s32.totalorder %s20, 5
      %p335 = pnand %p333, %p334
      %p336 = pneg %p335
      // Predicated region
      $region53: #{csp_darknet_tiny_block.1} parent=5 // pred_check
        _
      $region54: #{csp_darknet_tiny_block.1} parent=5 // pred_check_branch
        %338 = sbr.rel (%p335) target = $region56
      $region55: #{csp_darknet_tiny_block.1} parent=5 // pred_region
        %s339 = ssub.s32 %s20, 1
        %p340 = scmp.lt.s32.totalorder %s29, 1
        %s341 = scalar_select %p340, %s29, 1
        %s342 = smul.addr %s341, 66
        %s343 = smul.addr %s342, 4
        %s344 = scalar_lea.vmem %s0, %s343
        %p345 = pneg %p58
        %p346 = pneg %p55
        %p347 = pneg %p79
        %p348 = pneg %p76
        %p349 = pneg %p100
        %p350 = pneg %p97
        %p351 = pneg %p121
        %p352 = pneg %p118
        %p353 = pneg %p142
        %p354 = pneg %p139
        %p355 = pneg %p163
        %p356 = pneg %p160
        %p357 = pneg %p184
        %p358 = pneg %p181
        %p359 = pneg %p205
        %p360 = pneg %p202
        %p361 = pneg %p226
        %p362 = pneg %p223
        %p363 = pneg %p254
        %p364 = pneg %p251
        %s365 = sand.u32 %s241, 1
        %s366 = scalar_lea.sflag [#allocation6], %s365
        %s367 = sand.u32 %s241, 1
        %s368 = smul.addr %s367, 32
        %s369 = scalar_lea.vmem [#allocation5], %s368
        %p370 = pneg %p282
        %p371 = pneg %p279
        %s372 = smul.u32 8, %s30
        %p373 = scmp.lt.s32.totalorder %s29, 1
        %s374 = scalar_select %p373, %s29, 1
        %p375 = scmp.lt.s32.totalorder %s372, 15
        %s376 = scalar_select %p375, %s372, 15
        %s377 = smul.addr %s376, 2
        %s378 = smul.addr %s374, 32
        %s379 = sadd.s32 %s377, %s378
        %s380 = smul.addr %s379, 8
        %s381 = scalar_lea.vmem %s10, %s380
        %p382 = scmp.lt.s32.totalorder %s29, 1
        %s383 = scalar_select %p382, %s29, 1
        %s384 = smul.addr %s383, 66
        %s385 = smul.addr %s384, 4
        %s386 = scalar_lea.vmem %s0, %s385
        %s387 = smul.u32 4, %s30
        %s388 = smul.u32 8, %s30
        %p389 = scmp.lt.s32.totalorder %s29, 1
        %s390 = scalar_select %p389, %s29, 1
        %p391 = scmp.lt.s32.totalorder %s388, 15
        %s392 = scalar_select %p391, %s388, 15
        %s393 = smul.addr %s392, 2
        %s394 = smul.addr %s390, 32
        %s395 = sadd.s32 %s393, %s394
        %s396 = smul.addr %s395, 8
        %s397 = scalar_lea.vmem %s10, %s396
        %s398 = smul.u32 8, %s30
        %s400 = smul.u32 %s30, 8
        %s401 = smul.u32 %s400, 3
        %s402 = smul.addr %s401, 4
        %s403 = scalar_lea.vmem %s386, %s402
        %v404 = vld [vmem:[%s403] sm:$0xf]
        %v405 = vld [vmem:[%s403 + $0x4] sm:$0xf]
        %v406 = vld [vmem:[%s403 + $0x8] sm:$0x7]
        %v407 = vld [vmem:[%s403 + $0xc] sm:$0xf]
        %v408 = vld [vmem:[%s403 + $0x10] sm:$0xf]
        %v409 = vld [vmem:[%s403 + $0x14] sm:$0x7]
        %v410 = vld [vmem:[%s403 + $0x18] sm:$0xf]
        %v411 = vld [vmem:[%s403 + $0x1c] sm:$0xf]
        %v412 = vld [vmem:[%s403 + $0x20] sm:$0x7]
        %v413 = vld [vmem:[%s403 + $0x24] sm:$0xf]
        %v414 = vld [vmem:[%s403 + $0x28] sm:$0xf]
        %v415 = vld [vmem:[%s403 + $0x2c] sm:$0x7]
        %v416 = vld [vmem:[%s403 + $0x30] sm:$0xf]
        %v417 = vld [vmem:[%s403 + $0x34] sm:$0xf]
        %v418 = vld [vmem:[%s403 + $0x38] sm:$0x7]
        %v419 = vld [vmem:[%s403 + $0x3c] sm:$0xf]
        %v420 = vld [vmem:[%s403 + $0x40] sm:$0xf]
        %v421 = vld [vmem:[%s403 + $0x44] sm:$0x7]
        %v422 = vld [vmem:[%s403 + $0x48] sm:$0xf]
        %v423 = vld [vmem:[%s403 + $0x4c] sm:$0xf]
        %v424 = vld [vmem:[%s403 + $0x50] sm:$0x7]
        %v425 = vld [vmem:[%s403 + $0x54] sm:$0xf]
        %v426 = vld [vmem:[%s403 + $0x58] sm:$0xf]
        %v427 = vld [vmem:[%s403 + $0x5c] sm:$0x7]
        %v428 = vld [vmem:[%s403 + $0x60] sm:$0xf]
        %v429 = vld [vmem:[%s403 + $0x64] sm:$0xf]
        %v430 = vld [vmem:[%s403 + $0x68] sm:$0x7]
        %v431 = vld [vmem:[%s403 + $0x6c] sm:$0xf]
        %v432 = vld [vmem:[%s403 + $0x70] sm:$0xf]
        %v433 = vld [vmem:[%s403 + $0x74] sm:$0x7]
        %v434 = vld [vmem:[%s403 + $0x78] sm:$0xf]
        %v435 = vld [vmem:[%s403 + $0x7c] sm:$0xf]
        %v436 = vld [vmem:[%s403 + $0x80] sm:$0x7]
        %v437 = vld [vmem:[%s403 + $0x84] sm:$0xf]
        %v438 = vld [vmem:[%s403 + $0x88] sm:$0xf]
        %v439 = vld [vmem:[%s403 + $0x8c] sm:$0x7]
        %v440 = vld [vmem:[%s403 + $0x90] sm:$0xf]
        %v441 = vld [vmem:[%s403 + $0x94] sm:$0xf]
        %v442 = vld [vmem:[%s403 + $0x98] sm:$0x7]
        %v443 = vld [vmem:[%s403 + $0x9c] sm:$0xf]
        %v444 = vld [vmem:[%s403 + $0xa0] sm:$0xf]
        %v445 = vld [vmem:[%s403 + $0xa4] sm:$0x7]
        %vm446 = vcmask 27648
        %447 = vst.msk [vmem:[#allocation2] sm:$0xf] %vm446, %v404
        %448 = vst.msk [vmem:[#allocation2 + $0x4] sm:$0xf] %vm446, %v405
        %vm449 = vcmask 25600
        %450 = vst.msk [vmem:[#allocation2 + $0x8] sm:$0x3] %vm449, %v406
        %451 = vst.msk [vmem:[#allocation2 + $0xc] sm:$0xf] %vm446, %v407
        %452 = vst.msk [vmem:[#allocation2 + $0x10] sm:$0xf] %vm446, %v408
        %453 = vst.msk [vmem:[#allocation2 + $0x14] sm:$0x3] %vm449, %v409
        %454 = vst.msk [vmem:[#allocation2 + $0x18] sm:$0xf] %vm446, %v410
        %455 = vst.msk [vmem:[#allocation2 + $0x1c] sm:$0xf] %vm446, %v411
        %456 = vst.msk [vmem:[#allocation2 + $0x20] sm:$0x3] %vm449, %v412
        %457 = vst.msk [vmem:[#allocation2 + $0x24] sm:$0xf] %vm446, %v413
        %458 = vst.msk [vmem:[#allocation2 + $0x28] sm:$0xf] %vm446, %v414
        %459 = vst.msk [vmem:[#allocation2 + $0x2c] sm:$0x3] %vm449, %v415
        %460 = vst.msk [vmem:[#allocation2 + $0x30] sm:$0xf] %vm446, %v416
        %461 = vst.msk [vmem:[#allocation2 + $0x34] sm:$0xf] %vm446, %v417
        %462 = vst.msk [vmem:[#allocation2 + $0x38] sm:$0x3] %vm449, %v418
        %463 = vst.msk [vmem:[#allocation2 + $0x3c] sm:$0xf] %vm446, %v419
        %464 = vst.msk [vmem:[#allocation2 + $0x40] sm:$0xf] %vm446, %v420
        %465 = vst.msk [vmem:[#allocation2 + $0x44] sm:$0x3] %vm449, %v421
        %466 = vst.msk [vmem:[#allocation2 + $0x48] sm:$0xf] %vm446, %v422
        %467 = vst.msk [vmem:[#allocation2 + $0x4c] sm:$0xf] %vm446, %v423
        %468 = vst.msk [vmem:[#allocation2 + $0x50] sm:$0x3] %vm449, %v424
        %469 = vst.msk [vmem:[#allocation2 + $0x54] sm:$0xf] %vm446, %v425
        %470 = vst.msk [vmem:[#allocation2 + $0x58] sm:$0xf] %vm446, %v426
        %471 = vst.msk [vmem:[#allocation2 + $0x5c] sm:$0x3] %vm449, %v427
        %472 = vst.msk [vmem:[#allocation2 + $0x60] sm:$0xf] %vm446, %v428
        %473 = vst.msk [vmem:[#allocation2 + $0x64] sm:$0xf] %vm446, %v429
        %474 = vst.msk [vmem:[#allocation2 + $0x68] sm:$0x3] %vm449, %v430
        %475 = vst.msk [vmem:[#allocation2 + $0x6c] sm:$0xf] %vm446, %v431
        %476 = vst.msk [vmem:[#allocation2 + $0x70] sm:$0xf] %vm446, %v432
        %477 = vst.msk [vmem:[#allocation2 + $0x74] sm:$0x3] %vm449, %v433
        %478 = vst.msk [vmem:[#allocation2 + $0x78] sm:$0xf] %vm446, %v434
        %479 = vst.msk [vmem:[#allocation2 + $0x7c] sm:$0xf] %vm446, %v435
        %480 = vst.msk [vmem:[#allocation2 + $0x80] sm:$0x3] %vm449, %v436
        %481 = vst.msk [vmem:[#allocation2 + $0x84] sm:$0xf] %vm446, %v437
        %482 = vst.msk [vmem:[#allocation2 + $0x88] sm:$0xf] %vm446, %v438
        %483 = vst.msk [vmem:[#allocation2 + $0x8c] sm:$0x3] %vm449, %v439
        %vm484 = vsmask.f32 3328
        %vm485 = vsmask.f32 7440
        %vm486 = vmor %vm484, %vm485
        %v488 = vshrl.u32 %v404, 16
        %v490 = vrot.slane %v488, 4
        %v491 = vshll.u32 %v404, 16
        %v493 = vrot.slane %v491, 5
        %v494 = vor.u32 %v490, %v493
        %v495 = vrot.slane %v494, 4
        %v497 = vshll.u32 %v405, 16
        %v499 = vrot.slane %v497, 5
        %v500 = vsel %vm486, %v495, %v499
        %v501 = vshrl.u32 %v405, 16
        %v503 = vrot.slane %v501, 4
        %v504 = vor.u32 %v503, %v499
        %v505 = vrot.slane %v504, 4
        %v507 = vshll.u32 %v406, 16
        %v509 = vrot.slane %v507, 5
        %v510 = vsel %vm486, %v505, %v509
        %v511 = vshrl.u32 %v406, 16
        %v513 = vrot.slane %v511, 4
        %v514 = vor.u32 %v513, %v509
        %v515 = vrot.slane %v514, 4
        %v517 = vshrl.u32 %v407, 16
        %v519 = vrot.slane %v517, 4
        %v520 = vshll.u32 %v407, 16
        %v522 = vrot.slane %v520, 5
        %v523 = vor.u32 %v519, %v522
        %v524 = vrot.slane %v523, 4
        %v526 = vshll.u32 %v408, 16
        %v528 = vrot.slane %v526, 5
        %v529 = vsel %vm486, %v524, %v528
        %v530 = vshrl.u32 %v408, 16
        %v532 = vrot.slane %v530, 4
        %v533 = vor.u32 %v532, %v528
        %v534 = vrot.slane %v533, 4
        %v536 = vshll.u32 %v409, 16
        %v538 = vrot.slane %v536, 5
        %v539 = vsel %vm486, %v534, %v538
        %v540 = vshrl.u32 %v409, 16
        %v542 = vrot.slane %v540, 4
        %v543 = vor.u32 %v542, %v538
        %v544 = vrot.slane %v543, 4
        %v546 = vshrl.u32 %v410, 16
        %v548 = vrot.slane %v546, 4
        %v549 = vshll.u32 %v410, 16
        %v551 = vrot.slane %v549, 5
        %v552 = vor.u32 %v548, %v551
        %v553 = vrot.slane %v552, 4
        %v555 = vshll.u32 %v411, 16
        %v557 = vrot.slane %v555, 5
        %v558 = vsel %vm486, %v553, %v557
        %v559 = vshrl.u32 %v411, 16
        %v561 = vrot.slane %v559, 4
        %v562 = vor.u32 %v561, %v557
        %v563 = vrot.slane %v562, 4
        %v565 = vshll.u32 %v412, 16
        %v567 = vrot.slane %v565, 5
        %v568 = vsel %vm486, %v563, %v567
        %v569 = vshrl.u32 %v412, 16
        %v571 = vrot.slane %v569, 4
        %v572 = vor.u32 %v571, %v567
        %v573 = vrot.slane %v572, 4
        %v575 = vshrl.u32 %v413, 16
        %v577 = vrot.slane %v575, 4
        %v578 = vshll.u32 %v413, 16
        %v580 = vrot.slane %v578, 5
        %v581 = vor.u32 %v577, %v580
        %v582 = vrot.slane %v581, 4
        %v584 = vshll.u32 %v414, 16
        %v586 = vrot.slane %v584, 5
        %v587 = vsel %vm486, %v582, %v586
        %v588 = vshrl.u32 %v414, 16
        %v590 = vrot.slane %v588, 4
        %v591 = vor.u32 %v590, %v586
        %v592 = vrot.slane %v591, 4
        %v594 = vshll.u32 %v415, 16
        %v596 = vrot.slane %v594, 5
        %v597 = vsel %vm486, %v592, %v596
        %v598 = vshrl.u32 %v415, 16
        %v600 = vrot.slane %v598, 4
        %v601 = vor.u32 %v600, %v596
        %v602 = vrot.slane %v601, 4
        %v604 = vshrl.u32 %v416, 16
        %v606 = vrot.slane %v604, 4
        %v607 = vshll.u32 %v416, 16
        %v609 = vrot.slane %v607, 5
        %v610 = vor.u32 %v606, %v609
        %v611 = vrot.slane %v610, 4
        %v613 = vshll.u32 %v417, 16
        %v615 = vrot.slane %v613, 5
        %v616 = vsel %vm486, %v611, %v615
        %v617 = vshrl.u32 %v417, 16
        %v619 = vrot.slane %v617, 4
        %v620 = vor.u32 %v619, %v615
        %v621 = vrot.slane %v620, 4
        %v623 = vshll.u32 %v418, 16
        %v625 = vrot.slane %v623, 5
        %v626 = vsel %vm486, %v621, %v625
        %v627 = vshrl.u32 %v418, 16
        %v629 = vrot.slane %v627, 4
        %v630 = vor.u32 %v629, %v625
        %v631 = vrot.slane %v630, 4
        %v633 = vshrl.u32 %v419, 16
        %v635 = vrot.slane %v633, 4
        %v636 = vshll.u32 %v419, 16
        %v638 = vrot.slane %v636, 5
        %v639 = vor.u32 %v635, %v638
        %v640 = vrot.slane %v639, 4
        %v642 = vshll.u32 %v420, 16
        %v644 = vrot.slane %v642, 5
        %v645 = vsel %vm486, %v640, %v644
        %v646 = vshrl.u32 %v420, 16
        %v648 = vrot.slane %v646, 4
        %v649 = vor.u32 %v648, %v644
        %v650 = vrot.slane %v649, 4
        %v652 = vshll.u32 %v421, 16
        %v654 = vrot.slane %v652, 5
        %v655 = vsel %vm486, %v650, %v654
        %v656 = vshrl.u32 %v421, 16
        %v658 = vrot.slane %v656, 4
        %v659 = vor.u32 %v658, %v654
        %v660 = vrot.slane %v659, 4
        %v662 = vshrl.u32 %v422, 16
        %v664 = vrot.slane %v662, 4
        %v665 = vshll.u32 %v422, 16
        %v667 = vrot.slane %v665, 5
        %v668 = vor.u32 %v664, %v667
        %v669 = vrot.slane %v668, 4
        %v671 = vshll.u32 %v423, 16
        %v673 = vrot.slane %v671, 5
        %v674 = vsel %vm486, %v669, %v673
        %v675 = vshrl.u32 %v423, 16
        %v677 = vrot.slane %v675, 4
        %v678 = vor.u32 %v677, %v673
        %v679 = vrot.slane %v678, 4
        %v681 = vshll.u32 %v424, 16
        %v683 = vrot.slane %v681, 5
        %v684 = vsel %vm486, %v679, %v683
        %v685 = vshrl.u32 %v424, 16
        %v687 = vrot.slane %v685, 4
        %v688 = vor.u32 %v687, %v683
        %v689 = vrot.slane %v688, 4
        %v691 = vshrl.u32 %v425, 16
        %v693 = vrot.slane %v691, 4
        %v694 = vshll.u32 %v425, 16
        %v696 = vrot.slane %v694, 5
        %v697 = vor.u32 %v693, %v696
        %v698 = vrot.slane %v697, 4
        %v700 = vshll.u32 %v426, 16
        %v702 = vrot.slane %v700, 5
        %v703 = vsel %vm486, %v698, %v702
        %v704 = vshrl.u32 %v426, 16
        %v706 = vrot.slane %v704, 4
        %v707 = vor.u32 %v706, %v702
        %v708 = vrot.slane %v707, 4
        %v710 = vshll.u32 %v427, 16
        %v712 = vrot.slane %v710, 5
        %v713 = vsel %vm486, %v708, %v712
        %v714 = vshrl.u32 %v427, 16
        %v716 = vrot.slane %v714, 4
        %v717 = vor.u32 %v716, %v712
        %v718 = vrot.slane %v717, 4
        %v720 = vshrl.u32 %v428, 16
        %v722 = vrot.slane %v720, 4
        %v723 = vshll.u32 %v428, 16
        %v725 = vrot.slane %v723, 5
        %v726 = vor.u32 %v722, %v725
        %v727 = vrot.slane %v726, 4
        %v729 = vshll.u32 %v429, 16
        %v731 = vrot.slane %v729, 5
        %v732 = vsel %vm486, %v727, %v731
        %v733 = vshrl.u32 %v429, 16
        %v735 = vrot.slane %v733, 4
        %v736 = vor.u32 %v735, %v731
        %v737 = vrot.slane %v736, 4
        %v739 = vshll.u32 %v430, 16
        %v741 = vrot.slane %v739, 5
        %v742 = vsel %vm486, %v737, %v741
        %v743 = vshrl.u32 %v430, 16
        %v745 = vrot.slane %v743, 4
        %v746 = vor.u32 %v745, %v741
        %v747 = vrot.slane %v746, 4
        %v749 = vshrl.u32 %v431, 16
        %v751 = vrot.slane %v749, 4
        %v752 = vshll.u32 %v431, 16
        %v754 = vrot.slane %v752, 5
        %v755 = vor.u32 %v751, %v754
        %v756 = vrot.slane %v755, 4
        %v758 = vshll.u32 %v432, 16
        %v760 = vrot.slane %v758, 5
        %v761 = vsel %vm486, %v756, %v760
        %v762 = vshrl.u32 %v432, 16
        %v764 = vrot.slane %v762, 4
        %v765 = vor.u32 %v764, %v760
        %v766 = vrot.slane %v765, 4
        %v768 = vshll.u32 %v433, 16
        %v770 = vrot.slane %v768, 5
        %v771 = vsel %vm486, %v766, %v770
        %v772 = vshrl.u32 %v433, 16
        %v774 = vrot.slane %v772, 4
        %v775 = vor.u32 %v774, %v770
        %v776 = vrot.slane %v775, 4
        %v778 = vshrl.u32 %v434, 16
        %v780 = vrot.slane %v778, 4
        %v781 = vshll.u32 %v434, 16
        %v783 = vrot.slane %v781, 5
        %v784 = vor.u32 %v780, %v783
        %v785 = vrot.slane %v784, 4
        %v787 = vshll.u32 %v435, 16
        %v789 = vrot.slane %v787, 5
        %v790 = vsel %vm486, %v785, %v789
        %v791 = vshrl.u32 %v435, 16
        %v793 = vrot.slane %v791, 4
        %v794 = vor.u32 %v793, %v789
        %v795 = vrot.slane %v794, 4
        %v797 = vshll.u32 %v436, 16
        %v799 = vrot.slane %v797, 5
        %v800 = vsel %vm486, %v795, %v799
        %v801 = vshrl.u32 %v436, 16
        %v803 = vrot.slane %v801, 4
        %v804 = vor.u32 %v803, %v799
        %v805 = vrot.slane %v804, 4
        %v807 = vshrl.u32 %v437, 16
        %v809 = vrot.slane %v807, 4
        %v810 = vshll.u32 %v437, 16
        %v812 = vrot.slane %v810, 5
        %v813 = vor.u32 %v809, %v812
        %v814 = vrot.slane %v813, 4
        %v816 = vshll.u32 %v438, 16
        %v818 = vrot.slane %v816, 5
        %v819 = vsel %vm486, %v814, %v818
        %v820 = vshrl.u32 %v438, 16
        %v822 = vrot.slane %v820, 4
        %v823 = vor.u32 %v822, %v818
        %v824 = vrot.slane %v823, 4
        %v826 = vshll.u32 %v439, 16
        %v828 = vrot.slane %v826, 5
        %v829 = vsel %vm486, %v824, %v828
        %v830 = vshrl.u32 %v439, 16
        %v832 = vrot.slane %v830, 4
        %v833 = vor.u32 %v832, %v828
        %v834 = vrot.slane %v833, 4
        %835 = vrot.lane.b32.xlu0 %v500, 4
        %v836 = vpop.permute.xlu0 %835
        %837 = vrot.lane.b32.xlu0 %v510, 4
        %v838 = vpop.permute.xlu0 %837
        %839 = vrot.lane.b32.xlu0 %v515, 4
        %v840 = vpop.permute.xlu0 %839
        %841 = vrot.lane.b32.xlu0 %v529, 4
        %v842 = vpop.permute.xlu0 %841
        %843 = vrot.lane.b32.xlu0 %v539, 4
        %v844 = vpop.permute.xlu0 %843
        %845 = vrot.lane.b32.xlu0 %v544, 4
        %v846 = vpop.permute.xlu0 %845
        %847 = vrot.lane.b32.xlu0 %v558, 4
        %v848 = vpop.permute.xlu0 %847
        %849 = vrot.lane.b32.xlu0 %v568, 4
        %v850 = vpop.permute.xlu0 %849
        %851 = vrot.lane.b32.xlu0 %v573, 4
        %v852 = vpop.permute.xlu0 %851
        %853 = vrot.lane.b32.xlu0 %v587, 4
        %v854 = vpop.permute.xlu0 %853
        %855 = vrot.lane.b32.xlu0 %v597, 4
        %v856 = vpop.permute.xlu0 %855
        %857 = vrot.lane.b32.xlu0 %v602, 4
        %v858 = vpop.permute.xlu0 %857
        %859 = vrot.lane.b32.xlu0 %v616, 4
        %v860 = vpop.permute.xlu0 %859
        %861 = vrot.lane.b32.xlu0 %v626, 4
        %v862 = vpop.permute.xlu0 %861
        %863 = vrot.lane.b32.xlu0 %v631, 4
        %v864 = vpop.permute.xlu0 %863
        %865 = vrot.lane.b32.xlu0 %v645, 4
        %v866 = vpop.permute.xlu0 %865
        %867 = vrot.lane.b32.xlu0 %v655, 4
        %v868 = vpop.permute.xlu0 %867
        %869 = vrot.lane.b32.xlu0 %v660, 4
        %v870 = vpop.permute.xlu0 %869
        %871 = vrot.lane.b32.xlu0 %v674, 4
        %v872 = vpop.permute.xlu0 %871
        %873 = vrot.lane.b32.xlu0 %v684, 4
        %v874 = vpop.permute.xlu0 %873
        %875 = vrot.lane.b32.xlu0 %v689, 4
        %v876 = vpop.permute.xlu0 %875
        %877 = vrot.lane.b32.xlu0 %v703, 4
        %v878 = vpop.permute.xlu0 %877
        %879 = vrot.lane.b32.xlu0 %v713, 4
        %v880 = vpop.permute.xlu0 %879
        %881 = vrot.lane.b32.xlu0 %v718, 4
        %v882 = vpop.permute.xlu0 %881
        %883 = vrot.lane.b32.xlu0 %v732, 4
        %v884 = vpop.permute.xlu0 %883
        %885 = vrot.lane.b32.xlu0 %v742, 4
        %v886 = vpop.permute.xlu0 %885
        %887 = vrot.lane.b32.xlu0 %v747, 4
        %v888 = vpop.permute.xlu0 %887
        %889 = vrot.lane.b32.xlu0 %v761, 4
        %v890 = vpop.permute.xlu0 %889
        %891 = vrot.lane.b32.xlu0 %v771, 4
        %v892 = vpop.permute.xlu0 %891
        %893 = vrot.lane.b32.xlu0 %v776, 4
        %v894 = vpop.permute.xlu0 %893
        %895 = vrot.lane.b32.xlu0 %v790, 4
        %v896 = vpop.permute.xlu0 %895
        %897 = vrot.lane.b32.xlu0 %v800, 4
        %v898 = vpop.permute.xlu0 %897
        %899 = vrot.lane.b32.xlu0 %v805, 4
        %v900 = vpop.permute.xlu0 %899
        %901 = vrot.lane.b32.xlu0 %v819, 4
        %v902 = vpop.permute.xlu0 %901
        %903 = vrot.lane.b32.xlu0 %v829, 4
        %v904 = vpop.permute.xlu0 %903
        %905 = vrot.lane.b32.xlu0 %v834, 4
        %v906 = vpop.permute.xlu0 %905
        %vm943 = vcmask 60448
        %944 = vst.msk [vmem:[#allocation2] sm:$0xf] %vm943, %v836
        %945 = vst.msk [vmem:[#allocation2 + $0x4] sm:$0xf] %vm943, %v838
        %vm946 = vcmask 58400
        %947 = vst.msk [vmem:[#allocation2 + $0x8] sm:$0x3] %vm946, %v840
        %948 = vst.msk [vmem:[#allocation2 + $0xc] sm:$0xf] %vm943, %v842
        %949 = vst.msk [vmem:[#allocation2 + $0x10] sm:$0xf] %vm943, %v844
        %950 = vst.msk [vmem:[#allocation2 + $0x14] sm:$0x3] %vm946, %v846
        %951 = vst.msk [vmem:[#allocation2 + $0x18] sm:$0xf] %vm943, %v848
        %952 = vst.msk [vmem:[#allocation2 + $0x1c] sm:$0xf] %vm943, %v850
        %953 = vst.msk [vmem:[#allocation2 + $0x20] sm:$0x3] %vm946, %v852
        %954 = vst.msk [vmem:[#allocation2 + $0x24] sm:$0xf] %vm943, %v854
        %955 = vst.msk [vmem:[#allocation2 + $0x28] sm:$0xf] %vm943, %v856
        %956 = vst.msk [vmem:[#allocation2 + $0x2c] sm:$0x3] %vm946, %v858
        %957 = vst.msk [vmem:[#allocation2 + $0x30] sm:$0xf] %vm943, %v860
        %958 = vst.msk [vmem:[#allocation2 + $0x34] sm:$0xf] %vm943, %v862
        %959 = vst.msk [vmem:[#allocation2 + $0x38] sm:$0x3] %vm946, %v864
        %960 = vst.msk [vmem:[#allocation2 + $0x3c] sm:$0xf] %vm943, %v866
        %961 = vst.msk [vmem:[#allocation2 + $0x40] sm:$0xf] %vm943, %v868
        %962 = vst.msk [vmem:[#allocation2 + $0x44] sm:$0x3] %vm946, %v870
        %963 = vst.msk [vmem:[#allocation2 + $0x48] sm:$0xf] %vm943, %v872
        %964 = vst.msk [vmem:[#allocation2 + $0x4c] sm:$0xf] %vm943, %v874
        %965 = vst.msk [vmem:[#allocation2 + $0x50] sm:$0x3] %vm946, %v876
        %966 = vst.msk [vmem:[#allocation2 + $0x54] sm:$0xf] %vm943, %v878
        %967 = vst.msk [vmem:[#allocation2 + $0x58] sm:$0xf] %vm943, %v880
        %968 = vst.msk [vmem:[#allocation2 + $0x5c] sm:$0x3] %vm946, %v882
        %969 = vst.msk [vmem:[#allocation2 + $0x60] sm:$0xf] %vm943, %v884
        %970 = vst.msk [vmem:[#allocation2 + $0x64] sm:$0xf] %vm943, %v886
        %971 = vst.msk [vmem:[#allocation2 + $0x68] sm:$0x3] %vm946, %v888
        %972 = vst.msk [vmem:[#allocation2 + $0x6c] sm:$0xf] %vm943, %v890
        %973 = vst.msk [vmem:[#allocation2 + $0x70] sm:$0xf] %vm943, %v892
        %974 = vst.msk [vmem:[#allocation2 + $0x74] sm:$0x3] %vm946, %v894
        %975 = vst.msk [vmem:[#allocation2 + $0x78] sm:$0xf] %vm943, %v896
        %976 = vst.msk [vmem:[#allocation2 + $0x7c] sm:$0xf] %vm943, %v898
        %977 = vst.msk [vmem:[#allocation2 + $0x80] sm:$0x3] %vm946, %v900
        %978 = vst.msk [vmem:[#allocation2 + $0x84] sm:$0xf] %vm943, %v902
        %979 = vst.msk [vmem:[#allocation2 + $0x88] sm:$0xf] %vm943, %v904
        %980 = vst.msk [vmem:[#allocation2 + $0x8c] sm:$0x3] %vm946, %v906
        %vm1017 = vcmask 1042432
        %vm1018 = vcmask 1046532
        %vm1019 = vmor %vm1017, %vm1018
        %v1020 = vrot.slane %v404, 5
        %v1021 = vrot.slane %v1020, 4
        %v1022 = vrot.slane %v405, 5
        %v1023 = vsel %vm1019, %v1021, %v1022
        %v1024 = vrot.slane %v1022, 4
        %v1025 = vrot.slane %v406, 5
        %v1026 = vsel %vm1019, %v1024, %v1025
        %v1027 = vrot.slane %v1025, 4
        %v1028 = vrot.slane %v407, 5
        %v1029 = vrot.slane %v1028, 4
        %v1030 = vrot.slane %v408, 5
        %v1031 = vsel %vm1019, %v1029, %v1030
        %v1032 = vrot.slane %v1030, 4
        %v1033 = vrot.slane %v409, 5
        %v1034 = vsel %vm1019, %v1032, %v1033
        %v1035 = vrot.slane %v1033, 4
        %v1036 = vrot.slane %v410, 5
        %v1037 = vrot.slane %v1036, 4
        %v1038 = vrot.slane %v411, 5
        %v1039 = vsel %vm1019, %v1037, %v1038
        %v1040 = vrot.slane %v1038, 4
        %v1041 = vrot.slane %v412, 5
        %v1042 = vsel %vm1019, %v1040, %v1041
        %v1043 = vrot.slane %v1041, 4
        %v1044 = vrot.slane %v413, 5
        %v1045 = vrot.slane %v1044, 4
        %v1046 = vrot.slane %v414, 5
        %v1047 = vsel %vm1019, %v1045, %v1046
        %v1048 = vrot.slane %v1046, 4
        %v1049 = vrot.slane %v415, 5
        %v1050 = vsel %vm1019, %v1048, %v1049
        %v1051 = vrot.slane %v1049, 4
        %v1052 = vrot.slane %v416, 5
        %v1053 = vrot.slane %v1052, 4
        %v1054 = vrot.slane %v417, 5
        %v1055 = vsel %vm1019, %v1053, %v1054
        %v1056 = vrot.slane %v1054, 4
        %v1057 = vrot.slane %v418, 5
        %v1058 = vsel %vm1019, %v1056, %v1057
        %v1059 = vrot.slane %v1057, 4
        %v1060 = vrot.slane %v419, 5
        %v1061 = vrot.slane %v1060, 4
        %v1062 = vrot.slane %v420, 5
        %v1063 = vsel %vm1019, %v1061, %v1062
        %v1064 = vrot.slane %v1062, 4
        %v1065 = vrot.slane %v421, 5
        %v1066 = vsel %vm1019, %v1064, %v1065
        %v1067 = vrot.slane %v1065, 4
        %v1068 = vrot.slane %v422, 5
        %v1069 = vrot.slane %v1068, 4
        %v1070 = vrot.slane %v423, 5
        %v1071 = vsel %vm1019, %v1069, %v1070
        %v1072 = vrot.slane %v1070, 4
        %v1073 = vrot.slane %v424, 5
        %v1074 = vsel %vm1019, %v1072, %v1073
        %v1075 = vrot.slane %v1073, 4
        %v1076 = vrot.slane %v425, 5
        %v1077 = vrot.slane %v1076, 4
        %v1078 = vrot.slane %v426, 5
        %v1079 = vsel %vm1019, %v1077, %v1078
        %v1080 = vrot.slane %v1078, 4
        %v1081 = vrot.slane %v427, 5
        %v1082 = vsel %vm1019, %v1080, %v1081
        %v1083 = vrot.slane %v1081, 4
        %v1084 = vrot.slane %v428, 5
        %v1085 = vrot.slane %v1084, 4
        %v1086 = vrot.slane %v429, 5
        %v1087 = vsel %vm1019, %v1085, %v1086
        %v1088 = vrot.slane %v1086, 4
        %v1089 = vrot.slane %v430, 5
        %v1090 = vsel %vm1019, %v1088, %v1089
        %v1091 = vrot.slane %v1089, 4
        %v1092 = vrot.slane %v431, 5
        %v1093 = vrot.slane %v1092, 4
        %v1094 = vrot.slane %v432, 5
        %v1095 = vsel %vm1019, %v1093, %v1094
        %v1096 = vrot.slane %v1094, 4
        %v1097 = vrot.slane %v433, 5
        %v1098 = vsel %vm1019, %v1096, %v1097
        %v1099 = vrot.slane %v1097, 4
        %v1100 = vrot.slane %v434, 5
        %v1101 = vrot.slane %v1100, 4
        %v1102 = vrot.slane %v435, 5
        %v1103 = vsel %vm1019, %v1101, %v1102
        %v1104 = vrot.slane %v1102, 4
        %v1105 = vrot.slane %v436, 5
        %v1106 = vsel %vm1019, %v1104, %v1105
        %v1107 = vrot.slane %v1105, 4
        %v1108 = vrot.slane %v437, 5
        %v1109 = vrot.slane %v1108, 4
        %v1110 = vrot.slane %v438, 5
        %v1111 = vsel %vm1019, %v1109, %v1110
        %v1112 = vrot.slane %v1110, 4
        %v1113 = vrot.slane %v439, 5
        %v1114 = vsel %vm1019, %v1112, %v1113
        %v1115 = vrot.slane %v1113, 4
        %1116 = vrot.lane.b32.xlu0 %v1023, 8
        %v1117 = vpop.permute.xlu0 %1116
        %1118 = vrot.lane.b32.xlu0 %v1026, 8
        %v1119 = vpop.permute.xlu0 %1118
        %1120 = vrot.lane.b32.xlu0 %v1027, 8
        %v1121 = vpop.permute.xlu0 %1120
        %1122 = vrot.lane.b32.xlu0 %v1031, 8
        %v1123 = vpop.permute.xlu0 %1122
        %1124 = vrot.lane.b32.xlu0 %v1034, 8
        %v1125 = vpop.permute.xlu0 %1124
        %1126 = vrot.lane.b32.xlu0 %v1035, 8
        %v1127 = vpop.permute.xlu0 %1126
        %1128 = vrot.lane.b32.xlu0 %v1039, 8
        %v1129 = vpop.permute.xlu0 %1128
        %1130 = vrot.lane.b32.xlu0 %v1042, 8
        %v1131 = vpop.permute.xlu0 %1130
        %1132 = vrot.lane.b32.xlu0 %v1043, 8
        %v1133 = vpop.permute.xlu0 %1132
        %1134 = vrot.lane.b32.xlu0 %v1047, 8
        %v1135 = vpop.permute.xlu0 %1134
        %1136 = vrot.lane.b32.xlu0 %v1050, 8
        %v1137 = vpop.permute.xlu0 %1136
        %1138 = vrot.lane.b32.xlu0 %v1051, 8
        %v1139 = vpop.permute.xlu0 %1138
        %1140 = vrot.lane.b32.xlu0 %v1055, 8
        %v1141 = vpop.permute.xlu0 %1140
        %1142 = vrot.lane.b32.xlu0 %v1058, 8
        %v1143 = vpop.permute.xlu0 %1142
        %1144 = vrot.lane.b32.xlu0 %v1059, 8
        %v1145 = vpop.permute.xlu0 %1144
        %1146 = vrot.lane.b32.xlu0 %v1063, 8
        %v1147 = vpop.permute.xlu0 %1146
        %1148 = vrot.lane.b32.xlu0 %v1066, 8
        %v1149 = vpop.permute.xlu0 %1148
        %1150 = vrot.lane.b32.xlu0 %v1067, 8
        %v1151 = vpop.permute.xlu0 %1150
        %1152 = vrot.lane.b32.xlu0 %v1071, 8
        %v1153 = vpop.permute.xlu0 %1152
        %1154 = vrot.lane.b32.xlu0 %v1074, 8
        %v1155 = vpop.permute.xlu0 %1154
        %1156 = vrot.lane.b32.xlu0 %v1075, 8
        %v1157 = vpop.permute.xlu0 %1156
        %1158 = vrot.lane.b32.xlu0 %v1079, 8
        %v1159 = vpop.permute.xlu0 %1158
        %1160 = vrot.lane.b32.xlu0 %v1082, 8
        %v1161 = vpop.permute.xlu0 %1160
        %1162 = vrot.lane.b32.xlu0 %v1083, 8
        %v1163 = vpop.permute.xlu0 %1162
        %1164 = vrot.lane.b32.xlu0 %v1087, 8
        %v1165 = vpop.permute.xlu0 %1164
        %1166 = vrot.lane.b32.xlu0 %v1090, 8
        %v1167 = vpop.permute.xlu0 %1166
        %1168 = vrot.lane.b32.xlu0 %v1091, 8
        %v1169 = vpop.permute.xlu0 %1168
        %1170 = vrot.lane.b32.xlu0 %v1095, 8
        %v1171 = vpop.permute.xlu0 %1170
        %1172 = vrot.lane.b32.xlu0 %v1098, 8
        %v1173 = vpop.permute.xlu0 %1172
        %1174 = vrot.lane.b32.xlu0 %v1099, 8
        %v1175 = vpop.permute.xlu0 %1174
        %1176 = vrot.lane.b32.xlu0 %v1103, 8
        %v1177 = vpop.permute.xlu0 %1176
        %1178 = vrot.lane.b32.xlu0 %v1106, 8
        %v1179 = vpop.permute.xlu0 %1178
        %1180 = vrot.lane.b32.xlu0 %v1107, 8
        %v1181 = vpop.permute.xlu0 %1180
        %1182 = vrot.lane.b32.xlu0 %v1111, 8
        %v1183 = vpop.permute.xlu0 %1182
        %1184 = vrot.lane.b32.xlu0 %v1114, 8
        %v1185 = vpop.permute.xlu0 %1184
        %1186 = vrot.lane.b32.xlu0 %v1115, 8
        %v1187 = vpop.permute.xlu0 %1186
        %vm1224 = vcmask 93248
        %1225 = vst.msk [vmem:[#allocation2] sm:$0xf] %vm1224, %v1117
        %1226 = vst.msk [vmem:[#allocation2 + $0x4] sm:$0xf] %vm1224, %v1119
        %vm1227 = vcmask 91200
        %1228 = vst.msk [vmem:[#allocation2 + $0x8] sm:$0x3] %vm1227, %v1121
        %1229 = vst.msk [vmem:[#allocation2 + $0xc] sm:$0xf] %vm1224, %v1123
        %1230 = vst.msk [vmem:[#allocation2 + $0x10] sm:$0xf] %vm1224, %v1125
        %1231 = vst.msk [vmem:[#allocation2 + $0x14] sm:$0x3] %vm1227, %v1127
        %1232 = vst.msk [vmem:[#allocation2 + $0x18] sm:$0xf] %vm1224, %v1129
        %1233 = vst.msk [vmem:[#allocation2 + $0x1c] sm:$0xf] %vm1224, %v1131
        %1234 = vst.msk [vmem:[#allocation2 + $0x20] sm:$0x3] %vm1227, %v1133
        %1235 = vst.msk [vmem:[#allocation2 + $0x24] sm:$0xf] %vm1224, %v1135
        %1236 = vst.msk [vmem:[#allocation2 + $0x28] sm:$0xf] %vm1224, %v1137
        %1237 = vst.msk [vmem:[#allocation2 + $0x2c] sm:$0x3] %vm1227, %v1139
        %1238 = vst.msk [vmem:[#allocation2 + $0x30] sm:$0xf] %vm1224, %v1141
        %1239 = vst.msk [vmem:[#allocation2 + $0x34] sm:$0xf] %vm1224, %v1143
        %1240 = vst.msk [vmem:[#allocation2 + $0x38] sm:$0x3] %vm1227, %v1145
        %1241 = vst.msk [vmem:[#allocation2 + $0x3c] sm:$0xf] %vm1224, %v1147
        %1242 = vst.msk [vmem:[#allocation2 + $0x40] sm:$0xf] %vm1224, %v1149
        %1243 = vst.msk [vmem:[#allocation2 + $0x44] sm:$0x3] %vm1227, %v1151
        %1244 = vst.msk [vmem:[#allocation2 + $0x48] sm:$0xf] %vm1224, %v1153
        %1245 = vst.msk [vmem:[#allocation2 + $0x4c] sm:$0xf] %vm1224, %v1155
        %1246 = vst.msk [vmem:[#allocation2 + $0x50] sm:$0x3] %vm1227, %v1157
        %1247 = vst.msk [vmem:[#allocation2 + $0x54] sm:$0xf] %vm1224, %v1159
        %1248 = vst.msk [vmem:[#allocation2 + $0x58] sm:$0xf] %vm1224, %v1161
        %1249 = vst.msk [vmem:[#allocation2 + $0x5c] sm:$0x3] %vm1227, %v1163
        %1250 = vst.msk [vmem:[#allocation2 + $0x60] sm:$0xf] %vm1224, %v1165
        %1251 = vst.msk [vmem:[#allocation2 + $0x64] sm:$0xf] %vm1224, %v1167
        %1252 = vst.msk [vmem:[#allocation2 + $0x68] sm:$0x3] %vm1227, %v1169
        %1253 = vst.msk [vmem:[#allocation2 + $0x6c] sm:$0xf] %vm1224, %v1171
        %1254 = vst.msk [vmem:[#allocation2 + $0x70] sm:$0xf] %vm1224, %v1173
        %1255 = vst.msk [vmem:[#allocation2 + $0x74] sm:$0x3] %vm1227, %v1175
        %1256 = vst.msk [vmem:[#allocation2 + $0x78] sm:$0xf] %vm1224, %v1177
        %1257 = vst.msk [vmem:[#allocation2 + $0x7c] sm:$0xf] %vm1224, %v1179
        %1258 = vst.msk [vmem:[#allocation2 + $0x80] sm:$0x3] %vm1227, %v1181
        %1259 = vst.msk [vmem:[#allocation2 + $0x84] sm:$0xf] %vm1224, %v1183
        %1260 = vst.msk [vmem:[#allocation2 + $0x88] sm:$0xf] %vm1224, %v1185
        %1261 = vst.msk [vmem:[#allocation2 + $0x8c] sm:$0x3] %vm1227, %v1187
        %1265 = vrot.lane.b32.xlu0 %v407, 12
        %v1266 = vpop.permute.xlu0 %1265
        %1267 = vrot.lane.b32.xlu0 %v408, 12
        %v1268 = vpop.permute.xlu0 %1267
        %1269 = vrot.lane.b32.xlu0 %v409, 12
        %v1270 = vpop.permute.xlu0 %1269
        %1271 = vrot.lane.b32.xlu0 %v410, 12
        %v1272 = vpop.permute.xlu0 %1271
        %1273 = vrot.lane.b32.xlu0 %v411, 12
        %v1274 = vpop.permute.xlu0 %1273
        %1275 = vrot.lane.b32.xlu0 %v412, 12
        %v1276 = vpop.permute.xlu0 %1275
        %1277 = vrot.lane.b32.xlu0 %v413, 12
        %v1278 = vpop.permute.xlu0 %1277
        %1279 = vrot.lane.b32.xlu0 %v414, 12
        %v1280 = vpop.permute.xlu0 %1279
        %1281 = vrot.lane.b32.xlu0 %v415, 12
        %v1282 = vpop.permute.xlu0 %1281
        %1283 = vrot.lane.b32.xlu0 %v416, 12
        %v1284 = vpop.permute.xlu0 %1283
        %1285 = vrot.lane.b32.xlu0 %v417, 12
        %v1286 = vpop.permute.xlu0 %1285
        %1287 = vrot.lane.b32.xlu0 %v418, 12
        %v1288 = vpop.permute.xlu0 %1287
        %1289 = vrot.lane.b32.xlu0 %v419, 12
        %v1290 = vpop.permute.xlu0 %1289
        %1291 = vrot.lane.b32.xlu0 %v420, 12
        %v1292 = vpop.permute.xlu0 %1291
        %1293 = vrot.lane.b32.xlu0 %v421, 12
        %v1294 = vpop.permute.xlu0 %1293
        %1295 = vrot.lane.b32.xlu0 %v422, 12
        %v1296 = vpop.permute.xlu0 %1295
        %1297 = vrot.lane.b32.xlu0 %v423, 12
        %v1298 = vpop.permute.xlu0 %1297
        %1299 = vrot.lane.b32.xlu0 %v424, 12
        %v1300 = vpop.permute.xlu0 %1299
        %1301 = vrot.lane.b32.xlu0 %v425, 12
        %v1302 = vpop.permute.xlu0 %1301
        %1303 = vrot.lane.b32.xlu0 %v426, 12
        %v1304 = vpop.permute.xlu0 %1303
        %1305 = vrot.lane.b32.xlu0 %v427, 12
        %v1306 = vpop.permute.xlu0 %1305
        %1307 = vrot.lane.b32.xlu0 %v428, 12
        %v1308 = vpop.permute.xlu0 %1307
        %1309 = vrot.lane.b32.xlu0 %v429, 12
        %v1310 = vpop.permute.xlu0 %1309
        %1311 = vrot.lane.b32.xlu0 %v430, 12
        %v1312 = vpop.permute.xlu0 %1311
        %1313 = vrot.lane.b32.xlu0 %v431, 12
        %v1314 = vpop.permute.xlu0 %1313
        %1315 = vrot.lane.b32.xlu0 %v432, 12
        %v1316 = vpop.permute.xlu0 %1315
        %1317 = vrot.lane.b32.xlu0 %v433, 12
        %v1318 = vpop.permute.xlu0 %1317
        %1319 = vrot.lane.b32.xlu0 %v434, 12
        %v1320 = vpop.permute.xlu0 %1319
        %1321 = vrot.lane.b32.xlu0 %v435, 12
        %v1322 = vpop.permute.xlu0 %1321
        %1323 = vrot.lane.b32.xlu0 %v436, 12
        %v1324 = vpop.permute.xlu0 %1323
        %1325 = vrot.lane.b32.xlu0 %v437, 12
        %v1326 = vpop.permute.xlu0 %1325
        %1327 = vrot.lane.b32.xlu0 %v438, 12
        %v1328 = vpop.permute.xlu0 %1327
        %1329 = vrot.lane.b32.xlu0 %v439, 12
        %v1330 = vpop.permute.xlu0 %1329
        %1331 = vrot.lane.b32.xlu0 %v440, 12
        %v1332 = vpop.permute.xlu0 %1331
        %1333 = vrot.lane.b32.xlu0 %v441, 12
        %v1334 = vpop.permute.xlu0 %1333
        %1335 = vrot.lane.b32.xlu0 %v442, 12
        %v1336 = vpop.permute.xlu0 %1335
        %vm1373 = vcmask 126048
        %1374 = vst.msk [vmem:[#allocation2] sm:$0xf] %vm1373, %v1266
        %1375 = vst.msk [vmem:[#allocation2 + $0x4] sm:$0xf] %vm1373, %v1268
        %vm1376 = vcmask 124000
        %1377 = vst.msk [vmem:[#allocation2 + $0x8] sm:$0x3] %vm1376, %v1270
        %1378 = vst.msk [vmem:[#allocation2 + $0xc] sm:$0xf] %vm1373, %v1272
        %1379 = vst.msk [vmem:[#allocation2 + $0x10] sm:$0xf] %vm1373, %v1274
        %1380 = vst.msk [vmem:[#allocation2 + $0x14] sm:$0x3] %vm1376, %v1276
        %1381 = vst.msk [vmem:[#allocation2 + $0x18] sm:$0xf] %vm1373, %v1278
        %1382 = vst.msk [vmem:[#allocation2 + $0x1c] sm:$0xf] %vm1373, %v1280
        %1383 = vst.msk [vmem:[#allocation2 + $0x20] sm:$0x3] %vm1376, %v1282
        %1384 = vst.msk [vmem:[#allocation2 + $0x24] sm:$0xf] %vm1373, %v1284
        %1385 = vst.msk [vmem:[#allocation2 + $0x28] sm:$0xf] %vm1373, %v1286
        %1386 = vst.msk [vmem:[#allocation2 + $0x2c] sm:$0x3] %vm1376, %v1288
        %1387 = vst.msk [vmem:[#allocation2 + $0x30] sm:$0xf] %vm1373, %v1290
        %1388 = vst.msk [vmem:[#allocation2 + $0x34] sm:$0xf] %vm1373, %v1292
        %1389 = vst.msk [vmem:[#allocation2 + $0x38] sm:$0x3] %vm1376, %v1294
        %1390 = vst.msk [vmem:[#allocation2 + $0x3c] sm:$0xf] %vm1373, %v1296
        %1391 = vst.msk [vmem:[#allocation2 + $0x40] sm:$0xf] %vm1373, %v1298
        %1392 = vst.msk [vmem:[#allocation2 + $0x44] sm:$0x3] %vm1376, %v1300
        %1393 = vst.msk [vmem:[#allocation2 + $0x48] sm:$0xf] %vm1373, %v1302
        %1394 = vst.msk [vmem:[#allocation2 + $0x4c] sm:$0xf] %vm1373, %v1304
        %1395 = vst.msk [vmem:[#allocation2 + $0x50] sm:$0x3] %vm1376, %v1306
        %1396 = vst.msk [vmem:[#allocation2 + $0x54] sm:$0xf] %vm1373, %v1308
        %1397 = vst.msk [vmem:[#allocation2 + $0x58] sm:$0xf] %vm1373, %v1310
        %1398 = vst.msk [vmem:[#allocation2 + $0x5c] sm:$0x3] %vm1376, %v1312
        %1399 = vst.msk [vmem:[#allocation2 + $0x60] sm:$0xf] %vm1373, %v1314
        %1400 = vst.msk [vmem:[#allocation2 + $0x64] sm:$0xf] %vm1373, %v1316
        %1401 = vst.msk [vmem:[#allocation2 + $0x68] sm:$0x3] %vm1376, %v1318
        %1402 = vst.msk [vmem:[#allocation2 + $0x6c] sm:$0xf] %vm1373, %v1320
        %1403 = vst.msk [vmem:[#allocation2 + $0x70] sm:$0xf] %vm1373, %v1322
        %1404 = vst.msk [vmem:[#allocation2 + $0x74] sm:$0x3] %vm1376, %v1324
        %1405 = vst.msk [vmem:[#allocation2 + $0x78] sm:$0xf] %vm1373, %v1326
        %1406 = vst.msk [vmem:[#allocation2 + $0x7c] sm:$0xf] %vm1373, %v1328
        %1407 = vst.msk [vmem:[#allocation2 + $0x80] sm:$0x3] %vm1376, %v1330
        %1408 = vst.msk [vmem:[#allocation2 + $0x84] sm:$0xf] %vm1373, %v1332
        %1409 = vst.msk [vmem:[#allocation2 + $0x88] sm:$0xf] %vm1373, %v1334
        %1410 = vst.msk [vmem:[#allocation2 + $0x8c] sm:$0x3] %vm1376, %v1336
        %v1412 = vshrl.u32 %v440, 16
        %v1414 = vrot.slane %v1412, 4
        %v1415 = vshll.u32 %v440, 16
        %v1417 = vrot.slane %v1415, 5
        %v1418 = vor.u32 %v1414, %v1417
        %v1419 = vrot.slane %v1418, 4
        %v1421 = vshll.u32 %v441, 16
        %v1423 = vrot.slane %v1421, 5
        %v1424 = vsel %vm486, %v1419, %v1423
        %v1425 = vshrl.u32 %v441, 16
        %v1427 = vrot.slane %v1425, 4
        %v1428 = vor.u32 %v1427, %v1423
        %v1429 = vrot.slane %v1428, 4
        %v1431 = vshll.u32 %v442, 16
        %v1433 = vrot.slane %v1431, 5
        %v1434 = vsel %vm486, %v1429, %v1433
        %v1435 = vshrl.u32 %v442, 16
        %v1437 = vrot.slane %v1435, 4
        %v1438 = vor.u32 %v1437, %v1433
        %v1439 = vrot.slane %v1438, 4
        %1440 = vrot.lane.b32.xlu0 %v529, 16
        %v1441 = vpop.permute.xlu0 %1440
        %1442 = vrot.lane.b32.xlu0 %v539, 16
        %v1443 = vpop.permute.xlu0 %1442
        %1444 = vrot.lane.b32.xlu0 %v544, 16
        %v1445 = vpop.permute.xlu0 %1444
        %1446 = vrot.lane.b32.xlu0 %v558, 16
        %v1447 = vpop.permute.xlu0 %1446
        %1448 = vrot.lane.b32.xlu0 %v568, 16
        %v1449 = vpop.permute.xlu0 %1448
        %1450 = vrot.lane.b32.xlu0 %v573, 16
        %v1451 = vpop.permute.xlu0 %1450
        %1452 = vrot.lane.b32.xlu0 %v587, 16
        %v1453 = vpop.permute.xlu0 %1452
        %1454 = vrot.lane.b32.xlu0 %v597, 16
        %v1455 = vpop.permute.xlu0 %1454
        %1456 = vrot.lane.b32.xlu0 %v602, 16
        %v1457 = vpop.permute.xlu0 %1456
        %1458 = vrot.lane.b32.xlu0 %v616, 16
        %v1459 = vpop.permute.xlu0 %1458
        %1460 = vrot.lane.b32.xlu0 %v626, 16
        %v1461 = vpop.permute.xlu0 %1460
        %1462 = vrot.lane.b32.xlu0 %v631, 16
        %v1463 = vpop.permute.xlu0 %1462
        %1464 = vrot.lane.b32.xlu0 %v645, 16
        %v1465 = vpop.permute.xlu0 %1464
        %1466 = vrot.lane.b32.xlu0 %v655, 16
        %v1467 = vpop.permute.xlu0 %1466
        %1468 = vrot.lane.b32.xlu0 %v660, 16
        %v1469 = vpop.permute.xlu0 %1468
        %1470 = vrot.lane.b32.xlu0 %v674, 16
        %v1471 = vpop.permute.xlu0 %1470
        %1472 = vrot.lane.b32.xlu0 %v684, 16
        %v1473 = vpop.permute.xlu0 %1472
        %1474 = vrot.lane.b32.xlu0 %v689, 16
        %v1475 = vpop.permute.xlu0 %1474
        %1476 = vrot.lane.b32.xlu0 %v703, 16
        %v1477 = vpop.permute.xlu0 %1476
        %1478 = vrot.lane.b32.xlu0 %v713, 16
        %v1479 = vpop.permute.xlu0 %1478
        %1480 = vrot.lane.b32.xlu0 %v718, 16
        %v1481 = vpop.permute.xlu0 %1480
        %1482 = vrot.lane.b32.xlu0 %v732, 16
        %v1483 = vpop.permute.xlu0 %1482
        %1484 = vrot.lane.b32.xlu0 %v742, 16
        %v1485 = vpop.permute.xlu0 %1484
        %1486 = vrot.lane.b32.xlu0 %v747, 16
        %v1487 = vpop.permute.xlu0 %1486
        %1488 = vrot.lane.b32.xlu0 %v761, 16
        %v1489 = vpop.permute.xlu0 %1488
        %1490 = vrot.lane.b32.xlu0 %v771, 16
        %v1491 = vpop.permute.xlu0 %1490
        %1492 = vrot.lane.b32.xlu0 %v776, 16
        %v1493 = vpop.permute.xlu0 %1492
        %1494 = vrot.lane.b32.xlu0 %v790, 16
        %v1495 = vpop.permute.xlu0 %1494
        %1496 = vrot.lane.b32.xlu0 %v800, 16
        %v1497 = vpop.permute.xlu0 %1496
        %1498 = vrot.lane.b32.xlu0 %v805, 16
        %v1499 = vpop.permute.xlu0 %1498
        %1500 = vrot.lane.b32.xlu0 %v819, 16
        %v1501 = vpop.permute.xlu0 %1500
        %1502 = vrot.lane.b32.xlu0 %v829, 16
        %v1503 = vpop.permute.xlu0 %1502
        %1504 = vrot.lane.b32.xlu0 %v834, 16
        %v1505 = vpop.permute.xlu0 %1504
        %1506 = vrot.lane.b32.xlu0 %v1424, 16
        %v1507 = vpop.permute.xlu0 %1506
        %1508 = vrot.lane.b32.xlu0 %v1434, 16
        %v1509 = vpop.permute.xlu0 %1508
        %1510 = vrot.lane.b32.xlu0 %v1439, 16
        %v1511 = vpop.permute.xlu0 %1510
        %vm1548 = vcmask 158848
        %1549 = vst.msk [vmem:[#allocation2] sm:$0xf] %vm1548, %v1441
        %1550 = vst.msk [vmem:[#allocation2 + $0x4] sm:$0xf] %vm1548, %v1443
        %vm1551 = vcmask 156800
        %1552 = vst.msk [vmem:[#allocation2 + $0x8] sm:$0x3] %vm1551, %v1445
        %1553 = vst.msk [vmem:[#allocation2 + $0xc] sm:$0xf] %vm1548, %v1447
        %1554 = vst.msk [vmem:[#allocation2 + $0x10] sm:$0xf] %vm1548, %v1449
        %1555 = vst.msk [vmem:[#allocation2 + $0x14] sm:$0x3] %vm1551, %v1451
        %1556 = vst.msk [vmem:[#allocation2 + $0x18] sm:$0xf] %vm1548, %v1453
        %1557 = vst.msk [vmem:[#allocation2 + $0x1c] sm:$0xf] %vm1548, %v1455
        %1558 = vst.msk [vmem:[#allocation2 + $0x20] sm:$0x3] %vm1551, %v1457
        %1559 = vst.msk [vmem:[#allocation2 + $0x24] sm:$0xf] %vm1548, %v1459
        %1560 = vst.msk [vmem:[#allocation2 + $0x28] sm:$0xf] %vm1548, %v1461
        %1561 = vst.msk [vmem:[#allocation2 + $0x2c] sm:$0x3] %vm1551, %v1463
        %1562 = vst.msk [vmem:[#allocation2 + $0x30] sm:$0xf] %vm1548, %v1465
        %1563 = vst.msk [vmem:[#allocation2 + $0x34] sm:$0xf] %vm1548, %v1467
        %1564 = vst.msk [vmem:[#allocation2 + $0x38] sm:$0x3] %vm1551, %v1469
        %1565 = vst.msk [vmem:[#allocation2 + $0x3c] sm:$0xf] %vm1548, %v1471
        %1566 = vst.msk [vmem:[#allocation2 + $0x40] sm:$0xf] %vm1548, %v1473
        %1567 = vst.msk [vmem:[#allocation2 + $0x44] sm:$0x3] %vm1551, %v1475
        %1568 = vst.msk [vmem:[#allocation2 + $0x48] sm:$0xf] %vm1548, %v1477
        %1569 = vst.msk [vmem:[#allocation2 + $0x4c] sm:$0xf] %vm1548, %v1479
        %1570 = vst.msk [vmem:[#allocation2 + $0x50] sm:$0x3] %vm1551, %v1481
        %1571 = vst.msk [vmem:[#allocation2 + $0x54] sm:$0xf] %vm1548, %v1483
        %1572 = vst.msk [vmem:[#allocation2 + $0x58] sm:$0xf] %vm1548, %v1485
        %1573 = vst.msk [vmem:[#allocation2 + $0x5c] sm:$0x3] %vm1551, %v1487
        %1574 = vst.msk [vmem:[#allocation2 + $0x60] sm:$0xf] %vm1548, %v1489
        %1575 = vst.msk [vmem:[#allocation2 + $0x64] sm:$0xf] %vm1548, %v1491
        %1576 = vst.msk [vmem:[#allocation2 + $0x68] sm:$0x3] %vm1551, %v1493
        %1577 = vst.msk [vmem:[#allocation2 + $0x6c] sm:$0xf] %vm1548, %v1495
        %1578 = vst.msk [vmem:[#allocation2 + $0x70] sm:$0xf] %vm1548, %v1497
        %1579 = vst.msk [vmem:[#allocation2 + $0x74] sm:$0x3] %vm1551, %v1499
        %1580 = vst.msk [vmem:[#allocation2 + $0x78] sm:$0xf] %vm1548, %v1501
        %1581 = vst.msk [vmem:[#allocation2 + $0x7c] sm:$0xf] %vm1548, %v1503
        %1582 = vst.msk [vmem:[#allocation2 + $0x80] sm:$0x3] %vm1551, %v1505
        %1583 = vst.msk [vmem:[#allocation2 + $0x84] sm:$0xf] %vm1548, %v1507
        %1584 = vst.msk [vmem:[#allocation2 + $0x88] sm:$0xf] %vm1548, %v1509
        %1585 = vst.msk [vmem:[#allocation2 + $0x8c] sm:$0x3] %vm1551, %v1511
        %v1586 = vrot.slane %v440, 5
        %v1587 = vrot.slane %v1586, 4
        %v1588 = vrot.slane %v441, 5
        %v1589 = vsel %vm1019, %v1587, %v1588
        %v1590 = vrot.slane %v1588, 4
        %v1591 = vrot.slane %v442, 5
        %v1592 = vsel %vm1019, %v1590, %v1591
        %v1593 = vrot.slane %v1591, 4
        %1594 = vrot.lane.b32.xlu0 %v1031, 20
        %v1595 = vpop.permute.xlu0 %1594
        %1596 = vrot.lane.b32.xlu0 %v1034, 20
        %v1597 = vpop.permute.xlu0 %1596
        %1598 = vrot.lane.b32.xlu0 %v1035, 20
        %v1599 = vpop.permute.xlu0 %1598
        %1600 = vrot.lane.b32.xlu0 %v1039, 20
        %v1601 = vpop.permute.xlu0 %1600
        %1602 = vrot.lane.b32.xlu0 %v1042, 20
        %v1603 = vpop.permute.xlu0 %1602
        %1604 = vrot.lane.b32.xlu0 %v1043, 20
        %v1605 = vpop.permute.xlu0 %1604
        %1606 = vrot.lane.b32.xlu0 %v1047, 20
        %v1607 = vpop.permute.xlu0 %1606
        %1608 = vrot.lane.b32.xlu0 %v1050, 20
        %v1609 = vpop.permute.xlu0 %1608
        %1610 = vrot.lane.b32.xlu0 %v1051, 20
        %v1611 = vpop.permute.xlu0 %1610
        %1612 = vrot.lane.b32.xlu0 %v1055, 20
        %v1613 = vpop.permute.xlu0 %1612
        %1614 = vrot.lane.b32.xlu0 %v1058, 20
        %v1615 = vpop.permute.xlu0 %1614
        %1616 = vrot.lane.b32.xlu0 %v1059, 20
        %v1617 = vpop.permute.xlu0 %1616
        %1618 = vrot.lane.b32.xlu0 %v1063, 20
        %v1619 = vpop.permute.xlu0 %1618
        %1620 = vrot.lane.b32.xlu0 %v1066, 20
        %v1621 = vpop.permute.xlu0 %1620
        %1622 = vrot.lane.b32.xlu0 %v1067, 20
        %v1623 = vpop.permute.xlu0 %1622
        %1624 = vrot.lane.b32.xlu0 %v1071, 20
        %v1625 = vpop.permute.xlu0 %1624
        %1626 = vrot.lane.b32.xlu0 %v1074, 20
        %v1627 = vpop.permute.xlu0 %1626
        %1628 = vrot.lane.b32.xlu0 %v1075, 20
        %v1629 = vpop.permute.xlu0 %1628
        %1630 = vrot.lane.b32.xlu0 %v1079, 20
        %v1631 = vpop.permute.xlu0 %1630
        %1632 = vrot.lane.b32.xlu0 %v1082, 20
        %v1633 = vpop.permute.xlu0 %1632
        %1634 = vrot.lane.b32.xlu0 %v1083, 20
        %v1635 = vpop.permute.xlu0 %1634
        %1636 = vrot.lane.b32.xlu0 %v1087, 20
        %v1637 = vpop.permute.xlu0 %1636
        %1638 = vrot.lane.b32.xlu0 %v1090, 20
        %v1639 = vpop.permute.xlu0 %1638
        %1640 = vrot.lane.b32.xlu0 %v1091, 20
        %v1641 = vpop.permute.xlu0 %1640
        %1642 = vrot.lane.b32.xlu0 %v1095, 20
        %v1643 = vpop.permute.xlu0 %1642
        %1644 = vrot.lane.b32.xlu0 %v1098, 20
        %v1645 = vpop.permute.xlu0 %1644
        %1646 = vrot.lane.b32.xlu0 %v1099, 20
        %v1647 = vpop.permute.xlu0 %1646
        %1648 = vrot.lane.b32.xlu0 %v1103, 20
        %v1649 = vpop.permute.xlu0 %1648
        %1650 = vrot.lane.b32.xlu0 %v1106, 20
        %v1651 = vpop.permute.xlu0 %1650
        %1652 = vrot.lane.b32.xlu0 %v1107, 20
        %v1653 = vpop.permute.xlu0 %1652
        %1654 = vrot.lane.b32.xlu0 %v1111, 20
        %v1655 = vpop.permute.xlu0 %1654
        %1656 = vrot.lane.b32.xlu0 %v1114, 20
        %v1657 = vpop.permute.xlu0 %1656
        %1658 = vrot.lane.b32.xlu0 %v1115, 20
        %v1659 = vpop.permute.xlu0 %1658
        %1660 = vrot.lane.b32.xlu0 %v1589, 20
        %v1661 = vpop.permute.xlu0 %1660
        %1662 = vrot.lane.b32.xlu0 %v1592, 20
        %v1663 = vpop.permute.xlu0 %1662
        %1664 = vrot.lane.b32.xlu0 %v1593, 20
        %v1665 = vpop.permute.xlu0 %1664
        %vm1702 = vcmask 191648
        %1703 = vst.msk [vmem:[#allocation2] sm:$0xf] %vm1702, %v1595
        %1704 = vst.msk [vmem:[#allocation2 + $0x4] sm:$0xf] %vm1702, %v1597
        %vm1705 = vcmask 189600
        %1706 = vst.msk [vmem:[#allocation2 + $0x8] sm:$0x3] %vm1705, %v1599
        %1707 = vst.msk [vmem:[#allocation2 + $0xc] sm:$0xf] %vm1702, %v1601
        %1708 = vst.msk [vmem:[#allocation2 + $0x10] sm:$0xf] %vm1702, %v1603
        %1709 = vst.msk [vmem:[#allocation2 + $0x14] sm:$0x3] %vm1705, %v1605
        %1710 = vst.msk [vmem:[#allocation2 + $0x18] sm:$0xf] %vm1702, %v1607
        %1711 = vst.msk [vmem:[#allocation2 + $0x1c] sm:$0xf] %vm1702, %v1609
        %1712 = vst.msk [vmem:[#allocation2 + $0x20] sm:$0x3] %vm1705, %v1611
        %1713 = vst.msk [vmem:[#allocation2 + $0x24] sm:$0xf] %vm1702, %v1613
        %1714 = vst.msk [vmem:[#allocation2 + $0x28] sm:$0xf] %vm1702, %v1615
        %1715 = vst.msk [vmem:[#allocation2 + $0x2c] sm:$0x3] %vm1705, %v1617
        %1716 = vst.msk [vmem:[#allocation2 + $0x30] sm:$0xf] %vm1702, %v1619
        %1717 = vst.msk [vmem:[#allocation2 + $0x34] sm:$0xf] %vm1702, %v1621
        %1718 = vst.msk [vmem:[#allocation2 + $0x38] sm:$0x3] %vm1705, %v1623
        %1719 = vst.msk [vmem:[#allocation2 + $0x3c] sm:$0xf] %vm1702, %v1625
        %1720 = vst.msk [vmem:[#allocation2 + $0x40] sm:$0xf] %vm1702, %v1627
        %1721 = vst.msk [vmem:[#allocation2 + $0x44] sm:$0x3] %vm1705, %v1629
        %1722 = vst.msk [vmem:[#allocation2 + $0x48] sm:$0xf] %vm1702, %v1631
        %1723 = vst.msk [vmem:[#allocation2 + $0x4c] sm:$0xf] %vm1702, %v1633
        %1724 = vst.msk [vmem:[#allocation2 + $0x50] sm:$0x3] %vm1705, %v1635
        %1725 = vst.msk [vmem:[#allocation2 + $0x54] sm:$0xf] %vm1702, %v1637
        %1726 = vst.msk [vmem:[#allocation2 + $0x58] sm:$0xf] %vm1702, %v1639
        %1727 = vst.msk [vmem:[#allocation2 + $0x5c] sm:$0x3] %vm1705, %v1641
        %1728 = vst.msk [vmem:[#allocation2 + $0x60] sm:$0xf] %vm1702, %v1643
        %1729 = vst.msk [vmem:[#allocation2 + $0x64] sm:$0xf] %vm1702, %v1645
        %1730 = vst.msk [vmem:[#allocation2 + $0x68] sm:$0x3] %vm1705, %v1647
        %1731 = vst.msk [vmem:[#allocation2 + $0x6c] sm:$0xf] %vm1702, %v1649
        %1732 = vst.msk [vmem:[#allocation2 + $0x70] sm:$0xf] %vm1702, %v1651
        %1733 = vst.msk [vmem:[#allocation2 + $0x74] sm:$0x3] %vm1705, %v1653
        %1734 = vst.msk [vmem:[#allocation2 + $0x78] sm:$0xf] %vm1702, %v1655
        %1735 = vst.msk [vmem:[#allocation2 + $0x7c] sm:$0xf] %vm1702, %v1657
        %1736 = vst.msk [vmem:[#allocation2 + $0x80] sm:$0x3] %vm1705, %v1659
        %1737 = vst.msk [vmem:[#allocation2 + $0x84] sm:$0xf] %vm1702, %v1661
        %1738 = vst.msk [vmem:[#allocation2 + $0x88] sm:$0xf] %vm1702, %v1663
        %1739 = vst.msk [vmem:[#allocation2 + $0x8c] sm:$0x3] %vm1705, %v1665
        %1743 = vrot.lane.b32.xlu0 %v410, 24
        %v1744 = vpop.permute.xlu0 %1743
        %1745 = vrot.lane.b32.xlu0 %v411, 24
        %v1746 = vpop.permute.xlu0 %1745
        %1747 = vrot.lane.b32.xlu0 %v412, 24
        %v1748 = vpop.permute.xlu0 %1747
        %1749 = vrot.lane.b32.xlu0 %v413, 24
        %v1750 = vpop.permute.xlu0 %1749
        %1751 = vrot.lane.b32.xlu0 %v414, 24
        %v1752 = vpop.permute.xlu0 %1751
        %1753 = vrot.lane.b32.xlu0 %v415, 24
        %v1754 = vpop.permute.xlu0 %1753
        %1755 = vrot.lane.b32.xlu0 %v416, 24
        %v1756 = vpop.permute.xlu0 %1755
        %1757 = vrot.lane.b32.xlu0 %v417, 24
        %v1758 = vpop.permute.xlu0 %1757
        %1759 = vrot.lane.b32.xlu0 %v418, 24
        %v1760 = vpop.permute.xlu0 %1759
        %1761 = vrot.lane.b32.xlu0 %v419, 24
        %v1762 = vpop.permute.xlu0 %1761
        %1763 = vrot.lane.b32.xlu0 %v420, 24
        %v1764 = vpop.permute.xlu0 %1763
        %1765 = vrot.lane.b32.xlu0 %v421, 24
        %v1766 = vpop.permute.xlu0 %1765
        %1767 = vrot.lane.b32.xlu0 %v422, 24
        %v1768 = vpop.permute.xlu0 %1767
        %1769 = vrot.lane.b32.xlu0 %v423, 24
        %v1770 = vpop.permute.xlu0 %1769
        %1771 = vrot.lane.b32.xlu0 %v424, 24
        %v1772 = vpop.permute.xlu0 %1771
        %1773 = vrot.lane.b32.xlu0 %v425, 24
        %v1774 = vpop.permute.xlu0 %1773
        %1775 = vrot.lane.b32.xlu0 %v426, 24
        %v1776 = vpop.permute.xlu0 %1775
        %1777 = vrot.lane.b32.xlu0 %v427, 24
        %v1778 = vpop.permute.xlu0 %1777
        %1779 = vrot.lane.b32.xlu0 %v428, 24
        %v1780 = vpop.permute.xlu0 %1779
        %1781 = vrot.lane.b32.xlu0 %v429, 24
        %v1782 = vpop.permute.xlu0 %1781
        %1783 = vrot.lane.b32.xlu0 %v430, 24
        %v1784 = vpop.permute.xlu0 %1783
        %1785 = vrot.lane.b32.xlu0 %v431, 24
        %v1786 = vpop.permute.xlu0 %1785
        %1787 = vrot.lane.b32.xlu0 %v432, 24
        %v1788 = vpop.permute.xlu0 %1787
        %1789 = vrot.lane.b32.xlu0 %v433, 24
        %v1790 = vpop.permute.xlu0 %1789
        %1791 = vrot.lane.b32.xlu0 %v434, 24
        %v1792 = vpop.permute.xlu0 %1791
        %1793 = vrot.lane.b32.xlu0 %v435, 24
        %v1794 = vpop.permute.xlu0 %1793
        %1795 = vrot.lane.b32.xlu0 %v436, 24
        %v1796 = vpop.permute.xlu0 %1795
        %1797 = vrot.lane.b32.xlu0 %v437, 24
        %v1798 = vpop.permute.xlu0 %1797
        %1799 = vrot.lane.b32.xlu0 %v438, 24
        %v1800 = vpop.permute.xlu0 %1799
        %1801 = vrot.lane.b32.xlu0 %v439, 24
        %v1802 = vpop.permute.xlu0 %1801
        %1803 = vrot.lane.b32.xlu0 %v440, 24
        %v1804 = vpop.permute.xlu0 %1803
        %1805 = vrot.lane.b32.xlu0 %v441, 24
        %v1806 = vpop.permute.xlu0 %1805
        %1807 = vrot.lane.b32.xlu0 %v442, 24
        %v1808 = vpop.permute.xlu0 %1807
        %1809 = vrot.lane.b32.xlu0 %v443, 24
        %v1810 = vpop.permute.xlu0 %1809
        %1811 = vrot.lane.b32.xlu0 %v444, 24
        %v1812 = vpop.permute.xlu0 %1811
        %1813 = vrot.lane.b32.xlu0 %v445, 24
        %v1814 = vpop.permute.xlu0 %1813
        %vm1851 = vcmask 224448
        %1852 = vst.msk [vmem:[#allocation2] sm:$0xf] %vm1851, %v1744
        %1853 = vst.msk [vmem:[#allocation2 + $0x4] sm:$0xf] %vm1851, %v1746
        %vm1854 = vcmask 222400
        %1855 = vst.msk [vmem:[#allocation2 + $0x8] sm:$0x3] %vm1854, %v1748
        %1856 = vst.msk [vmem:[#allocation2 + $0xc] sm:$0xf] %vm1851, %v1750
        %1857 = vst.msk [vmem:[#allocation2 + $0x10] sm:$0xf] %vm1851, %v1752
        %1858 = vst.msk [vmem:[#allocation2 + $0x14] sm:$0x3] %vm1854, %v1754
        %1859 = vst.msk [vmem:[#allocation2 + $0x18] sm:$0xf] %vm1851, %v1756
        %1860 = vst.msk [vmem:[#allocation2 + $0x1c] sm:$0xf] %vm1851, %v1758
        %1861 = vst.msk [vmem:[#allocation2 + $0x20] sm:$0x3] %vm1854, %v1760
        %1862 = vst.msk [vmem:[#allocation2 + $0x24] sm:$0xf] %vm1851, %v1762
        %1863 = vst.msk [vmem:[#allocation2 + $0x28] sm:$0xf] %vm1851, %v1764
        %1864 = vst.msk [vmem:[#allocation2 + $0x2c] sm:$0x3] %vm1854, %v1766
        %1865 = vst.msk [vmem:[#allocation2 + $0x30] sm:$0xf] %vm1851, %v1768
        %1866 = vst.msk [vmem:[#allocation2 + $0x34] sm:$0xf] %vm1851, %v1770
        %1867 = vst.msk [vmem:[#allocation2 + $0x38] sm:$0x3] %vm1854, %v1772
        %1868 = vst.msk [vmem:[#allocation2 + $0x3c] sm:$0xf] %vm1851, %v1774
        %1869 = vst.msk [vmem:[#allocation2 + $0x40] sm:$0xf] %vm1851, %v1776
        %1870 = vst.msk [vmem:[#allocation2 + $0x44] sm:$0x3] %vm1854, %v1778
        %1871 = vst.msk [vmem:[#allocation2 + $0x48] sm:$0xf] %vm1851, %v1780
        %1872 = vst.msk [vmem:[#allocation2 + $0x4c] sm:$0xf] %vm1851, %v1782
        %1873 = vst.msk [vmem:[#allocation2 + $0x50] sm:$0x3] %vm1854, %v1784
        %1874 = vst.msk [vmem:[#allocation2 + $0x54] sm:$0xf] %vm1851, %v1786
        %1875 = vst.msk [vmem:[#allocation2 + $0x58] sm:$0xf] %vm1851, %v1788
        %1876 = vst.msk [vmem:[#allocation2 + $0x5c] sm:$0x3] %vm1854, %v1790
        %1877 = vst.msk [vmem:[#allocation2 + $0x60] sm:$0xf] %vm1851, %v1792
        %1878 = vst.msk [vmem:[#allocation2 + $0x64] sm:$0xf] %vm1851, %v1794
        %1879 = vst.msk [vmem:[#allocation2 + $0x68] sm:$0x3] %vm1854, %v1796
        %1880 = vst.msk [vmem:[#allocation2 + $0x6c] sm:$0xf] %vm1851, %v1798
        %1881 = vst.msk [vmem:[#allocation2 + $0x70] sm:$0xf] %vm1851, %v1800
        %1882 = vst.msk [vmem:[#allocation2 + $0x74] sm:$0x3] %vm1854, %v1802
        %1883 = vst.msk [vmem:[#allocation2 + $0x78] sm:$0xf] %vm1851, %v1804
        %1884 = vst.msk [vmem:[#allocation2 + $0x7c] sm:$0xf] %vm1851, %v1806
        %1885 = vst.msk [vmem:[#allocation2 + $0x80] sm:$0x3] %vm1854, %v1808
        %1886 = vst.msk [vmem:[#allocation2 + $0x84] sm:$0xf] %vm1851, %v1810
        %1887 = vst.msk [vmem:[#allocation2 + $0x88] sm:$0xf] %vm1851, %v1812
        %1888 = vst.msk [vmem:[#allocation2 + $0x8c] sm:$0x3] %vm1854, %v1814
        %v1890 = vshrl.u32 %v443, 16
        %v1892 = vrot.slane %v1890, 4
        %v1893 = vshll.u32 %v443, 16
        %v1895 = vrot.slane %v1893, 5
        %v1896 = vor.u32 %v1892, %v1895
        %v1897 = vrot.slane %v1896, 4
        %v1899 = vshll.u32 %v444, 16
        %v1901 = vrot.slane %v1899, 5
        %v1902 = vsel %vm486, %v1897, %v1901
        %v1903 = vshrl.u32 %v444, 16
        %v1905 = vrot.slane %v1903, 4
        %v1906 = vor.u32 %v1905, %v1901
        %v1907 = vrot.slane %v1906, 4
        %v1909 = vshll.u32 %v445, 16
        %v1911 = vrot.slane %v1909, 5
        %v1912 = vsel %vm486, %v1907, %v1911
        %v1913 = vshrl.u32 %v445, 16
        %v1915 = vrot.slane %v1913, 4
        %v1916 = vor.u32 %v1915, %v1911
        %v1917 = vrot.slane %v1916, 4
        %1918 = vrot.lane.b32.xlu0 %v558, 28
        %v1919 = vpop.permute.xlu0 %1918
        %1920 = vrot.lane.b32.xlu0 %v568, 28
        %v1921 = vpop.permute.xlu0 %1920
        %1922 = vrot.lane.b32.xlu0 %v573, 28
        %v1923 = vpop.permute.xlu0 %1922
        %1924 = vrot.lane.b32.xlu0 %v587, 28
        %v1925 = vpop.permute.xlu0 %1924
        %1926 = vrot.lane.b32.xlu0 %v597, 28
        %v1927 = vpop.permute.xlu0 %1926
        %1928 = vrot.lane.b32.xlu0 %v602, 28
        %v1929 = vpop.permute.xlu0 %1928
        %1930 = vrot.lane.b32.xlu0 %v616, 28
        %v1931 = vpop.permute.xlu0 %1930
        %1932 = vrot.lane.b32.xlu0 %v626, 28
        %v1933 = vpop.permute.xlu0 %1932
        %1934 = vrot.lane.b32.xlu0 %v631, 28
        %v1935 = vpop.permute.xlu0 %1934
        %1936 = vrot.lane.b32.xlu0 %v645, 28
        %v1937 = vpop.permute.xlu0 %1936
        %1938 = vrot.lane.b32.xlu0 %v655, 28
        %v1939 = vpop.permute.xlu0 %1938
        %1940 = vrot.lane.b32.xlu0 %v660, 28
        %v1941 = vpop.permute.xlu0 %1940
        %1942 = vrot.lane.b32.xlu0 %v674, 28
        %v1943 = vpop.permute.xlu0 %1942
        %1944 = vrot.lane.b32.xlu0 %v684, 28
        %v1945 = vpop.permute.xlu0 %1944
        %1946 = vrot.lane.b32.xlu0 %v689, 28
        %v1947 = vpop.permute.xlu0 %1946
        %1948 = vrot.lane.b32.xlu0 %v703, 28
        %v1949 = vpop.permute.xlu0 %1948
        %1950 = vrot.lane.b32.xlu0 %v713, 28
        %v1951 = vpop.permute.xlu0 %1950
        %1952 = vrot.lane.b32.xlu0 %v718, 28
        %v1953 = vpop.permute.xlu0 %1952
        %1954 = vrot.lane.b32.xlu0 %v732, 28
        %v1955 = vpop.permute.xlu0 %1954
        %1956 = vrot.lane.b32.xlu0 %v742, 28
        %v1957 = vpop.permute.xlu0 %1956
        %1958 = vrot.lane.b32.xlu0 %v747, 28
        %v1959 = vpop.permute.xlu0 %1958
        %1960 = vrot.lane.b32.xlu0 %v761, 28
        %v1961 = vpop.permute.xlu0 %1960
        %1962 = vrot.lane.b32.xlu0 %v771, 28
        %v1963 = vpop.permute.xlu0 %1962
        %1964 = vrot.lane.b32.xlu0 %v776, 28
        %v1965 = vpop.permute.xlu0 %1964
        %1966 = vrot.lane.b32.xlu0 %v790, 28
        %v1967 = vpop.permute.xlu0 %1966
        %1968 = vrot.lane.b32.xlu0 %v800, 28
        %v1969 = vpop.permute.xlu0 %1968
        %1970 = vrot.lane.b32.xlu0 %v805, 28
        %v1971 = vpop.permute.xlu0 %1970
        %1972 = vrot.lane.b32.xlu0 %v819, 28
        %v1973 = vpop.permute.xlu0 %1972
        %1974 = vrot.lane.b32.xlu0 %v829, 28
        %v1975 = vpop.permute.xlu0 %1974
        %1976 = vrot.lane.b32.xlu0 %v834, 28
        %v1977 = vpop.permute.xlu0 %1976
        %1978 = vrot.lane.b32.xlu0 %v1424, 28
        %v1979 = vpop.permute.xlu0 %1978
        %1980 = vrot.lane.b32.xlu0 %v1434, 28
        %v1981 = vpop.permute.xlu0 %1980
        %1982 = vrot.lane.b32.xlu0 %v1439, 28
        %v1983 = vpop.permute.xlu0 %1982
        %1984 = vrot.lane.b32.xlu0 %v1902, 28
        %v1985 = vpop.permute.xlu0 %1984
        %1986 = vrot.lane.b32.xlu0 %v1912, 28
        %v1987 = vpop.permute.xlu0 %1986
        %1988 = vrot.lane.b32.xlu0 %v1917, 28
        %v1989 = vpop.permute.xlu0 %1988
        %vm2026 = vcmask 257248
        %2027 = vst.msk [vmem:[#allocation2] sm:$0xf] %vm2026, %v1919
        %2028 = vst.msk [vmem:[#allocation2 + $0x4] sm:$0xf] %vm2026, %v1921
        %vm2029 = vcmask 255200
        %2030 = vst.msk [vmem:[#allocation2 + $0x8] sm:$0x3] %vm2029, %v1923
        %2031 = vst.msk [vmem:[#allocation2 + $0xc] sm:$0xf] %vm2026, %v1925
        %2032 = vst.msk [vmem:[#allocation2 + $0x10] sm:$0xf] %vm2026, %v1927
        %2033 = vst.msk [vmem:[#allocation2 + $0x14] sm:$0x3] %vm2029, %v1929
        %2034 = vst.msk [vmem:[#allocation2 + $0x18] sm:$0xf] %vm2026, %v1931
        %2035 = vst.msk [vmem:[#allocation2 + $0x1c] sm:$0xf] %vm2026, %v1933
        %2036 = vst.msk [vmem:[#allocation2 + $0x20] sm:$0x3] %vm2029, %v1935
        %2037 = vst.msk [vmem:[#allocation2 + $0x24] sm:$0xf] %vm2026, %v1937
        %2038 = vst.msk [vmem:[#allocation2 + $0x28] sm:$0xf] %vm2026, %v1939
        %2039 = vst.msk [vmem:[#allocation2 + $0x2c] sm:$0x3] %vm2029, %v1941
        %2040 = vst.msk [vmem:[#allocation2 + $0x30] sm:$0xf] %vm2026, %v1943
        %2041 = vst.msk [vmem:[#allocation2 + $0x34] sm:$0xf] %vm2026, %v1945
        %2042 = vst.msk [vmem:[#allocation2 + $0x38] sm:$0x3] %vm2029, %v1947
        %2043 = vst.msk [vmem:[#allocation2 + $0x3c] sm:$0xf] %vm2026, %v1949
        %2044 = vst.msk [vmem:[#allocation2 + $0x40] sm:$0xf] %vm2026, %v1951
        %2045 = vst.msk [vmem:[#allocation2 + $0x44] sm:$0x3] %vm2029, %v1953
        %2046 = vst.msk [vmem:[#allocation2 + $0x48] sm:$0xf] %vm2026, %v1955
        %2047 = vst.msk [vmem:[#allocation2 + $0x4c] sm:$0xf] %vm2026, %v1957
        %2048 = vst.msk [vmem:[#allocation2 + $0x50] sm:$0x3] %vm2029, %v1959
        %2049 = vst.msk [vmem:[#allocation2 + $0x54] sm:$0xf] %vm2026, %v1961
        %2050 = vst.msk [vmem:[#allocation2 + $0x58] sm:$0xf] %vm2026, %v1963
        %2051 = vst.msk [vmem:[#allocation2 + $0x5c] sm:$0x3] %vm2029, %v1965
        %2052 = vst.msk [vmem:[#allocation2 + $0x60] sm:$0xf] %vm2026, %v1967
        %2053 = vst.msk [vmem:[#allocation2 + $0x64] sm:$0xf] %vm2026, %v1969
        %2054 = vst.msk [vmem:[#allocation2 + $0x68] sm:$0x3] %vm2029, %v1971
        %2055 = vst.msk [vmem:[#allocation2 + $0x6c] sm:$0xf] %vm2026, %v1973
        %2056 = vst.msk [vmem:[#allocation2 + $0x70] sm:$0xf] %vm2026, %v1975
        %2057 = vst.msk [vmem:[#allocation2 + $0x74] sm:$0x3] %vm2029, %v1977
        %2058 = vst.msk [vmem:[#allocation2 + $0x78] sm:$0xf] %vm2026, %v1979
        %2059 = vst.msk [vmem:[#allocation2 + $0x7c] sm:$0xf] %vm2026, %v1981
        %2060 = vst.msk [vmem:[#allocation2 + $0x80] sm:$0x3] %vm2029, %v1983
        %2061 = vst.msk [vmem:[#allocation2 + $0x84] sm:$0xf] %vm2026, %v1985
        %2062 = vst.msk [vmem:[#allocation2 + $0x88] sm:$0xf] %vm2026, %v1987
        %2063 = vst.msk [vmem:[#allocation2 + $0x8c] sm:$0x3] %vm2029, %v1989
        %v2064 = vrot.slane %v443, 5
        %v2065 = vrot.slane %v2064, 4
        %v2066 = vrot.slane %v444, 5
        %v2067 = vsel %vm1019, %v2065, %v2066
        %v2068 = vrot.slane %v2066, 4
        %v2069 = vrot.slane %v445, 5
        %v2070 = vsel %vm1019, %v2068, %v2069
        %v2071 = vrot.slane %v2069, 4
        %2072 = vrot.lane.b32.xlu0 %v1039, 32
        %v2073 = vpop.permute.xlu0 %2072
        %2074 = vrot.lane.b32.xlu0 %v1042, 32
        %v2075 = vpop.permute.xlu0 %2074
        %2076 = vrot.lane.b32.xlu0 %v1043, 32
        %v2077 = vpop.permute.xlu0 %2076
        %2078 = vrot.lane.b32.xlu0 %v1047, 32
        %v2079 = vpop.permute.xlu0 %2078
        %2080 = vrot.lane.b32.xlu0 %v1050, 32
        %v2081 = vpop.permute.xlu0 %2080
        %2082 = vrot.lane.b32.xlu0 %v1051, 32
        %v2083 = vpop.permute.xlu0 %2082
        %2084 = vrot.lane.b32.xlu0 %v1055, 32
        %v2085 = vpop.permute.xlu0 %2084
        %2086 = vrot.lane.b32.xlu0 %v1058, 32
        %v2087 = vpop.permute.xlu0 %2086
        %2088 = vrot.lane.b32.xlu0 %v1059, 32
        %v2089 = vpop.permute.xlu0 %2088
        %2090 = vrot.lane.b32.xlu0 %v1063, 32
        %v2091 = vpop.permute.xlu0 %2090
        %2092 = vrot.lane.b32.xlu0 %v1066, 32
        %v2093 = vpop.permute.xlu0 %2092
        %2094 = vrot.lane.b32.xlu0 %v1067, 32
        %v2095 = vpop.permute.xlu0 %2094
        %2096 = vrot.lane.b32.xlu0 %v1071, 32
        %v2097 = vpop.permute.xlu0 %2096
        %2098 = vrot.lane.b32.xlu0 %v1074, 32
        %v2099 = vpop.permute.xlu0 %2098
        %2100 = vrot.lane.b32.xlu0 %v1075, 32
        %v2101 = vpop.permute.xlu0 %2100
        %2102 = vrot.lane.b32.xlu0 %v1079, 32
        %v2103 = vpop.permute.xlu0 %2102
        %2104 = vrot.lane.b32.xlu0 %v1082, 32
        %v2105 = vpop.permute.xlu0 %2104
        %2106 = vrot.lane.b32.xlu0 %v1083, 32
        %v2107 = vpop.permute.xlu0 %2106
        %2108 = vrot.lane.b32.xlu0 %v1087, 32
        %v2109 = vpop.permute.xlu0 %2108
        %2110 = vrot.lane.b32.xlu0 %v1090, 32
        %v2111 = vpop.permute.xlu0 %2110
        %2112 = vrot.lane.b32.xlu0 %v1091, 32
        %v2113 = vpop.permute.xlu0 %2112
        %2114 = vrot.lane.b32.xlu0 %v1095, 32
        %v2115 = vpop.permute.xlu0 %2114
        %2116 = vrot.lane.b32.xlu0 %v1098, 32
        %v2117 = vpop.permute.xlu0 %2116
        %2118 = vrot.lane.b32.xlu0 %v1099, 32
        %v2119 = vpop.permute.xlu0 %2118
        %2120 = vrot.lane.b32.xlu0 %v1103, 32
        %v2121 = vpop.permute.xlu0 %2120
        %2122 = vrot.lane.b32.xlu0 %v1106, 32
        %v2123 = vpop.permute.xlu0 %2122
        %2124 = vrot.lane.b32.xlu0 %v1107, 32
        %v2125 = vpop.permute.xlu0 %2124
        %2126 = vrot.lane.b32.xlu0 %v1111, 32
        %v2127 = vpop.permute.xlu0 %2126
        %2128 = vrot.lane.b32.xlu0 %v1114, 32
        %v2129 = vpop.permute.xlu0 %2128
        %2130 = vrot.lane.b32.xlu0 %v1115, 32
        %v2131 = vpop.permute.xlu0 %2130
        %2132 = vrot.lane.b32.xlu0 %v1589, 32
        %v2133 = vpop.permute.xlu0 %2132
        %2134 = vrot.lane.b32.xlu0 %v1592, 32
        %v2135 = vpop.permute.xlu0 %2134
        %2136 = vrot.lane.b32.xlu0 %v1593, 32
        %v2137 = vpop.permute.xlu0 %2136
        %2138 = vrot.lane.b32.xlu0 %v2067, 32
        %v2139 = vpop.permute.xlu0 %2138
        %2140 = vrot.lane.b32.xlu0 %v2070, 32
        %v2141 = vpop.permute.xlu0 %2140
        %2142 = vrot.lane.b32.xlu0 %v2071, 32
        %v2143 = vpop.permute.xlu0 %2142
        %vm2180 = vcmask 290048
        %2181 = vst.msk [vmem:[#allocation2] sm:$0xf] %vm2180, %v2073
        %2182 = vst.msk [vmem:[#allocation2 + $0x4] sm:$0xf] %vm2180, %v2075
        %vm2183 = vcmask 288000
        %2184 = vst.msk [vmem:[#allocation2 + $0x8] sm:$0x3] %vm2183, %v2077
        %2185 = vst.msk [vmem:[#allocation2 + $0xc] sm:$0xf] %vm2180, %v2079
        %2186 = vst.msk [vmem:[#allocation2 + $0x10] sm:$0xf] %vm2180, %v2081
        %2187 = vst.msk [vmem:[#allocation2 + $0x14] sm:$0x3] %vm2183, %v2083
        %2188 = vst.msk [vmem:[#allocation2 + $0x18] sm:$0xf] %vm2180, %v2085
        %2189 = vst.msk [vmem:[#allocation2 + $0x1c] sm:$0xf] %vm2180, %v2087
        %2190 = vst.msk [vmem:[#allocation2 + $0x20] sm:$0x3] %vm2183, %v2089
        %2191 = vst.msk [vmem:[#allocation2 + $0x24] sm:$0xf] %vm2180, %v2091
        %2192 = vst.msk [vmem:[#allocation2 + $0x28] sm:$0xf] %vm2180, %v2093
        %2193 = vst.msk [vmem:[#allocation2 + $0x2c] sm:$0x3] %vm2183, %v2095
        %2194 = vst.msk [vmem:[#allocation2 + $0x30] sm:$0xf] %vm2180, %v2097
        %2195 = vst.msk [vmem:[#allocation2 + $0x34] sm:$0xf] %vm2180, %v2099
        %2196 = vst.msk [vmem:[#allocation2 + $0x38] sm:$0x3] %vm2183, %v2101
        %2197 = vst.msk [vmem:[#allocation2 + $0x3c] sm:$0xf] %vm2180, %v2103
        %2198 = vst.msk [vmem:[#allocation2 + $0x40] sm:$0xf] %vm2180, %v2105
        %2199 = vst.msk [vmem:[#allocation2 + $0x44] sm:$0x3] %vm2183, %v2107
        %2200 = vst.msk [vmem:[#allocation2 + $0x48] sm:$0xf] %vm2180, %v2109
        %2201 = vst.msk [vmem:[#allocation2 + $0x4c] sm:$0xf] %vm2180, %v2111
        %2202 = vst.msk [vmem:[#allocation2 + $0x50] sm:$0x3] %vm2183, %v2113
        %2203 = vst.msk [vmem:[#allocation2 + $0x54] sm:$0xf] %vm2180, %v2115
        %2204 = vst.msk [vmem:[#allocation2 + $0x58] sm:$0xf] %vm2180, %v2117
        %2205 = vst.msk [vmem:[#allocation2 + $0x5c] sm:$0x3] %vm2183, %v2119
        %2206 = vst.msk [vmem:[#allocation2 + $0x60] sm:$0xf] %vm2180, %v2121
        %2207 = vst.msk [vmem:[#allocation2 + $0x64] sm:$0xf] %vm2180, %v2123
        %2208 = vst.msk [vmem:[#allocation2 + $0x68] sm:$0x3] %vm2183, %v2125
        %2209 = vst.msk [vmem:[#allocation2 + $0x6c] sm:$0xf] %vm2180, %v2127
        %2210 = vst.msk [vmem:[#allocation2 + $0x70] sm:$0xf] %vm2180, %v2129
        %2211 = vst.msk [vmem:[#allocation2 + $0x74] sm:$0x3] %vm2183, %v2131
        %2212 = vst.msk [vmem:[#allocation2 + $0x78] sm:$0xf] %vm2180, %v2133
        %2213 = vst.msk [vmem:[#allocation2 + $0x7c] sm:$0xf] %vm2180, %v2135
        %2214 = vst.msk [vmem:[#allocation2 + $0x80] sm:$0x3] %vm2183, %v2137
        %2215 = vst.msk [vmem:[#allocation2 + $0x84] sm:$0xf] %vm2180, %v2139
        %2216 = vst.msk [vmem:[#allocation2 + $0x88] sm:$0xf] %vm2180, %v2141
        %2217 = vst.msk [vmem:[#allocation2 + $0x8c] sm:$0x3] %vm2183, %v2143
        %v2218 = vld [vmem:[#allocation2] sm:$0xf]
        %v2219 = vld [vmem:[#allocation2 + $0x4] sm:$0xf]
        %v2220 = vld [vmem:[#allocation2 + $0x8] sm:$0x3]
        %v2221 = vld [vmem:[#allocation2 + $0xc] sm:$0xf]
        %v2222 = vld [vmem:[#allocation2 + $0x10] sm:$0xf]
        %v2223 = vld [vmem:[#allocation2 + $0x14] sm:$0x3]
        %v2224 = vld [vmem:[#allocation2 + $0x18] sm:$0xf]
        %v2225 = vld [vmem:[#allocation2 + $0x1c] sm:$0xf]
        %v2226 = vld [vmem:[#allocation2 + $0x20] sm:$0x3]
        %v2227 = vld [vmem:[#allocation2 + $0x24] sm:$0xf]
        %v2228 = vld [vmem:[#allocation2 + $0x28] sm:$0xf]
        %v2229 = vld [vmem:[#allocation2 + $0x2c] sm:$0x3]
        %v2230 = vld [vmem:[#allocation2 + $0x30] sm:$0xf]
        %v2231 = vld [vmem:[#allocation2 + $0x34] sm:$0xf]
        %v2232 = vld [vmem:[#allocation2 + $0x38] sm:$0x3]
        %v2233 = vld [vmem:[#allocation2 + $0x3c] sm:$0xf]
        %v2234 = vld [vmem:[#allocation2 + $0x40] sm:$0xf]
        %v2235 = vld [vmem:[#allocation2 + $0x44] sm:$0x3]
        %v2236 = vld [vmem:[#allocation2 + $0x48] sm:$0xf]
        %v2237 = vld [vmem:[#allocation2 + $0x4c] sm:$0xf]
        %v2238 = vld [vmem:[#allocation2 + $0x50] sm:$0x3]
        %v2239 = vld [vmem:[#allocation2 + $0x54] sm:$0xf]
        %v2240 = vld [vmem:[#allocation2 + $0x58] sm:$0xf]
        %v2241 = vld [vmem:[#allocation2 + $0x5c] sm:$0x3]
        %v2242 = vld [vmem:[#allocation2 + $0x60] sm:$0xf]
        %v2243 = vld [vmem:[#allocation2 + $0x64] sm:$0xf]
        %v2244 = vld [vmem:[#allocation2 + $0x68] sm:$0x3]
        %v2245 = vld [vmem:[#allocation2 + $0x6c] sm:$0xf]
        %v2246 = vld [vmem:[#allocation2 + $0x70] sm:$0xf]
        %v2247 = vld [vmem:[#allocation2 + $0x74] sm:$0x3]
        %v2248 = vld [vmem:[#allocation2 + $0x78] sm:$0xf]
        %v2249 = vld [vmem:[#allocation2 + $0x7c] sm:$0xf]
        %v2250 = vld [vmem:[#allocation2 + $0x80] sm:$0x3]
        %v2251 = vld [vmem:[#allocation2 + $0x84] sm:$0xf]
        %v2252 = vld [vmem:[#allocation2 + $0x88] sm:$0xf]
        %v2253 = vld [vmem:[#allocation2 + $0x8c] sm:$0x3]
        %v2291 = vunpack.c.l.s4 1983009808
        %v2292 = vunpack.c.0.s8 %v2291
        %v2293 = vlaneseq
        %v2294 = vshrl.u32 %v2293, 7
        %v2295 = vsub.s32 %v2292, %v2294
        %v2296 = vrot.slane %v2218, %v2295
        %v2297 = vcombine.high %v2296, %v2296
        %v2299 = vunpack.c.l.s4 1983009808
        %v2300 = vunpack.c.0.s8 %v2299
        %v2301 = vlaneseq
        %v2302 = vshrl.u32 %v2301, 7
        %v2303 = vsub.s32 %v2300, %v2302
        %v2304 = vrot.slane %v2219, %v2303
        %v2305 = vcombine.high %v2304, %v2304
        %v2307 = vunpack.c.l.s4 1983009808
        %v2308 = vunpack.c.0.s8 %v2307
        %v2309 = vlaneseq
        %v2310 = vshrl.u32 %v2309, 7
        %v2311 = vsub.s32 %v2308, %v2310
        %v2312 = vrot.slane %v2220, %v2311
        %v2314 = vunpack.c.l.s4 1983009808
        %v2315 = vunpack.c.0.s8 %v2314
        %v2316 = vlaneseq
        %v2317 = vshrl.u32 %v2316, 7
        %v2318 = vsub.s32 %v2315, %v2317
        %v2319 = vrot.slane %v2221, %v2318
        %v2320 = vcombine.high %v2319, %v2319
        %v2322 = vunpack.c.l.s4 1983009808
        %v2323 = vunpack.c.0.s8 %v2322
        %v2324 = vlaneseq
        %v2325 = vshrl.u32 %v2324, 7
        %v2326 = vsub.s32 %v2323, %v2325
        %v2327 = vrot.slane %v2222, %v2326
        %v2328 = vcombine.high %v2327, %v2327
        %v2330 = vunpack.c.l.s4 1983009808
        %v2331 = vunpack.c.0.s8 %v2330
        %v2332 = vlaneseq
        %v2333 = vshrl.u32 %v2332, 7
        %v2334 = vsub.s32 %v2331, %v2333
        %v2335 = vrot.slane %v2223, %v2334
        %v2337 = vunpack.c.l.s4 1983009808
        %v2338 = vunpack.c.0.s8 %v2337
        %v2339 = vlaneseq
        %v2340 = vshrl.u32 %v2339, 7
        %v2341 = vsub.s32 %v2338, %v2340
        %v2342 = vrot.slane %v2224, %v2341
        %v2343 = vcombine.high %v2342, %v2342
        %v2345 = vunpack.c.l.s4 1983009808
        %v2346 = vunpack.c.0.s8 %v2345
        %v2347 = vlaneseq
        %v2348 = vshrl.u32 %v2347, 7
        %v2349 = vsub.s32 %v2346, %v2348
        %v2350 = vrot.slane %v2225, %v2349
        %v2351 = vcombine.high %v2350, %v2350
        %v2353 = vunpack.c.l.s4 1983009808
        %v2354 = vunpack.c.0.s8 %v2353
        %v2355 = vlaneseq
        %v2356 = vshrl.u32 %v2355, 7
        %v2357 = vsub.s32 %v2354, %v2356
        %v2358 = vrot.slane %v2226, %v2357
        %v2360 = vunpack.c.l.s4 1983009808
        %v2361 = vunpack.c.0.s8 %v2360
        %v2362 = vlaneseq
        %v2363 = vshrl.u32 %v2362, 7
        %v2364 = vsub.s32 %v2361, %v2363
        %v2365 = vrot.slane %v2227, %v2364
        %v2366 = vcombine.high %v2365, %v2365
        %v2368 = vunpack.c.l.s4 1983009808
        %v2369 = vunpack.c.0.s8 %v2368
        %v2370 = vlaneseq
        %v2371 = vshrl.u32 %v2370, 7
        %v2372 = vsub.s32 %v2369, %v2371
        %v2373 = vrot.slane %v2228, %v2372
        %v2374 = vcombine.high %v2373, %v2373
        %v2376 = vunpack.c.l.s4 1983009808
        %v2377 = vunpack.c.0.s8 %v2376
        %v2378 = vlaneseq
        %v2379 = vshrl.u32 %v2378, 7
        %v2380 = vsub.s32 %v2377, %v2379
        %v2381 = vrot.slane %v2229, %v2380
        %v2383 = vunpack.c.l.s4 1983009808
        %v2384 = vunpack.c.0.s8 %v2383
        %v2385 = vlaneseq
        %v2386 = vshrl.u32 %v2385, 7
        %v2387 = vsub.s32 %v2384, %v2386
        %v2388 = vrot.slane %v2230, %v2387
        %v2389 = vcombine.high %v2388, %v2388
        %v2391 = vunpack.c.l.s4 1983009808
        %v2392 = vunpack.c.0.s8 %v2391
        %v2393 = vlaneseq
        %v2394 = vshrl.u32 %v2393, 7
        %v2395 = vsub.s32 %v2392, %v2394
        %v2396 = vrot.slane %v2231, %v2395
        %v2397 = vcombine.high %v2396, %v2396
        %v2399 = vunpack.c.l.s4 1983009808
        %v2400 = vunpack.c.0.s8 %v2399
        %v2401 = vlaneseq
        %v2402 = vshrl.u32 %v2401, 7
        %v2403 = vsub.s32 %v2400, %v2402
        %v2404 = vrot.slane %v2232, %v2403
        %v2406 = vunpack.c.l.s4 1983009808
        %v2407 = vunpack.c.0.s8 %v2406
        %v2408 = vlaneseq
        %v2409 = vshrl.u32 %v2408, 7
        %v2410 = vsub.s32 %v2407, %v2409
        %v2411 = vrot.slane %v2233, %v2410
        %v2412 = vcombine.high %v2411, %v2411
        %v2414 = vunpack.c.l.s4 1983009808
        %v2415 = vunpack.c.0.s8 %v2414
        %v2416 = vlaneseq
        %v2417 = vshrl.u32 %v2416, 7
        %v2418 = vsub.s32 %v2415, %v2417
        %v2419 = vrot.slane %v2234, %v2418
        %v2420 = vcombine.high %v2419, %v2419
        %v2422 = vunpack.c.l.s4 1983009808
        %v2423 = vunpack.c.0.s8 %v2422
        %v2424 = vlaneseq
        %v2425 = vshrl.u32 %v2424, 7
        %v2426 = vsub.s32 %v2423, %v2425
        %v2427 = vrot.slane %v2235, %v2426
        %v2429 = vunpack.c.l.s4 1983009808
        %v2430 = vunpack.c.0.s8 %v2429
        %v2431 = vlaneseq
        %v2432 = vshrl.u32 %v2431, 7
        %v2433 = vsub.s32 %v2430, %v2432
        %v2434 = vrot.slane %v2236, %v2433
        %v2435 = vcombine.high %v2434, %v2434
        %v2437 = vunpack.c.l.s4 1983009808
        %v2438 = vunpack.c.0.s8 %v2437
        %v2439 = vlaneseq
        %v2440 = vshrl.u32 %v2439, 7
        %v2441 = vsub.s32 %v2438, %v2440
        %v2442 = vrot.slane %v2237, %v2441
        %v2443 = vcombine.high %v2442, %v2442
        %v2445 = vunpack.c.l.s4 1983009808
        %v2446 = vunpack.c.0.s8 %v2445
        %v2447 = vlaneseq
        %v2448 = vshrl.u32 %v2447, 7
        %v2449 = vsub.s32 %v2446, %v2448
        %v2450 = vrot.slane %v2238, %v2449
        %v2452 = vunpack.c.l.s4 1983009808
        %v2453 = vunpack.c.0.s8 %v2452
        %v2454 = vlaneseq
        %v2455 = vshrl.u32 %v2454, 7
        %v2456 = vsub.s32 %v2453, %v2455
        %v2457 = vrot.slane %v2239, %v2456
        %v2458 = vcombine.high %v2457, %v2457
        %v2460 = vunpack.c.l.s4 1983009808
        %v2461 = vunpack.c.0.s8 %v2460
        %v2462 = vlaneseq
        %v2463 = vshrl.u32 %v2462, 7
        %v2464 = vsub.s32 %v2461, %v2463
        %v2465 = vrot.slane %v2240, %v2464
        %v2466 = vcombine.high %v2465, %v2465
        %v2468 = vunpack.c.l.s4 1983009808
        %v2469 = vunpack.c.0.s8 %v2468
        %v2470 = vlaneseq
        %v2471 = vshrl.u32 %v2470, 7
        %v2472 = vsub.s32 %v2469, %v2471
        %v2473 = vrot.slane %v2241, %v2472
        %v2475 = vunpack.c.l.s4 1983009808
        %v2476 = vunpack.c.0.s8 %v2475
        %v2477 = vlaneseq
        %v2478 = vshrl.u32 %v2477, 7
        %v2479 = vsub.s32 %v2476, %v2478
        %v2480 = vrot.slane %v2242, %v2479
        %v2481 = vcombine.high %v2480, %v2480
        %v2483 = vunpack.c.l.s4 1983009808
        %v2484 = vunpack.c.0.s8 %v2483
        %v2485 = vlaneseq
        %v2486 = vshrl.u32 %v2485, 7
        %v2487 = vsub.s32 %v2484, %v2486
        %v2488 = vrot.slane %v2243, %v2487
        %v2489 = vcombine.high %v2488, %v2488
        %v2491 = vunpack.c.l.s4 1983009808
        %v2492 = vunpack.c.0.s8 %v2491
        %v2493 = vlaneseq
        %v2494 = vshrl.u32 %v2493, 7
        %v2495 = vsub.s32 %v2492, %v2494
        %v2496 = vrot.slane %v2244, %v2495
        %v2498 = vunpack.c.l.s4 1983009808
        %v2499 = vunpack.c.0.s8 %v2498
        %v2500 = vlaneseq
        %v2501 = vshrl.u32 %v2500, 7
        %v2502 = vsub.s32 %v2499, %v2501
        %v2503 = vrot.slane %v2245, %v2502
        %v2504 = vcombine.high %v2503, %v2503
        %v2506 = vunpack.c.l.s4 1983009808
        %v2507 = vunpack.c.0.s8 %v2506
        %v2508 = vlaneseq
        %v2509 = vshrl.u32 %v2508, 7
        %v2510 = vsub.s32 %v2507, %v2509
        %v2511 = vrot.slane %v2246, %v2510
        %v2512 = vcombine.high %v2511, %v2511
        %v2514 = vunpack.c.l.s4 1983009808
        %v2515 = vunpack.c.0.s8 %v2514
        %v2516 = vlaneseq
        %v2517 = vshrl.u32 %v2516, 7
        %v2518 = vsub.s32 %v2515, %v2517
        %v2519 = vrot.slane %v2247, %v2518
        %v2521 = vunpack.c.l.s4 1983009808
        %v2522 = vunpack.c.0.s8 %v2521
        %v2523 = vlaneseq
        %v2524 = vshrl.u32 %v2523, 7
        %v2525 = vsub.s32 %v2522, %v2524
        %v2526 = vrot.slane %v2248, %v2525
        %v2527 = vcombine.high %v2526, %v2526
        %v2529 = vunpack.c.l.s4 1983009808
        %v2530 = vunpack.c.0.s8 %v2529
        %v2531 = vlaneseq
        %v2532 = vshrl.u32 %v2531, 7
        %v2533 = vsub.s32 %v2530, %v2532
        %v2534 = vrot.slane %v2249, %v2533
        %v2535 = vcombine.high %v2534, %v2534
        %v2537 = vunpack.c.l.s4 1983009808
        %v2538 = vunpack.c.0.s8 %v2537
        %v2539 = vlaneseq
        %v2540 = vshrl.u32 %v2539, 7
        %v2541 = vsub.s32 %v2538, %v2540
        %v2542 = vrot.slane %v2250, %v2541
        %v2544 = vunpack.c.l.s4 1983009808
        %v2545 = vunpack.c.0.s8 %v2544
        %v2546 = vlaneseq
        %v2547 = vshrl.u32 %v2546, 7
        %v2548 = vsub.s32 %v2545, %v2547
        %v2549 = vrot.slane %v2251, %v2548
        %v2550 = vcombine.high %v2549, %v2549
        %v2552 = vunpack.c.l.s4 1983009808
        %v2553 = vunpack.c.0.s8 %v2552
        %v2554 = vlaneseq
        %v2555 = vshrl.u32 %v2554, 7
        %v2556 = vsub.s32 %v2553, %v2555
        %v2557 = vrot.slane %v2252, %v2556
        %v2558 = vcombine.high %v2557, %v2557
        %v2560 = vunpack.c.l.s4 1983009808
        %v2561 = vunpack.c.0.s8 %v2560
        %v2562 = vlaneseq
        %v2563 = vshrl.u32 %v2562, 7
        %v2564 = vsub.s32 %v2561, %v2563
        %v2565 = vrot.slane %v2253, %v2564
        %v2566 = vld [vmem:[%s1] sm:$0xf]
        %v2567 = vld [vmem:[%s1 + $0x4] sm:$0xf]
        %v2568 = vld [vmem:[%s1 + $0x8] sm:$0xf]
        %v2569 = vld [vmem:[%s1 + $0xc] sm:$0xf]
        %v2570 = vld [vmem:[%s1 + $0x10] sm:$0x3]
        %v2571 = vld [vmem:[%s2] sm:$0x1]
        %v2573 = vlaneseq
        %v2574 = vshrl.u32 %v2573, 7
        %v2575 = vsub.s32 0, %v2574
        %v2576 = vrot.slane %v2571, %v2575
        %v2578 = vcombine.low %v2296, %v2297
        %v2579 = vcombine.low %v2304, %v2305
        %v2581 = vunpack.c.l.s4 1983009808
        %v2582 = vunpack.c.0.s8 %v2581
        %v2583 = vlaneseq
        %v2584 = vshrl.u32 %v2583, 7
        %v2585 = vsub.s32 %v2582, %v2584
        %v2586 = vrot.slane %v2578, %v2585
        %v2588 = vunpack.c.l.s4 1983009808
        %v2589 = vunpack.c.0.s8 %v2588
        %v2590 = vlaneseq
        %v2591 = vshrl.u32 %v2590, 7
        %v2592 = vsub.s32 %v2589, %v2591
        %v2593 = vrot.slane %v2579, %v2592
        %v2594 = vcombine.low %v2586, %v2593
        %v2595 = vcombine.low %v2312, %v2319
        %v2596 = vcombine.low %v2320, %v2327
        %v2598 = vunpack.c.l.s4 1983009808
        %v2599 = vunpack.c.0.s8 %v2598
        %v2600 = vlaneseq
        %v2601 = vshrl.u32 %v2600, 7
        %v2602 = vsub.s32 %v2599, %v2601
        %v2603 = vrot.slane %v2595, %v2602
        %v2605 = vunpack.c.l.s4 1983009808
        %v2606 = vunpack.c.0.s8 %v2605
        %v2607 = vlaneseq
        %v2608 = vshrl.u32 %v2607, 7
        %v2609 = vsub.s32 %v2606, %v2608
        %v2610 = vrot.slane %v2596, %v2609
        %v2611 = vcombine.low %v2603, %v2610
        %v2612 = vcombine.low %v2328, %v2335
        %v2613 = vcombine.low %v2342, %v2343
        %v2615 = vunpack.c.l.s4 1983009808
        %v2616 = vunpack.c.0.s8 %v2615
        %v2617 = vlaneseq
        %v2618 = vshrl.u32 %v2617, 7
        %v2619 = vsub.s32 %v2616, %v2618
        %v2620 = vrot.slane %v2612, %v2619
        %v2622 = vunpack.c.l.s4 1983009808
        %v2623 = vunpack.c.0.s8 %v2622
        %v2624 = vlaneseq
        %v2625 = vshrl.u32 %v2624, 7
        %v2626 = vsub.s32 %v2623, %v2625
        %v2627 = vrot.slane %v2613, %v2626
        %v2628 = vcombine.low %v2620, %v2627
        %v2629 = vcombine.low %v2350, %v2351
        %v2630 = vcombine.low %v2358, %v2365
        %v2632 = vunpack.c.l.s4 1983009808
        %v2633 = vunpack.c.0.s8 %v2632
        %v2634 = vlaneseq
        %v2635 = vshrl.u32 %v2634, 7
        %v2636 = vsub.s32 %v2633, %v2635
        %v2637 = vrot.slane %v2629, %v2636
        %v2639 = vunpack.c.l.s4 1983009808
        %v2640 = vunpack.c.0.s8 %v2639
        %v2641 = vlaneseq
        %v2642 = vshrl.u32 %v2641, 7
        %v2643 = vsub.s32 %v2640, %v2642
        %v2644 = vrot.slane %v2630, %v2643
        %v2645 = vcombine.low %v2637, %v2644
        %v2646 = vcombine.low %v2366, %v2373
        %v2647 = vcombine.low %v2374, %v2381
        %v2649 = vunpack.c.l.s4 1983009808
        %v2650 = vunpack.c.0.s8 %v2649
        %v2651 = vlaneseq
        %v2652 = vshrl.u32 %v2651, 7
        %v2653 = vsub.s32 %v2650, %v2652
        %v2654 = vrot.slane %v2646, %v2653
        %v2656 = vunpack.c.l.s4 1983009808
        %v2657 = vunpack.c.0.s8 %v2656
        %v2658 = vlaneseq
        %v2659 = vshrl.u32 %v2658, 7
        %v2660 = vsub.s32 %v2657, %v2659
        %v2661 = vrot.slane %v2647, %v2660
        %v2662 = vcombine.low %v2654, %v2661
        %v2663 = vcombine.low %v2388, %v2389
        %v2664 = vcombine.low %v2396, %v2397
        %v2666 = vunpack.c.l.s4 1983009808
        %v2667 = vunpack.c.0.s8 %v2666
        %v2668 = vlaneseq
        %v2669 = vshrl.u32 %v2668, 7
        %v2670 = vsub.s32 %v2667, %v2669
        %v2671 = vrot.slane %v2663, %v2670
        %v2673 = vunpack.c.l.s4 1983009808
        %v2674 = vunpack.c.0.s8 %v2673
        %v2675 = vlaneseq
        %v2676 = vshrl.u32 %v2675, 7
        %v2677 = vsub.s32 %v2674, %v2676
        %v2678 = vrot.slane %v2664, %v2677
        %v2679 = vcombine.low %v2671, %v2678
        %v2680 = vcombine.low %v2404, %v2411
        %v2681 = vcombine.low %v2412, %v2419
        %v2683 = vunpack.c.l.s4 1983009808
        %v2684 = vunpack.c.0.s8 %v2683
        %v2685 = vlaneseq
        %v2686 = vshrl.u32 %v2685, 7
        %v2687 = vsub.s32 %v2684, %v2686
        %v2688 = vrot.slane %v2680, %v2687
        %v2690 = vunpack.c.l.s4 1983009808
        %v2691 = vunpack.c.0.s8 %v2690
        %v2692 = vlaneseq
        %v2693 = vshrl.u32 %v2692, 7
        %v2694 = vsub.s32 %v2691, %v2693
        %v2695 = vrot.slane %v2681, %v2694
        %v2696 = vcombine.low %v2688, %v2695
        %v2697 = vcombine.low %v2420, %v2427
        %v2698 = vcombine.low %v2434, %v2435
        %v2700 = vunpack.c.l.s4 1983009808
        %v2701 = vunpack.c.0.s8 %v2700
        %v2702 = vlaneseq
        %v2703 = vshrl.u32 %v2702, 7
        %v2704 = vsub.s32 %v2701, %v2703
        %v2705 = vrot.slane %v2697, %v2704
        %v2707 = vunpack.c.l.s4 1983009808
        %v2708 = vunpack.c.0.s8 %v2707
        %v2709 = vlaneseq
        %v2710 = vshrl.u32 %v2709, 7
        %v2711 = vsub.s32 %v2708, %v2710
        %v2712 = vrot.slane %v2698, %v2711
        %v2713 = vcombine.low %v2705, %v2712
        %v2714 = vcombine.low %v2442, %v2443
        %v2715 = vcombine.low %v2450, %v2457
        %v2717 = vunpack.c.l.s4 1983009808
        %v2718 = vunpack.c.0.s8 %v2717
        %v2719 = vlaneseq
        %v2720 = vshrl.u32 %v2719, 7
        %v2721 = vsub.s32 %v2718, %v2720
        %v2722 = vrot.slane %v2714, %v2721
        %v2724 = vunpack.c.l.s4 1983009808
        %v2725 = vunpack.c.0.s8 %v2724
        %v2726 = vlaneseq
        %v2727 = vshrl.u32 %v2726, 7
        %v2728 = vsub.s32 %v2725, %v2727
        %v2729 = vrot.slane %v2715, %v2728
        %v2730 = vcombine.low %v2722, %v2729
        %v2731 = vcombine.low %v2458, %v2465
        %v2732 = vcombine.low %v2466, %v2473
        %v2734 = vunpack.c.l.s4 1983009808
        %v2735 = vunpack.c.0.s8 %v2734
        %v2736 = vlaneseq
        %v2737 = vshrl.u32 %v2736, 7
        %v2738 = vsub.s32 %v2735, %v2737
        %v2739 = vrot.slane %v2731, %v2738
        %v2741 = vunpack.c.l.s4 1983009808
        %v2742 = vunpack.c.0.s8 %v2741
        %v2743 = vlaneseq
        %v2744 = vshrl.u32 %v2743, 7
        %v2745 = vsub.s32 %v2742, %v2744
        %v2746 = vrot.slane %v2732, %v2745
        %v2747 = vcombine.low %v2739, %v2746
        %v2748 = vcombine.low %v2480, %v2481
        %v2749 = vcombine.low %v2488, %v2489
        %v2751 = vunpack.c.l.s4 1983009808
        %v2752 = vunpack.c.0.s8 %v2751
        %v2753 = vlaneseq
        %v2754 = vshrl.u32 %v2753, 7
        %v2755 = vsub.s32 %v2752, %v2754
        %v2756 = vrot.slane %v2748, %v2755
        %v2758 = vunpack.c.l.s4 1983009808
        %v2759 = vunpack.c.0.s8 %v2758
        %v2760 = vlaneseq
        %v2761 = vshrl.u32 %v2760, 7
        %v2762 = vsub.s32 %v2759, %v2761
        %v2763 = vrot.slane %v2749, %v2762
        %v2764 = vcombine.low %v2756, %v2763
        %v2765 = vcombine.low %v2496, %v2503
        %v2766 = vcombine.low %v2504, %v2511
        %v2768 = vunpack.c.l.s4 1983009808
        %v2769 = vunpack.c.0.s8 %v2768
        %v2770 = vlaneseq
        %v2771 = vshrl.u32 %v2770, 7
        %v2772 = vsub.s32 %v2769, %v2771
        %v2773 = vrot.slane %v2765, %v2772
        %v2775 = vunpack.c.l.s4 1983009808
        %v2776 = vunpack.c.0.s8 %v2775
        %v2777 = vlaneseq
        %v2778 = vshrl.u32 %v2777, 7
        %v2779 = vsub.s32 %v2776, %v2778
        %v2780 = vrot.slane %v2766, %v2779
        %v2781 = vcombine.low %v2773, %v2780
        %v2782 = vcombine.low %v2512, %v2519
        %v2783 = vcombine.low %v2526, %v2527
        %v2785 = vunpack.c.l.s4 1983009808
        %v2786 = vunpack.c.0.s8 %v2785
        %v2787 = vlaneseq
        %v2788 = vshrl.u32 %v2787, 7
        %v2789 = vsub.s32 %v2786, %v2788
        %v2790 = vrot.slane %v2782, %v2789
        %v2792 = vunpack.c.l.s4 1983009808
        %v2793 = vunpack.c.0.s8 %v2792
        %v2794 = vlaneseq
        %v2795 = vshrl.u32 %v2794, 7
        %v2796 = vsub.s32 %v2793, %v2795
        %v2797 = vrot.slane %v2783, %v2796
        %v2798 = vcombine.low %v2790, %v2797
        %v2799 = vcombine.low %v2534, %v2535
        %v2800 = vcombine.low %v2542, %v2549
        %v2802 = vunpack.c.l.s4 1983009808
        %v2803 = vunpack.c.0.s8 %v2802
        %v2804 = vlaneseq
        %v2805 = vshrl.u32 %v2804, 7
        %v2806 = vsub.s32 %v2803, %v2805
        %v2807 = vrot.slane %v2799, %v2806
        %v2809 = vunpack.c.l.s4 1983009808
        %v2810 = vunpack.c.0.s8 %v2809
        %v2811 = vlaneseq
        %v2812 = vshrl.u32 %v2811, 7
        %v2813 = vsub.s32 %v2810, %v2812
        %v2814 = vrot.slane %v2800, %v2813
        %v2815 = vcombine.low %v2807, %v2814
        %v2816 = vcombine.low %v2550, %v2557
        %v2817 = vcombine.low %v2558, %v2565
        %v2819 = vunpack.c.l.s4 1983009808
        %v2820 = vunpack.c.0.s8 %v2819
        %v2821 = vlaneseq
        %v2822 = vshrl.u32 %v2821, 7
        %v2823 = vsub.s32 %v2820, %v2822
        %v2824 = vrot.slane %v2816, %v2823
        %v2826 = vunpack.c.l.s4 1983009808
        %v2827 = vunpack.c.0.s8 %v2826
        %v2828 = vlaneseq
        %v2829 = vshrl.u32 %v2828, 7
        %v2830 = vsub.s32 %v2827, %v2829
        %v2831 = vrot.slane %v2817, %v2830
        %v2832 = vcombine.low %v2824, %v2831
        %v2838 = vunpack.c.l.b16 %v2566
        %v2839 = vunpack.c.l.b16 %v2567
        %v2840 = vunpack.c.l.b16 %v2568
        %v2841 = vunpack.c.l.b16 %v2569
        %v2842 = vunpack.c.l.b16 %v2570
        %v2843 = vpack.c.b16 %v2839, %v2838
        %v2844 = vpack.c.b16 %v2841, %v2840
        %v2845 = vpack.c.b16 %v2842, %v2842
        %vm2848 = vcmask 293888
        %v2850 = vsel %vm2848, %v2594, 0
        %v2853 = vsel %vm2848, %v2611, 0
        %v2856 = vsel %vm2848, %v2628, 0
        %v2859 = vsel %vm2848, %v2645, 0
        %v2862 = vsel %vm2848, %v2662, 0
        %v2865 = vsel %vm2848, %v2679, 0
        %v2868 = vsel %vm2848, %v2696, 0
        %v2871 = vsel %vm2848, %v2713, 0
        %v2874 = vsel %vm2848, %v2730, 0
        %v2877 = vsel %vm2848, %v2747, 0
        %v2880 = vsel %vm2848, %v2764, 0
        %v2883 = vsel %vm2848, %v2781, 0
        %v2886 = vsel %vm2848, %v2798, 0
        %v2889 = vsel %vm2848, %v2815, 0
        %v2892 = vsel %vm2848, %v2832, 0
        %vm2894 = vcmask 1041408
        %v2896 = vsel %vm2894, %v2845, 0
        %2898 = vmatprep.subr.bf16.mxu0 0
        %2899 = vmatpush1.bf16.msra.mxu0 0
        %2900 = vmatprep.subr.bf16.mxu0 0
        %2901 = vmatpush1.bf16.msra.mxu0 0
        %2902 = vmatprep.subr.bf16.mxu0 0
        %2903 = vmatpush1.bf16.msra.mxu0 0
        %2904 = vmatprep.subr.bf16.mxu0 0
        %2905 = vmatpush1.bf16.msra.mxu0 0
        %2906 = vmatprep.subr.bf16.mxu0 0
        %2907 = vmatpush1.bf16.msra.mxu0 0
        %2908 = vmatprep.subr.bf16.mxu0 0
        %2909 = vmatpush1.bf16.msra.mxu0 %v2896
        %2910 = vmatprep.subr.bf16.mxu0 0
        %2911 = vmatpush1.bf16.msra.mxu0 %v2844
        %2912 = vmatprep.subr.bf16.mxu0 0
        %2913 = vmatpush1.bf16.msra.mxu0 %v2843
        %2914 = vmatprep.subr.bf16.mxu0 0
        %2915 = vmatpush2.bf16.msra.mxu0 0
        %2916 = vmatprep.subr.bf16.mxu0 0
        %2917 = vmatpush2.bf16.msra.mxu0 0
        %2918 = vmatprep.subr.bf16.mxu0 0
        %2919 = vmatpush2.bf16.msra.mxu0 0
        %2920 = vmatprep.subr.bf16.mxu0 0
        %2921 = vmatpush2.bf16.msra.mxu0 0
        %2922 = vmatprep.subr.bf16.mxu0 0
        %2923 = vmatpush2.bf16.msra.mxu0 0
        %2924 = vmatprep.subr.bf16.mxu0 0
        %2925 = vmatpush2.bf16.msra.mxu0 0
        %2926 = vmatprep.subr.bf16.mxu0 0
        %2927 = vmatpush2.bf16.msra.mxu0 0
        %2928 = vmatprep.subr.bf16.mxu0 0
        %2929 = vmatpush2.bf16.msra.mxu0 0
        %2930 = vmatprep.mubr.bf16.mxu0 0
        %2931 = vmatmul.mubr.bf16.gmra.mxu0 %v2850
        %v2932 = vpop.f32.mrf.mxu0
        %v2933 = vadd.f32 %v2576, %v2932
        %v2934 = vpop.f32.mrf.mxu0
        %v2935 = vpop.f32.mrf.mxu0
        %v2936 = vadd.f32 %v2576, %v2935
        %v2937 = vpop.f32.mrf.mxu0
        %2938 = vmatprep.mubr.bf16.mxu0 0
        %2939 = vmatmul.mubr.bf16.gmra.mxu0 %v2853
        %v2940 = vpop.f32.mrf.mxu0
        %v2941 = vadd.f32 %v2576, %v2940
        %v2942 = vpop.f32.mrf.mxu0
        %v2943 = vpop.f32.mrf.mxu0
        %v2944 = vadd.f32 %v2576, %v2943
        %v2945 = vpop.f32.mrf.mxu0
        %2946 = vmatprep.mubr.bf16.mxu0 0
        %2947 = vmatmul.mubr.bf16.gmra.mxu0 %v2856
        %v2948 = vpop.f32.mrf.mxu0
        %v2949 = vadd.f32 %v2576, %v2948
        %v2950 = vpop.f32.mrf.mxu0
        %v2951 = vpop.f32.mrf.mxu0
        %v2952 = vadd.f32 %v2576, %v2951
        %v2953 = vpop.f32.mrf.mxu0
        %2954 = vmatprep.mubr.bf16.mxu0 0
        %2955 = vmatmul.mubr.bf16.gmra.mxu0 %v2859
        %v2956 = vpop.f32.mrf.mxu0
        %v2957 = vadd.f32 %v2576, %v2956
        %v2958 = vpop.f32.mrf.mxu0
        %v2959 = vpop.f32.mrf.mxu0
        %v2960 = vadd.f32 %v2576, %v2959
        %v2961 = vpop.f32.mrf.mxu0
        %2962 = vmatprep.mubr.bf16.mxu0 0
        %2963 = vmatmul.mubr.bf16.gmra.mxu0 %v2862
        %v2964 = vpop.f32.mrf.mxu0
        %v2965 = vadd.f32 %v2576, %v2964
        %v2966 = vpop.f32.mrf.mxu0
        %v2967 = vpop.f32.mrf.mxu0
        %v2968 = vadd.f32 %v2576, %v2967
        %v2969 = vpop.f32.mrf.mxu0
        %2970 = vmatprep.mubr.bf16.mxu0 0
        %2971 = vmatmul.mubr.bf16.gmra.mxu0 %v2865
        %v2972 = vpop.f32.mrf.mxu0
        %v2973 = vadd.f32 %v2576, %v2972
        %v2974 = vpop.f32.mrf.mxu0
        %v2975 = vpop.f32.mrf.mxu0
        %v2976 = vadd.f32 %v2576, %v2975
        %v2977 = vpop.f32.mrf.mxu0
        %2978 = vmatprep.mubr.bf16.mxu0 0
        %2979 = vmatmul.mubr.bf16.gmra.mxu0 %v2868
        %v2980 = vpop.f32.mrf.mxu0
        %v2981 = vadd.f32 %v2576, %v2980
        %v2982 = vpop.f32.mrf.mxu0
        %v2983 = vpop.f32.mrf.mxu0
        %v2984 = vadd.f32 %v2576, %v2983
        %v2985 = vpop.f32.mrf.mxu0
        %2986 = vmatprep.mubr.bf16.mxu0 0
        %2987 = vmatmul.mubr.bf16.gmra.mxu0 %v2871
        %v2988 = vpop.f32.mrf.mxu0
        %v2989 = vadd.f32 %v2576, %v2988
        %v2990 = vpop.f32.mrf.mxu0
        %v2991 = vpop.f32.mrf.mxu0
        %v2992 = vadd.f32 %v2576, %v2991
        %v2993 = vpop.f32.mrf.mxu0
        %2994 = vmatprep.mubr.bf16.mxu0 0
        %2995 = vmatmul.mubr.bf16.gmra.mxu0 %v2874
        %v2996 = vpop.f32.mrf.mxu0
        %v2997 = vadd.f32 %v2576, %v2996
        %v2998 = vpop.f32.mrf.mxu0
        %v2999 = vpop.f32.mrf.mxu0
        %v3000 = vadd.f32 %v2576, %v2999
        %v3001 = vpop.f32.mrf.mxu0
        %3002 = vmatprep.mubr.bf16.mxu0 0
        %3003 = vmatmul.mubr.bf16.gmra.mxu0 %v2877
        %v3004 = vpop.f32.mrf.mxu0
        %v3005 = vadd.f32 %v2576, %v3004
        %v3006 = vpop.f32.mrf.mxu0
        %v3007 = vpop.f32.mrf.mxu0
        %v3008 = vadd.f32 %v2576, %v3007
        %v3009 = vpop.f32.mrf.mxu0
        %3010 = vmatprep.mubr.bf16.mxu0 0
        %3011 = vmatmul.mubr.bf16.gmra.mxu0 %v2880
        %v3012 = vpop.f32.mrf.mxu0
        %v3013 = vadd.f32 %v2576, %v3012
        %v3014 = vpop.f32.mrf.mxu0
        %v3015 = vpop.f32.mrf.mxu0
        %v3016 = vadd.f32 %v2576, %v3015
        %v3017 = vpop.f32.mrf.mxu0
        %3018 = vmatprep.mubr.bf16.mxu0 0
        %3019 = vmatmul.mubr.bf16.gmra.mxu0 %v2883
        %v3020 = vpop.f32.mrf.mxu0
        %v3021 = vadd.f32 %v2576, %v3020
        %v3022 = vpop.f32.mrf.mxu0
        %v3023 = vpop.f32.mrf.mxu0
        %v3024 = vadd.f32 %v2576, %v3023
        %v3025 = vpop.f32.mrf.mxu0
        %3026 = vmatprep.mubr.bf16.mxu0 0
        %3027 = vmatmul.mubr.bf16.gmra.mxu0 %v2886
        %v3028 = vpop.f32.mrf.mxu0
        %v3029 = vadd.f32 %v2576, %v3028
        %v3030 = vpop.f32.mrf.mxu0
        %v3031 = vpop.f32.mrf.mxu0
        %v3032 = vadd.f32 %v2576, %v3031
        %v3033 = vpop.f32.mrf.mxu0
        %3034 = vmatprep.mubr.bf16.mxu0 0
        %3035 = vmatmul.mubr.bf16.gmra.mxu0 %v2889
        %v3036 = vpop.f32.mrf.mxu0
        %v3037 = vadd.f32 %v2576, %v3036
        %v3038 = vpop.f32.mrf.mxu0
        %v3039 = vpop.f32.mrf.mxu0
        %v3040 = vadd.f32 %v2576, %v3039
        %v3041 = vpop.f32.mrf.mxu0
        %3042 = vmatprep.mubr.bf16.mxu0 0
        %3043 = vmatmul.mubr.bf16.gmra.mxu0 %v2892
        %v3044 = vpop.f32.mrf.mxu0
        %v3045 = vadd.f32 %v2576, %v3044
        %v3046 = vpop.f32.mrf.mxu0
        %v3047 = vpop.f32.mrf.mxu0
        %v3048 = vadd.f32 %v2576, %v3047
        %v3049 = vpop.f32.mrf.mxu0
        %3050 = vdwg.mxu0
        %vm3051 = vcmp.ge.f32.partialorder %v2933, 0.0
        %vm3052 = vcmp.ge.f32.partialorder %v2936, 0.0
        %vm3053 = vcmp.ge.f32.partialorder %v2941, 0.0
        %vm3054 = vcmp.ge.f32.partialorder %v2944, 0.0
        %vm3055 = vcmp.ge.f32.partialorder %v2949, 0.0
        %vm3056 = vcmp.ge.f32.partialorder %v2952, 0.0
        %vm3057 = vcmp.ge.f32.partialorder %v2957, 0.0
        %vm3058 = vcmp.ge.f32.partialorder %v2960, 0.0
        %vm3059 = vcmp.ge.f32.partialorder %v2965, 0.0
        %vm3060 = vcmp.ge.f32.partialorder %v2968, 0.0
        %vm3061 = vcmp.ge.f32.partialorder %v2973, 0.0
        %vm3062 = vcmp.ge.f32.partialorder %v2976, 0.0
        %vm3063 = vcmp.ge.f32.partialorder %v2981, 0.0
        %vm3064 = vcmp.ge.f32.partialorder %v2984, 0.0
        %vm3065 = vcmp.ge.f32.partialorder %v2989, 0.0
        %vm3066 = vcmp.ge.f32.partialorder %v2992, 0.0
        %vm3067 = vcmp.ge.f32.partialorder %v2997, 0.0
        %vm3068 = vcmp.ge.f32.partialorder %v3000, 0.0
        %vm3069 = vcmp.ge.f32.partialorder %v3005, 0.0
        %vm3070 = vcmp.ge.f32.partialorder %v3008, 0.0
        %vm3071 = vcmp.ge.f32.partialorder %v3013, 0.0
        %vm3072 = vcmp.ge.f32.partialorder %v3016, 0.0
        %vm3073 = vcmp.ge.f32.partialorder %v3021, 0.0
        %vm3074 = vcmp.ge.f32.partialorder %v3024, 0.0
        %vm3075 = vcmp.ge.f32.partialorder %v3029, 0.0
        %vm3076 = vcmp.ge.f32.partialorder %v3032, 0.0
        %vm3077 = vcmp.ge.f32.partialorder %v3037, 0.0
        %vm3078 = vcmp.ge.f32.partialorder %v3040, 0.0
        %vm3079 = vcmp.ge.f32.partialorder %v3045, 0.0
        %vm3080 = vcmp.ge.f32.partialorder %v3048, 0.0
        %v3081 = vmul.f32 %v2933, 0.1
        %v3082 = vmul.f32 %v2936, 0.1
        %v3083 = vmul.f32 %v2941, 0.1
        %v3084 = vmul.f32 %v2944, 0.1
        %v3085 = vmul.f32 %v2949, 0.1
        %v3086 = vmul.f32 %v2952, 0.1
        %v3087 = vmul.f32 %v2957, 0.1
        %v3088 = vmul.f32 %v2960, 0.1
        %v3089 = vmul.f32 %v2965, 0.1
        %v3090 = vmul.f32 %v2968, 0.1
        %v3091 = vmul.f32 %v2973, 0.1
        %v3092 = vmul.f32 %v2976, 0.1
        %v3093 = vmul.f32 %v2981, 0.1
        %v3094 = vmul.f32 %v2984, 0.1
        %v3095 = vmul.f32 %v2989, 0.1
        %v3096 = vmul.f32 %v2992, 0.1
        %v3097 = vmul.f32 %v2997, 0.1
        %v3098 = vmul.f32 %v3000, 0.1
        %v3099 = vmul.f32 %v3005, 0.1
        %v3100 = vmul.f32 %v3008, 0.1
        %v3101 = vmul.f32 %v3013, 0.1
        %v3102 = vmul.f32 %v3016, 0.1
        %v3103 = vmul.f32 %v3021, 0.1
        %v3104 = vmul.f32 %v3024, 0.1
        %v3105 = vmul.f32 %v3029, 0.1
        %v3106 = vmul.f32 %v3032, 0.1
        %v3107 = vmul.f32 %v3037, 0.1
        %v3108 = vmul.f32 %v3040, 0.1
        %v3109 = vmul.f32 %v3045, 0.1
        %v3110 = vmul.f32 %v3048, 0.1
        %v3111 = vsel %vm3051, %v2933, %v3081
        %v3112 = vsel %vm3052, %v2936, %v3082
        %v3113 = vsel %vm3053, %v2941, %v3083
        %v3114 = vsel %vm3054, %v2944, %v3084
        %v3115 = vsel %vm3055, %v2949, %v3085
        %v3116 = vsel %vm3056, %v2952, %v3086
        %v3117 = vsel %vm3057, %v2957, %v3087
        %v3118 = vsel %vm3058, %v2960, %v3088
        %v3119 = vsel %vm3059, %v2965, %v3089
        %v3120 = vsel %vm3060, %v2968, %v3090
        %v3121 = vsel %vm3061, %v2973, %v3091
        %v3122 = vsel %vm3062, %v2976, %v3092
        %v3123 = vsel %vm3063, %v2981, %v3093
        %v3124 = vsel %vm3064, %v2984, %v3094
        %v3125 = vsel %vm3065, %v2989, %v3095
        %v3126 = vsel %vm3066, %v2992, %v3096
        %v3127 = vsel %vm3067, %v2997, %v3097
        %v3128 = vsel %vm3068, %v3000, %v3098
        %v3129 = vsel %vm3069, %v3005, %v3099
        %v3130 = vsel %vm3070, %v3008, %v3100
        %v3131 = vsel %vm3071, %v3013, %v3101
        %v3132 = vsel %vm3072, %v3016, %v3102
        %v3133 = vsel %vm3073, %v3021, %v3103
        %v3134 = vsel %vm3074, %v3024, %v3104
        %v3135 = vsel %vm3075, %v3029, %v3105
        %v3136 = vsel %vm3076, %v3032, %v3106
        %v3137 = vsel %vm3077, %v3037, %v3107
        %v3138 = vsel %vm3078, %v3040, %v3108
        %v3139 = vsel %vm3079, %v3045, %v3109
        %v3140 = vsel %vm3080, %v3048, %v3110
        %v3171 = vcombine.high %v3111, %v3111
        %v3172 = vcombine.high %v3112, %v3112
        %v3173 = vcombine.high %v3113, %v3113
        %v3174 = vcombine.high %v3114, %v3114
        %v3175 = vcombine.high %v3115, %v3115
        %v3176 = vcombine.high %v3116, %v3116
        %v3177 = vcombine.high %v3117, %v3117
        %v3178 = vcombine.high %v3118, %v3118
        %v3179 = vcombine.high %v3119, %v3119
        %v3180 = vcombine.high %v3120, %v3120
        %v3181 = vcombine.high %v3121, %v3121
        %v3182 = vcombine.high %v3122, %v3122
        %v3183 = vcombine.high %v3123, %v3123
        %v3184 = vcombine.high %v3124, %v3124
        %v3185 = vcombine.high %v3125, %v3125
        %v3186 = vcombine.high %v3126, %v3126
        %v3187 = vcombine.high %v3127, %v3127
        %v3188 = vcombine.high %v3128, %v3128
        %v3189 = vcombine.high %v3129, %v3129
        %v3190 = vcombine.high %v3130, %v3130
        %v3191 = vcombine.high %v3131, %v3131
        %v3192 = vcombine.high %v3132, %v3132
        %v3193 = vcombine.high %v3133, %v3133
        %v3194 = vcombine.high %v3134, %v3134
        %v3195 = vcombine.high %v3135, %v3135
        %v3196 = vcombine.high %v3136, %v3136
        %v3197 = vcombine.high %v3137, %v3137
        %v3198 = vcombine.high %v3138, %v3138
        %v3199 = vcombine.high %v3139, %v3139
        %v3200 = vcombine.high %v3140, %v3140
        %s3207 = ssub.s32 %s400, 2
        %v3208 = vstv %s3207
        %v3209 = vadd.s32 %v3208, 1
        %v3210 = vadd.s32 %v3208, 2
        %v3211 = vadd.s32 %v3208, 3
        %v3212 = vadd.s32 %v3208, 4
        %v3213 = vadd.s32 %v3208, 5
        %v3214 = vadd.s32 %v3208, 6
        %v3215 = vadd.s32 %v3208, 7
        %v3216 = vadd.s32 %v3208, 8
        %v3217 = vadd.s32 %v3208, 9
        %v3218 = vadd.s32 %v3208, 10
        %v3219 = vadd.s32 %v3208, 11
        %v3220 = vlaneseq
        %v3221 = vshrl.u32 %v3220, 7
        %v3222 = vadd.s32 %v3221, 8
        %v3223 = vadd.s32 %v3221, 16
        %v3224 = vsub.s32 %v3221, 2
        %v3225 = vsub.s32 %v3222, 2
        %v3226 = vsub.s32 %v3223, 2
        %vm3227 = vcmp.ge.s32.totalorder %v3208, 0
        %vm3228 = vcmp.ge.s32.totalorder %v3209, 0
        %vm3229 = vcmp.ge.s32.totalorder %v3210, 0
        %vm3230 = vcmp.ge.s32.totalorder %v3211, 0
        %vm3231 = vcmp.ge.s32.totalorder %v3212, 0
        %vm3232 = vcmp.ge.s32.totalorder %v3213, 0
        %vm3233 = vcmp.ge.s32.totalorder %v3214, 0
        %vm3234 = vcmp.ge.s32.totalorder %v3215, 0
        %vm3235 = vcmp.ge.s32.totalorder %v3216, 0
        %vm3236 = vcmp.ge.s32.totalorder %v3217, 0
        %vm3237 = vcmp.ge.s32.totalorder %v3218, 0
        %vm3238 = vcmp.ge.s32.totalorder %v3219, 0
        %vm3239 = vcmp.lt.s32.totalorder %v3208, 16
        %vm3240 = vcmp.lt.s32.totalorder %v3209, 16
        %vm3241 = vcmp.lt.s32.totalorder %v3210, 16
        %vm3242 = vcmp.lt.s32.totalorder %v3211, 16
        %vm3243 = vcmp.lt.s32.totalorder %v3212, 16
        %vm3244 = vcmp.lt.s32.totalorder %v3213, 16
        %vm3245 = vcmp.lt.s32.totalorder %v3214, 16
        %vm3246 = vcmp.lt.s32.totalorder %v3215, 16
        %vm3247 = vcmp.lt.s32.totalorder %v3216, 16
        %vm3248 = vcmp.lt.s32.totalorder %v3217, 16
        %vm3249 = vcmp.lt.s32.totalorder %v3218, 16
        %vm3250 = vcmp.lt.s32.totalorder %v3219, 16
        %vm3251 = vmand %vm3227, %vm3239
        %vm3252 = vmand %vm3228, %vm3240
        %vm3253 = vmand %vm3229, %vm3241
        %vm3254 = vmand %vm3230, %vm3242
        %vm3255 = vmand %vm3231, %vm3243
        %vm3256 = vmand %vm3232, %vm3244
        %vm3257 = vmand %vm3233, %vm3245
        %vm3258 = vmand %vm3234, %vm3246
        %vm3259 = vmand %vm3235, %vm3247
        %vm3260 = vmand %vm3236, %vm3248
        %vm3261 = vmand %vm3237, %vm3249
        %vm3262 = vmand %vm3238, %vm3250
        %vm3263 = vcmp.ge.s32.totalorder %v3224, 0
        %vm3264 = vcmp.ge.s32.totalorder %v3225, 0
        %vm3265 = vcmp.ge.s32.totalorder %v3226, 0
        %vm3266 = vmand %vm3251, %vm3263
        %vm3267 = vmand %vm3251, %vm3264
        %vm3268 = vmand %vm3251, %vm3265
        %vm3269 = vmand %vm3252, %vm3263
        %vm3270 = vmand %vm3252, %vm3264
        %vm3271 = vmand %vm3252, %vm3265
        %vm3272 = vmand %vm3253, %vm3263
        %vm3273 = vmand %vm3253, %vm3264
        %vm3274 = vmand %vm3253, %vm3265
        %vm3275 = vmand %vm3254, %vm3263
        %vm3276 = vmand %vm3254, %vm3264
        %vm3277 = vmand %vm3254, %vm3265
        %vm3278 = vmand %vm3255, %vm3263
        %vm3279 = vmand %vm3255, %vm3264
        %vm3280 = vmand %vm3255, %vm3265
        %vm3281 = vmand %vm3256, %vm3263
        %vm3282 = vmand %vm3256, %vm3264
        %vm3283 = vmand %vm3256, %vm3265
        %vm3284 = vmand %vm3257, %vm3263
        %vm3285 = vmand %vm3257, %vm3264
        %vm3286 = vmand %vm3257, %vm3265
        %vm3287 = vmand %vm3258, %vm3263
        %vm3288 = vmand %vm3258, %vm3264
        %vm3289 = vmand %vm3258, %vm3265
        %vm3290 = vmand %vm3259, %vm3263
        %vm3291 = vmand %vm3259, %vm3264
        %vm3292 = vmand %vm3259, %vm3265
        %vm3293 = vmand %vm3260, %vm3263
        %vm3294 = vmand %vm3260, %vm3264
        %vm3295 = vmand %vm3260, %vm3265
        %vm3296 = vmand %vm3261, %vm3263
        %vm3297 = vmand %vm3261, %vm3264
        %vm3298 = vmand %vm3261, %vm3265
        %vm3299 = vmand %vm3262, %vm3263
        %vm3300 = vmand %vm3262, %vm3264
        %vm3301 = vmand %vm3262, %vm3265
        %vm3302 = vcmp.lt.s32.totalorder %v3224, 16
        %vm3303 = vcmp.lt.s32.totalorder %v3225, 16
        %vm3304 = vcmp.lt.s32.totalorder %v3226, 16
        %vm3305 = vmand %vm3266, %vm3302
        %vm3306 = vmand %vm3267, %vm3303
        %vm3307 = vmand %vm3268, %vm3304
        %vm3308 = vmand %vm3269, %vm3302
        %vm3309 = vmand %vm3270, %vm3303
        %vm3310 = vmand %vm3271, %vm3304
        %vm3311 = vmand %vm3272, %vm3302
        %vm3312 = vmand %vm3273, %vm3303
        %vm3313 = vmand %vm3274, %vm3304
        %vm3314 = vmand %vm3275, %vm3302
        %vm3315 = vmand %vm3276, %vm3303
        %vm3316 = vmand %vm3277, %vm3304
        %vm3317 = vmand %vm3278, %vm3302
        %vm3318 = vmand %vm3279, %vm3303
        %vm3319 = vmand %vm3280, %vm3304
        %vm3320 = vmand %vm3281, %vm3302
        %vm3321 = vmand %vm3282, %vm3303
        %vm3322 = vmand %vm3283, %vm3304
        %vm3323 = vmand %vm3284, %vm3302
        %vm3324 = vmand %vm3285, %vm3303
        %vm3325 = vmand %vm3286, %vm3304
        %vm3326 = vmand %vm3287, %vm3302
        %vm3327 = vmand %vm3288, %vm3303
        %vm3328 = vmand %vm3289, %vm3304
        %vm3329 = vmand %vm3290, %vm3302
        %vm3330 = vmand %vm3291, %vm3303
        %vm3331 = vmand %vm3292, %vm3304
        %vm3332 = vmand %vm3293, %vm3302
        %vm3333 = vmand %vm3294, %vm3303
        %vm3334 = vmand %vm3295, %vm3304
        %vm3335 = vmand %vm3296, %vm3302
        %vm3336 = vmand %vm3297, %vm3303
        %vm3337 = vmand %vm3298, %vm3304
        %vm3338 = vmand %vm3299, %vm3302
        %vm3339 = vmand %vm3300, %vm3303
        %vm3340 = vmand %vm3301, %vm3304
        %v3341 = vsel %vm3305, 1, 0
        %v3342 = vsel %vm3306, 1, 0
        %v3343 = vsel %vm3307, 1, 0
        %v3344 = vsel %vm3308, 1, 0
        %v3345 = vsel %vm3309, 1, 0
        %v3346 = vsel %vm3310, 1, 0
        %v3347 = vsel %vm3311, 1, 0
        %v3348 = vsel %vm3312, 1, 0
        %v3349 = vsel %vm3313, 1, 0
        %v3350 = vsel %vm3314, 1, 0
        %v3351 = vsel %vm3315, 1, 0
        %v3352 = vsel %vm3316, 1, 0
        %v3353 = vsel %vm3317, 1, 0
        %v3354 = vsel %vm3318, 1, 0
        %v3355 = vsel %vm3319, 1, 0
        %v3356 = vsel %vm3320, 1, 0
        %v3357 = vsel %vm3321, 1, 0
        %v3358 = vsel %vm3322, 1, 0
        %v3359 = vsel %vm3323, 1, 0
        %v3360 = vsel %vm3324, 1, 0
        %v3361 = vsel %vm3325, 1, 0
        %v3362 = vsel %vm3326, 1, 0
        %v3363 = vsel %vm3327, 1, 0
        %v3364 = vsel %vm3328, 1, 0
        %v3365 = vsel %vm3329, 1, 0
        %v3366 = vsel %vm3330, 1, 0
        %v3367 = vsel %vm3331, 1, 0
        %v3368 = vsel %vm3332, 1, 0
        %v3369 = vsel %vm3333, 1, 0
        %v3370 = vsel %vm3334, 1, 0
        %v3371 = vsel %vm3335, 1, 0
        %v3372 = vsel %vm3336, 1, 0
        %v3373 = vsel %vm3337, 1, 0
        %v3374 = vsel %vm3338, 1, 0
        %v3375 = vsel %vm3339, 1, 0
        %v3376 = vsel %vm3340, 1, 0
        %vm3377 = vcmp.eq.s32.totalorder %v3341, 1
        %vm3378 = vcmp.eq.s32.totalorder %v3342, 1
        %vm3379 = vcmp.eq.s32.totalorder %v3343, 1
        %vm3380 = vcmp.eq.s32.totalorder %v3344, 1
        %vm3381 = vcmp.eq.s32.totalorder %v3345, 1
        %vm3382 = vcmp.eq.s32.totalorder %v3346, 1
        %vm3383 = vcmp.eq.s32.totalorder %v3347, 1
        %vm3384 = vcmp.eq.s32.totalorder %v3348, 1
        %vm3385 = vcmp.eq.s32.totalorder %v3349, 1
        %vm3386 = vcmp.eq.s32.totalorder %v3350, 1
        %vm3387 = vcmp.eq.s32.totalorder %v3351, 1
        %vm3388 = vcmp.eq.s32.totalorder %v3352, 1
        %vm3389 = vcmp.eq.s32.totalorder %v3353, 1
        %vm3390 = vcmp.eq.s32.totalorder %v3354, 1
        %vm3391 = vcmp.eq.s32.totalorder %v3355, 1
        %vm3392 = vcmp.eq.s32.totalorder %v3356, 1
        %vm3393 = vcmp.eq.s32.totalorder %v3357, 1
        %vm3394 = vcmp.eq.s32.totalorder %v3358, 1
        %vm3395 = vcmp.eq.s32.totalorder %v3359, 1
        %vm3396 = vcmp.eq.s32.totalorder %v3360, 1
        %vm3397 = vcmp.eq.s32.totalorder %v3361, 1
        %vm3398 = vcmp.eq.s32.totalorder %v3362, 1
        %vm3399 = vcmp.eq.s32.totalorder %v3363, 1
        %vm3400 = vcmp.eq.s32.totalorder %v3364, 1
        %vm3401 = vcmp.eq.s32.totalorder %v3365, 1
        %vm3402 = vcmp.eq.s32.totalorder %v3366, 1
        %vm3403 = vcmp.eq.s32.totalorder %v3367, 1
        %vm3404 = vcmp.eq.s32.totalorder %v3368, 1
        %vm3405 = vcmp.eq.s32.totalorder %v3369, 1
        %vm3406 = vcmp.eq.s32.totalorder %v3370, 1
        %vm3407 = vcmp.eq.s32.totalorder %v3371, 1
        %vm3408 = vcmp.eq.s32.totalorder %v3372, 1
        %vm3409 = vcmp.eq.s32.totalorder %v3373, 1
        %vm3410 = vcmp.eq.s32.totalorder %v3374, 1
        %vm3411 = vcmp.eq.s32.totalorder %v3375, 1
        %vm3412 = vcmp.eq.s32.totalorder %v3376, 1
        %v3413 = vcombine.low %v3111, %v3171
        %v3414 = vcombine.low %v3112, %v3172
        %v3415 = vcombine.low %v3173, %v3114
        %v3416 = vcombine.low %v3174, %v3115
        %v3417 = vcombine.low %v3116, %v3176
        %v3418 = vcombine.low %v3117, %v3177
        %v3419 = vcombine.low %v3178, %v3119
        %v3420 = vcombine.low %v3179, %v3120
        %v3421 = vcombine.low %v3121, %v3181
        %v3422 = vcombine.low %v3122, %v3182
        %v3423 = vcombine.low %v3183, %v3124
        %v3424 = vcombine.low %v3184, %v3125
        %v3425 = vcombine.low %v3126, %v3186
        %v3426 = vcombine.low %v3127, %v3187
        %v3427 = vcombine.low %v3188, %v3129
        %v3428 = vcombine.low %v3189, %v3130
        %v3429 = vcombine.low %v3131, %v3191
        %v3430 = vcombine.low %v3132, %v3192
        %v3431 = vcombine.low %v3193, %v3134
        %v3432 = vcombine.low %v3194, %v3135
        %v3433 = vcombine.low %v3136, %v3196
        %v3434 = vcombine.low %v3137, %v3197
        %v3435 = vcombine.low %v3198, %v3139
        %v3436 = vcombine.low %v3199, %v3140
        %v3461 = vsel %vm3377, %v3413, 0.0
        %v3462 = vsel %vm3378, %v3414, 0.0
        %v3463 = vsel %vm3379, %v3113, 0.0
        %v3464 = vsel %vm3380, %v3415, 0.0
        %v3465 = vsel %vm3381, %v3416, 0.0
        %v3466 = vsel %vm3382, %v3175, 0.0
        %v3467 = vsel %vm3383, %v3417, 0.0
        %v3468 = vsel %vm3384, %v3418, 0.0
        %v3469 = vsel %vm3385, %v3118, 0.0
        %v3470 = vsel %vm3386, %v3419, 0.0
        %v3471 = vsel %vm3387, %v3420, 0.0
        %v3472 = vsel %vm3388, %v3180, 0.0
        %v3473 = vsel %vm3389, %v3421, 0.0
        %v3474 = vsel %vm3390, %v3422, 0.0
        %v3475 = vsel %vm3391, %v3123, 0.0
        %v3476 = vsel %vm3392, %v3423, 0.0
        %v3477 = vsel %vm3393, %v3424, 0.0
        %v3478 = vsel %vm3394, %v3185, 0.0
        %v3479 = vsel %vm3395, %v3425, 0.0
        %v3480 = vsel %vm3396, %v3426, 0.0
        %v3481 = vsel %vm3397, %v3128, 0.0
        %v3482 = vsel %vm3398, %v3427, 0.0
        %v3483 = vsel %vm3399, %v3428, 0.0
        %v3484 = vsel %vm3400, %v3190, 0.0
        %v3485 = vsel %vm3401, %v3429, 0.0
        %v3486 = vsel %vm3402, %v3430, 0.0
        %v3487 = vsel %vm3403, %v3133, 0.0
        %v3488 = vsel %vm3404, %v3431, 0.0
        %v3489 = vsel %vm3405, %v3432, 0.0
        %v3490 = vsel %vm3406, %v3195, 0.0
        %v3491 = vsel %vm3407, %v3433, 0.0
        %v3492 = vsel %vm3408, %v3434, 0.0
        %v3493 = vsel %vm3409, %v3138, 0.0
        %v3494 = vsel %vm3410, %v3435, 0.0
        %v3495 = vsel %vm3411, %v3436, 0.0
        %v3496 = vsel %vm3412, %v3200, 0.0
        %v3497 = vpack.c.bf16 %v3462, %v3461
        %v3498 = vpack.c.bf16 %v3463, %v3463
        %v3499 = vpack.c.bf16 %v3465, %v3464
        %v3500 = vpack.c.bf16 %v3466, %v3466
        %v3501 = vpack.c.bf16 %v3468, %v3467
        %v3502 = vpack.c.bf16 %v3469, %v3469
        %v3503 = vpack.c.bf16 %v3471, %v3470
        %v3504 = vpack.c.bf16 %v3472, %v3472
        %v3505 = vpack.c.bf16 %v3474, %v3473
        %v3506 = vpack.c.bf16 %v3475, %v3475
        %v3507 = vpack.c.bf16 %v3477, %v3476
        %v3508 = vpack.c.bf16 %v3478, %v3478
        %v3509 = vpack.c.bf16 %v3480, %v3479
        %v3510 = vpack.c.bf16 %v3481, %v3481
        %v3511 = vpack.c.bf16 %v3483, %v3482
        %v3512 = vpack.c.bf16 %v3484, %v3484
        %v3513 = vpack.c.bf16 %v3486, %v3485
        %v3514 = vpack.c.bf16 %v3487, %v3487
        %v3515 = vpack.c.bf16 %v3489, %v3488
        %v3516 = vpack.c.bf16 %v3490, %v3490
        %v3517 = vpack.c.bf16 %v3492, %v3491
        %v3518 = vpack.c.bf16 %v3493, %v3493
        %v3519 = vpack.c.bf16 %v3495, %v3494
        %v3520 = vpack.c.bf16 %v3496, %v3496
        %v3541 = vunpack.c.l.b16 %v3497
        %v3542 = vunpack.c.h.b16 %v3497
        %v3543 = vunpack.c.l.b16 %v3498
        %v3544 = vunpack.c.l.b16 %v3499
        %v3545 = vunpack.c.h.b16 %v3499
        %v3546 = vunpack.c.l.b16 %v3500
        %v3547 = vunpack.c.l.b16 %v3501
        %v3548 = vunpack.c.h.b16 %v3501
        %v3549 = vunpack.c.l.b16 %v3502
        %v3550 = vunpack.c.l.b16 %v3503
        %v3551 = vunpack.c.h.b16 %v3503
        %v3552 = vunpack.c.l.b16 %v3504
        %v3553 = vunpack.c.l.b16 %v3505
        %v3554 = vunpack.c.h.b16 %v3505
        %v3555 = vunpack.c.l.b16 %v3506
        %v3556 = vunpack.c.l.b16 %v3507
        %v3557 = vunpack.c.h.b16 %v3507
        %v3558 = vunpack.c.l.b16 %v3508
        %v3559 = vunpack.c.l.b16 %v3509
        %v3560 = vunpack.c.h.b16 %v3509
        %v3561 = vunpack.c.l.b16 %v3510
        %v3562 = vunpack.c.l.b16 %v3511
        %v3563 = vunpack.c.h.b16 %v3511
        %v3564 = vunpack.c.l.b16 %v3512
        %v3565 = vunpack.c.l.b16 %v3513
        %v3566 = vunpack.c.h.b16 %v3513
        %v3567 = vunpack.c.l.b16 %v3514
        %v3568 = vunpack.c.l.b16 %v3515
        %v3569 = vunpack.c.h.b16 %v3515
        %v3570 = vunpack.c.l.b16 %v3516
        %v3571 = vpack.c.b16 %v3541, %v3541
        %v3572 = vpack.c.b16 %v3542, %v3542
        %v3573 = vpack.c.b16 %v3543, %v3543
        %v3574 = vpack.c.b16 %v3544, %v3544
        %v3575 = vpack.c.b16 %v3545, %v3545
        %v3576 = vpack.c.b16 %v3546, %v3546
        %v3577 = vpack.c.b16 %v3547, %v3547
        %v3578 = vpack.c.b16 %v3548, %v3548
        %v3579 = vpack.c.b16 %v3549, %v3549
        %v3580 = vpack.c.b16 %v3550, %v3550
        %v3581 = vpack.c.b16 %v3551, %v3551
        %v3582 = vpack.c.b16 %v3552, %v3552
        %v3583 = vpack.c.b16 %v3553, %v3553
        %v3584 = vpack.c.b16 %v3554, %v3554
        %v3585 = vpack.c.b16 %v3555, %v3555
        %v3586 = vpack.c.b16 %v3556, %v3556
        %v3587 = vpack.c.b16 %v3557, %v3557
        %v3588 = vpack.c.b16 %v3558, %v3558
        %v3589 = vpack.c.b16 %v3559, %v3559
        %v3590 = vpack.c.b16 %v3560, %v3560
        %v3591 = vpack.c.b16 %v3561, %v3561
        %v3592 = vpack.c.b16 %v3562, %v3562
        %v3593 = vpack.c.b16 %v3563, %v3563
        %v3594 = vpack.c.b16 %v3564, %v3564
        %v3595 = vpack.c.b16 %v3565, %v3565
        %v3596 = vpack.c.b16 %v3566, %v3566
        %v3597 = vpack.c.b16 %v3567, %v3567
        %v3598 = vpack.c.b16 %v3568, %v3568
        %v3599 = vpack.c.b16 %v3569, %v3569
        %v3600 = vpack.c.b16 %v3570, %v3570
        %3601 = vrot.lane.b32.xlu0 %v3571, 124
        %v3602 = vpop.permute.xlu0 %3601
        %3603 = vrot.lane.b32.xlu0 %v3572, 124
        %v3604 = vpop.permute.xlu0 %3603
        %3605 = vrot.lane.b32.xlu0 %v3573, 124
        %v3606 = vpop.permute.xlu0 %3605
        %3607 = vrot.lane.b32.xlu0 %v3574, 124
        %v3608 = vpop.permute.xlu0 %3607
        %3609 = vrot.lane.b32.xlu0 %v3575, 124
        %v3610 = vpop.permute.xlu0 %3609
        %3611 = vrot.lane.b32.xlu0 %v3576, 124
        %v3612 = vpop.permute.xlu0 %3611
        %3613 = vrot.lane.b32.xlu0 %v3577, 124
        %v3614 = vpop.permute.xlu0 %3613
        %3615 = vrot.lane.b32.xlu0 %v3578, 124
        %v3616 = vpop.permute.xlu0 %3615
        %3617 = vrot.lane.b32.xlu0 %v3579, 124
        %v3618 = vpop.permute.xlu0 %3617
        %3619 = vrot.lane.b32.xlu0 %v3580, 124
        %v3620 = vpop.permute.xlu0 %3619
        %3621 = vrot.lane.b32.xlu0 %v3581, 124
        %v3622 = vpop.permute.xlu0 %3621
        %3623 = vrot.lane.b32.xlu0 %v3582, 124
        %v3624 = vpop.permute.xlu0 %3623
        %3625 = vrot.lane.b32.xlu0 %v3583, 124
        %v3626 = vpop.permute.xlu0 %3625
        %3627 = vrot.lane.b32.xlu0 %v3584, 124
        %v3628 = vpop.permute.xlu0 %3627
        %3629 = vrot.lane.b32.xlu0 %v3585, 124
        %v3630 = vpop.permute.xlu0 %3629
        %3631 = vrot.lane.b32.xlu0 %v3586, 124
        %v3632 = vpop.permute.xlu0 %3631
        %3633 = vrot.lane.b32.xlu0 %v3587, 124
        %v3634 = vpop.permute.xlu0 %3633
        %3635 = vrot.lane.b32.xlu0 %v3588, 124
        %v3636 = vpop.permute.xlu0 %3635
        %3637 = vrot.lane.b32.xlu0 %v3589, 124
        %v3638 = vpop.permute.xlu0 %3637
        %3639 = vrot.lane.b32.xlu0 %v3590, 124
        %v3640 = vpop.permute.xlu0 %3639
        %3641 = vrot.lane.b32.xlu0 %v3591, 124
        %v3642 = vpop.permute.xlu0 %3641
        %3643 = vrot.lane.b32.xlu0 %v3592, 124
        %v3644 = vpop.permute.xlu0 %3643
        %3645 = vrot.lane.b32.xlu0 %v3593, 124
        %v3646 = vpop.permute.xlu0 %3645
        %3647 = vrot.lane.b32.xlu0 %v3594, 124
        %v3648 = vpop.permute.xlu0 %3647
        %3649 = vrot.lane.b32.xlu0 %v3595, 124
        %v3650 = vpop.permute.xlu0 %3649
        %3651 = vrot.lane.b32.xlu0 %v3596, 124
        %v3652 = vpop.permute.xlu0 %3651
        %3653 = vrot.lane.b32.xlu0 %v3597, 124
        %v3654 = vpop.permute.xlu0 %3653
        %3655 = vrot.lane.b32.xlu0 %v3598, 124
        %v3656 = vpop.permute.xlu0 %3655
        %3657 = vrot.lane.b32.xlu0 %v3599, 124
        %v3658 = vpop.permute.xlu0 %3657
        %3659 = vrot.lane.b32.xlu0 %v3600, 124
        %v3660 = vpop.permute.xlu0 %3659
        %3691 = vst.msk [vmem:[#allocation3] sm:$0xf] %vm446, %v3602
        %3692 = vst.msk [vmem:[#allocation3 + $0x4] sm:$0xf] %vm446, %v3604
        %vm3693 = vcmask 24576
        %3694 = vst.msk [vmem:[#allocation3 + $0x8] sm:$0x1] %vm3693, %v3606
        %3695 = vst.msk [vmem:[#allocation3 + $0xc] sm:$0xf] %vm446, %v3608
        %3696 = vst.msk [vmem:[#allocation3 + $0x10] sm:$0xf] %vm446, %v3610
        %3697 = vst.msk [vmem:[#allocation3 + $0x14] sm:$0x1] %vm3693, %v3612
        %3698 = vst.msk [vmem:[#allocation3 + $0x18] sm:$0xf] %vm446, %v3614
        %3699 = vst.msk [vmem:[#allocation3 + $0x1c] sm:$0xf] %vm446, %v3616
        %3700 = vst.msk [vmem:[#allocation3 + $0x20] sm:$0x1] %vm3693, %v3618
        %3701 = vst.msk [vmem:[#allocation3 + $0x24] sm:$0xf] %vm446, %v3620
        %3702 = vst.msk [vmem:[#allocation3 + $0x28] sm:$0xf] %vm446, %v3622
        %3703 = vst.msk [vmem:[#allocation3 + $0x2c] sm:$0x1] %vm3693, %v3624
        %3704 = vst.msk [vmem:[#allocation3 + $0x30] sm:$0xf] %vm446, %v3626
        %3705 = vst.msk [vmem:[#allocation3 + $0x34] sm:$0xf] %vm446, %v3628
        %3706 = vst.msk [vmem:[#allocation3 + $0x38] sm:$0x1] %vm3693, %v3630
        %3707 = vst.msk [vmem:[#allocation3 + $0x3c] sm:$0xf] %vm446, %v3632
        %3708 = vst.msk [vmem:[#allocation3 + $0x40] sm:$0xf] %vm446, %v3634
        %3709 = vst.msk [vmem:[#allocation3 + $0x44] sm:$0x1] %vm3693, %v3636
        %3710 = vst.msk [vmem:[#allocation3 + $0x48] sm:$0xf] %vm446, %v3638
        %3711 = vst.msk [vmem:[#allocation3 + $0x4c] sm:$0xf] %vm446, %v3640
        %3712 = vst.msk [vmem:[#allocation3 + $0x50] sm:$0x1] %vm3693, %v3642
        %3713 = vst.msk [vmem:[#allocation3 + $0x54] sm:$0xf] %vm446, %v3644
        %3714 = vst.msk [vmem:[#allocation3 + $0x58] sm:$0xf] %vm446, %v3646
        %3715 = vst.msk [vmem:[#allocation3 + $0x5c] sm:$0x1] %vm3693, %v3648
        %3716 = vst.msk [vmem:[#allocation3 + $0x60] sm:$0xf] %vm446, %v3650
        %3717 = vst.msk [vmem:[#allocation3 + $0x64] sm:$0xf] %vm446, %v3652
        %3718 = vst.msk [vmem:[#allocation3 + $0x68] sm:$0x1] %vm3693, %v3654
        %3719 = vst.msk [vmem:[#allocation3 + $0x6c] sm:$0xf] %vm446, %v3656
        %3720 = vst.msk [vmem:[#allocation3 + $0x70] sm:$0xf] %vm446, %v3658
        %3721 = vst.msk [vmem:[#allocation3 + $0x74] sm:$0x1] %vm3693, %v3660
        %v3723 = vshrl.u32 %v3571, 16
        %v3725 = vrot.slane %v3723, 4
        %v3726 = vshll.u32 %v3571, 16
        %v3728 = vrot.slane %v3726, 5
        %v3729 = vor.u32 %v3725, %v3728
        %v3730 = vrot.slane %v3729, 4
        %v3732 = vshll.u32 %v3572, 16
        %v3734 = vrot.slane %v3732, 5
        %v3735 = vsel %vm486, %v3730, %v3734
        %v3736 = vshrl.u32 %v3572, 16
        %v3738 = vrot.slane %v3736, 4
        %v3739 = vor.u32 %v3738, %v3734
        %v3740 = vrot.slane %v3739, 4
        %v3742 = vshll.u32 %v3573, 16
        %v3744 = vrot.slane %v3742, 5
        %v3745 = vsel %vm486, %v3740, %v3744
        %v3746 = vshrl.u32 %v3573, 16
        %v3748 = vrot.slane %v3746, 4
        %v3749 = vor.u32 %v3748, %v3744
        %v3750 = vrot.slane %v3749, 4
        %v3752 = vshrl.u32 %v3574, 16
        %v3754 = vrot.slane %v3752, 4
        %v3755 = vshll.u32 %v3574, 16
        %v3757 = vrot.slane %v3755, 5
        %v3758 = vor.u32 %v3754, %v3757
        %v3759 = vrot.slane %v3758, 4
        %v3761 = vshll.u32 %v3575, 16
        %v3763 = vrot.slane %v3761, 5
        %v3764 = vsel %vm486, %v3759, %v3763
        %v3765 = vshrl.u32 %v3575, 16
        %v3767 = vrot.slane %v3765, 4
        %v3768 = vor.u32 %v3767, %v3763
        %v3769 = vrot.slane %v3768, 4
        %v3771 = vshll.u32 %v3576, 16
        %v3773 = vrot.slane %v3771, 5
        %v3774 = vsel %vm486, %v3769, %v3773
        %v3775 = vshrl.u32 %v3576, 16
        %v3777 = vrot.slane %v3775, 4
        %v3778 = vor.u32 %v3777, %v3773
        %v3779 = vrot.slane %v3778, 4
        %v3781 = vshrl.u32 %v3577, 16
        %v3783 = vrot.slane %v3781, 4
        %v3784 = vshll.u32 %v3577, 16
        %v3786 = vrot.slane %v3784, 5
        %v3787 = vor.u32 %v3783, %v3786
        %v3788 = vrot.slane %v3787, 4
        %v3790 = vshll.u32 %v3578, 16
        %v3792 = vrot.slane %v3790, 5
        %v3793 = vsel %vm486, %v3788, %v3792
        %v3794 = vshrl.u32 %v3578, 16
        %v3796 = vrot.slane %v3794, 4
        %v3797 = vor.u32 %v3796, %v3792
        %v3798 = vrot.slane %v3797, 4
        %v3800 = vshll.u32 %v3579, 16
        %v3802 = vrot.slane %v3800, 5
        %v3803 = vsel %vm486, %v3798, %v3802
        %v3804 = vshrl.u32 %v3579, 16
        %v3806 = vrot.slane %v3804, 4
        %v3807 = vor.u32 %v3806, %v3802
        %v3808 = vrot.slane %v3807, 4
        %v3810 = vshrl.u32 %v3580, 16
        %v3812 = vrot.slane %v3810, 4
        %v3813 = vshll.u32 %v3580, 16
        %v3815 = vrot.slane %v3813, 5
        %v3816 = vor.u32 %v3812, %v3815
        %v3817 = vrot.slane %v3816, 4
        %v3819 = vshll.u32 %v3581, 16
        %v3821 = vrot.slane %v3819, 5
        %v3822 = vsel %vm486, %v3817, %v3821
        %v3823 = vshrl.u32 %v3581, 16
        %v3825 = vrot.slane %v3823, 4
        %v3826 = vor.u32 %v3825, %v3821
        %v3827 = vrot.slane %v3826, 4
        %v3829 = vshll.u32 %v3582, 16
        %v3831 = vrot.slane %v3829, 5
        %v3832 = vsel %vm486, %v3827, %v3831
        %v3833 = vshrl.u32 %v3582, 16
        %v3835 = vrot.slane %v3833, 4
        %v3836 = vor.u32 %v3835, %v3831
        %v3837 = vrot.slane %v3836, 4
        %v3839 = vshrl.u32 %v3583, 16
        %v3841 = vrot.slane %v3839, 4
        %v3842 = vshll.u32 %v3583, 16
        %v3844 = vrot.slane %v3842, 5
        %v3845 = vor.u32 %v3841, %v3844
        %v3846 = vrot.slane %v3845, 4
        %v3848 = vshll.u32 %v3584, 16
        %v3850 = vrot.slane %v3848, 5
        %v3851 = vsel %vm486, %v3846, %v3850
        %v3852 = vshrl.u32 %v3584, 16
        %v3854 = vrot.slane %v3852, 4
        %v3855 = vor.u32 %v3854, %v3850
        %v3856 = vrot.slane %v3855, 4
        %v3858 = vshll.u32 %v3585, 16
        %v3860 = vrot.slane %v3858, 5
        %v3861 = vsel %vm486, %v3856, %v3860
        %v3862 = vshrl.u32 %v3585, 16
        %v3864 = vrot.slane %v3862, 4
        %v3865 = vor.u32 %v3864, %v3860
        %v3866 = vrot.slane %v3865, 4
        %v3868 = vshrl.u32 %v3586, 16
        %v3870 = vrot.slane %v3868, 4
        %v3871 = vshll.u32 %v3586, 16
        %v3873 = vrot.slane %v3871, 5
        %v3874 = vor.u32 %v3870, %v3873
        %v3875 = vrot.slane %v3874, 4
        %v3877 = vshll.u32 %v3587, 16
        %v3879 = vrot.slane %v3877, 5
        %v3880 = vsel %vm486, %v3875, %v3879
        %v3881 = vshrl.u32 %v3587, 16
        %v3883 = vrot.slane %v3881, 4
        %v3884 = vor.u32 %v3883, %v3879
        %v3885 = vrot.slane %v3884, 4
        %v3887 = vshll.u32 %v3588, 16
        %v3889 = vrot.slane %v3887, 5
        %v3890 = vsel %vm486, %v3885, %v3889
        %v3891 = vshrl.u32 %v3588, 16
        %v3893 = vrot.slane %v3891, 4
        %v3894 = vor.u32 %v3893, %v3889
        %v3895 = vrot.slane %v3894, 4
        %v3897 = vshrl.u32 %v3589, 16
        %v3899 = vrot.slane %v3897, 4
        %v3900 = vshll.u32 %v3589, 16
        %v3902 = vrot.slane %v3900, 5
        %v3903 = vor.u32 %v3899, %v3902
        %v3904 = vrot.slane %v3903, 4
        %v3906 = vshll.u32 %v3590, 16
        %v3908 = vrot.slane %v3906, 5
        %v3909 = vsel %vm486, %v3904, %v3908
        %v3910 = vshrl.u32 %v3590, 16
        %v3912 = vrot.slane %v3910, 4
        %v3913 = vor.u32 %v3912, %v3908
        %v3914 = vrot.slane %v3913, 4
        %v3916 = vshll.u32 %v3591, 16
        %v3918 = vrot.slane %v3916, 5
        %v3919 = vsel %vm486, %v3914, %v3918
        %v3920 = vshrl.u32 %v3591, 16
        %v3922 = vrot.slane %v3920, 4
        %v3923 = vor.u32 %v3922, %v3918
        %v3924 = vrot.slane %v3923, 4
        %v3926 = vshrl.u32 %v3592, 16
        %v3928 = vrot.slane %v3926, 4
        %v3929 = vshll.u32 %v3592, 16
        %v3931 = vrot.slane %v3929, 5
        %v3932 = vor.u32 %v3928, %v3931
        %v3933 = vrot.slane %v3932, 4
        %v3935 = vshll.u32 %v3593, 16
        %v3937 = vrot.slane %v3935, 5
        %v3938 = vsel %vm486, %v3933, %v3937
        %v3939 = vshrl.u32 %v3593, 16
        %v3941 = vrot.slane %v3939, 4
        %v3942 = vor.u32 %v3941, %v3937
        %v3943 = vrot.slane %v3942, 4
        %v3945 = vshll.u32 %v3594, 16
        %v3947 = vrot.slane %v3945, 5
        %v3948 = vsel %vm486, %v3943, %v3947
        %v3949 = vshrl.u32 %v3594, 16
        %v3951 = vrot.slane %v3949, 4
        %v3952 = vor.u32 %v3951, %v3947
        %v3953 = vrot.slane %v3952, 4
        %v3955 = vshrl.u32 %v3595, 16
        %v3957 = vrot.slane %v3955, 4
        %v3958 = vshll.u32 %v3595, 16
        %v3960 = vrot.slane %v3958, 5
        %v3961 = vor.u32 %v3957, %v3960
        %v3962 = vrot.slane %v3961, 4
        %v3964 = vshll.u32 %v3596, 16
        %v3966 = vrot.slane %v3964, 5
        %v3967 = vsel %vm486, %v3962, %v3966
        %v3968 = vshrl.u32 %v3596, 16
        %v3970 = vrot.slane %v3968, 4
        %v3971 = vor.u32 %v3970, %v3966
        %v3972 = vrot.slane %v3971, 4
        %v3974 = vshll.u32 %v3597, 16
        %v3976 = vrot.slane %v3974, 5
        %v3977 = vsel %vm486, %v3972, %v3976
        %v3978 = vshrl.u32 %v3597, 16
        %v3980 = vrot.slane %v3978, 4
        %v3981 = vor.u32 %v3980, %v3976
        %v3982 = vrot.slane %v3981, 4
        %v3984 = vshrl.u32 %v3598, 16
        %v3986 = vrot.slane %v3984, 4
        %v3987 = vshll.u32 %v3598, 16
        %v3989 = vrot.slane %v3987, 5
        %v3990 = vor.u32 %v3986, %v3989
        %v3991 = vrot.slane %v3990, 4
        %v3993 = vshll.u32 %v3599, 16
        %v3995 = vrot.slane %v3993, 5
        %v3996 = vsel %vm486, %v3991, %v3995
        %v3997 = vshrl.u32 %v3599, 16
        %v3999 = vrot.slane %v3997, 4
        %v4000 = vor.u32 %v3999, %v3995
        %v4001 = vrot.slane %v4000, 4
        %v4003 = vshll.u32 %v3600, 16
        %v4005 = vrot.slane %v4003, 5
        %v4006 = vsel %vm486, %v4001, %v4005
        %v4007 = vshrl.u32 %v3600, 16
        %v4009 = vrot.slane %v4007, 4
        %v4010 = vor.u32 %v4009, %v4005
        %v4011 = vrot.slane %v4010, 4
        %4042 = vst.msk [vmem:[#allocation3] sm:$0xf] %vm943, %v3735
        %4043 = vst.msk [vmem:[#allocation3 + $0x4] sm:$0xf] %vm943, %v3745
        %vm4044 = vcmask 57376
        %4045 = vst.msk [vmem:[#allocation3 + $0x8] sm:$0x1] %vm4044, %v3750
        %4046 = vst.msk [vmem:[#allocation3 + $0xc] sm:$0xf] %vm943, %v3764
        %4047 = vst.msk [vmem:[#allocation3 + $0x10] sm:$0xf] %vm943, %v3774
        %4048 = vst.msk [vmem:[#allocation3 + $0x14] sm:$0x1] %vm4044, %v3779
        %4049 = vst.msk [vmem:[#allocation3 + $0x18] sm:$0xf] %vm943, %v3793
        %4050 = vst.msk [vmem:[#allocation3 + $0x1c] sm:$0xf] %vm943, %v3803
        %4051 = vst.msk [vmem:[#allocation3 + $0x20] sm:$0x1] %vm4044, %v3808
        %4052 = vst.msk [vmem:[#allocation3 + $0x24] sm:$0xf] %vm943, %v3822
        %4053 = vst.msk [vmem:[#allocation3 + $0x28] sm:$0xf] %vm943, %v3832
        %4054 = vst.msk [vmem:[#allocation3 + $0x2c] sm:$0x1] %vm4044, %v3837
        %4055 = vst.msk [vmem:[#allocation3 + $0x30] sm:$0xf] %vm943, %v3851
        %4056 = vst.msk [vmem:[#allocation3 + $0x34] sm:$0xf] %vm943, %v3861
        %4057 = vst.msk [vmem:[#allocation3 + $0x38] sm:$0x1] %vm4044, %v3866
        %4058 = vst.msk [vmem:[#allocation3 + $0x3c] sm:$0xf] %vm943, %v3880
        %4059 = vst.msk [vmem:[#allocation3 + $0x40] sm:$0xf] %vm943, %v3890
        %4060 = vst.msk [vmem:[#allocation3 + $0x44] sm:$0x1] %vm4044, %v3895
        %4061 = vst.msk [vmem:[#allocation3 + $0x48] sm:$0xf] %vm943, %v3909
        %4062 = vst.msk [vmem:[#allocation3 + $0x4c] sm:$0xf] %vm943, %v3919
        %4063 = vst.msk [vmem:[#allocation3 + $0x50] sm:$0x1] %vm4044, %v3924
        %4064 = vst.msk [vmem:[#allocation3 + $0x54] sm:$0xf] %vm943, %v3938
        %4065 = vst.msk [vmem:[#allocation3 + $0x58] sm:$0xf] %vm943, %v3948
        %4066 = vst.msk [vmem:[#allocation3 + $0x5c] sm:$0x1] %vm4044, %v3953
        %4067 = vst.msk [vmem:[#allocation3 + $0x60] sm:$0xf] %vm943, %v3967
        %4068 = vst.msk [vmem:[#allocation3 + $0x64] sm:$0xf] %vm943, %v3977
        %4069 = vst.msk [vmem:[#allocation3 + $0x68] sm:$0x1] %vm4044, %v3982
        %4070 = vst.msk [vmem:[#allocation3 + $0x6c] sm:$0xf] %vm943, %v3996
        %4071 = vst.msk [vmem:[#allocation3 + $0x70] sm:$0xf] %vm943, %v4006
        %4072 = vst.msk [vmem:[#allocation3 + $0x74] sm:$0x1] %vm4044, %v4011
        %v4073 = vrot.slane %v3571, 5
        %v4074 = vrot.slane %v4073, 4
        %v4075 = vrot.slane %v3572, 5
        %v4076 = vsel %vm1019, %v4074, %v4075
        %v4077 = vrot.slane %v4075, 4
        %v4078 = vrot.slane %v3573, 5
        %v4079 = vsel %vm1019, %v4077, %v4078
        %v4080 = vrot.slane %v4078, 4
        %v4081 = vrot.slane %v3574, 5
        %v4082 = vrot.slane %v4081, 4
        %v4083 = vrot.slane %v3575, 5
        %v4084 = vsel %vm1019, %v4082, %v4083
        %v4085 = vrot.slane %v4083, 4
        %v4086 = vrot.slane %v3576, 5
        %v4087 = vsel %vm1019, %v4085, %v4086
        %v4088 = vrot.slane %v4086, 4
        %v4089 = vrot.slane %v3577, 5
        %v4090 = vrot.slane %v4089, 4
        %v4091 = vrot.slane %v3578, 5
        %v4092 = vsel %vm1019, %v4090, %v4091
        %v4093 = vrot.slane %v4091, 4
        %v4094 = vrot.slane %v3579, 5
        %v4095 = vsel %vm1019, %v4093, %v4094
        %v4096 = vrot.slane %v4094, 4
        %v4097 = vrot.slane %v3580, 5
        %v4098 = vrot.slane %v4097, 4
        %v4099 = vrot.slane %v3581, 5
        %v4100 = vsel %vm1019, %v4098, %v4099
        %v4101 = vrot.slane %v4099, 4
        %v4102 = vrot.slane %v3582, 5
        %v4103 = vsel %vm1019, %v4101, %v4102
        %v4104 = vrot.slane %v4102, 4
        %v4105 = vrot.slane %v3583, 5
        %v4106 = vrot.slane %v4105, 4
        %v4107 = vrot.slane %v3584, 5
        %v4108 = vsel %vm1019, %v4106, %v4107
        %v4109 = vrot.slane %v4107, 4
        %v4110 = vrot.slane %v3585, 5
        %v4111 = vsel %vm1019, %v4109, %v4110
        %v4112 = vrot.slane %v4110, 4
        %v4113 = vrot.slane %v3586, 5
        %v4114 = vrot.slane %v4113, 4
        %v4115 = vrot.slane %v3587, 5
        %v4116 = vsel %vm1019, %v4114, %v4115
        %v4117 = vrot.slane %v4115, 4
        %v4118 = vrot.slane %v3588, 5
        %v4119 = vsel %vm1019, %v4117, %v4118
        %v4120 = vrot.slane %v4118, 4
        %v4121 = vrot.slane %v3589, 5
        %v4122 = vrot.slane %v4121, 4
        %v4123 = vrot.slane %v3590, 5
        %v4124 = vsel %vm1019, %v4122, %v4123
        %v4125 = vrot.slane %v4123, 4
        %v4126 = vrot.slane %v3591, 5
        %v4127 = vsel %vm1019, %v4125, %v4126
        %v4128 = vrot.slane %v4126, 4
        %v4129 = vrot.slane %v3592, 5
        %v4130 = vrot.slane %v4129, 4
        %v4131 = vrot.slane %v3593, 5
        %v4132 = vsel %vm1019, %v4130, %v4131
        %v4133 = vrot.slane %v4131, 4
        %v4134 = vrot.slane %v3594, 5
        %v4135 = vsel %vm1019, %v4133, %v4134
        %v4136 = vrot.slane %v4134, 4
        %v4137 = vrot.slane %v3595, 5
        %v4138 = vrot.slane %v4137, 4
        %v4139 = vrot.slane %v3596, 5
        %v4140 = vsel %vm1019, %v4138, %v4139
        %v4141 = vrot.slane %v4139, 4
        %v4142 = vrot.slane %v3597, 5
        %v4143 = vsel %vm1019, %v4141, %v4142
        %v4144 = vrot.slane %v4142, 4
        %v4145 = vrot.slane %v3598, 5
        %v4146 = vrot.slane %v4145, 4
        %v4147 = vrot.slane %v3599, 5
        %v4148 = vsel %vm1019, %v4146, %v4147
        %v4149 = vrot.slane %v4147, 4
        %v4150 = vrot.slane %v3600, 5
        %v4151 = vsel %vm1019, %v4149, %v4150
        %v4152 = vrot.slane %v4150, 4
        %4153 = vrot.lane.b32.xlu0 %v4076, 4
        %v4154 = vpop.permute.xlu0 %4153
        %4155 = vrot.lane.b32.xlu0 %v4079, 4
        %v4156 = vpop.permute.xlu0 %4155
        %4157 = vrot.lane.b32.xlu0 %v4080, 4
        %v4158 = vpop.permute.xlu0 %4157
        %4159 = vrot.lane.b32.xlu0 %v4084, 4
        %v4160 = vpop.permute.xlu0 %4159
        %4161 = vrot.lane.b32.xlu0 %v4087, 4
        %v4162 = vpop.permute.xlu0 %4161
        %4163 = vrot.lane.b32.xlu0 %v4088, 4
        %v4164 = vpop.permute.xlu0 %4163
        %4165 = vrot.lane.b32.xlu0 %v4092, 4
        %v4166 = vpop.permute.xlu0 %4165
        %4167 = vrot.lane.b32.xlu0 %v4095, 4
        %v4168 = vpop.permute.xlu0 %4167
        %4169 = vrot.lane.b32.xlu0 %v4096, 4
        %v4170 = vpop.permute.xlu0 %4169
        %4171 = vrot.lane.b32.xlu0 %v4100, 4
        %v4172 = vpop.permute.xlu0 %4171
        %4173 = vrot.lane.b32.xlu0 %v4103, 4
        %v4174 = vpop.permute.xlu0 %4173
        %4175 = vrot.lane.b32.xlu0 %v4104, 4
        %v4176 = vpop.permute.xlu0 %4175
        %4177 = vrot.lane.b32.xlu0 %v4108, 4
        %v4178 = vpop.permute.xlu0 %4177
        %4179 = vrot.lane.b32.xlu0 %v4111, 4
        %v4180 = vpop.permute.xlu0 %4179
        %4181 = vrot.lane.b32.xlu0 %v4112, 4
        %v4182 = vpop.permute.xlu0 %4181
        %4183 = vrot.lane.b32.xlu0 %v4116, 4
        %v4184 = vpop.permute.xlu0 %4183
        %4185 = vrot.lane.b32.xlu0 %v4119, 4
        %v4186 = vpop.permute.xlu0 %4185
        %4187 = vrot.lane.b32.xlu0 %v4120, 4
        %v4188 = vpop.permute.xlu0 %4187
        %4189 = vrot.lane.b32.xlu0 %v4124, 4
        %v4190 = vpop.permute.xlu0 %4189
        %4191 = vrot.lane.b32.xlu0 %v4127, 4
        %v4192 = vpop.permute.xlu0 %4191
        %4193 = vrot.lane.b32.xlu0 %v4128, 4
        %v4194 = vpop.permute.xlu0 %4193
        %4195 = vrot.lane.b32.xlu0 %v4132, 4
        %v4196 = vpop.permute.xlu0 %4195
        %4197 = vrot.lane.b32.xlu0 %v4135, 4
        %v4198 = vpop.permute.xlu0 %4197
        %4199 = vrot.lane.b32.xlu0 %v4136, 4
        %v4200 = vpop.permute.xlu0 %4199
        %4201 = vrot.lane.b32.xlu0 %v4140, 4
        %v4202 = vpop.permute.xlu0 %4201
        %4203 = vrot.lane.b32.xlu0 %v4143, 4
        %v4204 = vpop.permute.xlu0 %4203
        %4205 = vrot.lane.b32.xlu0 %v4144, 4
        %v4206 = vpop.permute.xlu0 %4205
        %4207 = vrot.lane.b32.xlu0 %v4148, 4
        %v4208 = vpop.permute.xlu0 %4207
        %4209 = vrot.lane.b32.xlu0 %v4151, 4
        %v4210 = vpop.permute.xlu0 %4209
        %4211 = vrot.lane.b32.xlu0 %v4152, 4
        %v4212 = vpop.permute.xlu0 %4211
        %4243 = vst.msk [vmem:[#allocation3] sm:$0xf] %vm1224, %v4154
        %4244 = vst.msk [vmem:[#allocation3 + $0x4] sm:$0xf] %vm1224, %v4156
        %vm4245 = vcmask 90176
        %4246 = vst.msk [vmem:[#allocation3 + $0x8] sm:$0x1] %vm4245, %v4158
        %4247 = vst.msk [vmem:[#allocation3 + $0xc] sm:$0xf] %vm1224, %v4160
        %4248 = vst.msk [vmem:[#allocation3 + $0x10] sm:$0xf] %vm1224, %v4162
        %4249 = vst.msk [vmem:[#allocation3 + $0x14] sm:$0x1] %vm4245, %v4164
        %4250 = vst.msk [vmem:[#allocation3 + $0x18] sm:$0xf] %vm1224, %v4166
        %4251 = vst.msk [vmem:[#allocation3 + $0x1c] sm:$0xf] %vm1224, %v4168
        %4252 = vst.msk [vmem:[#allocation3 + $0x20] sm:$0x1] %vm4245, %v4170
        %4253 = vst.msk [vmem:[#allocation3 + $0x24] sm:$0xf] %vm1224, %v4172
        %4254 = vst.msk [vmem:[#allocation3 + $0x28] sm:$0xf] %vm1224, %v4174
        %4255 = vst.msk [vmem:[#allocation3 + $0x2c] sm:$0x1] %vm4245, %v4176
        %4256 = vst.msk [vmem:[#allocation3 + $0x30] sm:$0xf] %vm1224, %v4178
        %4257 = vst.msk [vmem:[#allocation3 + $0x34] sm:$0xf] %vm1224, %v4180
        %4258 = vst.msk [vmem:[#allocation3 + $0x38] sm:$0x1] %vm4245, %v4182
        %4259 = vst.msk [vmem:[#allocation3 + $0x3c] sm:$0xf] %vm1224, %v4184
        %4260 = vst.msk [vmem:[#allocation3 + $0x40] sm:$0xf] %vm1224, %v4186
        %4261 = vst.msk [vmem:[#allocation3 + $0x44] sm:$0x1] %vm4245, %v4188
        %4262 = vst.msk [vmem:[#allocation3 + $0x48] sm:$0xf] %vm1224, %v4190
        %4263 = vst.msk [vmem:[#allocation3 + $0x4c] sm:$0xf] %vm1224, %v4192
        %4264 = vst.msk [vmem:[#allocation3 + $0x50] sm:$0x1] %vm4245, %v4194
        %4265 = vst.msk [vmem:[#allocation3 + $0x54] sm:$0xf] %vm1224, %v4196
        %4266 = vst.msk [vmem:[#allocation3 + $0x58] sm:$0xf] %vm1224, %v4198
        %4267 = vst.msk [vmem:[#allocation3 + $0x5c] sm:$0x1] %vm4245, %v4200
        %4268 = vst.msk [vmem:[#allocation3 + $0x60] sm:$0xf] %vm1224, %v4202
        %4269 = vst.msk [vmem:[#allocation3 + $0x64] sm:$0xf] %vm1224, %v4204
        %4270 = vst.msk [vmem:[#allocation3 + $0x68] sm:$0x1] %vm4245, %v4206
        %4271 = vst.msk [vmem:[#allocation3 + $0x6c] sm:$0xf] %vm1224, %v4208
        %4272 = vst.msk [vmem:[#allocation3 + $0x70] sm:$0xf] %vm1224, %v4210
        %4273 = vst.msk [vmem:[#allocation3 + $0x74] sm:$0x1] %vm4245, %v4212
        %v4276 = vunpack.c.l.b16 %v3517
        %v4277 = vunpack.c.h.b16 %v3517
        %v4278 = vunpack.c.l.b16 %v3518
        %v4279 = vpack.c.b16 %v4276, %v4276
        %v4280 = vpack.c.b16 %v4277, %v4277
        %v4281 = vpack.c.b16 %v4278, %v4278
        %4282 = vrot.lane.b32.xlu0 %v3574, 8
        %v4283 = vpop.permute.xlu0 %4282
        %4284 = vrot.lane.b32.xlu0 %v3575, 8
        %v4285 = vpop.permute.xlu0 %4284
        %4286 = vrot.lane.b32.xlu0 %v3576, 8
        %v4287 = vpop.permute.xlu0 %4286
        %4288 = vrot.lane.b32.xlu0 %v3577, 8
        %v4289 = vpop.permute.xlu0 %4288
        %4290 = vrot.lane.b32.xlu0 %v3578, 8
        %v4291 = vpop.permute.xlu0 %4290
        %4292 = vrot.lane.b32.xlu0 %v3579, 8
        %v4293 = vpop.permute.xlu0 %4292
        %4294 = vrot.lane.b32.xlu0 %v3580, 8
        %v4295 = vpop.permute.xlu0 %4294
        %4296 = vrot.lane.b32.xlu0 %v3581, 8
        %v4297 = vpop.permute.xlu0 %4296
        %4298 = vrot.lane.b32.xlu0 %v3582, 8
        %v4299 = vpop.permute.xlu0 %4298
        %4300 = vrot.lane.b32.xlu0 %v3583, 8
        %v4301 = vpop.permute.xlu0 %4300
        %4302 = vrot.lane.b32.xlu0 %v3584, 8
        %v4303 = vpop.permute.xlu0 %4302
        %4304 = vrot.lane.b32.xlu0 %v3585, 8
        %v4305 = vpop.permute.xlu0 %4304
        %4306 = vrot.lane.b32.xlu0 %v3586, 8
        %v4307 = vpop.permute.xlu0 %4306
        %4308 = vrot.lane.b32.xlu0 %v3587, 8
        %v4309 = vpop.permute.xlu0 %4308
        %4310 = vrot.lane.b32.xlu0 %v3588, 8
        %v4311 = vpop.permute.xlu0 %4310
        %4312 = vrot.lane.b32.xlu0 %v3589, 8
        %v4313 = vpop.permute.xlu0 %4312
        %4314 = vrot.lane.b32.xlu0 %v3590, 8
        %v4315 = vpop.permute.xlu0 %4314
        %4316 = vrot.lane.b32.xlu0 %v3591, 8
        %v4317 = vpop.permute.xlu0 %4316
        %4318 = vrot.lane.b32.xlu0 %v3592, 8
        %v4319 = vpop.permute.xlu0 %4318
        %4320 = vrot.lane.b32.xlu0 %v3593, 8
        %v4321 = vpop.permute.xlu0 %4320
        %4322 = vrot.lane.b32.xlu0 %v3594, 8
        %v4323 = vpop.permute.xlu0 %4322
        %4324 = vrot.lane.b32.xlu0 %v3595, 8
        %v4325 = vpop.permute.xlu0 %4324
        %4326 = vrot.lane.b32.xlu0 %v3596, 8
        %v4327 = vpop.permute.xlu0 %4326
        %4328 = vrot.lane.b32.xlu0 %v3597, 8
        %v4329 = vpop.permute.xlu0 %4328
        %4330 = vrot.lane.b32.xlu0 %v3598, 8
        %v4331 = vpop.permute.xlu0 %4330
        %4332 = vrot.lane.b32.xlu0 %v3599, 8
        %v4333 = vpop.permute.xlu0 %4332
        %4334 = vrot.lane.b32.xlu0 %v3600, 8
        %v4335 = vpop.permute.xlu0 %4334
        %4336 = vrot.lane.b32.xlu0 %v4279, 8
        %v4337 = vpop.permute.xlu0 %4336
        %4338 = vrot.lane.b32.xlu0 %v4280, 8
        %v4339 = vpop.permute.xlu0 %4338
        %4340 = vrot.lane.b32.xlu0 %v4281, 8
        %v4341 = vpop.permute.xlu0 %4340
        %4372 = vst.msk [vmem:[#allocation3] sm:$0xf] %vm1373, %v4283
        %4373 = vst.msk [vmem:[#allocation3 + $0x4] sm:$0xf] %vm1373, %v4285
        %vm4374 = vcmask 122976
        %4375 = vst.msk [vmem:[#allocation3 + $0x8] sm:$0x1] %vm4374, %v4287
        %4376 = vst.msk [vmem:[#allocation3 + $0xc] sm:$0xf] %vm1373, %v4289
        %4377 = vst.msk [vmem:[#allocation3 + $0x10] sm:$0xf] %vm1373, %v4291
        %4378 = vst.msk [vmem:[#allocation3 + $0x14] sm:$0x1] %vm4374, %v4293
        %4379 = vst.msk [vmem:[#allocation3 + $0x18] sm:$0xf] %vm1373, %v4295
        %4380 = vst.msk [vmem:[#allocation3 + $0x1c] sm:$0xf] %vm1373, %v4297
        %4381 = vst.msk [vmem:[#allocation3 + $0x20] sm:$0x1] %vm4374, %v4299
        %4382 = vst.msk [vmem:[#allocation3 + $0x24] sm:$0xf] %vm1373, %v4301
        %4383 = vst.msk [vmem:[#allocation3 + $0x28] sm:$0xf] %vm1373, %v4303
        %4384 = vst.msk [vmem:[#allocation3 + $0x2c] sm:$0x1] %vm4374, %v4305
        %4385 = vst.msk [vmem:[#allocation3 + $0x30] sm:$0xf] %vm1373, %v4307
        %4386 = vst.msk [vmem:[#allocation3 + $0x34] sm:$0xf] %vm1373, %v4309
        %4387 = vst.msk [vmem:[#allocation3 + $0x38] sm:$0x1] %vm4374, %v4311
        %4388 = vst.msk [vmem:[#allocation3 + $0x3c] sm:$0xf] %vm1373, %v4313
        %4389 = vst.msk [vmem:[#allocation3 + $0x40] sm:$0xf] %vm1373, %v4315
        %4390 = vst.msk [vmem:[#allocation3 + $0x44] sm:$0x1] %vm4374, %v4317
        %4391 = vst.msk [vmem:[#allocation3 + $0x48] sm:$0xf] %vm1373, %v4319
        %4392 = vst.msk [vmem:[#allocation3 + $0x4c] sm:$0xf] %vm1373, %v4321
        %4393 = vst.msk [vmem:[#allocation3 + $0x50] sm:$0x1] %vm4374, %v4323
        %4394 = vst.msk [vmem:[#allocation3 + $0x54] sm:$0xf] %vm1373, %v4325
        %4395 = vst.msk [vmem:[#allocation3 + $0x58] sm:$0xf] %vm1373, %v4327
        %4396 = vst.msk [vmem:[#allocation3 + $0x5c] sm:$0x1] %vm4374, %v4329
        %4397 = vst.msk [vmem:[#allocation3 + $0x60] sm:$0xf] %vm1373, %v4331
        %4398 = vst.msk [vmem:[#allocation3 + $0x64] sm:$0xf] %vm1373, %v4333
        %4399 = vst.msk [vmem:[#allocation3 + $0x68] sm:$0x1] %vm4374, %v4335
        %4400 = vst.msk [vmem:[#allocation3 + $0x6c] sm:$0xf] %vm1373, %v4337
        %4401 = vst.msk [vmem:[#allocation3 + $0x70] sm:$0xf] %vm1373, %v4339
        %4402 = vst.msk [vmem:[#allocation3 + $0x74] sm:$0x1] %vm4374, %v4341
        %v4404 = vshrl.u32 %v4279, 16
        %v4406 = vrot.slane %v4404, 4
        %v4407 = vshll.u32 %v4279, 16
        %v4409 = vrot.slane %v4407, 5
        %v4410 = vor.u32 %v4406, %v4409
        %v4411 = vrot.slane %v4410, 4
        %v4413 = vshll.u32 %v4280, 16
        %v4415 = vrot.slane %v4413, 5
        %v4416 = vsel %vm486, %v4411, %v4415
        %v4417 = vshrl.u32 %v4280, 16
        %v4419 = vrot.slane %v4417, 4
        %v4420 = vor.u32 %v4419, %v4415
        %v4421 = vrot.slane %v4420, 4
        %v4423 = vshll.u32 %v4281, 16
        %v4425 = vrot.slane %v4423, 5
        %v4426 = vsel %vm486, %v4421, %v4425
        %v4427 = vshrl.u32 %v4281, 16
        %v4429 = vrot.slane %v4427, 4
        %v4430 = vor.u32 %v4429, %v4425
        %v4431 = vrot.slane %v4430, 4
        %4432 = vrot.lane.b32.xlu0 %v3764, 12
        %v4433 = vpop.permute.xlu0 %4432
        %4434 = vrot.lane.b32.xlu0 %v3774, 12
        %v4435 = vpop.permute.xlu0 %4434
        %4436 = vrot.lane.b32.xlu0 %v3779, 12
        %v4437 = vpop.permute.xlu0 %4436
        %4438 = vrot.lane.b32.xlu0 %v3793, 12
        %v4439 = vpop.permute.xlu0 %4438
        %4440 = vrot.lane.b32.xlu0 %v3803, 12
        %v4441 = vpop.permute.xlu0 %4440
        %4442 = vrot.lane.b32.xlu0 %v3808, 12
        %v4443 = vpop.permute.xlu0 %4442
        %4444 = vrot.lane.b32.xlu0 %v3822, 12
        %v4445 = vpop.permute.xlu0 %4444
        %4446 = vrot.lane.b32.xlu0 %v3832, 12
        %v4447 = vpop.permute.xlu0 %4446
        %4448 = vrot.lane.b32.xlu0 %v3837, 12
        %v4449 = vpop.permute.xlu0 %4448
        %4450 = vrot.lane.b32.xlu0 %v3851, 12
        %v4451 = vpop.permute.xlu0 %4450
        %4452 = vrot.lane.b32.xlu0 %v3861, 12
        %v4453 = vpop.permute.xlu0 %4452
        %4454 = vrot.lane.b32.xlu0 %v3866, 12
        %v4455 = vpop.permute.xlu0 %4454
        %4456 = vrot.lane.b32.xlu0 %v3880, 12
        %v4457 = vpop.permute.xlu0 %4456
        %4458 = vrot.lane.b32.xlu0 %v3890, 12
        %v4459 = vpop.permute.xlu0 %4458
        %4460 = vrot.lane.b32.xlu0 %v3895, 12
        %v4461 = vpop.permute.xlu0 %4460
        %4462 = vrot.lane.b32.xlu0 %v3909, 12
        %v4463 = vpop.permute.xlu0 %4462
        %4464 = vrot.lane.b32.xlu0 %v3919, 12
        %v4465 = vpop.permute.xlu0 %4464
        %4466 = vrot.lane.b32.xlu0 %v3924, 12
        %v4467 = vpop.permute.xlu0 %4466
        %4468 = vrot.lane.b32.xlu0 %v3938, 12
        %v4469 = vpop.permute.xlu0 %4468
        %4470 = vrot.lane.b32.xlu0 %v3948, 12
        %v4471 = vpop.permute.xlu0 %4470
        %4472 = vrot.lane.b32.xlu0 %v3953, 12
        %v4473 = vpop.permute.xlu0 %4472
        %4474 = vrot.lane.b32.xlu0 %v3967, 12
        %v4475 = vpop.permute.xlu0 %4474
        %4476 = vrot.lane.b32.xlu0 %v3977, 12
        %v4477 = vpop.permute.xlu0 %4476
        %4478 = vrot.lane.b32.xlu0 %v3982, 12
        %v4479 = vpop.permute.xlu0 %4478
        %4480 = vrot.lane.b32.xlu0 %v3996, 12
        %v4481 = vpop.permute.xlu0 %4480
        %4482 = vrot.lane.b32.xlu0 %v4006, 12
        %v4483 = vpop.permute.xlu0 %4482
        %4484 = vrot.lane.b32.xlu0 %v4011, 12
        %v4485 = vpop.permute.xlu0 %4484
        %4486 = vrot.lane.b32.xlu0 %v4416, 12
        %v4487 = vpop.permute.xlu0 %4486
        %4488 = vrot.lane.b32.xlu0 %v4426, 12
        %v4489 = vpop.permute.xlu0 %4488
        %4490 = vrot.lane.b32.xlu0 %v4431, 12
        %v4491 = vpop.permute.xlu0 %4490
        %4522 = vst.msk [vmem:[#allocation3] sm:$0xf] %vm1548, %v4433
        %4523 = vst.msk [vmem:[#allocation3 + $0x4] sm:$0xf] %vm1548, %v4435
        %vm4524 = vcmask 155776
        %4525 = vst.msk [vmem:[#allocation3 + $0x8] sm:$0x1] %vm4524, %v4437
        %4526 = vst.msk [vmem:[#allocation3 + $0xc] sm:$0xf] %vm1548, %v4439
        %4527 = vst.msk [vmem:[#allocation3 + $0x10] sm:$0xf] %vm1548, %v4441
        %4528 = vst.msk [vmem:[#allocation3 + $0x14] sm:$0x1] %vm4524, %v4443
        %4529 = vst.msk [vmem:[#allocation3 + $0x18] sm:$0xf] %vm1548, %v4445
        %4530 = vst.msk [vmem:[#allocation3 + $0x1c] sm:$0xf] %vm1548, %v4447
        %4531 = vst.msk [vmem:[#allocation3 + $0x20] sm:$0x1] %vm4524, %v4449
        %4532 = vst.msk [vmem:[#allocation3 + $0x24] sm:$0xf] %vm1548, %v4451
        %4533 = vst.msk [vmem:[#allocation3 + $0x28] sm:$0xf] %vm1548, %v4453
        %4534 = vst.msk [vmem:[#allocation3 + $0x2c] sm:$0x1] %vm4524, %v4455
        %4535 = vst.msk [vmem:[#allocation3 + $0x30] sm:$0xf] %vm1548, %v4457
        %4536 = vst.msk [vmem:[#allocation3 + $0x34] sm:$0xf] %vm1548, %v4459
        %4537 = vst.msk [vmem:[#allocation3 + $0x38] sm:$0x1] %vm4524, %v4461
        %4538 = vst.msk [vmem:[#allocation3 + $0x3c] sm:$0xf] %vm1548, %v4463
        %4539 = vst.msk [vmem:[#allocation3 + $0x40] sm:$0xf] %vm1548, %v4465
        %4540 = vst.msk [vmem:[#allocation3 + $0x44] sm:$0x1] %vm4524, %v4467
        %4541 = vst.msk [vmem:[#allocation3 + $0x48] sm:$0xf] %vm1548, %v4469
        %4542 = vst.msk [vmem:[#allocation3 + $0x4c] sm:$0xf] %vm1548, %v4471
        %4543 = vst.msk [vmem:[#allocation3 + $0x50] sm:$0x1] %vm4524, %v4473
        %4544 = vst.msk [vmem:[#allocation3 + $0x54] sm:$0xf] %vm1548, %v4475
        %4545 = vst.msk [vmem:[#allocation3 + $0x58] sm:$0xf] %vm1548, %v4477
        %4546 = vst.msk [vmem:[#allocation3 + $0x5c] sm:$0x1] %vm4524, %v4479
        %4547 = vst.msk [vmem:[#allocation3 + $0x60] sm:$0xf] %vm1548, %v4481
        %4548 = vst.msk [vmem:[#allocation3 + $0x64] sm:$0xf] %vm1548, %v4483
        %4549 = vst.msk [vmem:[#allocation3 + $0x68] sm:$0x1] %vm4524, %v4485
        %4550 = vst.msk [vmem:[#allocation3 + $0x6c] sm:$0xf] %vm1548, %v4487
        %4551 = vst.msk [vmem:[#allocation3 + $0x70] sm:$0xf] %vm1548, %v4489
        %4552 = vst.msk [vmem:[#allocation3 + $0x74] sm:$0x1] %vm4524, %v4491
        %v4553 = vrot.slane %v4279, 5
        %v4554 = vrot.slane %v4553, 4
        %v4555 = vrot.slane %v4280, 5
        %v4556 = vsel %vm1019, %v4554, %v4555
        %v4557 = vrot.slane %v4555, 4
        %v4558 = vrot.slane %v4281, 5
        %v4559 = vsel %vm1019, %v4557, %v4558
        %v4560 = vrot.slane %v4558, 4
        %4561 = vrot.lane.b32.xlu0 %v4084, 16
        %v4562 = vpop.permute.xlu0 %4561
        %4563 = vrot.lane.b32.xlu0 %v4087, 16
        %v4564 = vpop.permute.xlu0 %4563
        %4565 = vrot.lane.b32.xlu0 %v4088, 16
        %v4566 = vpop.permute.xlu0 %4565
        %4567 = vrot.lane.b32.xlu0 %v4092, 16
        %v4568 = vpop.permute.xlu0 %4567
        %4569 = vrot.lane.b32.xlu0 %v4095, 16
        %v4570 = vpop.permute.xlu0 %4569
        %4571 = vrot.lane.b32.xlu0 %v4096, 16
        %v4572 = vpop.permute.xlu0 %4571
        %4573 = vrot.lane.b32.xlu0 %v4100, 16
        %v4574 = vpop.permute.xlu0 %4573
        %4575 = vrot.lane.b32.xlu0 %v4103, 16
        %v4576 = vpop.permute.xlu0 %4575
        %4577 = vrot.lane.b32.xlu0 %v4104, 16
        %v4578 = vpop.permute.xlu0 %4577
        %4579 = vrot.lane.b32.xlu0 %v4108, 16
        %v4580 = vpop.permute.xlu0 %4579
        %4581 = vrot.lane.b32.xlu0 %v4111, 16
        %v4582 = vpop.permute.xlu0 %4581
        %4583 = vrot.lane.b32.xlu0 %v4112, 16
        %v4584 = vpop.permute.xlu0 %4583
        %4585 = vrot.lane.b32.xlu0 %v4116, 16
        %v4586 = vpop.permute.xlu0 %4585
        %4587 = vrot.lane.b32.xlu0 %v4119, 16
        %v4588 = vpop.permute.xlu0 %4587
        %4589 = vrot.lane.b32.xlu0 %v4120, 16
        %v4590 = vpop.permute.xlu0 %4589
        %4591 = vrot.lane.b32.xlu0 %v4124, 16
        %v4592 = vpop.permute.xlu0 %4591
        %4593 = vrot.lane.b32.xlu0 %v4127, 16
        %v4594 = vpop.permute.xlu0 %4593
        %4595 = vrot.lane.b32.xlu0 %v4128, 16
        %v4596 = vpop.permute.xlu0 %4595
        %4597 = vrot.lane.b32.xlu0 %v4132, 16
        %v4598 = vpop.permute.xlu0 %4597
        %4599 = vrot.lane.b32.xlu0 %v4135, 16
        %v4600 = vpop.permute.xlu0 %4599
        %4601 = vrot.lane.b32.xlu0 %v4136, 16
        %v4602 = vpop.permute.xlu0 %4601
        %4603 = vrot.lane.b32.xlu0 %v4140, 16
        %v4604 = vpop.permute.xlu0 %4603
        %4605 = vrot.lane.b32.xlu0 %v4143, 16
        %v4606 = vpop.permute.xlu0 %4605
        %4607 = vrot.lane.b32.xlu0 %v4144, 16
        %v4608 = vpop.permute.xlu0 %4607
        %4609 = vrot.lane.b32.xlu0 %v4148, 16
        %v4610 = vpop.permute.xlu0 %4609
        %4611 = vrot.lane.b32.xlu0 %v4151, 16
        %v4612 = vpop.permute.xlu0 %4611
        %4613 = vrot.lane.b32.xlu0 %v4152, 16
        %v4614 = vpop.permute.xlu0 %4613
        %4615 = vrot.lane.b32.xlu0 %v4556, 16
        %v4616 = vpop.permute.xlu0 %4615
        %4617 = vrot.lane.b32.xlu0 %v4559, 16
        %v4618 = vpop.permute.xlu0 %4617
        %4619 = vrot.lane.b32.xlu0 %v4560, 16
        %v4620 = vpop.permute.xlu0 %4619
        %4651 = vst.msk [vmem:[#allocation3] sm:$0xf] %vm1702, %v4562
        %4652 = vst.msk [vmem:[#allocation3 + $0x4] sm:$0xf] %vm1702, %v4564
        %vm4653 = vcmask 188576
        %4654 = vst.msk [vmem:[#allocation3 + $0x8] sm:$0x1] %vm4653, %v4566
        %4655 = vst.msk [vmem:[#allocation3 + $0xc] sm:$0xf] %vm1702, %v4568
        %4656 = vst.msk [vmem:[#allocation3 + $0x10] sm:$0xf] %vm1702, %v4570
        %4657 = vst.msk [vmem:[#allocation3 + $0x14] sm:$0x1] %vm4653, %v4572
        %4658 = vst.msk [vmem:[#allocation3 + $0x18] sm:$0xf] %vm1702, %v4574
        %4659 = vst.msk [vmem:[#allocation3 + $0x1c] sm:$0xf] %vm1702, %v4576
        %4660 = vst.msk [vmem:[#allocation3 + $0x20] sm:$0x1] %vm4653, %v4578
        %4661 = vst.msk [vmem:[#allocation3 + $0x24] sm:$0xf] %vm1702, %v4580
        %4662 = vst.msk [vmem:[#allocation3 + $0x28] sm:$0xf] %vm1702, %v4582
        %4663 = vst.msk [vmem:[#allocation3 + $0x2c] sm:$0x1] %vm4653, %v4584
        %4664 = vst.msk [vmem:[#allocation3 + $0x30] sm:$0xf] %vm1702, %v4586
        %4665 = vst.msk [vmem:[#allocation3 + $0x34] sm:$0xf] %vm1702, %v4588
        %4666 = vst.msk [vmem:[#allocation3 + $0x38] sm:$0x1] %vm4653, %v4590
        %4667 = vst.msk [vmem:[#allocation3 + $0x3c] sm:$0xf] %vm1702, %v4592
        %4668 = vst.msk [vmem:[#allocation3 + $0x40] sm:$0xf] %vm1702, %v4594
        %4669 = vst.msk [vmem:[#allocation3 + $0x44] sm:$0x1] %vm4653, %v4596
        %4670 = vst.msk [vmem:[#allocation3 + $0x48] sm:$0xf] %vm1702, %v4598
        %4671 = vst.msk [vmem:[#allocation3 + $0x4c] sm:$0xf] %vm1702, %v4600
        %4672 = vst.msk [vmem:[#allocation3 + $0x50] sm:$0x1] %vm4653, %v4602
        %4673 = vst.msk [vmem:[#allocation3 + $0x54] sm:$0xf] %vm1702, %v4604
        %4674 = vst.msk [vmem:[#allocation3 + $0x58] sm:$0xf] %vm1702, %v4606
        %4675 = vst.msk [vmem:[#allocation3 + $0x5c] sm:$0x1] %vm4653, %v4608
        %4676 = vst.msk [vmem:[#allocation3 + $0x60] sm:$0xf] %vm1702, %v4610
        %4677 = vst.msk [vmem:[#allocation3 + $0x64] sm:$0xf] %vm1702, %v4612
        %4678 = vst.msk [vmem:[#allocation3 + $0x68] sm:$0x1] %vm4653, %v4614
        %4679 = vst.msk [vmem:[#allocation3 + $0x6c] sm:$0xf] %vm1702, %v4616
        %4680 = vst.msk [vmem:[#allocation3 + $0x70] sm:$0xf] %vm1702, %v4618
        %4681 = vst.msk [vmem:[#allocation3 + $0x74] sm:$0x1] %vm4653, %v4620
        %v4684 = vunpack.c.l.b16 %v3519
        %v4685 = vunpack.c.h.b16 %v3519
        %v4686 = vunpack.c.l.b16 %v3520
        %v4687 = vpack.c.b16 %v4684, %v4684
        %v4688 = vpack.c.b16 %v4685, %v4685
        %v4689 = vpack.c.b16 %v4686, %v4686
        %4690 = vrot.lane.b32.xlu0 %v3577, 20
        %v4691 = vpop.permute.xlu0 %4690
        %4692 = vrot.lane.b32.xlu0 %v3578, 20
        %v4693 = vpop.permute.xlu0 %4692
        %4694 = vrot.lane.b32.xlu0 %v3579, 20
        %v4695 = vpop.permute.xlu0 %4694
        %4696 = vrot.lane.b32.xlu0 %v3580, 20
        %v4697 = vpop.permute.xlu0 %4696
        %4698 = vrot.lane.b32.xlu0 %v3581, 20
        %v4699 = vpop.permute.xlu0 %4698
        %4700 = vrot.lane.b32.xlu0 %v3582, 20
        %v4701 = vpop.permute.xlu0 %4700
        %4702 = vrot.lane.b32.xlu0 %v3583, 20
        %v4703 = vpop.permute.xlu0 %4702
        %4704 = vrot.lane.b32.xlu0 %v3584, 20
        %v4705 = vpop.permute.xlu0 %4704
        %4706 = vrot.lane.b32.xlu0 %v3585, 20
        %v4707 = vpop.permute.xlu0 %4706
        %4708 = vrot.lane.b32.xlu0 %v3586, 20
        %v4709 = vpop.permute.xlu0 %4708
        %4710 = vrot.lane.b32.xlu0 %v3587, 20
        %v4711 = vpop.permute.xlu0 %4710
        %4712 = vrot.lane.b32.xlu0 %v3588, 20
        %v4713 = vpop.permute.xlu0 %4712
        %4714 = vrot.lane.b32.xlu0 %v3589, 20
        %v4715 = vpop.permute.xlu0 %4714
        %4716 = vrot.lane.b32.xlu0 %v3590, 20
        %v4717 = vpop.permute.xlu0 %4716
        %4718 = vrot.lane.b32.xlu0 %v3591, 20
        %v4719 = vpop.permute.xlu0 %4718
        %4720 = vrot.lane.b32.xlu0 %v3592, 20
        %v4721 = vpop.permute.xlu0 %4720
        %4722 = vrot.lane.b32.xlu0 %v3593, 20
        %v4723 = vpop.permute.xlu0 %4722
        %4724 = vrot.lane.b32.xlu0 %v3594, 20
        %v4725 = vpop.permute.xlu0 %4724
        %4726 = vrot.lane.b32.xlu0 %v3595, 20
        %v4727 = vpop.permute.xlu0 %4726
        %4728 = vrot.lane.b32.xlu0 %v3596, 20
        %v4729 = vpop.permute.xlu0 %4728
        %4730 = vrot.lane.b32.xlu0 %v3597, 20
        %v4731 = vpop.permute.xlu0 %4730
        %4732 = vrot.lane.b32.xlu0 %v3598, 20
        %v4733 = vpop.permute.xlu0 %4732
        %4734 = vrot.lane.b32.xlu0 %v3599, 20
        %v4735 = vpop.permute.xlu0 %4734
        %4736 = vrot.lane.b32.xlu0 %v3600, 20
        %v4737 = vpop.permute.xlu0 %4736
        %4738 = vrot.lane.b32.xlu0 %v4279, 20
        %v4739 = vpop.permute.xlu0 %4738
        %4740 = vrot.lane.b32.xlu0 %v4280, 20
        %v4741 = vpop.permute.xlu0 %4740
        %4742 = vrot.lane.b32.xlu0 %v4281, 20
        %v4743 = vpop.permute.xlu0 %4742
        %4744 = vrot.lane.b32.xlu0 %v4687, 20
        %v4745 = vpop.permute.xlu0 %4744
        %4746 = vrot.lane.b32.xlu0 %v4688, 20
        %v4747 = vpop.permute.xlu0 %4746
        %4748 = vrot.lane.b32.xlu0 %v4689, 20
        %v4749 = vpop.permute.xlu0 %4748
        %4780 = vst.msk [vmem:[#allocation3] sm:$0xf] %vm1851, %v4691
        %4781 = vst.msk [vmem:[#allocation3 + $0x4] sm:$0xf] %vm1851, %v4693
        %vm4782 = vcmask 221376
        %4783 = vst.msk [vmem:[#allocation3 + $0x8] sm:$0x1] %vm4782, %v4695
        %4784 = vst.msk [vmem:[#allocation3 + $0xc] sm:$0xf] %vm1851, %v4697
        %4785 = vst.msk [vmem:[#allocation3 + $0x10] sm:$0xf] %vm1851, %v4699
        %4786 = vst.msk [vmem:[#allocation3 + $0x14] sm:$0x1] %vm4782, %v4701
        %4787 = vst.msk [vmem:[#allocation3 + $0x18] sm:$0xf] %vm1851, %v4703
        %4788 = vst.msk [vmem:[#allocation3 + $0x1c] sm:$0xf] %vm1851, %v4705
        %4789 = vst.msk [vmem:[#allocation3 + $0x20] sm:$0x1] %vm4782, %v4707
        %4790 = vst.msk [vmem:[#allocation3 + $0x24] sm:$0xf] %vm1851, %v4709
        %4791 = vst.msk [vmem:[#allocation3 + $0x28] sm:$0xf] %vm1851, %v4711
        %4792 = vst.msk [vmem:[#allocation3 + $0x2c] sm:$0x1] %vm4782, %v4713
        %4793 = vst.msk [vmem:[#allocation3 + $0x30] sm:$0xf] %vm1851, %v4715
        %4794 = vst.msk [vmem:[#allocation3 + $0x34] sm:$0xf] %vm1851, %v4717
        %4795 = vst.msk [vmem:[#allocation3 + $0x38] sm:$0x1] %vm4782, %v4719
        %4796 = vst.msk [vmem:[#allocation3 + $0x3c] sm:$0xf] %vm1851, %v4721
        %4797 = vst.msk [vmem:[#allocation3 + $0x40] sm:$0xf] %vm1851, %v4723
        %4798 = vst.msk [vmem:[#allocation3 + $0x44] sm:$0x1] %vm4782, %v4725
        %4799 = vst.msk [vmem:[#allocation3 + $0x48] sm:$0xf] %vm1851, %v4727
        %4800 = vst.msk [vmem:[#allocation3 + $0x4c] sm:$0xf] %vm1851, %v4729
        %4801 = vst.msk [vmem:[#allocation3 + $0x50] sm:$0x1] %vm4782, %v4731
        %4802 = vst.msk [vmem:[#allocation3 + $0x54] sm:$0xf] %vm1851, %v4733
        %4803 = vst.msk [vmem:[#allocation3 + $0x58] sm:$0xf] %vm1851, %v4735
        %4804 = vst.msk [vmem:[#allocation3 + $0x5c] sm:$0x1] %vm4782, %v4737
        %4805 = vst.msk [vmem:[#allocation3 + $0x60] sm:$0xf] %vm1851, %v4739
        %4806 = vst.msk [vmem:[#allocation3 + $0x64] sm:$0xf] %vm1851, %v4741
        %4807 = vst.msk [vmem:[#allocation3 + $0x68] sm:$0x1] %vm4782, %v4743
        %4808 = vst.msk [vmem:[#allocation3 + $0x6c] sm:$0xf] %vm1851, %v4745
        %4809 = vst.msk [vmem:[#allocation3 + $0x70] sm:$0xf] %vm1851, %v4747
        %4810 = vst.msk [vmem:[#allocation3 + $0x74] sm:$0x1] %vm4782, %v4749
        %v4812 = vshrl.u32 %v4687, 16
        %v4814 = vrot.slane %v4812, 4
        %v4815 = vshll.u32 %v4687, 16
        %v4817 = vrot.slane %v4815, 5
        %v4818 = vor.u32 %v4814, %v4817
        %v4819 = vrot.slane %v4818, 4
        %v4821 = vshll.u32 %v4688, 16
        %v4823 = vrot.slane %v4821, 5
        %v4824 = vsel %vm486, %v4819, %v4823
        %v4825 = vshrl.u32 %v4688, 16
        %v4827 = vrot.slane %v4825, 4
        %v4828 = vor.u32 %v4827, %v4823
        %v4829 = vrot.slane %v4828, 4
        %v4831 = vshll.u32 %v4689, 16
        %v4833 = vrot.slane %v4831, 5
        %v4834 = vsel %vm486, %v4829, %v4833
        %v4835 = vshrl.u32 %v4689, 16
        %v4837 = vrot.slane %v4835, 4
        %v4838 = vor.u32 %v4837, %v4833
        %v4839 = vrot.slane %v4838, 4
        %4840 = vrot.lane.b32.xlu0 %v3793, 24
        %v4841 = vpop.permute.xlu0 %4840
        %4842 = vrot.lane.b32.xlu0 %v3803, 24
        %v4843 = vpop.permute.xlu0 %4842
        %4844 = vrot.lane.b32.xlu0 %v3808, 24
        %v4845 = vpop.permute.xlu0 %4844
        %4846 = vrot.lane.b32.xlu0 %v3822, 24
        %v4847 = vpop.permute.xlu0 %4846
        %4848 = vrot.lane.b32.xlu0 %v3832, 24
        %v4849 = vpop.permute.xlu0 %4848
        %4850 = vrot.lane.b32.xlu0 %v3837, 24
        %v4851 = vpop.permute.xlu0 %4850
        %4852 = vrot.lane.b32.xlu0 %v3851, 24
        %v4853 = vpop.permute.xlu0 %4852
        %4854 = vrot.lane.b32.xlu0 %v3861, 24
        %v4855 = vpop.permute.xlu0 %4854
        %4856 = vrot.lane.b32.xlu0 %v3866, 24
        %v4857 = vpop.permute.xlu0 %4856
        %4858 = vrot.lane.b32.xlu0 %v3880, 24
        %v4859 = vpop.permute.xlu0 %4858
        %4860 = vrot.lane.b32.xlu0 %v3890, 24
        %v4861 = vpop.permute.xlu0 %4860
        %4862 = vrot.lane.b32.xlu0 %v3895, 24
        %v4863 = vpop.permute.xlu0 %4862
        %4864 = vrot.lane.b32.xlu0 %v3909, 24
        %v4865 = vpop.permute.xlu0 %4864
        %4866 = vrot.lane.b32.xlu0 %v3919, 24
        %v4867 = vpop.permute.xlu0 %4866
        %4868 = vrot.lane.b32.xlu0 %v3924, 24
        %v4869 = vpop.permute.xlu0 %4868
        %4870 = vrot.lane.b32.xlu0 %v3938, 24
        %v4871 = vpop.permute.xlu0 %4870
        %4872 = vrot.lane.b32.xlu0 %v3948, 24
        %v4873 = vpop.permute.xlu0 %4872
        %4874 = vrot.lane.b32.xlu0 %v3953, 24
        %v4875 = vpop.permute.xlu0 %4874
        %4876 = vrot.lane.b32.xlu0 %v3967, 24
        %v4877 = vpop.permute.xlu0 %4876
        %4878 = vrot.lane.b32.xlu0 %v3977, 24
        %v4879 = vpop.permute.xlu0 %4878
        %4880 = vrot.lane.b32.xlu0 %v3982, 24
        %v4881 = vpop.permute.xlu0 %4880
        %4882 = vrot.lane.b32.xlu0 %v3996, 24
        %v4883 = vpop.permute.xlu0 %4882
        %4884 = vrot.lane.b32.xlu0 %v4006, 24
        %v4885 = vpop.permute.xlu0 %4884
        %4886 = vrot.lane.b32.xlu0 %v4011, 24
        %v4887 = vpop.permute.xlu0 %4886
        %4888 = vrot.lane.b32.xlu0 %v4416, 24
        %v4889 = vpop.permute.xlu0 %4888
        %4890 = vrot.lane.b32.xlu0 %v4426, 24
        %v4891 = vpop.permute.xlu0 %4890
        %4892 = vrot.lane.b32.xlu0 %v4431, 24
        %v4893 = vpop.permute.xlu0 %4892
        %4894 = vrot.lane.b32.xlu0 %v4824, 24
        %v4895 = vpop.permute.xlu0 %4894
        %4896 = vrot.lane.b32.xlu0 %v4834, 24
        %v4897 = vpop.permute.xlu0 %4896
        %4898 = vrot.lane.b32.xlu0 %v4839, 24
        %v4899 = vpop.permute.xlu0 %4898
        %4930 = vst.msk [vmem:[#allocation3] sm:$0xf] %vm2026, %v4841
        %4931 = vst.msk [vmem:[#allocation3 + $0x4] sm:$0xf] %vm2026, %v4843
        %vm4932 = vcmask 254176
        %4933 = vst.msk [vmem:[#allocation3 + $0x8] sm:$0x1] %vm4932, %v4845
        %4934 = vst.msk [vmem:[#allocation3 + $0xc] sm:$0xf] %vm2026, %v4847
        %4935 = vst.msk [vmem:[#allocation3 + $0x10] sm:$0xf] %vm2026, %v4849
        %4936 = vst.msk [vmem:[#allocation3 + $0x14] sm:$0x1] %vm4932, %v4851
        %4937 = vst.msk [vmem:[#allocation3 + $0x18] sm:$0xf] %vm2026, %v4853
        %4938 = vst.msk [vmem:[#allocation3 + $0x1c] sm:$0xf] %vm2026, %v4855
        %4939 = vst.msk [vmem:[#allocation3 + $0x20] sm:$0x1] %vm4932, %v4857
        %4940 = vst.msk [vmem:[#allocation3 + $0x24] sm:$0xf] %vm2026, %v4859
        %4941 = vst.msk [vmem:[#allocation3 + $0x28] sm:$0xf] %vm2026, %v4861
        %4942 = vst.msk [vmem:[#allocation3 + $0x2c] sm:$0x1] %vm4932, %v4863
        %4943 = vst.msk [vmem:[#allocation3 + $0x30] sm:$0xf] %vm2026, %v4865
        %4944 = vst.msk [vmem:[#allocation3 + $0x34] sm:$0xf] %vm2026, %v4867
        %4945 = vst.msk [vmem:[#allocation3 + $0x38] sm:$0x1] %vm4932, %v4869
        %4946 = vst.msk [vmem:[#allocation3 + $0x3c] sm:$0xf] %vm2026, %v4871
        %4947 = vst.msk [vmem:[#allocation3 + $0x40] sm:$0xf] %vm2026, %v4873
        %4948 = vst.msk [vmem:[#allocation3 + $0x44] sm:$0x1] %vm4932, %v4875
        %4949 = vst.msk [vmem:[#allocation3 + $0x48] sm:$0xf] %vm2026, %v4877
        %4950 = vst.msk [vmem:[#allocation3 + $0x4c] sm:$0xf] %vm2026, %v4879
        %4951 = vst.msk [vmem:[#allocation3 + $0x50] sm:$0x1] %vm4932, %v4881
        %4952 = vst.msk [vmem:[#allocation3 + $0x54] sm:$0xf] %vm2026, %v4883
        %4953 = vst.msk [vmem:[#allocation3 + $0x58] sm:$0xf] %vm2026, %v4885
        %4954 = vst.msk [vmem:[#allocation3 + $0x5c] sm:$0x1] %vm4932, %v4887
        %4955 = vst.msk [vmem:[#allocation3 + $0x60] sm:$0xf] %vm2026, %v4889
        %4956 = vst.msk [vmem:[#allocation3 + $0x64] sm:$0xf] %vm2026, %v4891
        %4957 = vst.msk [vmem:[#allocation3 + $0x68] sm:$0x1] %vm4932, %v4893
        %4958 = vst.msk [vmem:[#allocation3 + $0x6c] sm:$0xf] %vm2026, %v4895
        %4959 = vst.msk [vmem:[#allocation3 + $0x70] sm:$0xf] %vm2026, %v4897
        %4960 = vst.msk [vmem:[#allocation3 + $0x74] sm:$0x1] %vm4932, %v4899
        %v4961 = vrot.slane %v4687, 5
        %v4962 = vrot.slane %v4961, 4
        %v4963 = vrot.slane %v4688, 5
        %v4964 = vsel %vm1019, %v4962, %v4963
        %v4965 = vrot.slane %v4963, 4
        %v4966 = vrot.slane %v4689, 5
        %v4967 = vsel %vm1019, %v4965, %v4966
        %v4968 = vrot.slane %v4966, 4
        %4969 = vrot.lane.b32.xlu0 %v4092, 28
        %v4970 = vpop.permute.xlu0 %4969
        %4971 = vrot.lane.b32.xlu0 %v4095, 28
        %v4972 = vpop.permute.xlu0 %4971
        %4973 = vrot.lane.b32.xlu0 %v4096, 28
        %v4974 = vpop.permute.xlu0 %4973
        %4975 = vrot.lane.b32.xlu0 %v4100, 28
        %v4976 = vpop.permute.xlu0 %4975
        %4977 = vrot.lane.b32.xlu0 %v4103, 28
        %v4978 = vpop.permute.xlu0 %4977
        %4979 = vrot.lane.b32.xlu0 %v4104, 28
        %v4980 = vpop.permute.xlu0 %4979
        %4981 = vrot.lane.b32.xlu0 %v4108, 28
        %v4982 = vpop.permute.xlu0 %4981
        %4983 = vrot.lane.b32.xlu0 %v4111, 28
        %v4984 = vpop.permute.xlu0 %4983
        %4985 = vrot.lane.b32.xlu0 %v4112, 28
        %v4986 = vpop.permute.xlu0 %4985
        %4987 = vrot.lane.b32.xlu0 %v4116, 28
        %v4988 = vpop.permute.xlu0 %4987
        %4989 = vrot.lane.b32.xlu0 %v4119, 28
        %v4990 = vpop.permute.xlu0 %4989
        %4991 = vrot.lane.b32.xlu0 %v4120, 28
        %v4992 = vpop.permute.xlu0 %4991
        %4993 = vrot.lane.b32.xlu0 %v4124, 28
        %v4994 = vpop.permute.xlu0 %4993
        %4995 = vrot.lane.b32.xlu0 %v4127, 28
        %v4996 = vpop.permute.xlu0 %4995
        %4997 = vrot.lane.b32.xlu0 %v4128, 28
        %v4998 = vpop.permute.xlu0 %4997
        %4999 = vrot.lane.b32.xlu0 %v4132, 28
        %v5000 = vpop.permute.xlu0 %4999
        %5001 = vrot.lane.b32.xlu0 %v4135, 28
        %v5002 = vpop.permute.xlu0 %5001
        %5003 = vrot.lane.b32.xlu0 %v4136, 28
        %v5004 = vpop.permute.xlu0 %5003
        %5005 = vrot.lane.b32.xlu0 %v4140, 28
        %v5006 = vpop.permute.xlu0 %5005
        %5007 = vrot.lane.b32.xlu0 %v4143, 28
        %v5008 = vpop.permute.xlu0 %5007
        %5009 = vrot.lane.b32.xlu0 %v4144, 28
        %v5010 = vpop.permute.xlu0 %5009
        %5011 = vrot.lane.b32.xlu0 %v4148, 28
        %v5012 = vpop.permute.xlu0 %5011
        %5013 = vrot.lane.b32.xlu0 %v4151, 28
        %v5014 = vpop.permute.xlu0 %5013
        %5015 = vrot.lane.b32.xlu0 %v4152, 28
        %v5016 = vpop.permute.xlu0 %5015
        %5017 = vrot.lane.b32.xlu0 %v4556, 28
        %v5018 = vpop.permute.xlu0 %5017
        %5019 = vrot.lane.b32.xlu0 %v4559, 28
        %v5020 = vpop.permute.xlu0 %5019
        %5021 = vrot.lane.b32.xlu0 %v4560, 28
        %v5022 = vpop.permute.xlu0 %5021
        %5023 = vrot.lane.b32.xlu0 %v4964, 28
        %v5024 = vpop.permute.xlu0 %5023
        %5025 = vrot.lane.b32.xlu0 %v4967, 28
        %v5026 = vpop.permute.xlu0 %5025
        %5027 = vrot.lane.b32.xlu0 %v4968, 28
        %v5028 = vpop.permute.xlu0 %5027
        %5059 = vst.msk [vmem:[#allocation3] sm:$0xf] %vm2180, %v4970
        %5060 = vst.msk [vmem:[#allocation3 + $0x4] sm:$0xf] %vm2180, %v4972
        %vm5061 = vcmask 286976
        %5062 = vst.msk [vmem:[#allocation3 + $0x8] sm:$0x1] %vm5061, %v4974
        %5063 = vst.msk [vmem:[#allocation3 + $0xc] sm:$0xf] %vm2180, %v4976
        %5064 = vst.msk [vmem:[#allocation3 + $0x10] sm:$0xf] %vm2180, %v4978
        %5065 = vst.msk [vmem:[#allocation3 + $0x14] sm:$0x1] %vm5061, %v4980
        %5066 = vst.msk [vmem:[#allocation3 + $0x18] sm:$0xf] %vm2180, %v4982
        %5067 = vst.msk [vmem:[#allocation3 + $0x1c] sm:$0xf] %vm2180, %v4984
        %5068 = vst.msk [vmem:[#allocation3 + $0x20] sm:$0x1] %vm5061, %v4986
        %5069 = vst.msk [vmem:[#allocation3 + $0x24] sm:$0xf] %vm2180, %v4988
        %5070 = vst.msk [vmem:[#allocation3 + $0x28] sm:$0xf] %vm2180, %v4990
        %5071 = vst.msk [vmem:[#allocation3 + $0x2c] sm:$0x1] %vm5061, %v4992
        %5072 = vst.msk [vmem:[#allocation3 + $0x30] sm:$0xf] %vm2180, %v4994
        %5073 = vst.msk [vmem:[#allocation3 + $0x34] sm:$0xf] %vm2180, %v4996
        %5074 = vst.msk [vmem:[#allocation3 + $0x38] sm:$0x1] %vm5061, %v4998
        %5075 = vst.msk [vmem:[#allocation3 + $0x3c] sm:$0xf] %vm2180, %v5000
        %5076 = vst.msk [vmem:[#allocation3 + $0x40] sm:$0xf] %vm2180, %v5002
        %5077 = vst.msk [vmem:[#allocation3 + $0x44] sm:$0x1] %vm5061, %v5004
        %5078 = vst.msk [vmem:[#allocation3 + $0x48] sm:$0xf] %vm2180, %v5006
        %5079 = vst.msk [vmem:[#allocation3 + $0x4c] sm:$0xf] %vm2180, %v5008
        %5080 = vst.msk [vmem:[#allocation3 + $0x50] sm:$0x1] %vm5061, %v5010
        %5081 = vst.msk [vmem:[#allocation3 + $0x54] sm:$0xf] %vm2180, %v5012
        %5082 = vst.msk [vmem:[#allocation3 + $0x58] sm:$0xf] %vm2180, %v5014
        %5083 = vst.msk [vmem:[#allocation3 + $0x5c] sm:$0x1] %vm5061, %v5016
        %5084 = vst.msk [vmem:[#allocation3 + $0x60] sm:$0xf] %vm2180, %v5018
        %5085 = vst.msk [vmem:[#allocation3 + $0x64] sm:$0xf] %vm2180, %v5020
        %5086 = vst.msk [vmem:[#allocation3 + $0x68] sm:$0x1] %vm5061, %v5022
        %5087 = vst.msk [vmem:[#allocation3 + $0x6c] sm:$0xf] %vm2180, %v5024
        %5088 = vst.msk [vmem:[#allocation3 + $0x70] sm:$0xf] %vm2180, %v5026
        %5089 = vst.msk [vmem:[#allocation3 + $0x74] sm:$0x1] %vm5061, %v5028
        %v5090 = vld [vmem:[#allocation3] sm:$0xf]
        %v5091 = vld [vmem:[#allocation3 + $0x4] sm:$0xf]
        %v5092 = vld [vmem:[#allocation3 + $0x8] sm:$0x1]
        %v5093 = vld [vmem:[#allocation3 + $0xc] sm:$0xf]
        %v5094 = vld [vmem:[#allocation3 + $0x10] sm:$0xf]
        %v5095 = vld [vmem:[#allocation3 + $0x14] sm:$0x1]
        %v5096 = vld [vmem:[#allocation3 + $0x18] sm:$0xf]
        %v5097 = vld [vmem:[#allocation3 + $0x1c] sm:$0xf]
        %v5098 = vld [vmem:[#allocation3 + $0x20] sm:$0x1]
        %v5099 = vld [vmem:[#allocation3 + $0x24] sm:$0xf]
        %v5100 = vld [vmem:[#allocation3 + $0x28] sm:$0xf]
        %v5101 = vld [vmem:[#allocation3 + $0x2c] sm:$0x1]
        %v5102 = vld [vmem:[#allocation3 + $0x30] sm:$0xf]
        %v5103 = vld [vmem:[#allocation3 + $0x34] sm:$0xf]
        %v5104 = vld [vmem:[#allocation3 + $0x38] sm:$0x1]
        %v5105 = vld [vmem:[#allocation3 + $0x3c] sm:$0xf]
        %v5106 = vld [vmem:[#allocation3 + $0x40] sm:$0xf]
        %v5107 = vld [vmem:[#allocation3 + $0x44] sm:$0x1]
        %v5108 = vld [vmem:[#allocation3 + $0x48] sm:$0xf]
        %v5109 = vld [vmem:[#allocation3 + $0x4c] sm:$0xf]
        %v5110 = vld [vmem:[#allocation3 + $0x50] sm:$0x1]
        %v5111 = vld [vmem:[#allocation3 + $0x54] sm:$0xf]
        %v5112 = vld [vmem:[#allocation3 + $0x58] sm:$0xf]
        %v5113 = vld [vmem:[#allocation3 + $0x5c] sm:$0x1]
        %v5114 = vld [vmem:[#allocation3 + $0x60] sm:$0xf]
        %v5115 = vld [vmem:[#allocation3 + $0x64] sm:$0xf]
        %v5116 = vld [vmem:[#allocation3 + $0x68] sm:$0x1]
        %v5117 = vld [vmem:[#allocation3 + $0x6c] sm:$0xf]
        %v5118 = vld [vmem:[#allocation3 + $0x70] sm:$0xf]
        %v5119 = vld [vmem:[#allocation3 + $0x74] sm:$0x1]
        %v5151 = vunpack.c.l.s4 1966171168
        %v5152 = vunpack.c.0.s8 %v5151
        %v5153 = vlaneseq
        %v5154 = vshrl.u32 %v5153, 7
        %v5155 = vsub.s32 %v5152, %v5154
        %v5156 = vrot.slane %v5090, %v5155
        %v5157 = vcombine.high %v5156, %v5156
        %v5159 = vunpack.c.l.s4 1966171168
        %v5160 = vunpack.c.0.s8 %v5159
        %v5161 = vlaneseq
        %v5162 = vshrl.u32 %v5161, 7
        %v5163 = vsub.s32 %v5160, %v5162
        %v5164 = vrot.slane %v5156, %v5163
        %v5166 = vunpack.c.l.s4 1966171168
        %v5167 = vunpack.c.0.s8 %v5166
        %v5168 = vlaneseq
        %v5169 = vshrl.u32 %v5168, 7
        %v5170 = vsub.s32 %v5167, %v5169
        %v5171 = vrot.slane %v5157, %v5170
        %v5172 = vcombine.high %v5164, %v5164
        %v5173 = vcombine.high %v5171, %v5171
        %v5175 = vunpack.c.l.s4 1966171168
        %v5176 = vunpack.c.0.s8 %v5175
        %v5177 = vlaneseq
        %v5178 = vshrl.u32 %v5177, 7
        %v5179 = vsub.s32 %v5176, %v5178
        %v5180 = vrot.slane %v5091, %v5179
        %v5181 = vcombine.high %v5180, %v5180
        %v5183 = vunpack.c.l.s4 1966171168
        %v5184 = vunpack.c.0.s8 %v5183
        %v5185 = vlaneseq
        %v5186 = vshrl.u32 %v5185, 7
        %v5187 = vsub.s32 %v5184, %v5186
        %v5188 = vrot.slane %v5180, %v5187
        %v5190 = vunpack.c.l.s4 1966171168
        %v5191 = vunpack.c.0.s8 %v5190
        %v5192 = vlaneseq
        %v5193 = vshrl.u32 %v5192, 7
        %v5194 = vsub.s32 %v5191, %v5193
        %v5195 = vrot.slane %v5181, %v5194
        %v5196 = vcombine.high %v5188, %v5188
        %v5197 = vcombine.high %v5195, %v5195
        %v5199 = vunpack.c.l.s4 1966171168
        %v5200 = vunpack.c.0.s8 %v5199
        %v5201 = vlaneseq
        %v5202 = vshrl.u32 %v5201, 7
        %v5203 = vsub.s32 %v5200, %v5202
        %v5204 = vrot.slane %v5092, %v5203
        %v5206 = vunpack.c.l.s4 1966171168
        %v5207 = vunpack.c.0.s8 %v5206
        %v5208 = vlaneseq
        %v5209 = vshrl.u32 %v5208, 7
        %v5210 = vsub.s32 %v5207, %v5209
        %v5211 = vrot.slane %v5204, %v5210
        %v5213 = vunpack.c.l.s4 1966171168
        %v5214 = vunpack.c.0.s8 %v5213
        %v5215 = vlaneseq
        %v5216 = vshrl.u32 %v5215, 7
        %v5217 = vsub.s32 %v5214, %v5216
        %v5218 = vrot.slane %v5093, %v5217
        %v5219 = vcombine.high %v5218, %v5218
        %v5221 = vunpack.c.l.s4 1966171168
        %v5222 = vunpack.c.0.s8 %v5221
        %v5223 = vlaneseq
        %v5224 = vshrl.u32 %v5223, 7
        %v5225 = vsub.s32 %v5222, %v5224
        %v5226 = vrot.slane %v5218, %v5225
        %v5228 = vunpack.c.l.s4 1966171168
        %v5229 = vunpack.c.0.s8 %v5228
        %v5230 = vlaneseq
        %v5231 = vshrl.u32 %v5230, 7
        %v5232 = vsub.s32 %v5229, %v5231
        %v5233 = vrot.slane %v5219, %v5232
        %v5234 = vcombine.high %v5226, %v5226
        %v5235 = vcombine.high %v5233, %v5233
        %v5237 = vunpack.c.l.s4 1966171168
        %v5238 = vunpack.c.0.s8 %v5237
        %v5239 = vlaneseq
        %v5240 = vshrl.u32 %v5239, 7
        %v5241 = vsub.s32 %v5238, %v5240
        %v5242 = vrot.slane %v5094, %v5241
        %v5243 = vcombine.high %v5242, %v5242
        %v5245 = vunpack.c.l.s4 1966171168
        %v5246 = vunpack.c.0.s8 %v5245
        %v5247 = vlaneseq
        %v5248 = vshrl.u32 %v5247, 7
        %v5249 = vsub.s32 %v5246, %v5248
        %v5250 = vrot.slane %v5242, %v5249
        %v5252 = vunpack.c.l.s4 1966171168
        %v5253 = vunpack.c.0.s8 %v5252
        %v5254 = vlaneseq
        %v5255 = vshrl.u32 %v5254, 7
        %v5256 = vsub.s32 %v5253, %v5255
        %v5257 = vrot.slane %v5243, %v5256
        %v5258 = vcombine.high %v5250, %v5250
        %v5259 = vcombine.high %v5257, %v5257
        %v5261 = vunpack.c.l.s4 1966171168
        %v5262 = vunpack.c.0.s8 %v5261
        %v5263 = vlaneseq
        %v5264 = vshrl.u32 %v5263, 7
        %v5265 = vsub.s32 %v5262, %v5264
        %v5266 = vrot.slane %v5095, %v5265
        %v5268 = vunpack.c.l.s4 1966171168
        %v5269 = vunpack.c.0.s8 %v5268
        %v5270 = vlaneseq
        %v5271 = vshrl.u32 %v5270, 7
        %v5272 = vsub.s32 %v5269, %v5271
        %v5273 = vrot.slane %v5266, %v5272
        %v5275 = vunpack.c.l.s4 1966171168
        %v5276 = vunpack.c.0.s8 %v5275
        %v5277 = vlaneseq
        %v5278 = vshrl.u32 %v5277, 7
        %v5279 = vsub.s32 %v5276, %v5278
        %v5280 = vrot.slane %v5096, %v5279
        %v5281 = vcombine.high %v5280, %v5280
        %v5283 = vunpack.c.l.s4 1966171168
        %v5284 = vunpack.c.0.s8 %v5283
        %v5285 = vlaneseq
        %v5286 = vshrl.u32 %v5285, 7
        %v5287 = vsub.s32 %v5284, %v5286
        %v5288 = vrot.slane %v5280, %v5287
        %v5290 = vunpack.c.l.s4 1966171168
        %v5291 = vunpack.c.0.s8 %v5290
        %v5292 = vlaneseq
        %v5293 = vshrl.u32 %v5292, 7
        %v5294 = vsub.s32 %v5291, %v5293
        %v5295 = vrot.slane %v5281, %v5294
        %v5296 = vcombine.high %v5288, %v5288
        %v5297 = vcombine.high %v5295, %v5295
        %v5299 = vunpack.c.l.s4 1966171168
        %v5300 = vunpack.c.0.s8 %v5299
        %v5301 = vlaneseq
        %v5302 = vshrl.u32 %v5301, 7
        %v5303 = vsub.s32 %v5300, %v5302
        %v5304 = vrot.slane %v5097, %v5303
        %v5305 = vcombine.high %v5304, %v5304
        %v5307 = vunpack.c.l.s4 1966171168
        %v5308 = vunpack.c.0.s8 %v5307
        %v5309 = vlaneseq
        %v5310 = vshrl.u32 %v5309, 7
        %v5311 = vsub.s32 %v5308, %v5310
        %v5312 = vrot.slane %v5304, %v5311
        %v5314 = vunpack.c.l.s4 1966171168
        %v5315 = vunpack.c.0.s8 %v5314
        %v5316 = vlaneseq
        %v5317 = vshrl.u32 %v5316, 7
        %v5318 = vsub.s32 %v5315, %v5317
        %v5319 = vrot.slane %v5305, %v5318
        %v5320 = vcombine.high %v5312, %v5312
        %v5321 = vcombine.high %v5319, %v5319
        %v5323 = vunpack.c.l.s4 1966171168
        %v5324 = vunpack.c.0.s8 %v5323
        %v5325 = vlaneseq
        %v5326 = vshrl.u32 %v5325, 7
        %v5327 = vsub.s32 %v5324, %v5326
        %v5328 = vrot.slane %v5098, %v5327
        %v5330 = vunpack.c.l.s4 1966171168
        %v5331 = vunpack.c.0.s8 %v5330
        %v5332 = vlaneseq
        %v5333 = vshrl.u32 %v5332, 7
        %v5334 = vsub.s32 %v5331, %v5333
        %v5335 = vrot.slane %v5328, %v5334
        %v5337 = vunpack.c.l.s4 1966171168
        %v5338 = vunpack.c.0.s8 %v5337
        %v5339 = vlaneseq
        %v5340 = vshrl.u32 %v5339, 7
        %v5341 = vsub.s32 %v5338, %v5340
        %v5342 = vrot.slane %v5099, %v5341
        %v5343 = vcombine.high %v5342, %v5342
        %v5345 = vunpack.c.l.s4 1966171168
        %v5346 = vunpack.c.0.s8 %v5345
        %v5347 = vlaneseq
        %v5348 = vshrl.u32 %v5347, 7
        %v5349 = vsub.s32 %v5346, %v5348
        %v5350 = vrot.slane %v5342, %v5349
        %v5352 = vunpack.c.l.s4 1966171168
        %v5353 = vunpack.c.0.s8 %v5352
        %v5354 = vlaneseq
        %v5355 = vshrl.u32 %v5354, 7
        %v5356 = vsub.s32 %v5353, %v5355
        %v5357 = vrot.slane %v5343, %v5356
        %v5358 = vcombine.high %v5350, %v5350
        %v5359 = vcombine.high %v5357, %v5357
        %v5361 = vunpack.c.l.s4 1966171168
        %v5362 = vunpack.c.0.s8 %v5361
        %v5363 = vlaneseq
        %v5364 = vshrl.u32 %v5363, 7
        %v5365 = vsub.s32 %v5362, %v5364
        %v5366 = vrot.slane %v5100, %v5365
        %v5367 = vcombine.high %v5366, %v5366
        %v5369 = vunpack.c.l.s4 1966171168
        %v5370 = vunpack.c.0.s8 %v5369
        %v5371 = vlaneseq
        %v5372 = vshrl.u32 %v5371, 7
        %v5373 = vsub.s32 %v5370, %v5372
        %v5374 = vrot.slane %v5366, %v5373
        %v5376 = vunpack.c.l.s4 1966171168
        %v5377 = vunpack.c.0.s8 %v5376
        %v5378 = vlaneseq
        %v5379 = vshrl.u32 %v5378, 7
        %v5380 = vsub.s32 %v5377, %v5379
        %v5381 = vrot.slane %v5367, %v5380
        %v5382 = vcombine.high %v5374, %v5374
        %v5383 = vcombine.high %v5381, %v5381
        %v5385 = vunpack.c.l.s4 1966171168
        %v5386 = vunpack.c.0.s8 %v5385
        %v5387 = vlaneseq
        %v5388 = vshrl.u32 %v5387, 7
        %v5389 = vsub.s32 %v5386, %v5388
        %v5390 = vrot.slane %v5101, %v5389
        %v5392 = vunpack.c.l.s4 1966171168
        %v5393 = vunpack.c.0.s8 %v5392
        %v5394 = vlaneseq
        %v5395 = vshrl.u32 %v5394, 7
        %v5396 = vsub.s32 %v5393, %v5395
        %v5397 = vrot.slane %v5390, %v5396
        %v5399 = vunpack.c.l.s4 1966171168
        %v5400 = vunpack.c.0.s8 %v5399
        %v5401 = vlaneseq
        %v5402 = vshrl.u32 %v5401, 7
        %v5403 = vsub.s32 %v5400, %v5402
        %v5404 = vrot.slane %v5102, %v5403
        %v5405 = vcombine.high %v5404, %v5404
        %v5407 = vunpack.c.l.s4 1966171168
        %v5408 = vunpack.c.0.s8 %v5407
        %v5409 = vlaneseq
        %v5410 = vshrl.u32 %v5409, 7
        %v5411 = vsub.s32 %v5408, %v5410
        %v5412 = vrot.slane %v5404, %v5411
        %v5414 = vunpack.c.l.s4 1966171168
        %v5415 = vunpack.c.0.s8 %v5414
        %v5416 = vlaneseq
        %v5417 = vshrl.u32 %v5416, 7
        %v5418 = vsub.s32 %v5415, %v5417
        %v5419 = vrot.slane %v5405, %v5418
        %v5420 = vcombine.high %v5412, %v5412
        %v5421 = vcombine.high %v5419, %v5419
        %v5423 = vunpack.c.l.s4 1966171168
        %v5424 = vunpack.c.0.s8 %v5423
        %v5425 = vlaneseq
        %v5426 = vshrl.u32 %v5425, 7
        %v5427 = vsub.s32 %v5424, %v5426
        %v5428 = vrot.slane %v5103, %v5427
        %v5429 = vcombine.high %v5428, %v5428
        %v5431 = vunpack.c.l.s4 1966171168
        %v5432 = vunpack.c.0.s8 %v5431
        %v5433 = vlaneseq
        %v5434 = vshrl.u32 %v5433, 7
        %v5435 = vsub.s32 %v5432, %v5434
        %v5436 = vrot.slane %v5428, %v5435
        %v5438 = vunpack.c.l.s4 1966171168
        %v5439 = vunpack.c.0.s8 %v5438
        %v5440 = vlaneseq
        %v5441 = vshrl.u32 %v5440, 7
        %v5442 = vsub.s32 %v5439, %v5441
        %v5443 = vrot.slane %v5429, %v5442
        %v5444 = vcombine.high %v5436, %v5436
        %v5445 = vcombine.high %v5443, %v5443
        %v5447 = vunpack.c.l.s4 1966171168
        %v5448 = vunpack.c.0.s8 %v5447
        %v5449 = vlaneseq
        %v5450 = vshrl.u32 %v5449, 7
        %v5451 = vsub.s32 %v5448, %v5450
        %v5452 = vrot.slane %v5104, %v5451
        %v5454 = vunpack.c.l.s4 1966171168
        %v5455 = vunpack.c.0.s8 %v5454
        %v5456 = vlaneseq
        %v5457 = vshrl.u32 %v5456, 7
        %v5458 = vsub.s32 %v5455, %v5457
        %v5459 = vrot.slane %v5452, %v5458
        %v5461 = vunpack.c.l.s4 1966171168
        %v5462 = vunpack.c.0.s8 %v5461
        %v5463 = vlaneseq
        %v5464 = vshrl.u32 %v5463, 7
        %v5465 = vsub.s32 %v5462, %v5464
        %v5466 = vrot.slane %v5105, %v5465
        %v5467 = vcombine.high %v5466, %v5466
        %v5469 = vunpack.c.l.s4 1966171168
        %v5470 = vunpack.c.0.s8 %v5469
        %v5471 = vlaneseq
        %v5472 = vshrl.u32 %v5471, 7
        %v5473 = vsub.s32 %v5470, %v5472
        %v5474 = vrot.slane %v5466, %v5473
        %v5476 = vunpack.c.l.s4 1966171168
        %v5477 = vunpack.c.0.s8 %v5476
        %v5478 = vlaneseq
        %v5479 = vshrl.u32 %v5478, 7
        %v5480 = vsub.s32 %v5477, %v5479
        %v5481 = vrot.slane %v5467, %v5480
        %v5482 = vcombine.high %v5474, %v5474
        %v5483 = vcombine.high %v5481, %v5481
        %v5485 = vunpack.c.l.s4 1966171168
        %v5486 = vunpack.c.0.s8 %v5485
        %v5487 = vlaneseq
        %v5488 = vshrl.u32 %v5487, 7
        %v5489 = vsub.s32 %v5486, %v5488
        %v5490 = vrot.slane %v5106, %v5489
        %v5491 = vcombine.high %v5490, %v5490
        %v5493 = vunpack.c.l.s4 1966171168
        %v5494 = vunpack.c.0.s8 %v5493
        %v5495 = vlaneseq
        %v5496 = vshrl.u32 %v5495, 7
        %v5497 = vsub.s32 %v5494, %v5496
        %v5498 = vrot.slane %v5490, %v5497
        %v5500 = vunpack.c.l.s4 1966171168
        %v5501 = vunpack.c.0.s8 %v5500
        %v5502 = vlaneseq
        %v5503 = vshrl.u32 %v5502, 7
        %v5504 = vsub.s32 %v5501, %v5503
        %v5505 = vrot.slane %v5491, %v5504
        %v5506 = vcombine.high %v5498, %v5498
        %v5507 = vcombine.high %v5505, %v5505
        %v5509 = vunpack.c.l.s4 1966171168
        %v5510 = vunpack.c.0.s8 %v5509
        %v5511 = vlaneseq
        %v5512 = vshrl.u32 %v5511, 7
        %v5513 = vsub.s32 %v5510, %v5512
        %v5514 = vrot.slane %v5107, %v5513
        %v5516 = vunpack.c.l.s4 1966171168
        %v5517 = vunpack.c.0.s8 %v5516
        %v5518 = vlaneseq
        %v5519 = vshrl.u32 %v5518, 7
        %v5520 = vsub.s32 %v5517, %v5519
        %v5521 = vrot.slane %v5514, %v5520
        %v5523 = vunpack.c.l.s4 1966171168
        %v5524 = vunpack.c.0.s8 %v5523
        %v5525 = vlaneseq
        %v5526 = vshrl.u32 %v5525, 7
        %v5527 = vsub.s32 %v5524, %v5526
        %v5528 = vrot.slane %v5108, %v5527
        %v5529 = vcombine.high %v5528, %v5528
        %v5531 = vunpack.c.l.s4 1966171168
        %v5532 = vunpack.c.0.s8 %v5531
        %v5533 = vlaneseq
        %v5534 = vshrl.u32 %v5533, 7
        %v5535 = vsub.s32 %v5532, %v5534
        %v5536 = vrot.slane %v5528, %v5535
        %v5538 = vunpack.c.l.s4 1966171168
        %v5539 = vunpack.c.0.s8 %v5538
        %v5540 = vlaneseq
        %v5541 = vshrl.u32 %v5540, 7
        %v5542 = vsub.s32 %v5539, %v5541
        %v5543 = vrot.slane %v5529, %v5542
        %v5544 = vcombine.high %v5536, %v5536
        %v5545 = vcombine.high %v5543, %v5543
        %v5547 = vunpack.c.l.s4 1966171168
        %v5548 = vunpack.c.0.s8 %v5547
        %v5549 = vlaneseq
        %v5550 = vshrl.u32 %v5549, 7
        %v5551 = vsub.s32 %v5548, %v5550
        %v5552 = vrot.slane %v5109, %v5551
        %v5553 = vcombine.high %v5552, %v5552
        %v5555 = vunpack.c.l.s4 1966171168
        %v5556 = vunpack.c.0.s8 %v5555
        %v5557 = vlaneseq
        %v5558 = vshrl.u32 %v5557, 7
        %v5559 = vsub.s32 %v5556, %v5558
        %v5560 = vrot.slane %v5552, %v5559
        %v5562 = vunpack.c.l.s4 1966171168
        %v5563 = vunpack.c.0.s8 %v5562
        %v5564 = vlaneseq
        %v5565 = vshrl.u32 %v5564, 7
        %v5566 = vsub.s32 %v5563, %v5565
        %v5567 = vrot.slane %v5553, %v5566
        %v5568 = vcombine.high %v5560, %v5560
        %v5569 = vcombine.high %v5567, %v5567
        %v5571 = vunpack.c.l.s4 1966171168
        %v5572 = vunpack.c.0.s8 %v5571
        %v5573 = vlaneseq
        %v5574 = vshrl.u32 %v5573, 7
        %v5575 = vsub.s32 %v5572, %v5574
        %v5576 = vrot.slane %v5110, %v5575
        %v5578 = vunpack.c.l.s4 1966171168
        %v5579 = vunpack.c.0.s8 %v5578
        %v5580 = vlaneseq
        %v5581 = vshrl.u32 %v5580, 7
        %v5582 = vsub.s32 %v5579, %v5581
        %v5583 = vrot.slane %v5576, %v5582
        %v5585 = vunpack.c.l.s4 1966171168
        %v5586 = vunpack.c.0.s8 %v5585
        %v5587 = vlaneseq
        %v5588 = vshrl.u32 %v5587, 7
        %v5589 = vsub.s32 %v5586, %v5588
        %v5590 = vrot.slane %v5111, %v5589
        %v5591 = vcombine.high %v5590, %v5590
        %v5593 = vunpack.c.l.s4 1966171168
        %v5594 = vunpack.c.0.s8 %v5593
        %v5595 = vlaneseq
        %v5596 = vshrl.u32 %v5595, 7
        %v5597 = vsub.s32 %v5594, %v5596
        %v5598 = vrot.slane %v5590, %v5597
        %v5600 = vunpack.c.l.s4 1966171168
        %v5601 = vunpack.c.0.s8 %v5600
        %v5602 = vlaneseq
        %v5603 = vshrl.u32 %v5602, 7
        %v5604 = vsub.s32 %v5601, %v5603
        %v5605 = vrot.slane %v5591, %v5604
        %v5606 = vcombine.high %v5598, %v5598
        %v5607 = vcombine.high %v5605, %v5605
        %v5609 = vunpack.c.l.s4 1966171168
        %v5610 = vunpack.c.0.s8 %v5609
        %v5611 = vlaneseq
        %v5612 = vshrl.u32 %v5611, 7
        %v5613 = vsub.s32 %v5610, %v5612
        %v5614 = vrot.slane %v5112, %v5613
        %v5615 = vcombine.high %v5614, %v5614
        %v5617 = vunpack.c.l.s4 1966171168
        %v5618 = vunpack.c.0.s8 %v5617
        %v5619 = vlaneseq
        %v5620 = vshrl.u32 %v5619, 7
        %v5621 = vsub.s32 %v5618, %v5620
        %v5622 = vrot.slane %v5614, %v5621
        %v5624 = vunpack.c.l.s4 1966171168
        %v5625 = vunpack.c.0.s8 %v5624
        %v5626 = vlaneseq
        %v5627 = vshrl.u32 %v5626, 7
        %v5628 = vsub.s32 %v5625, %v5627
        %v5629 = vrot.slane %v5615, %v5628
        %v5630 = vcombine.high %v5622, %v5622
        %v5631 = vcombine.high %v5629, %v5629
        %v5633 = vunpack.c.l.s4 1966171168
        %v5634 = vunpack.c.0.s8 %v5633
        %v5635 = vlaneseq
        %v5636 = vshrl.u32 %v5635, 7
        %v5637 = vsub.s32 %v5634, %v5636
        %v5638 = vrot.slane %v5113, %v5637
        %v5640 = vunpack.c.l.s4 1966171168
        %v5641 = vunpack.c.0.s8 %v5640
        %v5642 = vlaneseq
        %v5643 = vshrl.u32 %v5642, 7
        %v5644 = vsub.s32 %v5641, %v5643
        %v5645 = vrot.slane %v5638, %v5644
        %v5647 = vunpack.c.l.s4 1966171168
        %v5648 = vunpack.c.0.s8 %v5647
        %v5649 = vlaneseq
        %v5650 = vshrl.u32 %v5649, 7
        %v5651 = vsub.s32 %v5648, %v5650
        %v5652 = vrot.slane %v5114, %v5651
        %v5653 = vcombine.high %v5652, %v5652
        %v5655 = vunpack.c.l.s4 1966171168
        %v5656 = vunpack.c.0.s8 %v5655
        %v5657 = vlaneseq
        %v5658 = vshrl.u32 %v5657, 7
        %v5659 = vsub.s32 %v5656, %v5658
        %v5660 = vrot.slane %v5652, %v5659
        %v5662 = vunpack.c.l.s4 1966171168
        %v5663 = vunpack.c.0.s8 %v5662
        %v5664 = vlaneseq
        %v5665 = vshrl.u32 %v5664, 7
        %v5666 = vsub.s32 %v5663, %v5665
        %v5667 = vrot.slane %v5653, %v5666
        %v5668 = vcombine.high %v5660, %v5660
        %v5669 = vcombine.high %v5667, %v5667
        %v5671 = vunpack.c.l.s4 1966171168
        %v5672 = vunpack.c.0.s8 %v5671
        %v5673 = vlaneseq
        %v5674 = vshrl.u32 %v5673, 7
        %v5675 = vsub.s32 %v5672, %v5674
        %v5676 = vrot.slane %v5115, %v5675
        %v5677 = vcombine.high %v5676, %v5676
        %v5679 = vunpack.c.l.s4 1966171168
        %v5680 = vunpack.c.0.s8 %v5679
        %v5681 = vlaneseq
        %v5682 = vshrl.u32 %v5681, 7
        %v5683 = vsub.s32 %v5680, %v5682
        %v5684 = vrot.slane %v5676, %v5683
        %v5686 = vunpack.c.l.s4 1966171168
        %v5687 = vunpack.c.0.s8 %v5686
        %v5688 = vlaneseq
        %v5689 = vshrl.u32 %v5688, 7
        %v5690 = vsub.s32 %v5687, %v5689
        %v5691 = vrot.slane %v5677, %v5690
        %v5692 = vcombine.high %v5684, %v5684
        %v5693 = vcombine.high %v5691, %v5691
        %v5695 = vunpack.c.l.s4 1966171168
        %v5696 = vunpack.c.0.s8 %v5695
        %v5697 = vlaneseq
        %v5698 = vshrl.u32 %v5697, 7
        %v5699 = vsub.s32 %v5696, %v5698
        %v5700 = vrot.slane %v5116, %v5699
        %v5702 = vunpack.c.l.s4 1966171168
        %v5703 = vunpack.c.0.s8 %v5702
        %v5704 = vlaneseq
        %v5705 = vshrl.u32 %v5704, 7
        %v5706 = vsub.s32 %v5703, %v5705
        %v5707 = vrot.slane %v5700, %v5706
        %v5709 = vunpack.c.l.s4 1966171168
        %v5710 = vunpack.c.0.s8 %v5709
        %v5711 = vlaneseq
        %v5712 = vshrl.u32 %v5711, 7
        %v5713 = vsub.s32 %v5710, %v5712
        %v5714 = vrot.slane %v5117, %v5713
        %v5715 = vcombine.high %v5714, %v5714
        %v5717 = vunpack.c.l.s4 1966171168
        %v5718 = vunpack.c.0.s8 %v5717
        %v5719 = vlaneseq
        %v5720 = vshrl.u32 %v5719, 7
        %v5721 = vsub.s32 %v5718, %v5720
        %v5722 = vrot.slane %v5714, %v5721
        %v5724 = vunpack.c.l.s4 1966171168
        %v5725 = vunpack.c.0.s8 %v5724
        %v5726 = vlaneseq
        %v5727 = vshrl.u32 %v5726, 7
        %v5728 = vsub.s32 %v5725, %v5727
        %v5729 = vrot.slane %v5715, %v5728
        %v5730 = vcombine.high %v5722, %v5722
        %v5731 = vcombine.high %v5729, %v5729
        %v5733 = vunpack.c.l.s4 1966171168
        %v5734 = vunpack.c.0.s8 %v5733
        %v5735 = vlaneseq
        %v5736 = vshrl.u32 %v5735, 7
        %v5737 = vsub.s32 %v5734, %v5736
        %v5738 = vrot.slane %v5118, %v5737
        %v5739 = vcombine.high %v5738, %v5738
        %v5741 = vunpack.c.l.s4 1966171168
        %v5742 = vunpack.c.0.s8 %v5741
        %v5743 = vlaneseq
        %v5744 = vshrl.u32 %v5743, 7
        %v5745 = vsub.s32 %v5742, %v5744
        %v5746 = vrot.slane %v5738, %v5745
        %v5748 = vunpack.c.l.s4 1966171168
        %v5749 = vunpack.c.0.s8 %v5748
        %v5750 = vlaneseq
        %v5751 = vshrl.u32 %v5750, 7
        %v5752 = vsub.s32 %v5749, %v5751
        %v5753 = vrot.slane %v5739, %v5752
        %v5754 = vcombine.high %v5746, %v5746
        %v5755 = vcombine.high %v5753, %v5753
        %v5757 = vunpack.c.l.s4 1966171168
        %v5758 = vunpack.c.0.s8 %v5757
        %v5759 = vlaneseq
        %v5760 = vshrl.u32 %v5759, 7
        %v5761 = vsub.s32 %v5758, %v5760
        %v5762 = vrot.slane %v5119, %v5761
        %v5764 = vunpack.c.l.s4 1966171168
        %v5765 = vunpack.c.0.s8 %v5764
        %v5766 = vlaneseq
        %v5767 = vshrl.u32 %v5766, 7
        %v5768 = vsub.s32 %v5765, %v5767
        %v5769 = vrot.slane %v5762, %v5768
        %v5770 = vld [vmem:[%s3] sm:$0xf]
        %v5771 = vld [vmem:[%s3 + $0x4] sm:$0xf]
        %v5772 = vld [vmem:[%s3 + $0x8] sm:$0xf]
        %v5773 = vld [vmem:[%s3 + $0xc] sm:$0xf]
        %v5774 = vld [vmem:[%s3 + $0x10] sm:$0x3]
        %v5775 = vld [vmem:[%s4] sm:$0x1]
        %v5777 = vlaneseq
        %v5778 = vshrl.u32 %v5777, 7
        %v5779 = vsub.s32 0, %v5778
        %v5780 = vrot.slane %v5775, %v5779
        %v5782 = vcombine.low %v5164, %v5171
        %v5783 = vcombine.low %v5172, %v5173
        %v5784 = vcombine.low %v5188, %v5195
        %v5785 = vcombine.low %v5196, %v5197
        %v5787 = vunpack.c.l.s4 1966171168
        %v5788 = vunpack.c.0.s8 %v5787
        %v5789 = vlaneseq
        %v5790 = vshrl.u32 %v5789, 7
        %v5791 = vsub.s32 %v5788, %v5790
        %v5792 = vrot.slane %v5782, %v5791
        %v5794 = vunpack.c.l.s4 1966171168
        %v5795 = vunpack.c.0.s8 %v5794
        %v5796 = vlaneseq
        %v5797 = vshrl.u32 %v5796, 7
        %v5798 = vsub.s32 %v5795, %v5797
        %v5799 = vrot.slane %v5783, %v5798
        %v5801 = vunpack.c.l.s4 1966171168
        %v5802 = vunpack.c.0.s8 %v5801
        %v5803 = vlaneseq
        %v5804 = vshrl.u32 %v5803, 7
        %v5805 = vsub.s32 %v5802, %v5804
        %v5806 = vrot.slane %v5784, %v5805
        %v5808 = vunpack.c.l.s4 1966171168
        %v5809 = vunpack.c.0.s8 %v5808
        %v5810 = vlaneseq
        %v5811 = vshrl.u32 %v5810, 7
        %v5812 = vsub.s32 %v5809, %v5811
        %v5813 = vrot.slane %v5785, %v5812
        %v5814 = vcombine.low %v5792, %v5799
        %v5815 = vcombine.low %v5806, %v5813
        %v5817 = vunpack.c.l.s4 1966171168
        %v5818 = vunpack.c.0.s8 %v5817
        %v5819 = vlaneseq
        %v5820 = vshrl.u32 %v5819, 7
        %v5821 = vsub.s32 %v5818, %v5820
        %v5822 = vrot.slane %v5814, %v5821
        %v5824 = vunpack.c.l.s4 1966171168
        %v5825 = vunpack.c.0.s8 %v5824
        %v5826 = vlaneseq
        %v5827 = vshrl.u32 %v5826, 7
        %v5828 = vsub.s32 %v5825, %v5827
        %v5829 = vrot.slane %v5815, %v5828
        %v5830 = vcombine.low %v5822, %v5829
        %v5831 = vcombine.low %v5211, %v5226
        %v5832 = vcombine.low %v5233, %v5234
        %v5833 = vcombine.low %v5235, %v5250
        %v5834 = vcombine.low %v5257, %v5258
        %v5836 = vunpack.c.l.s4 1966171168
        %v5837 = vunpack.c.0.s8 %v5836
        %v5838 = vlaneseq
        %v5839 = vshrl.u32 %v5838, 7
        %v5840 = vsub.s32 %v5837, %v5839
        %v5841 = vrot.slane %v5831, %v5840
        %v5843 = vunpack.c.l.s4 1966171168
        %v5844 = vunpack.c.0.s8 %v5843
        %v5845 = vlaneseq
        %v5846 = vshrl.u32 %v5845, 7
        %v5847 = vsub.s32 %v5844, %v5846
        %v5848 = vrot.slane %v5832, %v5847
        %v5850 = vunpack.c.l.s4 1966171168
        %v5851 = vunpack.c.0.s8 %v5850
        %v5852 = vlaneseq
        %v5853 = vshrl.u32 %v5852, 7
        %v5854 = vsub.s32 %v5851, %v5853
        %v5855 = vrot.slane %v5833, %v5854
        %v5857 = vunpack.c.l.s4 1966171168
        %v5858 = vunpack.c.0.s8 %v5857
        %v5859 = vlaneseq
        %v5860 = vshrl.u32 %v5859, 7
        %v5861 = vsub.s32 %v5858, %v5860
        %v5862 = vrot.slane %v5834, %v5861
        %v5863 = vcombine.low %v5841, %v5848
        %v5864 = vcombine.low %v5855, %v5862
        %v5866 = vunpack.c.l.s4 1966171168
        %v5867 = vunpack.c.0.s8 %v5866
        %v5868 = vlaneseq
        %v5869 = vshrl.u32 %v5868, 7
        %v5870 = vsub.s32 %v5867, %v5869
        %v5871 = vrot.slane %v5863, %v5870
        %v5873 = vunpack.c.l.s4 1966171168
        %v5874 = vunpack.c.0.s8 %v5873
        %v5875 = vlaneseq
        %v5876 = vshrl.u32 %v5875, 7
        %v5877 = vsub.s32 %v5874, %v5876
        %v5878 = vrot.slane %v5864, %v5877
        %v5879 = vcombine.low %v5871, %v5878
        %v5880 = vcombine.low %v5259, %v5273
        %v5881 = vcombine.low %v5288, %v5295
        %v5882 = vcombine.low %v5296, %v5297
        %v5883 = vcombine.low %v5312, %v5319
        %v5885 = vunpack.c.l.s4 1966171168
        %v5886 = vunpack.c.0.s8 %v5885
        %v5887 = vlaneseq
        %v5888 = vshrl.u32 %v5887, 7
        %v5889 = vsub.s32 %v5886, %v5888
        %v5890 = vrot.slane %v5880, %v5889
        %v5892 = vunpack.c.l.s4 1966171168
        %v5893 = vunpack.c.0.s8 %v5892
        %v5894 = vlaneseq
        %v5895 = vshrl.u32 %v5894, 7
        %v5896 = vsub.s32 %v5893, %v5895
        %v5897 = vrot.slane %v5881, %v5896
        %v5899 = vunpack.c.l.s4 1966171168
        %v5900 = vunpack.c.0.s8 %v5899
        %v5901 = vlaneseq
        %v5902 = vshrl.u32 %v5901, 7
        %v5903 = vsub.s32 %v5900, %v5902
        %v5904 = vrot.slane %v5882, %v5903
        %v5906 = vunpack.c.l.s4 1966171168
        %v5907 = vunpack.c.0.s8 %v5906
        %v5908 = vlaneseq
        %v5909 = vshrl.u32 %v5908, 7
        %v5910 = vsub.s32 %v5907, %v5909
        %v5911 = vrot.slane %v5883, %v5910
        %v5912 = vcombine.low %v5890, %v5897
        %v5913 = vcombine.low %v5904, %v5911
        %v5915 = vunpack.c.l.s4 1966171168
        %v5916 = vunpack.c.0.s8 %v5915
        %v5917 = vlaneseq
        %v5918 = vshrl.u32 %v5917, 7
        %v5919 = vsub.s32 %v5916, %v5918
        %v5920 = vrot.slane %v5912, %v5919
        %v5922 = vunpack.c.l.s4 1966171168
        %v5923 = vunpack.c.0.s8 %v5922
        %v5924 = vlaneseq
        %v5925 = vshrl.u32 %v5924, 7
        %v5926 = vsub.s32 %v5923, %v5925
        %v5927 = vrot.slane %v5913, %v5926
        %v5928 = vcombine.low %v5920, %v5927
        %v5929 = vcombine.low %v5320, %v5321
        %v5930 = vcombine.low %v5335, %v5350
        %v5931 = vcombine.low %v5357, %v5358
        %v5932 = vcombine.low %v5359, %v5374
        %v5934 = vunpack.c.l.s4 1966171168
        %v5935 = vunpack.c.0.s8 %v5934
        %v5936 = vlaneseq
        %v5937 = vshrl.u32 %v5936, 7
        %v5938 = vsub.s32 %v5935, %v5937
        %v5939 = vrot.slane %v5929, %v5938
        %v5941 = vunpack.c.l.s4 1966171168
        %v5942 = vunpack.c.0.s8 %v5941
        %v5943 = vlaneseq
        %v5944 = vshrl.u32 %v5943, 7
        %v5945 = vsub.s32 %v5942, %v5944
        %v5946 = vrot.slane %v5930, %v5945
        %v5948 = vunpack.c.l.s4 1966171168
        %v5949 = vunpack.c.0.s8 %v5948
        %v5950 = vlaneseq
        %v5951 = vshrl.u32 %v5950, 7
        %v5952 = vsub.s32 %v5949, %v5951
        %v5953 = vrot.slane %v5931, %v5952
        %v5955 = vunpack.c.l.s4 1966171168
        %v5956 = vunpack.c.0.s8 %v5955
        %v5957 = vlaneseq
        %v5958 = vshrl.u32 %v5957, 7
        %v5959 = vsub.s32 %v5956, %v5958
        %v5960 = vrot.slane %v5932, %v5959
        %v5961 = vcombine.low %v5939, %v5946
        %v5962 = vcombine.low %v5953, %v5960
        %v5964 = vunpack.c.l.s4 1966171168
        %v5965 = vunpack.c.0.s8 %v5964
        %v5966 = vlaneseq
        %v5967 = vshrl.u32 %v5966, 7
        %v5968 = vsub.s32 %v5965, %v5967
        %v5969 = vrot.slane %v5961, %v5968
        %v5971 = vunpack.c.l.s4 1966171168
        %v5972 = vunpack.c.0.s8 %v5971
        %v5973 = vlaneseq
        %v5974 = vshrl.u32 %v5973, 7
        %v5975 = vsub.s32 %v5972, %v5974
        %v5976 = vrot.slane %v5962, %v5975
        %v5977 = vcombine.low %v5969, %v5976
        %v5978 = vcombine.low %v5381, %v5382
        %v5979 = vcombine.low %v5383, %v5397
        %v5980 = vcombine.low %v5412, %v5419
        %v5981 = vcombine.low %v5420, %v5421
        %v5983 = vunpack.c.l.s4 1966171168
        %v5984 = vunpack.c.0.s8 %v5983
        %v5985 = vlaneseq
        %v5986 = vshrl.u32 %v5985, 7
        %v5987 = vsub.s32 %v5984, %v5986
        %v5988 = vrot.slane %v5978, %v5987
        %v5990 = vunpack.c.l.s4 1966171168
        %v5991 = vunpack.c.0.s8 %v5990
        %v5992 = vlaneseq
        %v5993 = vshrl.u32 %v5992, 7
        %v5994 = vsub.s32 %v5991, %v5993
        %v5995 = vrot.slane %v5979, %v5994
        %v5997 = vunpack.c.l.s4 1966171168
        %v5998 = vunpack.c.0.s8 %v5997
        %v5999 = vlaneseq
        %v6000 = vshrl.u32 %v5999, 7
        %v6001 = vsub.s32 %v5998, %v6000
        %v6002 = vrot.slane %v5980, %v6001
        %v6004 = vunpack.c.l.s4 1966171168
        %v6005 = vunpack.c.0.s8 %v6004
        %v6006 = vlaneseq
        %v6007 = vshrl.u32 %v6006, 7
        %v6008 = vsub.s32 %v6005, %v6007
        %v6009 = vrot.slane %v5981, %v6008
        %v6010 = vcombine.low %v5988, %v5995
        %v6011 = vcombine.low %v6002, %v6009
        %v6013 = vunpack.c.l.s4 1966171168
        %v6014 = vunpack.c.0.s8 %v6013
        %v6015 = vlaneseq
        %v6016 = vshrl.u32 %v6015, 7
        %v6017 = vsub.s32 %v6014, %v6016
        %v6018 = vrot.slane %v6010, %v6017
        %v6020 = vunpack.c.l.s4 1966171168
        %v6021 = vunpack.c.0.s8 %v6020
        %v6022 = vlaneseq
        %v6023 = vshrl.u32 %v6022, 7
        %v6024 = vsub.s32 %v6021, %v6023
        %v6025 = vrot.slane %v6011, %v6024
        %v6026 = vcombine.low %v6018, %v6025
        %v6027 = vcombine.low %v5436, %v5443
        %v6028 = vcombine.low %v5444, %v5445
        %v6029 = vcombine.low %v5459, %v5474
        %v6030 = vcombine.low %v5481, %v5482
        %v6032 = vunpack.c.l.s4 1966171168
        %v6033 = vunpack.c.0.s8 %v6032
        %v6034 = vlaneseq
        %v6035 = vshrl.u32 %v6034, 7
        %v6036 = vsub.s32 %v6033, %v6035
        %v6037 = vrot.slane %v6027, %v6036
        %v6039 = vunpack.c.l.s4 1966171168
        %v6040 = vunpack.c.0.s8 %v6039
        %v6041 = vlaneseq
        %v6042 = vshrl.u32 %v6041, 7
        %v6043 = vsub.s32 %v6040, %v6042
        %v6044 = vrot.slane %v6028, %v6043
        %v6046 = vunpack.c.l.s4 1966171168
        %v6047 = vunpack.c.0.s8 %v6046
        %v6048 = vlaneseq
        %v6049 = vshrl.u32 %v6048, 7
        %v6050 = vsub.s32 %v6047, %v6049
        %v6051 = vrot.slane %v6029, %v6050
        %v6053 = vunpack.c.l.s4 1966171168
        %v6054 = vunpack.c.0.s8 %v6053
        %v6055 = vlaneseq
        %v6056 = vshrl.u32 %v6055, 7
        %v6057 = vsub.s32 %v6054, %v6056
        %v6058 = vrot.slane %v6030, %v6057
        %v6059 = vcombine.low %v6037, %v6044
        %v6060 = vcombine.low %v6051, %v6058
        %v6062 = vunpack.c.l.s4 1966171168
        %v6063 = vunpack.c.0.s8 %v6062
        %v6064 = vlaneseq
        %v6065 = vshrl.u32 %v6064, 7
        %v6066 = vsub.s32 %v6063, %v6065
        %v6067 = vrot.slane %v6059, %v6066
        %v6069 = vunpack.c.l.s4 1966171168
        %v6070 = vunpack.c.0.s8 %v6069
        %v6071 = vlaneseq
        %v6072 = vshrl.u32 %v6071, 7
        %v6073 = vsub.s32 %v6070, %v6072
        %v6074 = vrot.slane %v6060, %v6073
        %v6075 = vcombine.low %v6067, %v6074
        %v6076 = vcombine.low %v5483, %v5498
        %v6077 = vcombine.low %v5505, %v5506
        %v6078 = vcombine.low %v5507, %v5521
        %v6079 = vcombine.low %v5536, %v5543
        %v6081 = vunpack.c.l.s4 1966171168
        %v6082 = vunpack.c.0.s8 %v6081
        %v6083 = vlaneseq
        %v6084 = vshrl.u32 %v6083, 7
        %v6085 = vsub.s32 %v6082, %v6084
        %v6086 = vrot.slane %v6076, %v6085
        %v6088 = vunpack.c.l.s4 1966171168
        %v6089 = vunpack.c.0.s8 %v6088
        %v6090 = vlaneseq
        %v6091 = vshrl.u32 %v6090, 7
        %v6092 = vsub.s32 %v6089, %v6091
        %v6093 = vrot.slane %v6077, %v6092
        %v6095 = vunpack.c.l.s4 1966171168
        %v6096 = vunpack.c.0.s8 %v6095
        %v6097 = vlaneseq
        %v6098 = vshrl.u32 %v6097, 7
        %v6099 = vsub.s32 %v6096, %v6098
        %v6100 = vrot.slane %v6078, %v6099
        %v6102 = vunpack.c.l.s4 1966171168
        %v6103 = vunpack.c.0.s8 %v6102
        %v6104 = vlaneseq
        %v6105 = vshrl.u32 %v6104, 7
        %v6106 = vsub.s32 %v6103, %v6105
        %v6107 = vrot.slane %v6079, %v6106
        %v6108 = vcombine.low %v6086, %v6093
        %v6109 = vcombine.low %v6100, %v6107
        %v6111 = vunpack.c.l.s4 1966171168
        %v6112 = vunpack.c.0.s8 %v6111
        %v6113 = vlaneseq
        %v6114 = vshrl.u32 %v6113, 7
        %v6115 = vsub.s32 %v6112, %v6114
        %v6116 = vrot.slane %v6108, %v6115
        %v6118 = vunpack.c.l.s4 1966171168
        %v6119 = vunpack.c.0.s8 %v6118
        %v6120 = vlaneseq
        %v6121 = vshrl.u32 %v6120, 7
        %v6122 = vsub.s32 %v6119, %v6121
        %v6123 = vrot.slane %v6109, %v6122
        %v6124 = vcombine.low %v6116, %v6123
        %v6125 = vcombine.low %v5544, %v5545
        %v6126 = vcombine.low %v5560, %v5567
        %v6127 = vcombine.low %v5568, %v5569
        %v6128 = vcombine.low %v5583, %v5598
        %v6130 = vunpack.c.l.s4 1966171168
        %v6131 = vunpack.c.0.s8 %v6130
        %v6132 = vlaneseq
        %v6133 = vshrl.u32 %v6132, 7
        %v6134 = vsub.s32 %v6131, %v6133
        %v6135 = vrot.slane %v6125, %v6134
        %v6137 = vunpack.c.l.s4 1966171168
        %v6138 = vunpack.c.0.s8 %v6137
        %v6139 = vlaneseq
        %v6140 = vshrl.u32 %v6139, 7
        %v6141 = vsub.s32 %v6138, %v6140
        %v6142 = vrot.slane %v6126, %v6141
        %v6144 = vunpack.c.l.s4 1966171168
        %v6145 = vunpack.c.0.s8 %v6144
        %v6146 = vlaneseq
        %v6147 = vshrl.u32 %v6146, 7
        %v6148 = vsub.s32 %v6145, %v6147
        %v6149 = vrot.slane %v6127, %v6148
        %v6151 = vunpack.c.l.s4 1966171168
        %v6152 = vunpack.c.0.s8 %v6151
        %v6153 = vlaneseq
        %v6154 = vshrl.u32 %v6153, 7
        %v6155 = vsub.s32 %v6152, %v6154
        %v6156 = vrot.slane %v6128, %v6155
        %v6157 = vcombine.low %v6135, %v6142
        %v6158 = vcombine.low %v6149, %v6156
        %v6160 = vunpack.c.l.s4 1966171168
        %v6161 = vunpack.c.0.s8 %v6160
        %v6162 = vlaneseq
        %v6163 = vshrl.u32 %v6162, 7
        %v6164 = vsub.s32 %v6161, %v6163
        %v6165 = vrot.slane %v6157, %v6164
        %v6167 = vunpack.c.l.s4 1966171168
        %v6168 = vunpack.c.0.s8 %v6167
        %v6169 = vlaneseq
        %v6170 = vshrl.u32 %v6169, 7
        %v6171 = vsub.s32 %v6168, %v6170
        %v6172 = vrot.slane %v6158, %v6171
        %v6173 = vcombine.low %v6165, %v6172
        %v6174 = vcombine.low %v5605, %v5606
        %v6175 = vcombine.low %v5607, %v5622
        %v6176 = vcombine.low %v5629, %v5630
        %v6177 = vcombine.low %v5631, %v5645
        %v6179 = vunpack.c.l.s4 1966171168
        %v6180 = vunpack.c.0.s8 %v6179
        %v6181 = vlaneseq
        %v6182 = vshrl.u32 %v6181, 7
        %v6183 = vsub.s32 %v6180, %v6182
        %v6184 = vrot.slane %v6174, %v6183
        %v6186 = vunpack.c.l.s4 1966171168
        %v6187 = vunpack.c.0.s8 %v6186
        %v6188 = vlaneseq
        %v6189 = vshrl.u32 %v6188, 7
        %v6190 = vsub.s32 %v6187, %v6189
        %v6191 = vrot.slane %v6175, %v6190
        %v6193 = vunpack.c.l.s4 1966171168
        %v6194 = vunpack.c.0.s8 %v6193
        %v6195 = vlaneseq
        %v6196 = vshrl.u32 %v6195, 7
        %v6197 = vsub.s32 %v6194, %v6196
        %v6198 = vrot.slane %v6176, %v6197
        %v6200 = vunpack.c.l.s4 1966171168
        %v6201 = vunpack.c.0.s8 %v6200
        %v6202 = vlaneseq
        %v6203 = vshrl.u32 %v6202, 7
        %v6204 = vsub.s32 %v6201, %v6203
        %v6205 = vrot.slane %v6177, %v6204
        %v6206 = vcombine.low %v6184, %v6191
        %v6207 = vcombine.low %v6198, %v6205
        %v6209 = vunpack.c.l.s4 1966171168
        %v6210 = vunpack.c.0.s8 %v6209
        %v6211 = vlaneseq
        %v6212 = vshrl.u32 %v6211, 7
        %v6213 = vsub.s32 %v6210, %v6212
        %v6214 = vrot.slane %v6206, %v6213
        %v6216 = vunpack.c.l.s4 1966171168
        %v6217 = vunpack.c.0.s8 %v6216
        %v6218 = vlaneseq
        %v6219 = vshrl.u32 %v6218, 7
        %v6220 = vsub.s32 %v6217, %v6219
        %v6221 = vrot.slane %v6207, %v6220
        %v6222 = vcombine.low %v6214, %v6221
        %v6223 = vcombine.low %v5660, %v5667
        %v6224 = vcombine.low %v5668, %v5669
        %v6225 = vcombine.low %v5684, %v5691
        %v6226 = vcombine.low %v5692, %v5693
        %v6228 = vunpack.c.l.s4 1966171168
        %v6229 = vunpack.c.0.s8 %v6228
        %v6230 = vlaneseq
        %v6231 = vshrl.u32 %v6230, 7
        %v6232 = vsub.s32 %v6229, %v6231
        %v6233 = vrot.slane %v6223, %v6232
        %v6235 = vunpack.c.l.s4 1966171168
        %v6236 = vunpack.c.0.s8 %v6235
        %v6237 = vlaneseq
        %v6238 = vshrl.u32 %v6237, 7
        %v6239 = vsub.s32 %v6236, %v6238
        %v6240 = vrot.slane %v6224, %v6239
        %v6242 = vunpack.c.l.s4 1966171168
        %v6243 = vunpack.c.0.s8 %v6242
        %v6244 = vlaneseq
        %v6245 = vshrl.u32 %v6244, 7
        %v6246 = vsub.s32 %v6243, %v6245
        %v6247 = vrot.slane %v6225, %v6246
        %v6249 = vunpack.c.l.s4 1966171168
        %v6250 = vunpack.c.0.s8 %v6249
        %v6251 = vlaneseq
        %v6252 = vshrl.u32 %v6251, 7
        %v6253 = vsub.s32 %v6250, %v6252
        %v6254 = vrot.slane %v6226, %v6253
        %v6255 = vcombine.low %v6233, %v6240
        %v6256 = vcombine.low %v6247, %v6254
        %v6258 = vunpack.c.l.s4 1966171168
        %v6259 = vunpack.c.0.s8 %v6258
        %v6260 = vlaneseq
        %v6261 = vshrl.u32 %v6260, 7
        %v6262 = vsub.s32 %v6259, %v6261
        %v6263 = vrot.slane %v6255, %v6262
        %v6265 = vunpack.c.l.s4 1966171168
        %v6266 = vunpack.c.0.s8 %v6265
        %v6267 = vlaneseq
        %v6268 = vshrl.u32 %v6267, 7
        %v6269 = vsub.s32 %v6266, %v6268
        %v6270 = vrot.slane %v6256, %v6269
        %v6271 = vcombine.low %v6263, %v6270
        %v6272 = vcombine.low %v5707, %v5722
        %v6273 = vcombine.low %v5729, %v5730
        %v6274 = vcombine.low %v5731, %v5746
        %v6275 = vcombine.low %v5753, %v5754
        %v6277 = vunpack.c.l.s4 1966171168
        %v6278 = vunpack.c.0.s8 %v6277
        %v6279 = vlaneseq
        %v6280 = vshrl.u32 %v6279, 7
        %v6281 = vsub.s32 %v6278, %v6280
        %v6282 = vrot.slane %v6272, %v6281
        %v6284 = vunpack.c.l.s4 1966171168
        %v6285 = vunpack.c.0.s8 %v6284
        %v6286 = vlaneseq
        %v6287 = vshrl.u32 %v6286, 7
        %v6288 = vsub.s32 %v6285, %v6287
        %v6289 = vrot.slane %v6273, %v6288
        %v6291 = vunpack.c.l.s4 1966171168
        %v6292 = vunpack.c.0.s8 %v6291
        %v6293 = vlaneseq
        %v6294 = vshrl.u32 %v6293, 7
        %v6295 = vsub.s32 %v6292, %v6294
        %v6296 = vrot.slane %v6274, %v6295
        %v6298 = vunpack.c.l.s4 1966171168
        %v6299 = vunpack.c.0.s8 %v6298
        %v6300 = vlaneseq
        %v6301 = vshrl.u32 %v6300, 7
        %v6302 = vsub.s32 %v6299, %v6301
        %v6303 = vrot.slane %v6275, %v6302
        %v6304 = vcombine.low %v6282, %v6289
        %v6305 = vcombine.low %v6296, %v6303
        %v6307 = vunpack.c.l.s4 1966171168
        %v6308 = vunpack.c.0.s8 %v6307
        %v6309 = vlaneseq
        %v6310 = vshrl.u32 %v6309, 7
        %v6311 = vsub.s32 %v6308, %v6310
        %v6312 = vrot.slane %v6304, %v6311
        %v6314 = vunpack.c.l.s4 1966171168
        %v6315 = vunpack.c.0.s8 %v6314
        %v6316 = vlaneseq
        %v6317 = vshrl.u32 %v6316, 7
        %v6318 = vsub.s32 %v6315, %v6317
        %v6319 = vrot.slane %v6305, %v6318
        %v6320 = vcombine.low %v6312, %v6319
        %v6321 = vcombine.low %v5755, %v5769
        %v6323 = vunpack.c.l.s4 1966171168
        %v6324 = vunpack.c.0.s8 %v6323
        %v6325 = vlaneseq
        %v6326 = vshrl.u32 %v6325, 7
        %v6327 = vsub.s32 %v6324, %v6326
        %v6328 = vrot.slane %v6321, %v6327
        %v6330 = vunpack.c.l.s4 1966171168
        %v6331 = vunpack.c.0.s8 %v6330
        %v6332 = vlaneseq
        %v6333 = vshrl.u32 %v6332, 7
        %v6334 = vsub.s32 %v6331, %v6333
        %v6335 = vrot.slane %v6328, %v6334
        %v6341 = vunpack.c.l.b16 %v5770
        %v6342 = vunpack.c.l.b16 %v5771
        %v6343 = vunpack.c.l.b16 %v5772
        %v6344 = vunpack.c.l.b16 %v5773
        %v6345 = vunpack.c.l.b16 %v5774
        %v6346 = vpack.c.b16 %v6342, %v6341
        %v6347 = vpack.c.b16 %v6344, %v6343
        %v6348 = vpack.c.b16 %v6345, %v6345
        %v6352 = vsel %vm2848, %v5830, 0
        %v6355 = vsel %vm2848, %v5879, 0
        %v6358 = vsel %vm2848, %v5928, 0
        %v6361 = vsel %vm2848, %v5977, 0
        %v6364 = vsel %vm2848, %v6026, 0
        %v6367 = vsel %vm2848, %v6075, 0
        %v6370 = vsel %vm2848, %v6124, 0
        %v6373 = vsel %vm2848, %v6173, 0
        %v6376 = vsel %vm2848, %v6222, 0
        %v6379 = vsel %vm2848, %v6271, 0
        %v6382 = vsel %vm2848, %v6320, 0
        %v6385 = vsel %vm2848, %v6335, 0
        %v6388 = vsel %vm2894, %v6348, 0
        %6390 = vmatprep.subr.bf16.mxu0 0
        %6391 = vmatpush1.bf16.msra.mxu0 0
        %6392 = vmatprep.subr.bf16.mxu0 0
        %6393 = vmatpush1.bf16.msra.mxu0 0
        %6394 = vmatprep.subr.bf16.mxu0 0
        %6395 = vmatpush1.bf16.msra.mxu0 0
        %6396 = vmatprep.subr.bf16.mxu0 0
        %6397 = vmatpush1.bf16.msra.mxu0 0
        %6398 = vmatprep.subr.bf16.mxu0 0
        %6399 = vmatpush1.bf16.msra.mxu0 0
        %6400 = vmatprep.subr.bf16.mxu0 0
        %6401 = vmatpush1.bf16.msra.mxu0 %v6388
        %6402 = vmatprep.subr.bf16.mxu0 0
        %6403 = vmatpush1.bf16.msra.mxu0 %v6347
        %6404 = vmatprep.subr.bf16.mxu0 0
        %6405 = vmatpush1.bf16.msra.mxu0 %v6346
        %6406 = vmatprep.subr.bf16.mxu0 0
        %6407 = vmatpush2.bf16.msra.mxu0 0
        %6408 = vmatprep.subr.bf16.mxu0 0
        %6409 = vmatpush2.bf16.msra.mxu0 0
        %6410 = vmatprep.subr.bf16.mxu0 0
        %6411 = vmatpush2.bf16.msra.mxu0 0
        %6412 = vmatprep.subr.bf16.mxu0 0
        %6413 = vmatpush2.bf16.msra.mxu0 0
        %6414 = vmatprep.subr.bf16.mxu0 0
        %6415 = vmatpush2.bf16.msra.mxu0 0
        %6416 = vmatprep.subr.bf16.mxu0 0
        %6417 = vmatpush2.bf16.msra.mxu0 0
        %6418 = vmatprep.subr.bf16.mxu0 0
        %6419 = vmatpush2.bf16.msra.mxu0 0
        %6420 = vmatprep.subr.bf16.mxu0 0
        %6421 = vmatpush2.bf16.msra.mxu0 0
        %6422 = vmatprep.mubr.bf16.mxu0 0
        %6423 = vmatmul.mubr.bf16.gmra.mxu0 %v6352
        %v6424 = vpop.f32.mrf.mxu0
        %v6425 = vadd.f32 %v5780, %v6424
        %v6426 = vpop.f32.mrf.mxu0
        %v6427 = vpop.f32.mrf.mxu0
        %v6428 = vadd.f32 %v5780, %v6427
        %v6429 = vpop.f32.mrf.mxu0
        %6430 = vmatprep.mubr.bf16.mxu0 0
        %6431 = vmatmul.mubr.bf16.gmra.mxu0 %v6355
        %v6432 = vpop.f32.mrf.mxu0
        %v6433 = vadd.f32 %v5780, %v6432
        %v6434 = vpop.f32.mrf.mxu0
        %v6435 = vpop.f32.mrf.mxu0
        %v6436 = vadd.f32 %v5780, %v6435
        %v6437 = vpop.f32.mrf.mxu0
        %6438 = vmatprep.mubr.bf16.mxu0 0
        %6439 = vmatmul.mubr.bf16.gmra.mxu0 %v6358
        %v6440 = vpop.f32.mrf.mxu0
        %v6441 = vadd.f32 %v5780, %v6440
        %v6442 = vpop.f32.mrf.mxu0
        %v6443 = vpop.f32.mrf.mxu0
        %v6444 = vadd.f32 %v5780, %v6443
        %v6445 = vpop.f32.mrf.mxu0
        %6446 = vmatprep.mubr.bf16.mxu0 0
        %6447 = vmatmul.mubr.bf16.gmra.mxu0 %v6361
        %v6448 = vpop.f32.mrf.mxu0
        %v6449 = vadd.f32 %v5780, %v6448
        %v6450 = vpop.f32.mrf.mxu0
        %v6451 = vpop.f32.mrf.mxu0
        %v6452 = vadd.f32 %v5780, %v6451
        %v6453 = vpop.f32.mrf.mxu0
        %6454 = vmatprep.mubr.bf16.mxu0 0
        %6455 = vmatmul.mubr.bf16.gmra.mxu0 %v6364
        %v6456 = vpop.f32.mrf.mxu0
        %v6457 = vadd.f32 %v5780, %v6456
        %v6458 = vpop.f32.mrf.mxu0
        %v6459 = vpop.f32.mrf.mxu0
        %v6460 = vadd.f32 %v5780, %v6459
        %v6461 = vpop.f32.mrf.mxu0
        %6462 = vmatprep.mubr.bf16.mxu0 0
        %6463 = vmatmul.mubr.bf16.gmra.mxu0 %v6367
        %v6464 = vpop.f32.mrf.mxu0
        %v6465 = vadd.f32 %v5780, %v6464
        %v6466 = vpop.f32.mrf.mxu0
        %v6467 = vpop.f32.mrf.mxu0
        %v6468 = vadd.f32 %v5780, %v6467
        %v6469 = vpop.f32.mrf.mxu0
        %6470 = vmatprep.mubr.bf16.mxu0 0
        %6471 = vmatmul.mubr.bf16.gmra.mxu0 %v6370
        %v6472 = vpop.f32.mrf.mxu0
        %v6473 = vadd.f32 %v5780, %v6472
        %v6474 = vpop.f32.mrf.mxu0
        %v6475 = vpop.f32.mrf.mxu0
        %v6476 = vadd.f32 %v5780, %v6475
        %v6477 = vpop.f32.mrf.mxu0
        %6478 = vmatprep.mubr.bf16.mxu0 0
        %6479 = vmatmul.mubr.bf16.gmra.mxu0 %v6373
        %v6480 = vpop.f32.mrf.mxu0
        %v6481 = vadd.f32 %v5780, %v6480
        %v6482 = vpop.f32.mrf.mxu0
        %v6483 = vpop.f32.mrf.mxu0
        %v6484 = vadd.f32 %v5780, %v6483
        %v6485 = vpop.f32.mrf.mxu0
        %6486 = vmatprep.mubr.bf16.mxu0 0
        %6487 = vmatmul.mubr.bf16.gmra.mxu0 %v6376
        %v6488 = vpop.f32.mrf.mxu0
        %v6489 = vadd.f32 %v5780, %v6488
        %v6490 = vpop.f32.mrf.mxu0
        %v6491 = vpop.f32.mrf.mxu0
        %v6492 = vadd.f32 %v5780, %v6491
        %v6493 = vpop.f32.mrf.mxu0
        %6494 = vmatprep.mubr.bf16.mxu0 0
        %6495 = vmatmul.mubr.bf16.gmra.mxu0 %v6379
        %v6496 = vpop.f32.mrf.mxu0
        %v6497 = vadd.f32 %v5780, %v6496
        %v6498 = vpop.f32.mrf.mxu0
        %v6499 = vpop.f32.mrf.mxu0
        %v6500 = vadd.f32 %v5780, %v6499
        %v6501 = vpop.f32.mrf.mxu0
        %6502 = vmatprep.mubr.bf16.mxu0 0
        %6503 = vmatmul.mubr.bf16.gmra.mxu0 %v6382
        %v6504 = vpop.f32.mrf.mxu0
        %v6505 = vadd.f32 %v5780, %v6504
        %v6506 = vpop.f32.mrf.mxu0
        %v6507 = vpop.f32.mrf.mxu0
        %v6508 = vadd.f32 %v5780, %v6507
        %v6509 = vpop.f32.mrf.mxu0
        %6510 = vmatprep.mubr.bf16.mxu0 0
        %6511 = vmatmul.mubr.bf16.gmra.mxu0 %v6385
        %v6512 = vpop.f32.mrf.mxu0
        %v6513 = vadd.f32 %v5780, %v6512
        %v6514 = vpop.f32.mrf.mxu0
        %v6515 = vpop.f32.mrf.mxu0
        %v6516 = vpop.f32.mrf.mxu0
        %6517 = vdwg.mxu0
        %vm6518 = vcmp.ge.f32.partialorder %v6425, 0.0
        %vm6519 = vcmp.ge.f32.partialorder %v6428, 0.0
        %vm6520 = vcmp.ge.f32.partialorder %v6433, 0.0
        %vm6521 = vcmp.ge.f32.partialorder %v6436, 0.0
        %vm6522 = vcmp.ge.f32.partialorder %v6441, 0.0
        %vm6523 = vcmp.ge.f32.partialorder %v6444, 0.0
        %vm6524 = vcmp.ge.f32.partialorder %v6449, 0.0
        %vm6525 = vcmp.ge.f32.partialorder %v6452, 0.0
        %vm6526 = vcmp.ge.f32.partialorder %v6457, 0.0
        %vm6527 = vcmp.ge.f32.partialorder %v6460, 0.0
        %vm6528 = vcmp.ge.f32.partialorder %v6465, 0.0
        %vm6529 = vcmp.ge.f32.partialorder %v6468, 0.0
        %vm6530 = vcmp.ge.f32.partialorder %v6473, 0.0
        %vm6531 = vcmp.ge.f32.partialorder %v6476, 0.0
        %vm6532 = vcmp.ge.f32.partialorder %v6481, 0.0
        %vm6533 = vcmp.ge.f32.partialorder %v6484, 0.0
        %vm6534 = vcmp.ge.f32.partialorder %v6489, 0.0
        %vm6535 = vcmp.ge.f32.partialorder %v6492, 0.0
        %vm6536 = vcmp.ge.f32.partialorder %v6497, 0.0
        %vm6537 = vcmp.ge.f32.partialorder %v6500, 0.0
        %vm6538 = vcmp.ge.f32.partialorder %v6505, 0.0
        %vm6539 = vcmp.ge.f32.partialorder %v6508, 0.0
        %vm6540 = vcmp.ge.f32.partialorder %v6513, 0.0
        %v6541 = vmul.f32 %v6425, 0.1
        %v6542 = vmul.f32 %v6428, 0.1
        %v6543 = vmul.f32 %v6433, 0.1
        %v6544 = vmul.f32 %v6436, 0.1
        %v6545 = vmul.f32 %v6441, 0.1
        %v6546 = vmul.f32 %v6444, 0.1
        %v6547 = vmul.f32 %v6449, 0.1
        %v6548 = vmul.f32 %v6452, 0.1
        %v6549 = vmul.f32 %v6457, 0.1
        %v6550 = vmul.f32 %v6460, 0.1
        %v6551 = vmul.f32 %v6465, 0.1
        %v6552 = vmul.f32 %v6468, 0.1
        %v6553 = vmul.f32 %v6473, 0.1
        %v6554 = vmul.f32 %v6476, 0.1
        %v6555 = vmul.f32 %v6481, 0.1
        %v6556 = vmul.f32 %v6484, 0.1
        %v6557 = vmul.f32 %v6489, 0.1
        %v6558 = vmul.f32 %v6492, 0.1
        %v6559 = vmul.f32 %v6497, 0.1
        %v6560 = vmul.f32 %v6500, 0.1
        %v6561 = vmul.f32 %v6505, 0.1
        %v6562 = vmul.f32 %v6508, 0.1
        %v6563 = vmul.f32 %v6513, 0.1
        %v6564 = vsel %vm6518, %v6425, %v6541
        %v6565 = vsel %vm6519, %v6428, %v6542
        %v6566 = vsel %vm6520, %v6433, %v6543
        %v6567 = vsel %vm6521, %v6436, %v6544
        %v6568 = vsel %vm6522, %v6441, %v6545
        %v6569 = vsel %vm6523, %v6444, %v6546
        %v6570 = vsel %vm6524, %v6449, %v6547
        %v6571 = vsel %vm6525, %v6452, %v6548
        %v6572 = vsel %vm6526, %v6457, %v6549
        %v6573 = vsel %vm6527, %v6460, %v6550
        %v6574 = vsel %vm6528, %v6465, %v6551
        %v6575 = vsel %vm6529, %v6468, %v6552
        %v6576 = vsel %vm6530, %v6473, %v6553
        %v6577 = vsel %vm6531, %v6476, %v6554
        %v6578 = vsel %vm6532, %v6481, %v6555
        %v6579 = vsel %vm6533, %v6484, %v6556
        %v6580 = vsel %vm6534, %v6489, %v6557
        %v6581 = vsel %vm6535, %v6492, %v6558
        %v6582 = vsel %vm6536, %v6497, %v6559
        %v6583 = vsel %vm6537, %v6500, %v6560
        %v6584 = vsel %vm6538, %v6505, %v6561
        %v6585 = vsel %vm6539, %v6508, %v6562
        %v6586 = vsel %vm6540, %v6513, %v6563
        %v6610 = vcombine.high %v6564, %v6564
        %v6612 = vunpack.c.l.s4 1983009808
        %v6613 = vunpack.c.0.s8 %v6612
        %v6614 = vlaneseq
        %v6615 = vshrl.u32 %v6614, 7
        %v6616 = vsub.s32 %v6613, %v6615
        %v6617 = vrot.slane %v6564, %v6616
        %v6619 = vunpack.c.l.s4 1983009808
        %v6620 = vunpack.c.0.s8 %v6619
        %v6621 = vlaneseq
        %v6622 = vshrl.u32 %v6621, 7
        %v6623 = vsub.s32 %v6620, %v6622
        %v6624 = vrot.slane %v6610, %v6623
        %v6625 = vcombine.high %v6617, %v6617
        %v6626 = vcombine.high %v6624, %v6624
        %v6627 = vcombine.high %v6565, %v6565
        %v6629 = vunpack.c.l.s4 1983009808
        %v6630 = vunpack.c.0.s8 %v6629
        %v6631 = vlaneseq
        %v6632 = vshrl.u32 %v6631, 7
        %v6633 = vsub.s32 %v6630, %v6632
        %v6634 = vrot.slane %v6565, %v6633
        %v6636 = vunpack.c.l.s4 1983009808
        %v6637 = vunpack.c.0.s8 %v6636
        %v6638 = vlaneseq
        %v6639 = vshrl.u32 %v6638, 7
        %v6640 = vsub.s32 %v6637, %v6639
        %v6641 = vrot.slane %v6627, %v6640
        %v6642 = vcombine.high %v6634, %v6634
        %v6643 = vcombine.high %v6641, %v6641
        %v6644 = vcombine.high %v6566, %v6566
        %v6646 = vunpack.c.l.s4 1983009808
        %v6647 = vunpack.c.0.s8 %v6646
        %v6648 = vlaneseq
        %v6649 = vshrl.u32 %v6648, 7
        %v6650 = vsub.s32 %v6647, %v6649
        %v6651 = vrot.slane %v6566, %v6650
        %v6653 = vunpack.c.l.s4 1983009808
        %v6654 = vunpack.c.0.s8 %v6653
        %v6655 = vlaneseq
        %v6656 = vshrl.u32 %v6655, 7
        %v6657 = vsub.s32 %v6654, %v6656
        %v6658 = vrot.slane %v6644, %v6657
        %v6659 = vcombine.high %v6651, %v6651
        %v6660 = vcombine.high %v6658, %v6658
        %v6661 = vcombine.high %v6567, %v6567
        %v6663 = vunpack.c.l.s4 1983009808
        %v6664 = vunpack.c.0.s8 %v6663
        %v6665 = vlaneseq
        %v6666 = vshrl.u32 %v6665, 7
        %v6667 = vsub.s32 %v6664, %v6666
        %v6668 = vrot.slane %v6567, %v6667
        %v6670 = vunpack.c.l.s4 1983009808
        %v6671 = vunpack.c.0.s8 %v6670
        %v6672 = vlaneseq
        %v6673 = vshrl.u32 %v6672, 7
        %v6674 = vsub.s32 %v6671, %v6673
        %v6675 = vrot.slane %v6661, %v6674
        %v6676 = vcombine.high %v6668, %v6668
        %v6677 = vcombine.high %v6675, %v6675
        %v6678 = vcombine.high %v6568, %v6568
        %v6680 = vunpack.c.l.s4 1983009808
        %v6681 = vunpack.c.0.s8 %v6680
        %v6682 = vlaneseq
        %v6683 = vshrl.u32 %v6682, 7
        %v6684 = vsub.s32 %v6681, %v6683
        %v6685 = vrot.slane %v6568, %v6684
        %v6687 = vunpack.c.l.s4 1983009808
        %v6688 = vunpack.c.0.s8 %v6687
        %v6689 = vlaneseq
        %v6690 = vshrl.u32 %v6689, 7
        %v6691 = vsub.s32 %v6688, %v6690
        %v6692 = vrot.slane %v6678, %v6691
        %v6693 = vcombine.high %v6685, %v6685
        %v6694 = vcombine.high %v6692, %v6692
        %v6695 = vcombine.high %v6569, %v6569
        %v6697 = vunpack.c.l.s4 1983009808
        %v6698 = vunpack.c.0.s8 %v6697
        %v6699 = vlaneseq
        %v6700 = vshrl.u32 %v6699, 7
        %v6701 = vsub.s32 %v6698, %v6700
        %v6702 = vrot.slane %v6569, %v6701
        %v6704 = vunpack.c.l.s4 1983009808
        %v6705 = vunpack.c.0.s8 %v6704
        %v6706 = vlaneseq
        %v6707 = vshrl.u32 %v6706, 7
        %v6708 = vsub.s32 %v6705, %v6707
        %v6709 = vrot.slane %v6695, %v6708
        %v6710 = vcombine.high %v6702, %v6702
        %v6711 = vcombine.high %v6709, %v6709
        %v6712 = vcombine.high %v6570, %v6570
        %v6714 = vunpack.c.l.s4 1983009808
        %v6715 = vunpack.c.0.s8 %v6714
        %v6716 = vlaneseq
        %v6717 = vshrl.u32 %v6716, 7
        %v6718 = vsub.s32 %v6715, %v6717
        %v6719 = vrot.slane %v6570, %v6718
        %v6721 = vunpack.c.l.s4 1983009808
        %v6722 = vunpack.c.0.s8 %v6721
        %v6723 = vlaneseq
        %v6724 = vshrl.u32 %v6723, 7
        %v6725 = vsub.s32 %v6722, %v6724
        %v6726 = vrot.slane %v6712, %v6725
        %v6727 = vcombine.high %v6719, %v6719
        %v6728 = vcombine.high %v6726, %v6726
        %v6729 = vcombine.high %v6571, %v6571
        %v6731 = vunpack.c.l.s4 1983009808
        %v6732 = vunpack.c.0.s8 %v6731
        %v6733 = vlaneseq
        %v6734 = vshrl.u32 %v6733, 7
        %v6735 = vsub.s32 %v6732, %v6734
        %v6736 = vrot.slane %v6571, %v6735
        %v6738 = vunpack.c.l.s4 1983009808
        %v6739 = vunpack.c.0.s8 %v6738
        %v6740 = vlaneseq
        %v6741 = vshrl.u32 %v6740, 7
        %v6742 = vsub.s32 %v6739, %v6741
        %v6743 = vrot.slane %v6729, %v6742
        %v6744 = vcombine.high %v6736, %v6736
        %v6745 = vcombine.high %v6743, %v6743
        %v6746 = vcombine.high %v6572, %v6572
        %v6748 = vunpack.c.l.s4 1983009808
        %v6749 = vunpack.c.0.s8 %v6748
        %v6750 = vlaneseq
        %v6751 = vshrl.u32 %v6750, 7
        %v6752 = vsub.s32 %v6749, %v6751
        %v6753 = vrot.slane %v6572, %v6752
        %v6755 = vunpack.c.l.s4 1983009808
        %v6756 = vunpack.c.0.s8 %v6755
        %v6757 = vlaneseq
        %v6758 = vshrl.u32 %v6757, 7
        %v6759 = vsub.s32 %v6756, %v6758
        %v6760 = vrot.slane %v6746, %v6759
        %v6761 = vcombine.high %v6753, %v6753
        %v6762 = vcombine.high %v6760, %v6760
        %v6763 = vcombine.high %v6573, %v6573
        %v6765 = vunpack.c.l.s4 1983009808
        %v6766 = vunpack.c.0.s8 %v6765
        %v6767 = vlaneseq
        %v6768 = vshrl.u32 %v6767, 7
        %v6769 = vsub.s32 %v6766, %v6768
        %v6770 = vrot.slane %v6573, %v6769
        %v6772 = vunpack.c.l.s4 1983009808
        %v6773 = vunpack.c.0.s8 %v6772
        %v6774 = vlaneseq
        %v6775 = vshrl.u32 %v6774, 7
        %v6776 = vsub.s32 %v6773, %v6775
        %v6777 = vrot.slane %v6763, %v6776
        %v6778 = vcombine.high %v6770, %v6770
        %v6779 = vcombine.high %v6777, %v6777
        %v6780 = vcombine.high %v6574, %v6574
        %v6782 = vunpack.c.l.s4 1983009808
        %v6783 = vunpack.c.0.s8 %v6782
        %v6784 = vlaneseq
        %v6785 = vshrl.u32 %v6784, 7
        %v6786 = vsub.s32 %v6783, %v6785
        %v6787 = vrot.slane %v6574, %v6786
        %v6789 = vunpack.c.l.s4 1983009808
        %v6790 = vunpack.c.0.s8 %v6789
        %v6791 = vlaneseq
        %v6792 = vshrl.u32 %v6791, 7
        %v6793 = vsub.s32 %v6790, %v6792
        %v6794 = vrot.slane %v6780, %v6793
        %v6795 = vcombine.high %v6787, %v6787
        %v6796 = vcombine.high %v6794, %v6794
        %v6797 = vcombine.high %v6575, %v6575
        %v6799 = vunpack.c.l.s4 1983009808
        %v6800 = vunpack.c.0.s8 %v6799
        %v6801 = vlaneseq
        %v6802 = vshrl.u32 %v6801, 7
        %v6803 = vsub.s32 %v6800, %v6802
        %v6804 = vrot.slane %v6575, %v6803
        %v6806 = vunpack.c.l.s4 1983009808
        %v6807 = vunpack.c.0.s8 %v6806
        %v6808 = vlaneseq
        %v6809 = vshrl.u32 %v6808, 7
        %v6810 = vsub.s32 %v6807, %v6809
        %v6811 = vrot.slane %v6797, %v6810
        %v6812 = vcombine.high %v6804, %v6804
        %v6813 = vcombine.high %v6811, %v6811
        %v6814 = vcombine.high %v6576, %v6576
        %v6816 = vunpack.c.l.s4 1983009808
        %v6817 = vunpack.c.0.s8 %v6816
        %v6818 = vlaneseq
        %v6819 = vshrl.u32 %v6818, 7
        %v6820 = vsub.s32 %v6817, %v6819
        %v6821 = vrot.slane %v6576, %v6820
        %v6823 = vunpack.c.l.s4 1983009808
        %v6824 = vunpack.c.0.s8 %v6823
        %v6825 = vlaneseq
        %v6826 = vshrl.u32 %v6825, 7
        %v6827 = vsub.s32 %v6824, %v6826
        %v6828 = vrot.slane %v6814, %v6827
        %v6829 = vcombine.high %v6821, %v6821
        %v6830 = vcombine.high %v6828, %v6828
        %v6831 = vcombine.high %v6577, %v6577
        %v6833 = vunpack.c.l.s4 1983009808
        %v6834 = vunpack.c.0.s8 %v6833
        %v6835 = vlaneseq
        %v6836 = vshrl.u32 %v6835, 7
        %v6837 = vsub.s32 %v6834, %v6836
        %v6838 = vrot.slane %v6577, %v6837
        %v6840 = vunpack.c.l.s4 1983009808
        %v6841 = vunpack.c.0.s8 %v6840
        %v6842 = vlaneseq
        %v6843 = vshrl.u32 %v6842, 7
        %v6844 = vsub.s32 %v6841, %v6843
        %v6845 = vrot.slane %v6831, %v6844
        %v6846 = vcombine.high %v6838, %v6838
        %v6847 = vcombine.high %v6845, %v6845
        %v6848 = vcombine.high %v6578, %v6578
        %v6850 = vunpack.c.l.s4 1983009808
        %v6851 = vunpack.c.0.s8 %v6850
        %v6852 = vlaneseq
        %v6853 = vshrl.u32 %v6852, 7
        %v6854 = vsub.s32 %v6851, %v6853
        %v6855 = vrot.slane %v6578, %v6854
        %v6857 = vunpack.c.l.s4 1983009808
        %v6858 = vunpack.c.0.s8 %v6857
        %v6859 = vlaneseq
        %v6860 = vshrl.u32 %v6859, 7
        %v6861 = vsub.s32 %v6858, %v6860
        %v6862 = vrot.slane %v6848, %v6861
        %v6863 = vcombine.high %v6855, %v6855
        %v6864 = vcombine.high %v6862, %v6862
        %v6865 = vcombine.high %v6579, %v6579
        %v6867 = vunpack.c.l.s4 1983009808
        %v6868 = vunpack.c.0.s8 %v6867
        %v6869 = vlaneseq
        %v6870 = vshrl.u32 %v6869, 7
        %v6871 = vsub.s32 %v6868, %v6870
        %v6872 = vrot.slane %v6579, %v6871
        %v6874 = vunpack.c.l.s4 1983009808
        %v6875 = vunpack.c.0.s8 %v6874
        %v6876 = vlaneseq
        %v6877 = vshrl.u32 %v6876, 7
        %v6878 = vsub.s32 %v6875, %v6877
        %v6879 = vrot.slane %v6865, %v6878
        %v6880 = vcombine.high %v6872, %v6872
        %v6881 = vcombine.high %v6879, %v6879
        %v6882 = vcombine.high %v6580, %v6580
        %v6884 = vunpack.c.l.s4 1983009808
        %v6885 = vunpack.c.0.s8 %v6884
        %v6886 = vlaneseq
        %v6887 = vshrl.u32 %v6886, 7
        %v6888 = vsub.s32 %v6885, %v6887
        %v6889 = vrot.slane %v6580, %v6888
        %v6891 = vunpack.c.l.s4 1983009808
        %v6892 = vunpack.c.0.s8 %v6891
        %v6893 = vlaneseq
        %v6894 = vshrl.u32 %v6893, 7
        %v6895 = vsub.s32 %v6892, %v6894
        %v6896 = vrot.slane %v6882, %v6895
        %v6897 = vcombine.high %v6889, %v6889
        %v6898 = vcombine.high %v6896, %v6896
        %v6899 = vcombine.high %v6581, %v6581
        %v6901 = vunpack.c.l.s4 1983009808
        %v6902 = vunpack.c.0.s8 %v6901
        %v6903 = vlaneseq
        %v6904 = vshrl.u32 %v6903, 7
        %v6905 = vsub.s32 %v6902, %v6904
        %v6906 = vrot.slane %v6581, %v6905
        %v6908 = vunpack.c.l.s4 1983009808
        %v6909 = vunpack.c.0.s8 %v6908
        %v6910 = vlaneseq
        %v6911 = vshrl.u32 %v6910, 7
        %v6912 = vsub.s32 %v6909, %v6911
        %v6913 = vrot.slane %v6899, %v6912
        %v6914 = vcombine.high %v6906, %v6906
        %v6915 = vcombine.high %v6913, %v6913
        %v6916 = vcombine.high %v6582, %v6582
        %v6918 = vunpack.c.l.s4 1983009808
        %v6919 = vunpack.c.0.s8 %v6918
        %v6920 = vlaneseq
        %v6921 = vshrl.u32 %v6920, 7
        %v6922 = vsub.s32 %v6919, %v6921
        %v6923 = vrot.slane %v6582, %v6922
        %v6925 = vunpack.c.l.s4 1983009808
        %v6926 = vunpack.c.0.s8 %v6925
        %v6927 = vlaneseq
        %v6928 = vshrl.u32 %v6927, 7
        %v6929 = vsub.s32 %v6926, %v6928
        %v6930 = vrot.slane %v6916, %v6929
        %v6931 = vcombine.high %v6923, %v6923
        %v6932 = vcombine.high %v6930, %v6930
        %v6933 = vcombine.high %v6583, %v6583
        %v6935 = vunpack.c.l.s4 1983009808
        %v6936 = vunpack.c.0.s8 %v6935
        %v6937 = vlaneseq
        %v6938 = vshrl.u32 %v6937, 7
        %v6939 = vsub.s32 %v6936, %v6938
        %v6940 = vrot.slane %v6583, %v6939
        %v6942 = vunpack.c.l.s4 1983009808
        %v6943 = vunpack.c.0.s8 %v6942
        %v6944 = vlaneseq
        %v6945 = vshrl.u32 %v6944, 7
        %v6946 = vsub.s32 %v6943, %v6945
        %v6947 = vrot.slane %v6933, %v6946
        %v6948 = vcombine.high %v6940, %v6940
        %v6949 = vcombine.high %v6947, %v6947
        %v6950 = vcombine.high %v6584, %v6584
        %v6952 = vunpack.c.l.s4 1983009808
        %v6953 = vunpack.c.0.s8 %v6952
        %v6954 = vlaneseq
        %v6955 = vshrl.u32 %v6954, 7
        %v6956 = vsub.s32 %v6953, %v6955
        %v6957 = vrot.slane %v6584, %v6956
        %v6959 = vunpack.c.l.s4 1983009808
        %v6960 = vunpack.c.0.s8 %v6959
        %v6961 = vlaneseq
        %v6962 = vshrl.u32 %v6961, 7
        %v6963 = vsub.s32 %v6960, %v6962
        %v6964 = vrot.slane %v6950, %v6963
        %v6965 = vcombine.high %v6957, %v6957
        %v6966 = vcombine.high %v6964, %v6964
        %v6967 = vcombine.high %v6585, %v6585
        %v6969 = vunpack.c.l.s4 1983009808
        %v6970 = vunpack.c.0.s8 %v6969
        %v6971 = vlaneseq
        %v6972 = vshrl.u32 %v6971, 7
        %v6973 = vsub.s32 %v6970, %v6972
        %v6974 = vrot.slane %v6585, %v6973
        %v6976 = vunpack.c.l.s4 1983009808
        %v6977 = vunpack.c.0.s8 %v6976
        %v6978 = vlaneseq
        %v6979 = vshrl.u32 %v6978, 7
        %v6980 = vsub.s32 %v6977, %v6979
        %v6981 = vrot.slane %v6967, %v6980
        %v6982 = vcombine.high %v6974, %v6974
        %v6983 = vcombine.high %v6981, %v6981
        %v6985 = vunpack.c.l.s4 1983009808
        %v6986 = vunpack.c.0.s8 %v6985
        %v6987 = vlaneseq
        %v6988 = vshrl.u32 %v6987, 7
        %v6989 = vsub.s32 %v6986, %v6988
        %v6990 = vrot.slane %v6586, %v6989
        %v6991 = vcombine.high %v6990, %v6990
        %s6992 = ssub.s32 %s400, 1
        %v6993 = vstv %s6992
        %v6994 = vadd.s32 %v6993, 1
        %v6995 = vadd.s32 %v6993, 2
        %v6996 = vadd.s32 %v6993, 3
        %v6997 = vadd.s32 %v6993, 4
        %v6998 = vadd.s32 %v6993, 5
        %v6999 = vadd.s32 %v6993, 6
        %v7000 = vadd.s32 %v6993, 7
        %v7001 = vadd.s32 %v6993, 8
        %v7002 = vadd.s32 %v6993, 9
        %v7003 = vsub.s32 %v3221, 1
        %v7004 = vsub.s32 %v3222, 1
        %v7005 = vsub.s32 %v3223, 1
        %vm7006 = vcmp.ge.s32.totalorder %v6993, 0
        %vm7007 = vcmp.ge.s32.totalorder %v6994, 0
        %vm7008 = vcmp.ge.s32.totalorder %v6995, 0
        %vm7009 = vcmp.ge.s32.totalorder %v6996, 0
        %vm7010 = vcmp.ge.s32.totalorder %v6997, 0
        %vm7011 = vcmp.ge.s32.totalorder %v6998, 0
        %vm7012 = vcmp.ge.s32.totalorder %v6999, 0
        %vm7013 = vcmp.ge.s32.totalorder %v7000, 0
        %vm7014 = vcmp.ge.s32.totalorder %v7001, 0
        %vm7015 = vcmp.ge.s32.totalorder %v7002, 0
        %vm7016 = vcmp.lt.s32.totalorder %v6993, 16
        %vm7017 = vcmp.lt.s32.totalorder %v6994, 16
        %vm7018 = vcmp.lt.s32.totalorder %v6995, 16
        %vm7019 = vcmp.lt.s32.totalorder %v6996, 16
        %vm7020 = vcmp.lt.s32.totalorder %v6997, 16
        %vm7021 = vcmp.lt.s32.totalorder %v6998, 16
        %vm7022 = vcmp.lt.s32.totalorder %v6999, 16
        %vm7023 = vcmp.lt.s32.totalorder %v7000, 16
        %vm7024 = vcmp.lt.s32.totalorder %v7001, 16
        %vm7025 = vcmp.lt.s32.totalorder %v7002, 16
        %vm7026 = vmand %vm7006, %vm7016
        %vm7027 = vmand %vm7007, %vm7017
        %vm7028 = vmand %vm7008, %vm7018
        %vm7029 = vmand %vm7009, %vm7019
        %vm7030 = vmand %vm7010, %vm7020
        %vm7031 = vmand %vm7011, %vm7021
        %vm7032 = vmand %vm7012, %vm7022
        %vm7033 = vmand %vm7013, %vm7023
        %vm7034 = vmand %vm7014, %vm7024
        %vm7035 = vmand %vm7015, %vm7025
        %vm7036 = vcmp.ge.s32.totalorder %v7003, 0
        %vm7037 = vcmp.ge.s32.totalorder %v7004, 0
        %vm7038 = vcmp.ge.s32.totalorder %v7005, 0
        %vm7039 = vmand %vm7026, %vm7036
        %vm7040 = vmand %vm7026, %vm7037
        %vm7041 = vmand %vm7026, %vm7038
        %vm7042 = vmand %vm7027, %vm7036
        %vm7043 = vmand %vm7027, %vm7037
        %vm7044 = vmand %vm7027, %vm7038
        %vm7045 = vmand %vm7028, %vm7036
        %vm7046 = vmand %vm7028, %vm7037
        %vm7047 = vmand %vm7028, %vm7038
        %vm7048 = vmand %vm7029, %vm7036
        %vm7049 = vmand %vm7029, %vm7037
        %vm7050 = vmand %vm7029, %vm7038
        %vm7051 = vmand %vm7030, %vm7036
        %vm7052 = vmand %vm7030, %vm7037
        %vm7053 = vmand %vm7030, %vm7038
        %vm7054 = vmand %vm7031, %vm7036
        %vm7055 = vmand %vm7031, %vm7037
        %vm7056 = vmand %vm7031, %vm7038
        %vm7057 = vmand %vm7032, %vm7036
        %vm7058 = vmand %vm7032, %vm7037
        %vm7059 = vmand %vm7032, %vm7038
        %vm7060 = vmand %vm7033, %vm7036
        %vm7061 = vmand %vm7033, %vm7037
        %vm7062 = vmand %vm7033, %vm7038
        %vm7063 = vmand %vm7034, %vm7036
        %vm7064 = vmand %vm7034, %vm7037
        %vm7065 = vmand %vm7034, %vm7038
        %vm7066 = vmand %vm7035, %vm7036
        %vm7067 = vmand %vm7035, %vm7037
        %vm7068 = vmand %vm7035, %vm7038
        %vm7069 = vcmp.lt.s32.totalorder %v7003, 16
        %vm7070 = vcmp.lt.s32.totalorder %v7004, 16
        %vm7071 = vcmp.lt.s32.totalorder %v7005, 16
        %vm7072 = vmand %vm7039, %vm7069
        %vm7073 = vmand %vm7040, %vm7070
        %vm7074 = vmand %vm7041, %vm7071
        %vm7075 = vmand %vm7042, %vm7069
        %vm7076 = vmand %vm7043, %vm7070
        %vm7077 = vmand %vm7044, %vm7071
        %vm7078 = vmand %vm7045, %vm7069
        %vm7079 = vmand %vm7046, %vm7070
        %vm7080 = vmand %vm7047, %vm7071
        %vm7081 = vmand %vm7048, %vm7069
        %vm7082 = vmand %vm7049, %vm7070
        %vm7083 = vmand %vm7050, %vm7071
        %vm7084 = vmand %vm7051, %vm7069
        %vm7085 = vmand %vm7052, %vm7070
        %vm7086 = vmand %vm7053, %vm7071
        %vm7087 = vmand %vm7054, %vm7069
        %vm7088 = vmand %vm7055, %vm7070
        %vm7089 = vmand %vm7056, %vm7071
        %vm7090 = vmand %vm7057, %vm7069
        %vm7091 = vmand %vm7058, %vm7070
        %vm7092 = vmand %vm7059, %vm7071
        %vm7093 = vmand %vm7060, %vm7069
        %vm7094 = vmand %vm7061, %vm7070
        %vm7095 = vmand %vm7062, %vm7071
        %vm7096 = vmand %vm7063, %vm7069
        %vm7097 = vmand %vm7064, %vm7070
        %vm7098 = vmand %vm7065, %vm7071
        %vm7099 = vmand %vm7066, %vm7069
        %vm7100 = vmand %vm7067, %vm7070
        %vm7101 = vmand %vm7068, %vm7071
        %v7102 = vsel %vm7072, 1, 0
        %v7103 = vsel %vm7073, 1, 0
        %v7104 = vsel %vm7074, 1, 0
        %v7105 = vsel %vm7075, 1, 0
        %v7106 = vsel %vm7076, 1, 0
        %v7107 = vsel %vm7077, 1, 0
        %v7108 = vsel %vm7078, 1, 0
        %v7109 = vsel %vm7079, 1, 0
        %v7110 = vsel %vm7080, 1, 0
        %v7111 = vsel %vm7081, 1, 0
        %v7112 = vsel %vm7082, 1, 0
        %v7113 = vsel %vm7083, 1, 0
        %v7114 = vsel %vm7084, 1, 0
        %v7115 = vsel %vm7085, 1, 0
        %v7116 = vsel %vm7086, 1, 0
        %v7117 = vsel %vm7087, 1, 0
        %v7118 = vsel %vm7088, 1, 0
        %v7119 = vsel %vm7089, 1, 0
        %v7120 = vsel %vm7090, 1, 0
        %v7121 = vsel %vm7091, 1, 0
        %v7122 = vsel %vm7092, 1, 0
        %v7123 = vsel %vm7093, 1, 0
        %v7124 = vsel %vm7094, 1, 0
        %v7125 = vsel %vm7095, 1, 0
        %v7126 = vsel %vm7096, 1, 0
        %v7127 = vsel %vm7097, 1, 0
        %v7128 = vsel %vm7098, 1, 0
        %v7129 = vsel %vm7099, 1, 0
        %v7130 = vsel %vm7100, 1, 0
        %v7131 = vsel %vm7101, 1, 0
        %vm7132 = vcmp.eq.s32.totalorder %v7102, 1
        %vm7133 = vcmp.eq.s32.totalorder %v7103, 1
        %vm7134 = vcmp.eq.s32.totalorder %v7104, 1
        %vm7135 = vcmp.eq.s32.totalorder %v7105, 1
        %vm7136 = vcmp.eq.s32.totalorder %v7106, 1
        %vm7137 = vcmp.eq.s32.totalorder %v7107, 1
        %vm7138 = vcmp.eq.s32.totalorder %v7108, 1
        %vm7139 = vcmp.eq.s32.totalorder %v7109, 1
        %vm7140 = vcmp.eq.s32.totalorder %v7110, 1
        %vm7141 = vcmp.eq.s32.totalorder %v7111, 1
        %vm7142 = vcmp.eq.s32.totalorder %v7112, 1
        %vm7143 = vcmp.eq.s32.totalorder %v7113, 1
        %vm7144 = vcmp.eq.s32.totalorder %v7114, 1
        %vm7145 = vcmp.eq.s32.totalorder %v7115, 1
        %vm7146 = vcmp.eq.s32.totalorder %v7116, 1
        %vm7147 = vcmp.eq.s32.totalorder %v7117, 1
        %vm7148 = vcmp.eq.s32.totalorder %v7118, 1
        %vm7149 = vcmp.eq.s32.totalorder %v7119, 1
        %vm7150 = vcmp.eq.s32.totalorder %v7120, 1
        %vm7151 = vcmp.eq.s32.totalorder %v7121, 1
        %vm7152 = vcmp.eq.s32.totalorder %v7122, 1
        %vm7153 = vcmp.eq.s32.totalorder %v7123, 1
        %vm7154 = vcmp.eq.s32.totalorder %v7124, 1
        %vm7155 = vcmp.eq.s32.totalorder %v7125, 1
        %vm7156 = vcmp.eq.s32.totalorder %v7126, 1
        %vm7157 = vcmp.eq.s32.totalorder %v7127, 1
        %vm7158 = vcmp.eq.s32.totalorder %v7128, 1
        %vm7159 = vcmp.eq.s32.totalorder %v7129, 1
        %vm7160 = vcmp.eq.s32.totalorder %v7130, 1
        %vm7161 = vcmp.eq.s32.totalorder %v7131, 1
        %v7162 = vcombine.low %v6617, %v6625
        %v7163 = vcombine.low %v6624, %v6626
        %v7165 = vunpack.c.l.s4 1983009808
        %v7166 = vunpack.c.0.s8 %v7165
        %v7167 = vlaneseq
        %v7168 = vshrl.u32 %v7167, 7
        %v7169 = vsub.s32 %v7166, %v7168
        %v7170 = vrot.slane %v7162, %v7169
        %v7172 = vunpack.c.l.s4 1983009808
        %v7173 = vunpack.c.0.s8 %v7172
        %v7174 = vlaneseq
        %v7175 = vshrl.u32 %v7174, 7
        %v7176 = vsub.s32 %v7173, %v7175
        %v7177 = vrot.slane %v7163, %v7176
        %v7178 = vcombine.low %v7170, %v7177
        %v7179 = vcombine.low %v6634, %v6642
        %v7180 = vcombine.low %v6641, %v6643
        %v7182 = vunpack.c.l.s4 1983009808
        %v7183 = vunpack.c.0.s8 %v7182
        %v7184 = vlaneseq
        %v7185 = vshrl.u32 %v7184, 7
        %v7186 = vsub.s32 %v7183, %v7185
        %v7187 = vrot.slane %v7179, %v7186
        %v7189 = vunpack.c.l.s4 1983009808
        %v7190 = vunpack.c.0.s8 %v7189
        %v7191 = vlaneseq
        %v7192 = vshrl.u32 %v7191, 7
        %v7193 = vsub.s32 %v7190, %v7192
        %v7194 = vrot.slane %v7180, %v7193
        %v7195 = vcombine.low %v7187, %v7194
        %v7197 = vunpack.c.l.s4 1983009808
        %v7198 = vunpack.c.0.s8 %v7197
        %v7199 = vlaneseq
        %v7200 = vshrl.u32 %v7199, 7
        %v7201 = vsub.s32 %v7198, %v7200
        %v7202 = vrot.slane %v6651, %v7201
        %v7203 = vcombine.low %v6659, %v6658
        %v7204 = vcombine.low %v6660, %v6668
        %v7206 = vunpack.c.l.s4 1983009808
        %v7207 = vunpack.c.0.s8 %v7206
        %v7208 = vlaneseq
        %v7209 = vshrl.u32 %v7208, 7
        %v7210 = vsub.s32 %v7207, %v7209
        %v7211 = vrot.slane %v7203, %v7210
        %v7213 = vunpack.c.l.s4 1983009808
        %v7214 = vunpack.c.0.s8 %v7213
        %v7215 = vlaneseq
        %v7216 = vshrl.u32 %v7215, 7
        %v7217 = vsub.s32 %v7214, %v7216
        %v7218 = vrot.slane %v7204, %v7217
        %v7219 = vcombine.low %v7211, %v7218
        %v7220 = vcombine.low %v6676, %v6675
        %v7221 = vcombine.low %v6677, %v6685
        %v7223 = vunpack.c.l.s4 1983009808
        %v7224 = vunpack.c.0.s8 %v7223
        %v7225 = vlaneseq
        %v7226 = vshrl.u32 %v7225, 7
        %v7227 = vsub.s32 %v7224, %v7226
        %v7228 = vrot.slane %v7220, %v7227
        %v7230 = vunpack.c.l.s4 1983009808
        %v7231 = vunpack.c.0.s8 %v7230
        %v7232 = vlaneseq
        %v7233 = vshrl.u32 %v7232, 7
        %v7234 = vsub.s32 %v7231, %v7233
        %v7235 = vrot.slane %v7221, %v7234
        %v7236 = vcombine.low %v7228, %v7235
        %v7238 = vunpack.c.l.s4 1983009808
        %v7239 = vunpack.c.0.s8 %v7238
        %v7240 = vlaneseq
        %v7241 = vshrl.u32 %v7240, 7
        %v7242 = vsub.s32 %v7239, %v7241
        %v7243 = vrot.slane %v6693, %v7242
        %v7244 = vcombine.low %v6692, %v6694
        %v7245 = vcombine.low %v6702, %v6710
        %v7247 = vunpack.c.l.s4 1983009808
        %v7248 = vunpack.c.0.s8 %v7247
        %v7249 = vlaneseq
        %v7250 = vshrl.u32 %v7249, 7
        %v7251 = vsub.s32 %v7248, %v7250
        %v7252 = vrot.slane %v7244, %v7251
        %v7254 = vunpack.c.l.s4 1983009808
        %v7255 = vunpack.c.0.s8 %v7254
        %v7256 = vlaneseq
        %v7257 = vshrl.u32 %v7256, 7
        %v7258 = vsub.s32 %v7255, %v7257
        %v7259 = vrot.slane %v7245, %v7258
        %v7260 = vcombine.low %v7252, %v7259
        %v7261 = vcombine.low %v6709, %v6711
        %v7262 = vcombine.low %v6719, %v6727
        %v7264 = vunpack.c.l.s4 1983009808
        %v7265 = vunpack.c.0.s8 %v7264
        %v7266 = vlaneseq
        %v7267 = vshrl.u32 %v7266, 7
        %v7268 = vsub.s32 %v7265, %v7267
        %v7269 = vrot.slane %v7261, %v7268
        %v7271 = vunpack.c.l.s4 1983009808
        %v7272 = vunpack.c.0.s8 %v7271
        %v7273 = vlaneseq
        %v7274 = vshrl.u32 %v7273, 7
        %v7275 = vsub.s32 %v7272, %v7274
        %v7276 = vrot.slane %v7262, %v7275
        %v7277 = vcombine.low %v7269, %v7276
        %v7279 = vunpack.c.l.s4 1983009808
        %v7280 = vunpack.c.0.s8 %v7279
        %v7281 = vlaneseq
        %v7282 = vshrl.u32 %v7281, 7
        %v7283 = vsub.s32 %v7280, %v7282
        %v7284 = vrot.slane %v6726, %v7283
        %v7285 = vcombine.low %v6728, %v6736
        %v7286 = vcombine.low %v6744, %v6743
        %v7288 = vunpack.c.l.s4 1983009808
        %v7289 = vunpack.c.0.s8 %v7288
        %v7290 = vlaneseq
        %v7291 = vshrl.u32 %v7290, 7
        %v7292 = vsub.s32 %v7289, %v7291
        %v7293 = vrot.slane %v7285, %v7292
        %v7295 = vunpack.c.l.s4 1983009808
        %v7296 = vunpack.c.0.s8 %v7295
        %v7297 = vlaneseq
        %v7298 = vshrl.u32 %v7297, 7
        %v7299 = vsub.s32 %v7296, %v7298
        %v7300 = vrot.slane %v7286, %v7299
        %v7301 = vcombine.low %v7293, %v7300
        %v7302 = vcombine.low %v6745, %v6753
        %v7303 = vcombine.low %v6761, %v6760
        %v7305 = vunpack.c.l.s4 1983009808
        %v7306 = vunpack.c.0.s8 %v7305
        %v7307 = vlaneseq
        %v7308 = vshrl.u32 %v7307, 7
        %v7309 = vsub.s32 %v7306, %v7308
        %v7310 = vrot.slane %v7302, %v7309
        %v7312 = vunpack.c.l.s4 1983009808
        %v7313 = vunpack.c.0.s8 %v7312
        %v7314 = vlaneseq
        %v7315 = vshrl.u32 %v7314, 7
        %v7316 = vsub.s32 %v7313, %v7315
        %v7317 = vrot.slane %v7303, %v7316
        %v7318 = vcombine.low %v7310, %v7317
        %v7320 = vunpack.c.l.s4 1983009808
        %v7321 = vunpack.c.0.s8 %v7320
        %v7322 = vlaneseq
        %v7323 = vshrl.u32 %v7322, 7
        %v7324 = vsub.s32 %v7321, %v7323
        %v7325 = vrot.slane %v6762, %v7324
        %v7326 = vcombine.low %v6770, %v6778
        %v7327 = vcombine.low %v6777, %v6779
        %v7329 = vunpack.c.l.s4 1983009808
        %v7330 = vunpack.c.0.s8 %v7329
        %v7331 = vlaneseq
        %v7332 = vshrl.u32 %v7331, 7
        %v7333 = vsub.s32 %v7330, %v7332
        %v7334 = vrot.slane %v7326, %v7333
        %v7336 = vunpack.c.l.s4 1983009808
        %v7337 = vunpack.c.0.s8 %v7336
        %v7338 = vlaneseq
        %v7339 = vshrl.u32 %v7338, 7
        %v7340 = vsub.s32 %v7337, %v7339
        %v7341 = vrot.slane %v7327, %v7340
        %v7342 = vcombine.low %v7334, %v7341
        %v7343 = vcombine.low %v6787, %v6795
        %v7344 = vcombine.low %v6794, %v6796
        %v7346 = vunpack.c.l.s4 1983009808
        %v7347 = vunpack.c.0.s8 %v7346
        %v7348 = vlaneseq
        %v7349 = vshrl.u32 %v7348, 7
        %v7350 = vsub.s32 %v7347, %v7349
        %v7351 = vrot.slane %v7343, %v7350
        %v7353 = vunpack.c.l.s4 1983009808
        %v7354 = vunpack.c.0.s8 %v7353
        %v7355 = vlaneseq
        %v7356 = vshrl.u32 %v7355, 7
        %v7357 = vsub.s32 %v7354, %v7356
        %v7358 = vrot.slane %v7344, %v7357
        %v7359 = vcombine.low %v7351, %v7358
        %v7361 = vunpack.c.l.s4 1983009808
        %v7362 = vunpack.c.0.s8 %v7361
        %v7363 = vlaneseq
        %v7364 = vshrl.u32 %v7363, 7
        %v7365 = vsub.s32 %v7362, %v7364
        %v7366 = vrot.slane %v6804, %v7365
        %v7367 = vcombine.low %v6812, %v6811
        %v7368 = vcombine.low %v6813, %v6821
        %v7370 = vunpack.c.l.s4 1983009808
        %v7371 = vunpack.c.0.s8 %v7370
        %v7372 = vlaneseq
        %v7373 = vshrl.u32 %v7372, 7
        %v7374 = vsub.s32 %v7371, %v7373
        %v7375 = vrot.slane %v7367, %v7374
        %v7377 = vunpack.c.l.s4 1983009808
        %v7378 = vunpack.c.0.s8 %v7377
        %v7379 = vlaneseq
        %v7380 = vshrl.u32 %v7379, 7
        %v7381 = vsub.s32 %v7378, %v7380
        %v7382 = vrot.slane %v7368, %v7381
        %v7383 = vcombine.low %v7375, %v7382
        %v7384 = vcombine.low %v6829, %v6828
        %v7385 = vcombine.low %v6830, %v6838
        %v7387 = vunpack.c.l.s4 1983009808
        %v7388 = vunpack.c.0.s8 %v7387
        %v7389 = vlaneseq
        %v7390 = vshrl.u32 %v7389, 7
        %v7391 = vsub.s32 %v7388, %v7390
        %v7392 = vrot.slane %v7384, %v7391
        %v7394 = vunpack.c.l.s4 1983009808
        %v7395 = vunpack.c.0.s8 %v7394
        %v7396 = vlaneseq
        %v7397 = vshrl.u32 %v7396, 7
        %v7398 = vsub.s32 %v7395, %v7397
        %v7399 = vrot.slane %v7385, %v7398
        %v7400 = vcombine.low %v7392, %v7399
        %v7402 = vunpack.c.l.s4 1983009808
        %v7403 = vunpack.c.0.s8 %v7402
        %v7404 = vlaneseq
        %v7405 = vshrl.u32 %v7404, 7
        %v7406 = vsub.s32 %v7403, %v7405
        %v7407 = vrot.slane %v6846, %v7406
        %v7408 = vcombine.low %v6845, %v6847
        %v7409 = vcombine.low %v6855, %v6863
        %v7411 = vunpack.c.l.s4 1983009808
        %v7412 = vunpack.c.0.s8 %v7411
        %v7413 = vlaneseq
        %v7414 = vshrl.u32 %v7413, 7
        %v7415 = vsub.s32 %v7412, %v7414
        %v7416 = vrot.slane %v7408, %v7415
        %v7418 = vunpack.c.l.s4 1983009808
        %v7419 = vunpack.c.0.s8 %v7418
        %v7420 = vlaneseq
        %v7421 = vshrl.u32 %v7420, 7
        %v7422 = vsub.s32 %v7419, %v7421
        %v7423 = vrot.slane %v7409, %v7422
        %v7424 = vcombine.low %v7416, %v7423
        %v7425 = vcombine.low %v6862, %v6864
        %v7426 = vcombine.low %v6872, %v6880
        %v7428 = vunpack.c.l.s4 1983009808
        %v7429 = vunpack.c.0.s8 %v7428
        %v7430 = vlaneseq
        %v7431 = vshrl.u32 %v7430, 7
        %v7432 = vsub.s32 %v7429, %v7431
        %v7433 = vrot.slane %v7425, %v7432
        %v7435 = vunpack.c.l.s4 1983009808
        %v7436 = vunpack.c.0.s8 %v7435
        %v7437 = vlaneseq
        %v7438 = vshrl.u32 %v7437, 7
        %v7439 = vsub.s32 %v7436, %v7438
        %v7440 = vrot.slane %v7426, %v7439
        %v7441 = vcombine.low %v7433, %v7440
        %v7443 = vunpack.c.l.s4 1983009808
        %v7444 = vunpack.c.0.s8 %v7443
        %v7445 = vlaneseq
        %v7446 = vshrl.u32 %v7445, 7
        %v7447 = vsub.s32 %v7444, %v7446
        %v7448 = vrot.slane %v6879, %v7447
        %v7449 = vcombine.low %v6881, %v6889
        %v7450 = vcombine.low %v6897, %v6896
        %v7452 = vunpack.c.l.s4 1983009808
        %v7453 = vunpack.c.0.s8 %v7452
        %v7454 = vlaneseq
        %v7455 = vshrl.u32 %v7454, 7
        %v7456 = vsub.s32 %v7453, %v7455
        %v7457 = vrot.slane %v7449, %v7456
        %v7459 = vunpack.c.l.s4 1983009808
        %v7460 = vunpack.c.0.s8 %v7459
        %v7461 = vlaneseq
        %v7462 = vshrl.u32 %v7461, 7
        %v7463 = vsub.s32 %v7460, %v7462
        %v7464 = vrot.slane %v7450, %v7463
        %v7465 = vcombine.low %v7457, %v7464
        %v7466 = vcombine.low %v6898, %v6906
        %v7467 = vcombine.low %v6914, %v6913
        %v7469 = vunpack.c.l.s4 1983009808
        %v7470 = vunpack.c.0.s8 %v7469
        %v7471 = vlaneseq
        %v7472 = vshrl.u32 %v7471, 7
        %v7473 = vsub.s32 %v7470, %v7472
        %v7474 = vrot.slane %v7466, %v7473
        %v7476 = vunpack.c.l.s4 1983009808
        %v7477 = vunpack.c.0.s8 %v7476
        %v7478 = vlaneseq
        %v7479 = vshrl.u32 %v7478, 7
        %v7480 = vsub.s32 %v7477, %v7479
        %v7481 = vrot.slane %v7467, %v7480
        %v7482 = vcombine.low %v7474, %v7481
        %v7484 = vunpack.c.l.s4 1983009808
        %v7485 = vunpack.c.0.s8 %v7484
        %v7486 = vlaneseq
        %v7487 = vshrl.u32 %v7486, 7
        %v7488 = vsub.s32 %v7485, %v7487
        %v7489 = vrot.slane %v6915, %v7488
        %v7490 = vcombine.low %v6923, %v6931
        %v7491 = vcombine.low %v6930, %v6932
        %v7493 = vunpack.c.l.s4 1983009808
        %v7494 = vunpack.c.0.s8 %v7493
        %v7495 = vlaneseq
        %v7496 = vshrl.u32 %v7495, 7
        %v7497 = vsub.s32 %v7494, %v7496
        %v7498 = vrot.slane %v7490, %v7497
        %v7500 = vunpack.c.l.s4 1983009808
        %v7501 = vunpack.c.0.s8 %v7500
        %v7502 = vlaneseq
        %v7503 = vshrl.u32 %v7502, 7
        %v7504 = vsub.s32 %v7501, %v7503
        %v7505 = vrot.slane %v7491, %v7504
        %v7506 = vcombine.low %v7498, %v7505
        %v7507 = vcombine.low %v6940, %v6948
        %v7508 = vcombine.low %v6947, %v6949
        %v7510 = vunpack.c.l.s4 1983009808
        %v7511 = vunpack.c.0.s8 %v7510
        %v7512 = vlaneseq
        %v7513 = vshrl.u32 %v7512, 7
        %v7514 = vsub.s32 %v7511, %v7513
        %v7515 = vrot.slane %v7507, %v7514
        %v7517 = vunpack.c.l.s4 1983009808
        %v7518 = vunpack.c.0.s8 %v7517
        %v7519 = vlaneseq
        %v7520 = vshrl.u32 %v7519, 7
        %v7521 = vsub.s32 %v7518, %v7520
        %v7522 = vrot.slane %v7508, %v7521
        %v7523 = vcombine.low %v7515, %v7522
        %v7525 = vunpack.c.l.s4 1983009808
        %v7526 = vunpack.c.0.s8 %v7525
        %v7527 = vlaneseq
        %v7528 = vshrl.u32 %v7527, 7
        %v7529 = vsub.s32 %v7526, %v7528
        %v7530 = vrot.slane %v6957, %v7529
        %v7531 = vcombine.low %v6965, %v6964
        %v7532 = vcombine.low %v6966, %v6974
        %v7534 = vunpack.c.l.s4 1983009808
        %v7535 = vunpack.c.0.s8 %v7534
        %v7536 = vlaneseq
        %v7537 = vshrl.u32 %v7536, 7
        %v7538 = vsub.s32 %v7535, %v7537
        %v7539 = vrot.slane %v7531, %v7538
        %v7541 = vunpack.c.l.s4 1983009808
        %v7542 = vunpack.c.0.s8 %v7541
        %v7543 = vlaneseq
        %v7544 = vshrl.u32 %v7543, 7
        %v7545 = vsub.s32 %v7542, %v7544
        %v7546 = vrot.slane %v7532, %v7545
        %v7547 = vcombine.low %v7539, %v7546
        %v7548 = vcombine.low %v6982, %v6981
        %v7549 = vcombine.low %v6983, %v6990
        %v7551 = vunpack.c.l.s4 1983009808
        %v7552 = vunpack.c.0.s8 %v7551
        %v7553 = vlaneseq
        %v7554 = vshrl.u32 %v7553, 7
        %v7555 = vsub.s32 %v7552, %v7554
        %v7556 = vrot.slane %v7548, %v7555
        %v7558 = vunpack.c.l.s4 1983009808
        %v7559 = vunpack.c.0.s8 %v7558
        %v7560 = vlaneseq
        %v7561 = vshrl.u32 %v7560, 7
        %v7562 = vsub.s32 %v7559, %v7561
        %v7563 = vrot.slane %v7549, %v7562
        %v7564 = vcombine.low %v7556, %v7563
        %v7566 = vunpack.c.l.s4 1983009808
        %v7567 = vunpack.c.0.s8 %v7566
        %v7568 = vlaneseq
        %v7569 = vshrl.u32 %v7568, 7
        %v7570 = vsub.s32 %v7567, %v7569
        %v7571 = vrot.slane %v6991, %v7570
        %v7602 = vsel %vm7132, %v7178, 0.0
        %v7603 = vsel %vm7133, %v7195, 0.0
        %v7604 = vsel %vm7134, %v7202, 0.0
        %v7605 = vsel %vm7135, %v7219, 0.0
        %v7606 = vsel %vm7136, %v7236, 0.0
        %v7607 = vsel %vm7137, %v7243, 0.0
        %v7608 = vsel %vm7138, %v7260, 0.0
        %v7609 = vsel %vm7139, %v7277, 0.0
        %v7610 = vsel %vm7140, %v7284, 0.0
        %v7611 = vsel %vm7141, %v7301, 0.0
        %v7612 = vsel %vm7142, %v7318, 0.0
        %v7613 = vsel %vm7143, %v7325, 0.0
        %v7614 = vsel %vm7144, %v7342, 0.0
        %v7615 = vsel %vm7145, %v7359, 0.0
        %v7616 = vsel %vm7146, %v7366, 0.0
        %v7617 = vsel %vm7147, %v7383, 0.0
        %v7618 = vsel %vm7148, %v7400, 0.0
        %v7619 = vsel %vm7149, %v7407, 0.0
        %v7620 = vsel %vm7150, %v7424, 0.0
        %v7621 = vsel %vm7151, %v7441, 0.0
        %v7622 = vsel %vm7152, %v7448, 0.0
        %v7623 = vsel %vm7153, %v7465, 0.0
        %v7624 = vsel %vm7154, %v7482, 0.0
        %v7625 = vsel %vm7155, %v7489, 0.0
        %v7626 = vsel %vm7156, %v7506, 0.0
        %v7627 = vsel %vm7157, %v7523, 0.0
        %v7628 = vsel %vm7158, %v7530, 0.0
        %v7629 = vsel %vm7159, %v7547, 0.0
        %v7630 = vsel %vm7160, %v7564, 0.0
        %v7631 = vsel %vm7161, %v7571, 0.0
        %v7632 = vpack.c.bf16 %v7603, %v7602
        %v7633 = vpack.c.bf16 %v7604, %v7604
        %v7634 = vpack.c.bf16 %v7606, %v7605
        %v7635 = vpack.c.bf16 %v7607, %v7607
        %v7636 = vpack.c.bf16 %v7609, %v7608
        %v7637 = vpack.c.bf16 %v7610, %v7610
        %v7638 = vpack.c.bf16 %v7612, %v7611
        %v7639 = vpack.c.bf16 %v7613, %v7613
        %v7640 = vpack.c.bf16 %v7615, %v7614
        %v7641 = vpack.c.bf16 %v7616, %v7616
        %v7642 = vpack.c.bf16 %v7618, %v7617
        %v7643 = vpack.c.bf16 %v7619, %v7619
        %v7644 = vpack.c.bf16 %v7621, %v7620
        %v7645 = vpack.c.bf16 %v7622, %v7622
        %v7646 = vpack.c.bf16 %v7624, %v7623
        %v7647 = vpack.c.bf16 %v7625, %v7625
        %v7648 = vpack.c.bf16 %v7627, %v7626
        %v7649 = vpack.c.bf16 %v7628, %v7628
        %v7650 = vpack.c.bf16 %v7630, %v7629
        %v7651 = vpack.c.bf16 %v7631, %v7631
        %v7660 = vunpack.c.l.b16 %v7632
        %v7661 = vunpack.c.h.b16 %v7632
        %v7662 = vunpack.c.l.b16 %v7634
        %v7663 = vunpack.c.h.b16 %v7634
        %v7664 = vunpack.c.l.b16 %v7636
        %v7665 = vunpack.c.h.b16 %v7636
        %v7666 = vunpack.c.l.b16 %v7638
        %v7667 = vunpack.c.h.b16 %v7638
        %v7668 = vunpack.c.l.b16 %v7640
        %v7669 = vunpack.c.h.b16 %v7640
        %v7670 = vunpack.c.l.b16 %v7642
        %v7671 = vunpack.c.h.b16 %v7642
        %v7672 = vunpack.c.l.b16 %v7644
        %v7673 = vunpack.c.h.b16 %v7644
        %v7674 = vunpack.c.l.b16 %v7646
        %v7675 = vunpack.c.h.b16 %v7646
        %v7676 = vpack.c.b16 %v7660, %v7660
        %v7677 = vpack.c.b16 %v7661, %v7661
        %v7678 = vpack.c.b16 %v7662, %v7662
        %v7679 = vpack.c.b16 %v7663, %v7663
        %v7680 = vpack.c.b16 %v7664, %v7664
        %v7681 = vpack.c.b16 %v7665, %v7665
        %v7682 = vpack.c.b16 %v7666, %v7666
        %v7683 = vpack.c.b16 %v7667, %v7667
        %v7684 = vpack.c.b16 %v7668, %v7668
        %v7685 = vpack.c.b16 %v7669, %v7669
        %v7686 = vpack.c.b16 %v7670, %v7670
        %v7687 = vpack.c.b16 %v7671, %v7671
        %v7688 = vpack.c.b16 %v7672, %v7672
        %v7689 = vpack.c.b16 %v7673, %v7673
        %v7690 = vpack.c.b16 %v7674, %v7674
        %v7691 = vpack.c.b16 %v7675, %v7675
        %7708 = vst.msk [vmem:[#allocation4] sm:$0xf] %vm446, %v7676
        %7709 = vst.msk [vmem:[#allocation4 + $0x4] sm:$0xf] %vm446, %v7677
        %7710 = vst.msk [vmem:[#allocation4 + $0x8] sm:$0xf] %vm446, %v7678
        %7711 = vst.msk [vmem:[#allocation4 + $0xc] sm:$0xf] %vm446, %v7679
        %7712 = vst.msk [vmem:[#allocation4 + $0x10] sm:$0xf] %vm446, %v7680
        %7713 = vst.msk [vmem:[#allocation4 + $0x14] sm:$0xf] %vm446, %v7681
        %7714 = vst.msk [vmem:[#allocation4 + $0x18] sm:$0xf] %vm446, %v7682
        %7715 = vst.msk [vmem:[#allocation4 + $0x1c] sm:$0xf] %vm446, %v7683
        %7716 = vst.msk [vmem:[#allocation4 + $0x20] sm:$0xf] %vm446, %v7684
        %7717 = vst.msk [vmem:[#allocation4 + $0x24] sm:$0xf] %vm446, %v7685
        %7718 = vst.msk [vmem:[#allocation4 + $0x28] sm:$0xf] %vm446, %v7686
        %7719 = vst.msk [vmem:[#allocation4 + $0x2c] sm:$0xf] %vm446, %v7687
        %7720 = vst.msk [vmem:[#allocation4 + $0x30] sm:$0xf] %vm446, %v7688
        %7721 = vst.msk [vmem:[#allocation4 + $0x34] sm:$0xf] %vm446, %v7689
        %7722 = vst.msk [vmem:[#allocation4 + $0x38] sm:$0xf] %vm446, %v7690
        %7723 = vst.msk [vmem:[#allocation4 + $0x3c] sm:$0xf] %vm446, %v7691
        %v7732 = vunpack.c.l.b16 %v7633
        %v7733 = vunpack.c.l.b16 %v7635
        %v7734 = vunpack.c.l.b16 %v7637
        %v7735 = vunpack.c.l.b16 %v7639
        %v7736 = vunpack.c.l.b16 %v7641
        %v7737 = vunpack.c.l.b16 %v7643
        %v7738 = vunpack.c.l.b16 %v7645
        %v7739 = vunpack.c.l.b16 %v7647
        %v7740 = vpack.c.b16 %v7732, %v7732
        %v7741 = vpack.c.b16 %v7733, %v7733
        %v7742 = vpack.c.b16 %v7734, %v7734
        %v7743 = vpack.c.b16 %v7735, %v7735
        %v7744 = vpack.c.b16 %v7736, %v7736
        %v7745 = vpack.c.b16 %v7737, %v7737
        %v7746 = vpack.c.b16 %v7738, %v7738
        %v7747 = vpack.c.b16 %v7739, %v7739
        %v7749 = vshrl.u32 %v7676, 16
        %v7751 = vrot.slane %v7749, 4
        %v7752 = vshll.u32 %v7676, 16
        %v7754 = vrot.slane %v7752, 5
        %v7755 = vor.u32 %v7751, %v7754
        %v7756 = vrot.slane %v7755, 4
        %v7758 = vshll.u32 %v7677, 16
        %v7760 = vrot.slane %v7758, 5
        %v7761 = vsel %vm486, %v7756, %v7760
        %v7762 = vshrl.u32 %v7677, 16
        %v7764 = vrot.slane %v7762, 4
        %v7765 = vor.u32 %v7764, %v7760
        %v7766 = vrot.slane %v7765, 4
        %v7768 = vshll.u32 %v7740, 16
        %v7770 = vrot.slane %v7768, 5
        %v7771 = vsel %vm486, %v7766, %v7770
        %v7773 = vshrl.u32 %v7678, 16
        %v7775 = vrot.slane %v7773, 4
        %v7776 = vshll.u32 %v7678, 16
        %v7778 = vrot.slane %v7776, 5
        %v7779 = vor.u32 %v7775, %v7778
        %v7780 = vrot.slane %v7779, 4
        %v7782 = vshll.u32 %v7679, 16
        %v7784 = vrot.slane %v7782, 5
        %v7785 = vsel %vm486, %v7780, %v7784
        %v7786 = vshrl.u32 %v7679, 16
        %v7788 = vrot.slane %v7786, 4
        %v7789 = vor.u32 %v7788, %v7784
        %v7790 = vrot.slane %v7789, 4
        %v7792 = vshll.u32 %v7741, 16
        %v7794 = vrot.slane %v7792, 5
        %v7795 = vsel %vm486, %v7790, %v7794
        %v7797 = vshrl.u32 %v7680, 16
        %v7799 = vrot.slane %v7797, 4
        %v7800 = vshll.u32 %v7680, 16
        %v7802 = vrot.slane %v7800, 5
        %v7803 = vor.u32 %v7799, %v7802
        %v7804 = vrot.slane %v7803, 4
        %v7806 = vshll.u32 %v7681, 16
        %v7808 = vrot.slane %v7806, 5
        %v7809 = vsel %vm486, %v7804, %v7808
        %v7810 = vshrl.u32 %v7681, 16
        %v7812 = vrot.slane %v7810, 4
        %v7813 = vor.u32 %v7812, %v7808
        %v7814 = vrot.slane %v7813, 4
        %v7816 = vshll.u32 %v7742, 16
        %v7818 = vrot.slane %v7816, 5
        %v7819 = vsel %vm486, %v7814, %v7818
        %v7821 = vshrl.u32 %v7682, 16
        %v7823 = vrot.slane %v7821, 4
        %v7824 = vshll.u32 %v7682, 16
        %v7826 = vrot.slane %v7824, 5
        %v7827 = vor.u32 %v7823, %v7826
        %v7828 = vrot.slane %v7827, 4
        %v7830 = vshll.u32 %v7683, 16
        %v7832 = vrot.slane %v7830, 5
        %v7833 = vsel %vm486, %v7828, %v7832
        %v7834 = vshrl.u32 %v7683, 16
        %v7836 = vrot.slane %v7834, 4
        %v7837 = vor.u32 %v7836, %v7832
        %v7838 = vrot.slane %v7837, 4
        %v7840 = vshll.u32 %v7743, 16
        %v7842 = vrot.slane %v7840, 5
        %v7843 = vsel %vm486, %v7838, %v7842
        %v7845 = vshrl.u32 %v7684, 16
        %v7847 = vrot.slane %v7845, 4
        %v7848 = vshll.u32 %v7684, 16
        %v7850 = vrot.slane %v7848, 5
        %v7851 = vor.u32 %v7847, %v7850
        %v7852 = vrot.slane %v7851, 4
        %v7854 = vshll.u32 %v7685, 16
        %v7856 = vrot.slane %v7854, 5
        %v7857 = vsel %vm486, %v7852, %v7856
        %v7858 = vshrl.u32 %v7685, 16
        %v7860 = vrot.slane %v7858, 4
        %v7861 = vor.u32 %v7860, %v7856
        %v7862 = vrot.slane %v7861, 4
        %v7864 = vshll.u32 %v7744, 16
        %v7866 = vrot.slane %v7864, 5
        %v7867 = vsel %vm486, %v7862, %v7866
        %v7869 = vshrl.u32 %v7686, 16
        %v7871 = vrot.slane %v7869, 4
        %v7872 = vshll.u32 %v7686, 16
        %v7874 = vrot.slane %v7872, 5
        %v7875 = vor.u32 %v7871, %v7874
        %v7876 = vrot.slane %v7875, 4
        %v7878 = vshll.u32 %v7687, 16
        %v7880 = vrot.slane %v7878, 5
        %v7881 = vsel %vm486, %v7876, %v7880
        %v7882 = vshrl.u32 %v7687, 16
        %v7884 = vrot.slane %v7882, 4
        %v7885 = vor.u32 %v7884, %v7880
        %v7886 = vrot.slane %v7885, 4
        %v7888 = vshll.u32 %v7745, 16
        %v7890 = vrot.slane %v7888, 5
        %v7891 = vsel %vm486, %v7886, %v7890
        %v7893 = vshrl.u32 %v7688, 16
        %v7895 = vrot.slane %v7893, 4
        %v7896 = vshll.u32 %v7688, 16
        %v7898 = vrot.slane %v7896, 5
        %v7899 = vor.u32 %v7895, %v7898
        %v7900 = vrot.slane %v7899, 4
        %v7902 = vshll.u32 %v7689, 16
        %v7904 = vrot.slane %v7902, 5
        %v7905 = vsel %vm486, %v7900, %v7904
        %v7906 = vshrl.u32 %v7689, 16
        %v7908 = vrot.slane %v7906, 4
        %v7909 = vor.u32 %v7908, %v7904
        %v7910 = vrot.slane %v7909, 4
        %v7912 = vshll.u32 %v7746, 16
        %v7914 = vrot.slane %v7912, 5
        %v7915 = vsel %vm486, %v7910, %v7914
        %v7917 = vshrl.u32 %v7690, 16
        %v7919 = vrot.slane %v7917, 4
        %v7920 = vshll.u32 %v7690, 16
        %v7922 = vrot.slane %v7920, 5
        %v7923 = vor.u32 %v7919, %v7922
        %v7924 = vrot.slane %v7923, 4
        %v7926 = vshll.u32 %v7691, 16
        %v7928 = vrot.slane %v7926, 5
        %v7929 = vsel %vm486, %v7924, %v7928
        %v7930 = vshrl.u32 %v7691, 16
        %v7932 = vrot.slane %v7930, 4
        %v7933 = vor.u32 %v7932, %v7928
        %v7934 = vrot.slane %v7933, 4
        %v7936 = vshll.u32 %v7747, 16
        %v7938 = vrot.slane %v7936, 5
        %v7939 = vsel %vm486, %v7934, %v7938
        %7940 = vrot.lane.b32.xlu0 %v7761, 4
        %v7941 = vpop.permute.xlu0 %7940
        %7942 = vrot.lane.b32.xlu0 %v7771, 4
        %v7943 = vpop.permute.xlu0 %7942
        %7944 = vrot.lane.b32.xlu0 %v7785, 4
        %v7945 = vpop.permute.xlu0 %7944
        %7946 = vrot.lane.b32.xlu0 %v7795, 4
        %v7947 = vpop.permute.xlu0 %7946
        %7948 = vrot.lane.b32.xlu0 %v7809, 4
        %v7949 = vpop.permute.xlu0 %7948
        %7950 = vrot.lane.b32.xlu0 %v7819, 4
        %v7951 = vpop.permute.xlu0 %7950
        %7952 = vrot.lane.b32.xlu0 %v7833, 4
        %v7953 = vpop.permute.xlu0 %7952
        %7954 = vrot.lane.b32.xlu0 %v7843, 4
        %v7955 = vpop.permute.xlu0 %7954
        %7956 = vrot.lane.b32.xlu0 %v7857, 4
        %v7957 = vpop.permute.xlu0 %7956
        %7958 = vrot.lane.b32.xlu0 %v7867, 4
        %v7959 = vpop.permute.xlu0 %7958
        %7960 = vrot.lane.b32.xlu0 %v7881, 4
        %v7961 = vpop.permute.xlu0 %7960
        %7962 = vrot.lane.b32.xlu0 %v7891, 4
        %v7963 = vpop.permute.xlu0 %7962
        %7964 = vrot.lane.b32.xlu0 %v7905, 4
        %v7965 = vpop.permute.xlu0 %7964
        %7966 = vrot.lane.b32.xlu0 %v7915, 4
        %v7967 = vpop.permute.xlu0 %7966
        %7968 = vrot.lane.b32.xlu0 %v7929, 4
        %v7969 = vpop.permute.xlu0 %7968
        %7970 = vrot.lane.b32.xlu0 %v7939, 4
        %v7971 = vpop.permute.xlu0 %7970
        %7988 = vst.msk [vmem:[#allocation4] sm:$0xf] %vm943, %v7941
        %7989 = vst.msk [vmem:[#allocation4 + $0x4] sm:$0xf] %vm943, %v7943
        %7990 = vst.msk [vmem:[#allocation4 + $0x8] sm:$0xf] %vm943, %v7945
        %7991 = vst.msk [vmem:[#allocation4 + $0xc] sm:$0xf] %vm943, %v7947
        %7992 = vst.msk [vmem:[#allocation4 + $0x10] sm:$0xf] %vm943, %v7949
        %7993 = vst.msk [vmem:[#allocation4 + $0x14] sm:$0xf] %vm943, %v7951
        %7994 = vst.msk [vmem:[#allocation4 + $0x18] sm:$0xf] %vm943, %v7953
        %7995 = vst.msk [vmem:[#allocation4 + $0x1c] sm:$0xf] %vm943, %v7955
        %7996 = vst.msk [vmem:[#allocation4 + $0x20] sm:$0xf] %vm943, %v7957
        %7997 = vst.msk [vmem:[#allocation4 + $0x24] sm:$0xf] %vm943, %v7959
        %7998 = vst.msk [vmem:[#allocation4 + $0x28] sm:$0xf] %vm943, %v7961
        %7999 = vst.msk [vmem:[#allocation4 + $0x2c] sm:$0xf] %vm943, %v7963
        %8000 = vst.msk [vmem:[#allocation4 + $0x30] sm:$0xf] %vm943, %v7965
        %8001 = vst.msk [vmem:[#allocation4 + $0x34] sm:$0xf] %vm943, %v7967
        %8002 = vst.msk [vmem:[#allocation4 + $0x38] sm:$0xf] %vm943, %v7969
        %8003 = vst.msk [vmem:[#allocation4 + $0x3c] sm:$0xf] %vm943, %v7971
        %v8004 = vrot.slane %v7676, 5
        %v8005 = vrot.slane %v8004, 4
        %v8006 = vrot.slane %v7677, 5
        %v8007 = vsel %vm1019, %v8005, %v8006
        %v8008 = vrot.slane %v8006, 4
        %v8009 = vrot.slane %v7740, 5
        %v8010 = vsel %vm1019, %v8008, %v8009
        %v8011 = vrot.slane %v7678, 5
        %v8012 = vrot.slane %v8011, 4
        %v8013 = vrot.slane %v7679, 5
        %v8014 = vsel %vm1019, %v8012, %v8013
        %v8015 = vrot.slane %v8013, 4
        %v8016 = vrot.slane %v7741, 5
        %v8017 = vsel %vm1019, %v8015, %v8016
        %v8018 = vrot.slane %v7680, 5
        %v8019 = vrot.slane %v8018, 4
        %v8020 = vrot.slane %v7681, 5
        %v8021 = vsel %vm1019, %v8019, %v8020
        %v8022 = vrot.slane %v8020, 4
        %v8023 = vrot.slane %v7742, 5
        %v8024 = vsel %vm1019, %v8022, %v8023
        %v8025 = vrot.slane %v7682, 5
        %v8026 = vrot.slane %v8025, 4
        %v8027 = vrot.slane %v7683, 5
        %v8028 = vsel %vm1019, %v8026, %v8027
        %v8029 = vrot.slane %v8027, 4
        %v8030 = vrot.slane %v7743, 5
        %v8031 = vsel %vm1019, %v8029, %v8030
        %v8032 = vrot.slane %v7684, 5
        %v8033 = vrot.slane %v8032, 4
        %v8034 = vrot.slane %v7685, 5
        %v8035 = vsel %vm1019, %v8033, %v8034
        %v8036 = vrot.slane %v8034, 4
        %v8037 = vrot.slane %v7744, 5
        %v8038 = vsel %vm1019, %v8036, %v8037
        %v8039 = vrot.slane %v7686, 5
        %v8040 = vrot.slane %v8039, 4
        %v8041 = vrot.slane %v7687, 5
        %v8042 = vsel %vm1019, %v8040, %v8041
        %v8043 = vrot.slane %v8041, 4
        %v8044 = vrot.slane %v7745, 5
        %v8045 = vsel %vm1019, %v8043, %v8044
        %v8046 = vrot.slane %v7688, 5
        %v8047 = vrot.slane %v8046, 4
        %v8048 = vrot.slane %v7689, 5
        %v8049 = vsel %vm1019, %v8047, %v8048
        %v8050 = vrot.slane %v8048, 4
        %v8051 = vrot.slane %v7746, 5
        %v8052 = vsel %vm1019, %v8050, %v8051
        %v8053 = vrot.slane %v7690, 5
        %v8054 = vrot.slane %v8053, 4
        %v8055 = vrot.slane %v7691, 5
        %v8056 = vsel %vm1019, %v8054, %v8055
        %v8057 = vrot.slane %v8055, 4
        %v8058 = vrot.slane %v7747, 5
        %v8059 = vsel %vm1019, %v8057, %v8058
        %8060 = vrot.lane.b32.xlu0 %v8007, 8
        %v8061 = vpop.permute.xlu0 %8060
        %8062 = vrot.lane.b32.xlu0 %v8010, 8
        %v8063 = vpop.permute.xlu0 %8062
        %8064 = vrot.lane.b32.xlu0 %v8014, 8
        %v8065 = vpop.permute.xlu0 %8064
        %8066 = vrot.lane.b32.xlu0 %v8017, 8
        %v8067 = vpop.permute.xlu0 %8066
        %8068 = vrot.lane.b32.xlu0 %v8021, 8
        %v8069 = vpop.permute.xlu0 %8068
        %8070 = vrot.lane.b32.xlu0 %v8024, 8
        %v8071 = vpop.permute.xlu0 %8070
        %8072 = vrot.lane.b32.xlu0 %v8028, 8
        %v8073 = vpop.permute.xlu0 %8072
        %8074 = vrot.lane.b32.xlu0 %v8031, 8
        %v8075 = vpop.permute.xlu0 %8074
        %8076 = vrot.lane.b32.xlu0 %v8035, 8
        %v8077 = vpop.permute.xlu0 %8076
        %8078 = vrot.lane.b32.xlu0 %v8038, 8
        %v8079 = vpop.permute.xlu0 %8078
        %8080 = vrot.lane.b32.xlu0 %v8042, 8
        %v8081 = vpop.permute.xlu0 %8080
        %8082 = vrot.lane.b32.xlu0 %v8045, 8
        %v8083 = vpop.permute.xlu0 %8082
        %8084 = vrot.lane.b32.xlu0 %v8049, 8
        %v8085 = vpop.permute.xlu0 %8084
        %8086 = vrot.lane.b32.xlu0 %v8052, 8
        %v8087 = vpop.permute.xlu0 %8086
        %8088 = vrot.lane.b32.xlu0 %v8056, 8
        %v8089 = vpop.permute.xlu0 %8088
        %8090 = vrot.lane.b32.xlu0 %v8059, 8
        %v8091 = vpop.permute.xlu0 %8090
        %8108 = vst.msk [vmem:[#allocation4] sm:$0xf] %vm1224, %v8061
        %8109 = vst.msk [vmem:[#allocation4 + $0x4] sm:$0xf] %vm1224, %v8063
        %8110 = vst.msk [vmem:[#allocation4 + $0x8] sm:$0xf] %vm1224, %v8065
        %8111 = vst.msk [vmem:[#allocation4 + $0xc] sm:$0xf] %vm1224, %v8067
        %8112 = vst.msk [vmem:[#allocation4 + $0x10] sm:$0xf] %vm1224, %v8069
        %8113 = vst.msk [vmem:[#allocation4 + $0x14] sm:$0xf] %vm1224, %v8071
        %8114 = vst.msk [vmem:[#allocation4 + $0x18] sm:$0xf] %vm1224, %v8073
        %8115 = vst.msk [vmem:[#allocation4 + $0x1c] sm:$0xf] %vm1224, %v8075
        %8116 = vst.msk [vmem:[#allocation4 + $0x20] sm:$0xf] %vm1224, %v8077
        %8117 = vst.msk [vmem:[#allocation4 + $0x24] sm:$0xf] %vm1224, %v8079
        %8118 = vst.msk [vmem:[#allocation4 + $0x28] sm:$0xf] %vm1224, %v8081
        %8119 = vst.msk [vmem:[#allocation4 + $0x2c] sm:$0xf] %vm1224, %v8083
        %8120 = vst.msk [vmem:[#allocation4 + $0x30] sm:$0xf] %vm1224, %v8085
        %8121 = vst.msk [vmem:[#allocation4 + $0x34] sm:$0xf] %vm1224, %v8087
        %8122 = vst.msk [vmem:[#allocation4 + $0x38] sm:$0xf] %vm1224, %v8089
        %8123 = vst.msk [vmem:[#allocation4 + $0x3c] sm:$0xf] %vm1224, %v8091
        %v8125 = vunpack.c.l.b16 %v7648
        %v8126 = vunpack.c.h.b16 %v7648
        %v8127 = vpack.c.b16 %v8125, %v8125
        %v8128 = vpack.c.b16 %v8126, %v8126
        %8129 = vrot.lane.b32.xlu0 %v7678, 12
        %v8130 = vpop.permute.xlu0 %8129
        %8131 = vrot.lane.b32.xlu0 %v7679, 12
        %v8132 = vpop.permute.xlu0 %8131
        %8133 = vrot.lane.b32.xlu0 %v7680, 12
        %v8134 = vpop.permute.xlu0 %8133
        %8135 = vrot.lane.b32.xlu0 %v7681, 12
        %v8136 = vpop.permute.xlu0 %8135
        %8137 = vrot.lane.b32.xlu0 %v7682, 12
        %v8138 = vpop.permute.xlu0 %8137
        %8139 = vrot.lane.b32.xlu0 %v7683, 12
        %v8140 = vpop.permute.xlu0 %8139
        %8141 = vrot.lane.b32.xlu0 %v7684, 12
        %v8142 = vpop.permute.xlu0 %8141
        %8143 = vrot.lane.b32.xlu0 %v7685, 12
        %v8144 = vpop.permute.xlu0 %8143
        %8145 = vrot.lane.b32.xlu0 %v7686, 12
        %v8146 = vpop.permute.xlu0 %8145
        %8147 = vrot.lane.b32.xlu0 %v7687, 12
        %v8148 = vpop.permute.xlu0 %8147
        %8149 = vrot.lane.b32.xlu0 %v7688, 12
        %v8150 = vpop.permute.xlu0 %8149
        %8151 = vrot.lane.b32.xlu0 %v7689, 12
        %v8152 = vpop.permute.xlu0 %8151
        %8153 = vrot.lane.b32.xlu0 %v7690, 12
        %v8154 = vpop.permute.xlu0 %8153
        %8155 = vrot.lane.b32.xlu0 %v7691, 12
        %v8156 = vpop.permute.xlu0 %8155
        %8157 = vrot.lane.b32.xlu0 %v8127, 12
        %v8158 = vpop.permute.xlu0 %8157
        %8159 = vrot.lane.b32.xlu0 %v8128, 12
        %v8160 = vpop.permute.xlu0 %8159
        %8177 = vst.msk [vmem:[#allocation4] sm:$0xf] %vm1373, %v8130
        %8178 = vst.msk [vmem:[#allocation4 + $0x4] sm:$0xf] %vm1373, %v8132
        %8179 = vst.msk [vmem:[#allocation4 + $0x8] sm:$0xf] %vm1373, %v8134
        %8180 = vst.msk [vmem:[#allocation4 + $0xc] sm:$0xf] %vm1373, %v8136
        %8181 = vst.msk [vmem:[#allocation4 + $0x10] sm:$0xf] %vm1373, %v8138
        %8182 = vst.msk [vmem:[#allocation4 + $0x14] sm:$0xf] %vm1373, %v8140
        %8183 = vst.msk [vmem:[#allocation4 + $0x18] sm:$0xf] %vm1373, %v8142
        %8184 = vst.msk [vmem:[#allocation4 + $0x1c] sm:$0xf] %vm1373, %v8144
        %8185 = vst.msk [vmem:[#allocation4 + $0x20] sm:$0xf] %vm1373, %v8146
        %8186 = vst.msk [vmem:[#allocation4 + $0x24] sm:$0xf] %vm1373, %v8148
        %8187 = vst.msk [vmem:[#allocation4 + $0x28] sm:$0xf] %vm1373, %v8150
        %8188 = vst.msk [vmem:[#allocation4 + $0x2c] sm:$0xf] %vm1373, %v8152
        %8189 = vst.msk [vmem:[#allocation4 + $0x30] sm:$0xf] %vm1373, %v8154
        %8190 = vst.msk [vmem:[#allocation4 + $0x34] sm:$0xf] %vm1373, %v8156
        %8191 = vst.msk [vmem:[#allocation4 + $0x38] sm:$0xf] %vm1373, %v8158
        %8192 = vst.msk [vmem:[#allocation4 + $0x3c] sm:$0xf] %vm1373, %v8160
        %v8194 = vunpack.c.l.b16 %v7649
        %v8195 = vpack.c.b16 %v8194, %v8194
        %v8197 = vshrl.u32 %v8127, 16
        %v8199 = vrot.slane %v8197, 4
        %v8200 = vshll.u32 %v8127, 16
        %v8202 = vrot.slane %v8200, 5
        %v8203 = vor.u32 %v8199, %v8202
        %v8204 = vrot.slane %v8203, 4
        %v8206 = vshll.u32 %v8128, 16
        %v8208 = vrot.slane %v8206, 5
        %v8209 = vsel %vm486, %v8204, %v8208
        %v8210 = vshrl.u32 %v8128, 16
        %v8212 = vrot.slane %v8210, 4
        %v8213 = vor.u32 %v8212, %v8208
        %v8214 = vrot.slane %v8213, 4
        %v8216 = vshll.u32 %v8195, 16
        %v8218 = vrot.slane %v8216, 5
        %v8219 = vsel %vm486, %v8214, %v8218
        %8220 = vrot.lane.b32.xlu0 %v7785, 16
        %v8221 = vpop.permute.xlu0 %8220
        %8222 = vrot.lane.b32.xlu0 %v7795, 16
        %v8223 = vpop.permute.xlu0 %8222
        %8224 = vrot.lane.b32.xlu0 %v7809, 16
        %v8225 = vpop.permute.xlu0 %8224
        %8226 = vrot.lane.b32.xlu0 %v7819, 16
        %v8227 = vpop.permute.xlu0 %8226
        %8228 = vrot.lane.b32.xlu0 %v7833, 16
        %v8229 = vpop.permute.xlu0 %8228
        %8230 = vrot.lane.b32.xlu0 %v7843, 16
        %v8231 = vpop.permute.xlu0 %8230
        %8232 = vrot.lane.b32.xlu0 %v7857, 16
        %v8233 = vpop.permute.xlu0 %8232
        %8234 = vrot.lane.b32.xlu0 %v7867, 16
        %v8235 = vpop.permute.xlu0 %8234
        %8236 = vrot.lane.b32.xlu0 %v7881, 16
        %v8237 = vpop.permute.xlu0 %8236
        %8238 = vrot.lane.b32.xlu0 %v7891, 16
        %v8239 = vpop.permute.xlu0 %8238
        %8240 = vrot.lane.b32.xlu0 %v7905, 16
        %v8241 = vpop.permute.xlu0 %8240
        %8242 = vrot.lane.b32.xlu0 %v7915, 16
        %v8243 = vpop.permute.xlu0 %8242
        %8244 = vrot.lane.b32.xlu0 %v7929, 16
        %v8245 = vpop.permute.xlu0 %8244
        %8246 = vrot.lane.b32.xlu0 %v7939, 16
        %v8247 = vpop.permute.xlu0 %8246
        %8248 = vrot.lane.b32.xlu0 %v8209, 16
        %v8249 = vpop.permute.xlu0 %8248
        %8250 = vrot.lane.b32.xlu0 %v8219, 16
        %v8251 = vpop.permute.xlu0 %8250
        %8268 = vst.msk [vmem:[#allocation4] sm:$0xf] %vm1548, %v8221
        %8269 = vst.msk [vmem:[#allocation4 + $0x4] sm:$0xf] %vm1548, %v8223
        %8270 = vst.msk [vmem:[#allocation4 + $0x8] sm:$0xf] %vm1548, %v8225
        %8271 = vst.msk [vmem:[#allocation4 + $0xc] sm:$0xf] %vm1548, %v8227
        %8272 = vst.msk [vmem:[#allocation4 + $0x10] sm:$0xf] %vm1548, %v8229
        %8273 = vst.msk [vmem:[#allocation4 + $0x14] sm:$0xf] %vm1548, %v8231
        %8274 = vst.msk [vmem:[#allocation4 + $0x18] sm:$0xf] %vm1548, %v8233
        %8275 = vst.msk [vmem:[#allocation4 + $0x1c] sm:$0xf] %vm1548, %v8235
        %8276 = vst.msk [vmem:[#allocation4 + $0x20] sm:$0xf] %vm1548, %v8237
        %8277 = vst.msk [vmem:[#allocation4 + $0x24] sm:$0xf] %vm1548, %v8239
        %8278 = vst.msk [vmem:[#allocation4 + $0x28] sm:$0xf] %vm1548, %v8241
        %8279 = vst.msk [vmem:[#allocation4 + $0x2c] sm:$0xf] %vm1548, %v8243
        %8280 = vst.msk [vmem:[#allocation4 + $0x30] sm:$0xf] %vm1548, %v8245
        %8281 = vst.msk [vmem:[#allocation4 + $0x34] sm:$0xf] %vm1548, %v8247
        %8282 = vst.msk [vmem:[#allocation4 + $0x38] sm:$0xf] %vm1548, %v8249
        %8283 = vst.msk [vmem:[#allocation4 + $0x3c] sm:$0xf] %vm1548, %v8251
        %v8284 = vrot.slane %v8127, 5
        %v8285 = vrot.slane %v8284, 4
        %v8286 = vrot.slane %v8128, 5
        %v8287 = vsel %vm1019, %v8285, %v8286
        %v8288 = vrot.slane %v8286, 4
        %v8289 = vrot.slane %v8195, 5
        %v8290 = vsel %vm1019, %v8288, %v8289
        %8291 = vrot.lane.b32.xlu0 %v8014, 20
        %v8292 = vpop.permute.xlu0 %8291
        %8293 = vrot.lane.b32.xlu0 %v8017, 20
        %v8294 = vpop.permute.xlu0 %8293
        %8295 = vrot.lane.b32.xlu0 %v8021, 20
        %v8296 = vpop.permute.xlu0 %8295
        %8297 = vrot.lane.b32.xlu0 %v8024, 20
        %v8298 = vpop.permute.xlu0 %8297
        %8299 = vrot.lane.b32.xlu0 %v8028, 20
        %v8300 = vpop.permute.xlu0 %8299
        %8301 = vrot.lane.b32.xlu0 %v8031, 20
        %v8302 = vpop.permute.xlu0 %8301
        %8303 = vrot.lane.b32.xlu0 %v8035, 20
        %v8304 = vpop.permute.xlu0 %8303
        %8305 = vrot.lane.b32.xlu0 %v8038, 20
        %v8306 = vpop.permute.xlu0 %8305
        %8307 = vrot.lane.b32.xlu0 %v8042, 20
        %v8308 = vpop.permute.xlu0 %8307
        %8309 = vrot.lane.b32.xlu0 %v8045, 20
        %v8310 = vpop.permute.xlu0 %8309
        %8311 = vrot.lane.b32.xlu0 %v8049, 20
        %v8312 = vpop.permute.xlu0 %8311
        %8313 = vrot.lane.b32.xlu0 %v8052, 20
        %v8314 = vpop.permute.xlu0 %8313
        %8315 = vrot.lane.b32.xlu0 %v8056, 20
        %v8316 = vpop.permute.xlu0 %8315
        %8317 = vrot.lane.b32.xlu0 %v8059, 20
        %v8318 = vpop.permute.xlu0 %8317
        %8319 = vrot.lane.b32.xlu0 %v8287, 20
        %v8320 = vpop.permute.xlu0 %8319
        %8321 = vrot.lane.b32.xlu0 %v8290, 20
        %v8322 = vpop.permute.xlu0 %8321
        %8339 = vst.msk [vmem:[#allocation4] sm:$0xf] %vm1702, %v8292
        %8340 = vst.msk [vmem:[#allocation4 + $0x4] sm:$0xf] %vm1702, %v8294
        %8341 = vst.msk [vmem:[#allocation4 + $0x8] sm:$0xf] %vm1702, %v8296
        %8342 = vst.msk [vmem:[#allocation4 + $0xc] sm:$0xf] %vm1702, %v8298
        %8343 = vst.msk [vmem:[#allocation4 + $0x10] sm:$0xf] %vm1702, %v8300
        %8344 = vst.msk [vmem:[#allocation4 + $0x14] sm:$0xf] %vm1702, %v8302
        %8345 = vst.msk [vmem:[#allocation4 + $0x18] sm:$0xf] %vm1702, %v8304
        %8346 = vst.msk [vmem:[#allocation4 + $0x1c] sm:$0xf] %vm1702, %v8306
        %8347 = vst.msk [vmem:[#allocation4 + $0x20] sm:$0xf] %vm1702, %v8308
        %8348 = vst.msk [vmem:[#allocation4 + $0x24] sm:$0xf] %vm1702, %v8310
        %8349 = vst.msk [vmem:[#allocation4 + $0x28] sm:$0xf] %vm1702, %v8312
        %8350 = vst.msk [vmem:[#allocation4 + $0x2c] sm:$0xf] %vm1702, %v8314
        %8351 = vst.msk [vmem:[#allocation4 + $0x30] sm:$0xf] %vm1702, %v8316
        %8352 = vst.msk [vmem:[#allocation4 + $0x34] sm:$0xf] %vm1702, %v8318
        %8353 = vst.msk [vmem:[#allocation4 + $0x38] sm:$0xf] %vm1702, %v8320
        %8354 = vst.msk [vmem:[#allocation4 + $0x3c] sm:$0xf] %vm1702, %v8322
        %v8356 = vunpack.c.l.b16 %v7650
        %v8357 = vunpack.c.h.b16 %v7650
        %v8358 = vpack.c.b16 %v8356, %v8356
        %v8359 = vpack.c.b16 %v8357, %v8357
        %8360 = vrot.lane.b32.xlu0 %v7680, 24
        %v8361 = vpop.permute.xlu0 %8360
        %8362 = vrot.lane.b32.xlu0 %v7681, 24
        %v8363 = vpop.permute.xlu0 %8362
        %8364 = vrot.lane.b32.xlu0 %v7682, 24
        %v8365 = vpop.permute.xlu0 %8364
        %8366 = vrot.lane.b32.xlu0 %v7683, 24
        %v8367 = vpop.permute.xlu0 %8366
        %8368 = vrot.lane.b32.xlu0 %v7684, 24
        %v8369 = vpop.permute.xlu0 %8368
        %8370 = vrot.lane.b32.xlu0 %v7685, 24
        %v8371 = vpop.permute.xlu0 %8370
        %8372 = vrot.lane.b32.xlu0 %v7686, 24
        %v8373 = vpop.permute.xlu0 %8372
        %8374 = vrot.lane.b32.xlu0 %v7687, 24
        %v8375 = vpop.permute.xlu0 %8374
        %8376 = vrot.lane.b32.xlu0 %v7688, 24
        %v8377 = vpop.permute.xlu0 %8376
        %8378 = vrot.lane.b32.xlu0 %v7689, 24
        %v8379 = vpop.permute.xlu0 %8378
        %8380 = vrot.lane.b32.xlu0 %v7690, 24
        %v8381 = vpop.permute.xlu0 %8380
        %8382 = vrot.lane.b32.xlu0 %v7691, 24
        %v8383 = vpop.permute.xlu0 %8382
        %8384 = vrot.lane.b32.xlu0 %v8127, 24
        %v8385 = vpop.permute.xlu0 %8384
        %8386 = vrot.lane.b32.xlu0 %v8128, 24
        %v8387 = vpop.permute.xlu0 %8386
        %8388 = vrot.lane.b32.xlu0 %v8358, 24
        %v8389 = vpop.permute.xlu0 %8388
        %8390 = vrot.lane.b32.xlu0 %v8359, 24
        %v8391 = vpop.permute.xlu0 %8390
        %8408 = vst.msk [vmem:[#allocation4] sm:$0xf] %vm1851, %v8361
        %8409 = vst.msk [vmem:[#allocation4 + $0x4] sm:$0xf] %vm1851, %v8363
        %8410 = vst.msk [vmem:[#allocation4 + $0x8] sm:$0xf] %vm1851, %v8365
        %8411 = vst.msk [vmem:[#allocation4 + $0xc] sm:$0xf] %vm1851, %v8367
        %8412 = vst.msk [vmem:[#allocation4 + $0x10] sm:$0xf] %vm1851, %v8369
        %8413 = vst.msk [vmem:[#allocation4 + $0x14] sm:$0xf] %vm1851, %v8371
        %8414 = vst.msk [vmem:[#allocation4 + $0x18] sm:$0xf] %vm1851, %v8373
        %8415 = vst.msk [vmem:[#allocation4 + $0x1c] sm:$0xf] %vm1851, %v8375
        %8416 = vst.msk [vmem:[#allocation4 + $0x20] sm:$0xf] %vm1851, %v8377
        %8417 = vst.msk [vmem:[#allocation4 + $0x24] sm:$0xf] %vm1851, %v8379
        %8418 = vst.msk [vmem:[#allocation4 + $0x28] sm:$0xf] %vm1851, %v8381
        %8419 = vst.msk [vmem:[#allocation4 + $0x2c] sm:$0xf] %vm1851, %v8383
        %8420 = vst.msk [vmem:[#allocation4 + $0x30] sm:$0xf] %vm1851, %v8385
        %8421 = vst.msk [vmem:[#allocation4 + $0x34] sm:$0xf] %vm1851, %v8387
        %8422 = vst.msk [vmem:[#allocation4 + $0x38] sm:$0xf] %vm1851, %v8389
        %8423 = vst.msk [vmem:[#allocation4 + $0x3c] sm:$0xf] %vm1851, %v8391
        %v8425 = vunpack.c.l.b16 %v7651
        %v8426 = vpack.c.b16 %v8425, %v8425
        %v8428 = vshrl.u32 %v8358, 16
        %v8430 = vrot.slane %v8428, 4
        %v8431 = vshll.u32 %v8358, 16
        %v8433 = vrot.slane %v8431, 5
        %v8434 = vor.u32 %v8430, %v8433
        %v8435 = vrot.slane %v8434, 4
        %v8437 = vshll.u32 %v8359, 16
        %v8439 = vrot.slane %v8437, 5
        %v8440 = vsel %vm486, %v8435, %v8439
        %v8441 = vshrl.u32 %v8359, 16
        %v8443 = vrot.slane %v8441, 4
        %v8444 = vor.u32 %v8443, %v8439
        %v8445 = vrot.slane %v8444, 4
        %v8447 = vshll.u32 %v8426, 16
        %v8449 = vrot.slane %v8447, 5
        %v8450 = vsel %vm486, %v8445, %v8449
        %8451 = vrot.lane.b32.xlu0 %v7809, 28
        %v8452 = vpop.permute.xlu0 %8451
        %8453 = vrot.lane.b32.xlu0 %v7819, 28
        %v8454 = vpop.permute.xlu0 %8453
        %8455 = vrot.lane.b32.xlu0 %v7833, 28
        %v8456 = vpop.permute.xlu0 %8455
        %8457 = vrot.lane.b32.xlu0 %v7843, 28
        %v8458 = vpop.permute.xlu0 %8457
        %8459 = vrot.lane.b32.xlu0 %v7857, 28
        %v8460 = vpop.permute.xlu0 %8459
        %8461 = vrot.lane.b32.xlu0 %v7867, 28
        %v8462 = vpop.permute.xlu0 %8461
        %8463 = vrot.lane.b32.xlu0 %v7881, 28
        %v8464 = vpop.permute.xlu0 %8463
        %8465 = vrot.lane.b32.xlu0 %v7891, 28
        %v8466 = vpop.permute.xlu0 %8465
        %8467 = vrot.lane.b32.xlu0 %v7905, 28
        %v8468 = vpop.permute.xlu0 %8467
        %8469 = vrot.lane.b32.xlu0 %v7915, 28
        %v8470 = vpop.permute.xlu0 %8469
        %8471 = vrot.lane.b32.xlu0 %v7929, 28
        %v8472 = vpop.permute.xlu0 %8471
        %8473 = vrot.lane.b32.xlu0 %v7939, 28
        %v8474 = vpop.permute.xlu0 %8473
        %8475 = vrot.lane.b32.xlu0 %v8209, 28
        %v8476 = vpop.permute.xlu0 %8475
        %8477 = vrot.lane.b32.xlu0 %v8219, 28
        %v8478 = vpop.permute.xlu0 %8477
        %8479 = vrot.lane.b32.xlu0 %v8440, 28
        %v8480 = vpop.permute.xlu0 %8479
        %8481 = vrot.lane.b32.xlu0 %v8450, 28
        %v8482 = vpop.permute.xlu0 %8481
        %8499 = vst.msk [vmem:[#allocation4] sm:$0xf] %vm2026, %v8452
        %8500 = vst.msk [vmem:[#allocation4 + $0x4] sm:$0xf] %vm2026, %v8454
        %8501 = vst.msk [vmem:[#allocation4 + $0x8] sm:$0xf] %vm2026, %v8456
        %8502 = vst.msk [vmem:[#allocation4 + $0xc] sm:$0xf] %vm2026, %v8458
        %8503 = vst.msk [vmem:[#allocation4 + $0x10] sm:$0xf] %vm2026, %v8460
        %8504 = vst.msk [vmem:[#allocation4 + $0x14] sm:$0xf] %vm2026, %v8462
        %8505 = vst.msk [vmem:[#allocation4 + $0x18] sm:$0xf] %vm2026, %v8464
        %8506 = vst.msk [vmem:[#allocation4 + $0x1c] sm:$0xf] %vm2026, %v8466
        %8507 = vst.msk [vmem:[#allocation4 + $0x20] sm:$0xf] %vm2026, %v8468
        %8508 = vst.msk [vmem:[#allocation4 + $0x24] sm:$0xf] %vm2026, %v8470
        %8509 = vst.msk [vmem:[#allocation4 + $0x28] sm:$0xf] %vm2026, %v8472
        %8510 = vst.msk [vmem:[#allocation4 + $0x2c] sm:$0xf] %vm2026, %v8474
        %8511 = vst.msk [vmem:[#allocation4 + $0x30] sm:$0xf] %vm2026, %v8476
        %8512 = vst.msk [vmem:[#allocation4 + $0x34] sm:$0xf] %vm2026, %v8478
        %8513 = vst.msk [vmem:[#allocation4 + $0x38] sm:$0xf] %vm2026, %v8480
        %8514 = vst.msk [vmem:[#allocation4 + $0x3c] sm:$0xf] %vm2026, %v8482
        %v8515 = vrot.slane %v8358, 5
        %v8516 = vrot.slane %v8515, 4
        %v8517 = vrot.slane %v8359, 5
        %v8518 = vsel %vm1019, %v8516, %v8517
        %v8519 = vrot.slane %v8517, 4
        %v8520 = vrot.slane %v8426, 5
        %v8521 = vsel %vm1019, %v8519, %v8520
        %8522 = vrot.lane.b32.xlu0 %v8021, 32
        %v8523 = vpop.permute.xlu0 %8522
        %8524 = vrot.lane.b32.xlu0 %v8024, 32
        %v8525 = vpop.permute.xlu0 %8524
        %8526 = vrot.lane.b32.xlu0 %v8028, 32
        %v8527 = vpop.permute.xlu0 %8526
        %8528 = vrot.lane.b32.xlu0 %v8031, 32
        %v8529 = vpop.permute.xlu0 %8528
        %8530 = vrot.lane.b32.xlu0 %v8035, 32
        %v8531 = vpop.permute.xlu0 %8530
        %8532 = vrot.lane.b32.xlu0 %v8038, 32
        %v8533 = vpop.permute.xlu0 %8532
        %8534 = vrot.lane.b32.xlu0 %v8042, 32
        %v8535 = vpop.permute.xlu0 %8534
        %8536 = vrot.lane.b32.xlu0 %v8045, 32
        %v8537 = vpop.permute.xlu0 %8536
        %8538 = vrot.lane.b32.xlu0 %v8049, 32
        %v8539 = vpop.permute.xlu0 %8538
        %8540 = vrot.lane.b32.xlu0 %v8052, 32
        %v8541 = vpop.permute.xlu0 %8540
        %8542 = vrot.lane.b32.xlu0 %v8056, 32
        %v8543 = vpop.permute.xlu0 %8542
        %8544 = vrot.lane.b32.xlu0 %v8059, 32
        %v8545 = vpop.permute.xlu0 %8544
        %8546 = vrot.lane.b32.xlu0 %v8287, 32
        %v8547 = vpop.permute.xlu0 %8546
        %8548 = vrot.lane.b32.xlu0 %v8290, 32
        %v8549 = vpop.permute.xlu0 %8548
        %8550 = vrot.lane.b32.xlu0 %v8518, 32
        %v8551 = vpop.permute.xlu0 %8550
        %8552 = vrot.lane.b32.xlu0 %v8521, 32
        %v8553 = vpop.permute.xlu0 %8552
        %8570 = vst.msk [vmem:[#allocation4] sm:$0xf] %vm2180, %v8523
        %8571 = vst.msk [vmem:[#allocation4 + $0x4] sm:$0xf] %vm2180, %v8525
        %8572 = vst.msk [vmem:[#allocation4 + $0x8] sm:$0xf] %vm2180, %v8527
        %8573 = vst.msk [vmem:[#allocation4 + $0xc] sm:$0xf] %vm2180, %v8529
        %8574 = vst.msk [vmem:[#allocation4 + $0x10] sm:$0xf] %vm2180, %v8531
        %8575 = vst.msk [vmem:[#allocation4 + $0x14] sm:$0xf] %vm2180, %v8533
        %8576 = vst.msk [vmem:[#allocation4 + $0x18] sm:$0xf] %vm2180, %v8535
        %8577 = vst.msk [vmem:[#allocation4 + $0x1c] sm:$0xf] %vm2180, %v8537
        %8578 = vst.msk [vmem:[#allocation4 + $0x20] sm:$0xf] %vm2180, %v8539
        %8579 = vst.msk [vmem:[#allocation4 + $0x24] sm:$0xf] %vm2180, %v8541
        %8580 = vst.msk [vmem:[#allocation4 + $0x28] sm:$0xf] %vm2180, %v8543
        %8581 = vst.msk [vmem:[#allocation4 + $0x2c] sm:$0xf] %vm2180, %v8545
        %8582 = vst.msk [vmem:[#allocation4 + $0x30] sm:$0xf] %vm2180, %v8547
        %8583 = vst.msk [vmem:[#allocation4 + $0x34] sm:$0xf] %vm2180, %v8549
        %8584 = vst.msk [vmem:[#allocation4 + $0x38] sm:$0xf] %vm2180, %v8551
        %8585 = vst.msk [vmem:[#allocation4 + $0x3c] sm:$0xf] %vm2180, %v8553
        %v8586 = vld [vmem:[#allocation4] sm:$0xf]
        %v8587 = vld [vmem:[#allocation4 + $0x4] sm:$0xf]
        %v8588 = vld [vmem:[#allocation4 + $0x8] sm:$0xf]
        %v8589 = vld [vmem:[#allocation4 + $0xc] sm:$0xf]
        %v8590 = vld [vmem:[#allocation4 + $0x10] sm:$0xf]
        %v8591 = vld [vmem:[#allocation4 + $0x14] sm:$0xf]
        %v8592 = vld [vmem:[#allocation4 + $0x18] sm:$0xf]
        %v8593 = vld [vmem:[#allocation4 + $0x1c] sm:$0xf]
        %v8594 = vld [vmem:[#allocation4 + $0x20] sm:$0xf]
        %v8595 = vld [vmem:[#allocation4 + $0x24] sm:$0xf]
        %v8596 = vld [vmem:[#allocation4 + $0x28] sm:$0xf]
        %v8597 = vld [vmem:[#allocation4 + $0x2c] sm:$0xf]
        %v8598 = vld [vmem:[#allocation4 + $0x30] sm:$0xf]
        %v8599 = vld [vmem:[#allocation4 + $0x34] sm:$0xf]
        %v8600 = vld [vmem:[#allocation4 + $0x38] sm:$0xf]
        %v8601 = vld [vmem:[#allocation4 + $0x3c] sm:$0xf]
        %v8602 = vld [vmem:[%s5] sm:$0xf]
        %v8603 = vld [vmem:[%s5 + $0x4] sm:$0xf]
        %v8604 = vld [vmem:[%s5 + $0x8] sm:$0xf]
        %v8605 = vld [vmem:[%s5 + $0xc] sm:$0xf]
        %v8606 = vld [vmem:[%s5 + $0x10] sm:$0x3]
        %v8607 = vld [vmem:[%s6] sm:$0x1]
        %v8609 = vlaneseq
        %v8610 = vshrl.u32 %v8609, 7
        %v8611 = vsub.s32 0, %v8610
        %v8612 = vrot.slane %v8607, %v8611
        %v8630 = vunpack.c.l.b16 %v8586
        %v8631 = vunpack.c.l.b16 %v8587
        %v8632 = vunpack.c.l.b16 %v8588
        %v8633 = vunpack.c.l.b16 %v8589
        %v8634 = vunpack.c.l.b16 %v8590
        %v8635 = vunpack.c.l.b16 %v8591
        %v8636 = vunpack.c.l.b16 %v8592
        %v8637 = vunpack.c.l.b16 %v8593
        %v8638 = vunpack.c.l.b16 %v8594
        %v8639 = vunpack.c.l.b16 %v8595
        %v8640 = vunpack.c.l.b16 %v8596
        %v8641 = vunpack.c.l.b16 %v8597
        %v8642 = vunpack.c.l.b16 %v8598
        %v8643 = vunpack.c.l.b16 %v8599
        %v8644 = vunpack.c.l.b16 %v8600
        %v8645 = vunpack.c.l.b16 %v8601
        %v8646 = vpack.c.b16 %v8631, %v8630
        %v8647 = vpack.c.b16 %v8633, %v8632
        %v8648 = vpack.c.b16 %v8635, %v8634
        %v8649 = vpack.c.b16 %v8637, %v8636
        %v8650 = vpack.c.b16 %v8639, %v8638
        %v8651 = vpack.c.b16 %v8641, %v8640
        %v8652 = vpack.c.b16 %v8643, %v8642
        %v8653 = vpack.c.b16 %v8645, %v8644
        %v8659 = vunpack.c.l.b16 %v8602
        %v8660 = vunpack.c.l.b16 %v8603
        %v8661 = vunpack.c.l.b16 %v8604
        %v8662 = vunpack.c.l.b16 %v8605
        %v8663 = vunpack.c.l.b16 %v8606
        %v8664 = vpack.c.b16 %v8660, %v8659
        %v8665 = vpack.c.b16 %v8662, %v8661
        %v8666 = vpack.c.b16 %v8663, %v8663
        %v8670 = vsel %vm2848, %v8646, 0
        %v8673 = vsel %vm2848, %v8647, 0
        %v8676 = vsel %vm2848, %v8648, 0
        %v8679 = vsel %vm2848, %v8649, 0
        %v8682 = vsel %vm2848, %v8650, 0
        %v8685 = vsel %vm2848, %v8651, 0
        %v8688 = vsel %vm2848, %v8652, 0
        %v8691 = vsel %vm2848, %v8653, 0
        %v8694 = vsel %vm2894, %v8666, 0
        %8696 = vmatprep.subr.bf16.mxu0 0
        %8697 = vmatpush1.bf16.msra.mxu0 0
        %8698 = vmatprep.subr.bf16.mxu0 0
        %8699 = vmatpush1.bf16.msra.mxu0 0
        %8700 = vmatprep.subr.bf16.mxu0 0
        %8701 = vmatpush1.bf16.msra.mxu0 0
        %8702 = vmatprep.subr.bf16.mxu0 0
        %8703 = vmatpush1.bf16.msra.mxu0 0
        %8704 = vmatprep.subr.bf16.mxu0 0
        %8705 = vmatpush1.bf16.msra.mxu0 0
        %8706 = vmatprep.subr.bf16.mxu0 0
        %8707 = vmatpush1.bf16.msra.mxu0 %v8694
        %8708 = vmatprep.subr.bf16.mxu0 0
        %8709 = vmatpush1.bf16.msra.mxu0 %v8665
        %8710 = vmatprep.subr.bf16.mxu0 0
        %8711 = vmatpush1.bf16.msra.mxu0 %v8664
        %8712 = vmatprep.subr.bf16.mxu0 0
        %8713 = vmatpush2.bf16.msra.mxu0 0
        %8714 = vmatprep.subr.bf16.mxu0 0
        %8715 = vmatpush2.bf16.msra.mxu0 0
        %8716 = vmatprep.subr.bf16.mxu0 0
        %8717 = vmatpush2.bf16.msra.mxu0 0
        %8718 = vmatprep.subr.bf16.mxu0 0
        %8719 = vmatpush2.bf16.msra.mxu0 0
        %8720 = vmatprep.subr.bf16.mxu0 0
        %8721 = vmatpush2.bf16.msra.mxu0 0
        %8722 = vmatprep.subr.bf16.mxu0 0
        %8723 = vmatpush2.bf16.msra.mxu0 0
        %8724 = vmatprep.subr.bf16.mxu0 0
        %8725 = vmatpush2.bf16.msra.mxu0 0
        %8726 = vmatprep.subr.bf16.mxu0 0
        %8727 = vmatpush2.bf16.msra.mxu0 0
        %8728 = vmatprep.mubr.bf16.mxu0 0
        %8729 = vmatmul.mubr.bf16.gmra.mxu0 %v8670
        %v8730 = vpop.f32.mrf.mxu0
        %v8731 = vadd.f32 %v8612, %v8730
        %v8732 = vpop.f32.mrf.mxu0
        %v8733 = vpop.f32.mrf.mxu0
        %v8734 = vadd.f32 %v8612, %v8733
        %v8735 = vpop.f32.mrf.mxu0
        %8736 = vmatprep.mubr.bf16.mxu0 0
        %8737 = vmatmul.mubr.bf16.gmra.mxu0 %v8673
        %v8738 = vpop.f32.mrf.mxu0
        %v8739 = vadd.f32 %v8612, %v8738
        %v8740 = vpop.f32.mrf.mxu0
        %v8741 = vpop.f32.mrf.mxu0
        %v8742 = vadd.f32 %v8612, %v8741
        %v8743 = vpop.f32.mrf.mxu0
        %8744 = vmatprep.mubr.bf16.mxu0 0
        %8745 = vmatmul.mubr.bf16.gmra.mxu0 %v8676
        %v8746 = vpop.f32.mrf.mxu0
        %v8747 = vadd.f32 %v8612, %v8746
        %v8748 = vpop.f32.mrf.mxu0
        %v8749 = vpop.f32.mrf.mxu0
        %v8750 = vadd.f32 %v8612, %v8749
        %v8751 = vpop.f32.mrf.mxu0
        %8752 = vmatprep.mubr.bf16.mxu0 0
        %8753 = vmatmul.mubr.bf16.gmra.mxu0 %v8679
        %v8754 = vpop.f32.mrf.mxu0
        %v8755 = vadd.f32 %v8612, %v8754
        %v8756 = vpop.f32.mrf.mxu0
        %v8757 = vpop.f32.mrf.mxu0
        %v8758 = vadd.f32 %v8612, %v8757
        %v8759 = vpop.f32.mrf.mxu0
        %8760 = vmatprep.mubr.bf16.mxu0 0
        %8761 = vmatmul.mubr.bf16.gmra.mxu0 %v8682
        %v8762 = vpop.f32.mrf.mxu0
        %v8763 = vadd.f32 %v8612, %v8762
        %v8764 = vpop.f32.mrf.mxu0
        %v8765 = vpop.f32.mrf.mxu0
        %v8766 = vadd.f32 %v8612, %v8765
        %v8767 = vpop.f32.mrf.mxu0
        %8768 = vmatprep.mubr.bf16.mxu0 0
        %8769 = vmatmul.mubr.bf16.gmra.mxu0 %v8685
        %v8770 = vpop.f32.mrf.mxu0
        %v8771 = vadd.f32 %v8612, %v8770
        %v8772 = vpop.f32.mrf.mxu0
        %v8773 = vpop.f32.mrf.mxu0
        %v8774 = vadd.f32 %v8612, %v8773
        %v8775 = vpop.f32.mrf.mxu0
        %8776 = vmatprep.mubr.bf16.mxu0 0
        %8777 = vmatmul.mubr.bf16.gmra.mxu0 %v8688
        %v8778 = vpop.f32.mrf.mxu0
        %v8779 = vadd.f32 %v8612, %v8778
        %v8780 = vpop.f32.mrf.mxu0
        %v8781 = vpop.f32.mrf.mxu0
        %v8782 = vadd.f32 %v8612, %v8781
        %v8783 = vpop.f32.mrf.mxu0
        %8784 = vmatprep.mubr.bf16.mxu0 0
        %8785 = vmatmul.mubr.bf16.gmra.mxu0 %v8691
        %v8786 = vpop.f32.mrf.mxu0
        %v8787 = vadd.f32 %v8612, %v8786
        %v8788 = vpop.f32.mrf.mxu0
        %v8789 = vpop.f32.mrf.mxu0
        %v8790 = vadd.f32 %v8612, %v8789
        %v8791 = vpop.f32.mrf.mxu0
        %8792 = vdwg.mxu0
        %vm8793 = vcmp.ge.f32.partialorder %v8731, 0.0
        %vm8794 = vcmp.ge.f32.partialorder %v8734, 0.0
        %vm8795 = vcmp.ge.f32.partialorder %v8739, 0.0
        %vm8796 = vcmp.ge.f32.partialorder %v8742, 0.0
        %vm8797 = vcmp.ge.f32.partialorder %v8747, 0.0
        %vm8798 = vcmp.ge.f32.partialorder %v8750, 0.0
        %vm8799 = vcmp.ge.f32.partialorder %v8755, 0.0
        %vm8800 = vcmp.ge.f32.partialorder %v8758, 0.0
        %vm8801 = vcmp.ge.f32.partialorder %v8763, 0.0
        %vm8802 = vcmp.ge.f32.partialorder %v8766, 0.0
        %vm8803 = vcmp.ge.f32.partialorder %v8771, 0.0
        %vm8804 = vcmp.ge.f32.partialorder %v8774, 0.0
        %vm8805 = vcmp.ge.f32.partialorder %v8779, 0.0
        %vm8806 = vcmp.ge.f32.partialorder %v8782, 0.0
        %vm8807 = vcmp.ge.f32.partialorder %v8787, 0.0
        %vm8808 = vcmp.ge.f32.partialorder %v8790, 0.0
        %v8809 = vmul.f32 %v8731, 0.1
        %v8810 = vmul.f32 %v8734, 0.1
        %v8811 = vmul.f32 %v8739, 0.1
        %v8812 = vmul.f32 %v8742, 0.1
        %v8813 = vmul.f32 %v8747, 0.1
        %v8814 = vmul.f32 %v8750, 0.1
        %v8815 = vmul.f32 %v8755, 0.1
        %v8816 = vmul.f32 %v8758, 0.1
        %v8817 = vmul.f32 %v8763, 0.1
        %v8818 = vmul.f32 %v8766, 0.1
        %v8819 = vmul.f32 %v8771, 0.1
        %v8820 = vmul.f32 %v8774, 0.1
        %v8821 = vmul.f32 %v8779, 0.1
        %v8822 = vmul.f32 %v8782, 0.1
        %v8823 = vmul.f32 %v8787, 0.1
        %v8824 = vmul.f32 %v8790, 0.1
        %v8825 = vsel %vm8793, %v8731, %v8809
        %v8826 = vsel %vm8794, %v8734, %v8810
        %v8827 = vsel %vm8795, %v8739, %v8811
        %v8828 = vsel %vm8796, %v8742, %v8812
        %v8829 = vsel %vm8797, %v8747, %v8813
        %v8830 = vsel %vm8798, %v8750, %v8814
        %v8831 = vsel %vm8799, %v8755, %v8815
        %v8832 = vsel %vm8800, %v8758, %v8816
        %v8833 = vsel %vm8801, %v8763, %v8817
        %v8834 = vsel %vm8802, %v8766, %v8818
        %v8835 = vsel %vm8803, %v8771, %v8819
        %v8836 = vsel %vm8804, %v8774, %v8820
        %v8837 = vsel %vm8805, %v8779, %v8821
        %v8838 = vsel %vm8806, %v8782, %v8822
        %v8839 = vsel %vm8807, %v8787, %v8823
        %v8840 = vsel %vm8808, %v8790, %v8824
        %vm8865 = vcmask 1046528
        %v8866 = vrot.slane %v7605, 1
        %v8867 = vrot.slane %v7606, 1
        %v8868 = vsel %vm8865, %v8866, %v8867
        %v8869 = vrot.slane %v7607, 1
        %v8870 = vsel %vm8865, %v8867, %v8869
        %v8871 = vrot.slane %v7608, 1
        %v8872 = vrot.slane %v7609, 1
        %v8873 = vsel %vm8865, %v8871, %v8872
        %v8874 = vrot.slane %v7610, 1
        %v8875 = vsel %vm8865, %v8872, %v8874
        %v8876 = vrot.slane %v7611, 1
        %v8877 = vrot.slane %v7612, 1
        %v8878 = vsel %vm8865, %v8876, %v8877
        %v8879 = vrot.slane %v7613, 1
        %v8880 = vsel %vm8865, %v8877, %v8879
        %v8881 = vrot.slane %v7614, 1
        %v8882 = vrot.slane %v7615, 1
        %v8883 = vsel %vm8865, %v8881, %v8882
        %v8884 = vrot.slane %v7616, 1
        %v8885 = vsel %vm8865, %v8882, %v8884
        %v8886 = vrot.slane %v7617, 1
        %v8887 = vrot.slane %v7618, 1
        %v8888 = vsel %vm8865, %v8886, %v8887
        %v8889 = vrot.slane %v7619, 1
        %v8890 = vsel %vm8865, %v8887, %v8889
        %v8891 = vrot.slane %v7620, 1
        %v8892 = vrot.slane %v7621, 1
        %v8893 = vsel %vm8865, %v8891, %v8892
        %v8894 = vrot.slane %v7622, 1
        %v8895 = vsel %vm8865, %v8892, %v8894
        %v8896 = vrot.slane %v7623, 1
        %v8897 = vrot.slane %v7624, 1
        %v8898 = vsel %vm8865, %v8896, %v8897
        %v8899 = vrot.slane %v7625, 1
        %v8900 = vsel %vm8865, %v8897, %v8899
        %v8901 = vrot.slane %v7626, 1
        %v8902 = vrot.slane %v7627, 1
        %v8903 = vsel %vm8865, %v8901, %v8902
        %v8904 = vrot.slane %v7628, 1
        %v8905 = vsel %vm8865, %v8902, %v8904
        %v8922 = vpack.c.bf16 %v8826, %v8825
        %v8923 = vpack.c.bf16 %v8828, %v8827
        %v8924 = vpack.c.bf16 %v8830, %v8829
        %v8925 = vpack.c.bf16 %v8832, %v8831
        %v8926 = vpack.c.bf16 %v8834, %v8833
        %v8927 = vpack.c.bf16 %v8836, %v8835
        %v8928 = vpack.c.bf16 %v8838, %v8837
        %v8929 = vpack.c.bf16 %v8840, %v8839
        %v8930 = vld [vmem:[%s7] sm:$0x3]
        %v8931 = vpack.c.bf16 %v8870, %v8868
        %v8932 = vpack.c.bf16 %v8875, %v8873
        %v8933 = vpack.c.bf16 %v8880, %v8878
        %v8934 = vpack.c.bf16 %v8885, %v8883
        %v8935 = vpack.c.bf16 %v8890, %v8888
        %v8936 = vpack.c.bf16 %v8895, %v8893
        %v8937 = vpack.c.bf16 %v8900, %v8898
        %v8938 = vpack.c.bf16 %v8905, %v8903
        %v8939 = vld [vmem:[%s7] sm:$0xc]
        %v8941 = vunpack.c.l.b16 %v8939
        %v8942 = vpack.c.b16 %v8941, %v8941
        %v8943 = vrot.slane %v8942, 2
        %vm8944 = vcmask 31744
        %v8946 = vsel %vm8944, %v8931, 0
        %v8949 = vsel %vm8944, %v8932, 0
        %v8952 = vsel %vm8944, %v8933, 0
        %v8955 = vsel %vm8944, %v8934, 0
        %v8958 = vsel %vm8944, %v8935, 0
        %v8961 = vsel %vm8944, %v8936, 0
        %v8964 = vsel %vm8944, %v8937, 0
        %v8967 = vsel %vm8944, %v8938, 0
        %v8970 = vsel %vm2894, %v8943, 0
        %8972 = vmatprep.subr.bf16.mxu0 0
        %8973 = vmatpush1.bf16.msra.mxu0 0
        %8974 = vmatprep.subr.bf16.mxu0 0
        %8975 = vmatpush1.bf16.msra.mxu0 0
        %8976 = vmatprep.subr.bf16.mxu0 0
        %8977 = vmatpush1.bf16.msra.mxu0 0
        %8978 = vmatprep.subr.bf16.mxu0 0
        %8979 = vmatpush1.bf16.msra.mxu0 0
        %8980 = vmatprep.subr.bf16.mxu0 0
        %8981 = vmatpush1.bf16.msra.mxu0 0
        %8982 = vmatprep.subr.bf16.mxu0 0
        %8983 = vmatpush1.bf16.msra.mxu0 0
        %8984 = vmatprep.subr.bf16.mxu0 0
        %8985 = vmatpush1.bf16.msra.mxu0 0
        %8986 = vmatprep.subr.bf16.mxu0 0
        %8987 = vmatpush1.bf16.msra.mxu0 %v8970
        %8988 = vmatprep.subr.bf16.mxu0 0
        %8989 = vmatpush2.bf16.msra.mxu0 0
        %8990 = vmatprep.subr.bf16.mxu0 0
        %8991 = vmatpush2.bf16.msra.mxu0 0
        %8992 = vmatprep.subr.bf16.mxu0 0
        %8993 = vmatpush2.bf16.msra.mxu0 0
        %8994 = vmatprep.subr.bf16.mxu0 0
        %8995 = vmatpush2.bf16.msra.mxu0 0
        %8996 = vmatprep.subr.bf16.mxu0 0
        %8997 = vmatpush2.bf16.msra.mxu0 0
        %8998 = vmatprep.subr.bf16.mxu0 0
        %8999 = vmatpush2.bf16.msra.mxu0 0
        %9000 = vmatprep.subr.bf16.mxu0 0
        %9001 = vmatpush2.bf16.msra.mxu0 0
        %9002 = vmatprep.subr.bf16.mxu0 0
        %9003 = vmatpush2.bf16.msra.mxu0 0
        %9004 = vmatprep.mubr.bf16.mxu0 0
        %9005 = vmatmul.mubr.bf16.gmra.mxu0 %v8946
        %v9006 = vpop.f32.mrf.mxu0
        %v9007 = vadd.f32 0.0, %v9006
        %v9008 = vpop.f32.mrf.mxu0
        %v9009 = vpop.f32.mrf.mxu0
        %v9010 = vadd.f32 0.0, %v9009
        %v9011 = vpop.f32.mrf.mxu0
        %9012 = vmatprep.mubr.bf16.mxu0 0
        %9013 = vmatmul.mubr.bf16.gmra.mxu0 %v8949
        %v9014 = vpop.f32.mrf.mxu0
        %v9015 = vadd.f32 0.0, %v9014
        %v9016 = vpop.f32.mrf.mxu0
        %v9017 = vpop.f32.mrf.mxu0
        %v9018 = vadd.f32 0.0, %v9017
        %v9019 = vpop.f32.mrf.mxu0
        %9020 = vmatprep.mubr.bf16.mxu0 0
        %9021 = vmatmul.mubr.bf16.gmra.mxu0 %v8952
        %v9022 = vpop.f32.mrf.mxu0
        %v9023 = vadd.f32 0.0, %v9022
        %v9024 = vpop.f32.mrf.mxu0
        %v9025 = vpop.f32.mrf.mxu0
        %v9026 = vadd.f32 0.0, %v9025
        %v9027 = vpop.f32.mrf.mxu0
        %9028 = vmatprep.mubr.bf16.mxu0 0
        %9029 = vmatmul.mubr.bf16.gmra.mxu0 %v8955
        %v9030 = vpop.f32.mrf.mxu0
        %v9031 = vadd.f32 0.0, %v9030
        %v9032 = vpop.f32.mrf.mxu0
        %v9033 = vpop.f32.mrf.mxu0
        %v9034 = vadd.f32 0.0, %v9033
        %v9035 = vpop.f32.mrf.mxu0
        %9036 = vmatprep.mubr.bf16.mxu0 0
        %9037 = vmatmul.mubr.bf16.gmra.mxu0 %v8958
        %v9038 = vpop.f32.mrf.mxu0
        %v9039 = vadd.f32 0.0, %v9038
        %v9040 = vpop.f32.mrf.mxu0
        %v9041 = vpop.f32.mrf.mxu0
        %v9042 = vadd.f32 0.0, %v9041
        %v9043 = vpop.f32.mrf.mxu0
        %9044 = vmatprep.mubr.bf16.mxu0 0
        %9045 = vmatmul.mubr.bf16.gmra.mxu0 %v8961
        %v9046 = vpop.f32.mrf.mxu0
        %v9047 = vadd.f32 0.0, %v9046
        %v9048 = vpop.f32.mrf.mxu0
        %v9049 = vpop.f32.mrf.mxu0
        %v9050 = vadd.f32 0.0, %v9049
        %v9051 = vpop.f32.mrf.mxu0
        %9052 = vmatprep.mubr.bf16.mxu0 0
        %9053 = vmatmul.mubr.bf16.gmra.mxu0 %v8964
        %v9054 = vpop.f32.mrf.mxu0
        %v9055 = vadd.f32 0.0, %v9054
        %v9056 = vpop.f32.mrf.mxu0
        %v9057 = vpop.f32.mrf.mxu0
        %v9058 = vadd.f32 0.0, %v9057
        %v9059 = vpop.f32.mrf.mxu0
        %9060 = vmatprep.mubr.bf16.mxu0 0
        %9061 = vmatmul.mubr.bf16.gmra.mxu0 %v8967
        %v9062 = vpop.f32.mrf.mxu0
        %v9063 = vadd.f32 0.0, %v9062
        %v9064 = vpop.f32.mrf.mxu0
        %v9065 = vpop.f32.mrf.mxu0
        %v9066 = vadd.f32 0.0, %v9065
        %v9067 = vpop.f32.mrf.mxu0
        %9068 = vdwg.mxu0
        %v9070 = vsel %vm8944, %v8922, 0
        %v9073 = vsel %vm8944, %v8923, 0
        %v9076 = vsel %vm8944, %v8924, 0
        %v9079 = vsel %vm8944, %v8925, 0
        %v9082 = vsel %vm8944, %v8926, 0
        %v9085 = vsel %vm8944, %v8927, 0
        %v9088 = vsel %vm8944, %v8928, 0
        %v9091 = vsel %vm8944, %v8929, 0
        %v9094 = vsel %vm2894, %v8930, 0
        %9096 = vmatprep.subr.bf16.mxu0 0
        %9097 = vmatpush1.bf16.msra.mxu0 0
        %9098 = vmatprep.subr.bf16.mxu0 0
        %9099 = vmatpush1.bf16.msra.mxu0 0
        %9100 = vmatprep.subr.bf16.mxu0 0
        %9101 = vmatpush1.bf16.msra.mxu0 0
        %9102 = vmatprep.subr.bf16.mxu0 0
        %9103 = vmatpush1.bf16.msra.mxu0 0
        %9104 = vmatprep.subr.bf16.mxu0 0
        %9105 = vmatpush1.bf16.msra.mxu0 0
        %9106 = vmatprep.subr.bf16.mxu0 0
        %9107 = vmatpush1.bf16.msra.mxu0 0
        %9108 = vmatprep.subr.bf16.mxu0 0
        %9109 = vmatpush1.bf16.msra.mxu0 0
        %9110 = vmatprep.subr.bf16.mxu0 0
        %9111 = vmatpush1.bf16.msra.mxu0 %v9094
        %9112 = vmatprep.subr.bf16.mxu0 0
        %9113 = vmatpush2.bf16.msra.mxu0 0
        %9114 = vmatprep.subr.bf16.mxu0 0
        %9115 = vmatpush2.bf16.msra.mxu0 0
        %9116 = vmatprep.subr.bf16.mxu0 0
        %9117 = vmatpush2.bf16.msra.mxu0 0
        %9118 = vmatprep.subr.bf16.mxu0 0
        %9119 = vmatpush2.bf16.msra.mxu0 0
        %9120 = vmatprep.subr.bf16.mxu0 0
        %9121 = vmatpush2.bf16.msra.mxu0 0
        %9122 = vmatprep.subr.bf16.mxu0 0
        %9123 = vmatpush2.bf16.msra.mxu0 0
        %9124 = vmatprep.subr.bf16.mxu0 0
        %9125 = vmatpush2.bf16.msra.mxu0 0
        %9126 = vmatprep.subr.bf16.mxu0 0
        %9127 = vmatpush2.bf16.msra.mxu0 0
        %9128 = vmatprep.mubr.bf16.mxu0 0
        %9129 = vmatmul.mubr.bf16.gmra.mxu0 %v9070
        %v9130 = vpop.f32.mrf.mxu0
        %v9131 = vadd.f32 %v9007, %v9130
        %v9132 = vpop.f32.mrf.mxu0
        %v9133 = vpop.f32.mrf.mxu0
        %v9134 = vadd.f32 %v9010, %v9133
        %v9135 = vpop.f32.mrf.mxu0
        %9136 = vmatprep.mubr.bf16.mxu0 0
        %9137 = vmatmul.mubr.bf16.gmra.mxu0 %v9073
        %v9138 = vpop.f32.mrf.mxu0
        %v9139 = vadd.f32 %v9015, %v9138
        %v9140 = vpop.f32.mrf.mxu0
        %v9141 = vpop.f32.mrf.mxu0
        %v9142 = vadd.f32 %v9018, %v9141
        %v9143 = vpop.f32.mrf.mxu0
        %9144 = vmatprep.mubr.bf16.mxu0 0
        %9145 = vmatmul.mubr.bf16.gmra.mxu0 %v9076
        %v9146 = vpop.f32.mrf.mxu0
        %v9147 = vadd.f32 %v9023, %v9146
        %v9148 = vpop.f32.mrf.mxu0
        %v9149 = vpop.f32.mrf.mxu0
        %v9150 = vadd.f32 %v9026, %v9149
        %v9151 = vpop.f32.mrf.mxu0
        %9152 = vmatprep.mubr.bf16.mxu0 0
        %9153 = vmatmul.mubr.bf16.gmra.mxu0 %v9079
        %v9154 = vpop.f32.mrf.mxu0
        %v9155 = vadd.f32 %v9031, %v9154
        %v9156 = vpop.f32.mrf.mxu0
        %v9157 = vpop.f32.mrf.mxu0
        %v9158 = vadd.f32 %v9034, %v9157
        %v9159 = vpop.f32.mrf.mxu0
        %9160 = vmatprep.mubr.bf16.mxu0 0
        %9161 = vmatmul.mubr.bf16.gmra.mxu0 %v9082
        %v9162 = vpop.f32.mrf.mxu0
        %v9163 = vadd.f32 %v9039, %v9162
        %v9164 = vpop.f32.mrf.mxu0
        %v9165 = vpop.f32.mrf.mxu0
        %v9166 = vadd.f32 %v9042, %v9165
        %v9167 = vpop.f32.mrf.mxu0
        %9168 = vmatprep.mubr.bf16.mxu0 0
        %9169 = vmatmul.mubr.bf16.gmra.mxu0 %v9085
        %v9170 = vpop.f32.mrf.mxu0
        %v9171 = vadd.f32 %v9047, %v9170
        %v9172 = vpop.f32.mrf.mxu0
        %v9173 = vpop.f32.mrf.mxu0
        %v9174 = vadd.f32 %v9050, %v9173
        %v9175 = vpop.f32.mrf.mxu0
        %9176 = vmatprep.mubr.bf16.mxu0 0
        %9177 = vmatmul.mubr.bf16.gmra.mxu0 %v9088
        %v9178 = vpop.f32.mrf.mxu0
        %v9179 = vadd.f32 %v9055, %v9178
        %v9180 = vpop.f32.mrf.mxu0
        %v9181 = vpop.f32.mrf.mxu0
        %v9182 = vadd.f32 %v9058, %v9181
        %v9183 = vpop.f32.mrf.mxu0
        %9184 = vmatprep.mubr.bf16.mxu0 0
        %9185 = vmatmul.mubr.bf16.gmra.mxu0 %v9091
        %v9186 = vpop.f32.mrf.mxu0
        %v9187 = vadd.f32 %v9063, %v9186
        %v9188 = vpop.f32.mrf.mxu0
        %v9189 = vpop.f32.mrf.mxu0
        %v9190 = vadd.f32 %v9066, %v9189
        %v9191 = vpop.f32.mrf.mxu0
        %9192 = vdwg.mxu0
        %v9193 = vld [vmem:[%s8] sm:$0x1]
        %v9195 = vlaneseq
        %v9196 = vshrl.u32 %v9195, 7
        %v9197 = vsub.s32 0, %v9196
        %v9198 = vrot.slane %v9193, %v9197
        %v9200 = vadd.f32 %v9131, %v9198
        %v9201 = vadd.f32 %v9134, %v9198
        %v9202 = vadd.f32 %v9139, %v9198
        %v9203 = vadd.f32 %v9142, %v9198
        %v9204 = vadd.f32 %v9147, %v9198
        %v9205 = vadd.f32 %v9150, %v9198
        %v9206 = vadd.f32 %v9155, %v9198
        %v9207 = vadd.f32 %v9158, %v9198
        %v9208 = vadd.f32 %v9163, %v9198
        %v9209 = vadd.f32 %v9166, %v9198
        %v9210 = vadd.f32 %v9171, %v9198
        %v9211 = vadd.f32 %v9174, %v9198
        %v9212 = vadd.f32 %v9179, %v9198
        %v9213 = vadd.f32 %v9182, %v9198
        %v9214 = vadd.f32 %v9187, %v9198
        %v9215 = vadd.f32 %v9190, %v9198
        %vm9216 = vcmp.ge.f32.partialorder %v9200, 0.0
        %vm9217 = vcmp.ge.f32.partialorder %v9201, 0.0
        %vm9218 = vcmp.ge.f32.partialorder %v9202, 0.0
        %vm9219 = vcmp.ge.f32.partialorder %v9203, 0.0
        %vm9220 = vcmp.ge.f32.partialorder %v9204, 0.0
        %vm9221 = vcmp.ge.f32.partialorder %v9205, 0.0
        %vm9222 = vcmp.ge.f32.partialorder %v9206, 0.0
        %vm9223 = vcmp.ge.f32.partialorder %v9207, 0.0
        %vm9224 = vcmp.ge.f32.partialorder %v9208, 0.0
        %vm9225 = vcmp.ge.f32.partialorder %v9209, 0.0
        %vm9226 = vcmp.ge.f32.partialorder %v9210, 0.0
        %vm9227 = vcmp.ge.f32.partialorder %v9211, 0.0
        %vm9228 = vcmp.ge.f32.partialorder %v9212, 0.0
        %vm9229 = vcmp.ge.f32.partialorder %v9213, 0.0
        %vm9230 = vcmp.ge.f32.partialorder %v9214, 0.0
        %vm9231 = vcmp.ge.f32.partialorder %v9215, 0.0
        %v9232 = vmul.f32 %v9200, 0.1
        %v9233 = vmul.f32 %v9201, 0.1
        %v9234 = vmul.f32 %v9202, 0.1
        %v9235 = vmul.f32 %v9203, 0.1
        %v9236 = vmul.f32 %v9204, 0.1
        %v9237 = vmul.f32 %v9205, 0.1
        %v9238 = vmul.f32 %v9206, 0.1
        %v9239 = vmul.f32 %v9207, 0.1
        %v9240 = vmul.f32 %v9208, 0.1
        %v9241 = vmul.f32 %v9209, 0.1
        %v9242 = vmul.f32 %v9210, 0.1
        %v9243 = vmul.f32 %v9211, 0.1
        %v9244 = vmul.f32 %v9212, 0.1
        %v9245 = vmul.f32 %v9213, 0.1
        %v9246 = vmul.f32 %v9214, 0.1
        %v9247 = vmul.f32 %v9215, 0.1
        %v9248 = vsel %vm9216, %v9200, %v9232
        %v9249 = vsel %vm9217, %v9201, %v9233
        %v9250 = vsel %vm9218, %v9202, %v9234
        %v9251 = vsel %vm9219, %v9203, %v9235
        %v9252 = vsel %vm9220, %v9204, %v9236
        %v9253 = vsel %vm9221, %v9205, %v9237
        %v9254 = vsel %vm9222, %v9206, %v9238
        %v9255 = vsel %vm9223, %v9207, %v9239
        %v9256 = vsel %vm9224, %v9208, %v9240
        %v9257 = vsel %vm9225, %v9209, %v9241
        %v9258 = vsel %vm9226, %v9210, %v9242
        %v9259 = vsel %vm9227, %v9211, %v9243
        %v9260 = vsel %vm9228, %v9212, %v9244
        %v9261 = vsel %vm9229, %v9213, %v9245
        %v9262 = vsel %vm9230, %v9214, %v9246
        %v9263 = vsel %vm9231, %v9215, %v9247
        %vm9264 = vcmask 64512
        %9265 = vst.msk [vmem:[%s397] sm:$0xff] %vm9264, %v9248
        %9266 = vst.msk [vmem:[%s397 + $0x8] sm:$0xff] %vm9264, %v9249
        %9267 = vst.msk [vmem:[%s397 + $0x10] sm:$0xff] %vm9264, %v9250
        %9268 = vst.msk [vmem:[%s397 + $0x18] sm:$0xff] %vm9264, %v9251
        %9269 = vst.msk [vmem:[%s397 + $0x20] sm:$0xff] %vm9264, %v9252
        %9270 = vst.msk [vmem:[%s397 + $0x28] sm:$0xff] %vm9264, %v9253
        %9271 = vst.msk [vmem:[%s397 + $0x30] sm:$0xff] %vm9264, %v9254
        %9272 = vst.msk [vmem:[%s397 + $0x38] sm:$0xff] %vm9264, %v9255
        %9273 = vst.msk [vmem:[%s397 + $0x40] sm:$0xff] %vm9264, %v9256
        %9274 = vst.msk [vmem:[%s397 + $0x48] sm:$0xff] %vm9264, %v9257
        %9275 = vst.msk [vmem:[%s397 + $0x50] sm:$0xff] %vm9264, %v9258
        %9276 = vst.msk [vmem:[%s397 + $0x58] sm:$0xff] %vm9264, %v9259
        %9277 = vst.msk [vmem:[%s397 + $0x60] sm:$0xff] %vm9264, %v9260
        %9278 = vst.msk [vmem:[%s397 + $0x68] sm:$0xff] %vm9264, %v9261
        %9279 = vst.msk [vmem:[%s397 + $0x70] sm:$0xff] %vm9264, %v9262
        %9280 = vst.msk [vmem:[%s397 + $0x78] sm:$0xff] %vm9264, %v9263
        %v9305 = vcombine.high %v3467, %v3467
        %v9307 = vunpack.c.l.s4 1983009808
        %v9308 = vunpack.c.0.s8 %v9307
        %v9309 = vlaneseq
        %v9310 = vshrl.u32 %v9309, 7
        %v9311 = vsub.s32 %v9308, %v9310
        %v9312 = vrot.slane %v3467, %v9311
        %v9314 = vunpack.c.l.s4 1983009808
        %v9315 = vunpack.c.0.s8 %v9314
        %v9316 = vlaneseq
        %v9317 = vshrl.u32 %v9316, 7
        %v9318 = vsub.s32 %v9315, %v9317
        %v9319 = vrot.slane %v9305, %v9318
        %v9320 = vcombine.high %v9312, %v9312
        %v9321 = vcombine.high %v9319, %v9319
        %v9322 = vcombine.high %v3468, %v3468
        %v9324 = vunpack.c.l.s4 1983009808
        %v9325 = vunpack.c.0.s8 %v9324
        %v9326 = vlaneseq
        %v9327 = vshrl.u32 %v9326, 7
        %v9328 = vsub.s32 %v9325, %v9327
        %v9329 = vrot.slane %v3468, %v9328
        %v9331 = vunpack.c.l.s4 1983009808
        %v9332 = vunpack.c.0.s8 %v9331
        %v9333 = vlaneseq
        %v9334 = vshrl.u32 %v9333, 7
        %v9335 = vsub.s32 %v9332, %v9334
        %v9336 = vrot.slane %v9322, %v9335
        %v9337 = vcombine.high %v9329, %v9329
        %v9338 = vcombine.high %v9336, %v9336
        %v9340 = vunpack.c.l.s4 1983009808
        %v9341 = vunpack.c.0.s8 %v9340
        %v9342 = vlaneseq
        %v9343 = vshrl.u32 %v9342, 7
        %v9344 = vsub.s32 %v9341, %v9343
        %v9345 = vrot.slane %v3469, %v9344
        %v9346 = vcombine.high %v3470, %v3470
        %v9348 = vunpack.c.l.s4 1983009808
        %v9349 = vunpack.c.0.s8 %v9348
        %v9350 = vlaneseq
        %v9351 = vshrl.u32 %v9350, 7
        %v9352 = vsub.s32 %v9349, %v9351
        %v9353 = vrot.slane %v3470, %v9352
        %v9355 = vunpack.c.l.s4 1983009808
        %v9356 = vunpack.c.0.s8 %v9355
        %v9357 = vlaneseq
        %v9358 = vshrl.u32 %v9357, 7
        %v9359 = vsub.s32 %v9356, %v9358
        %v9360 = vrot.slane %v9346, %v9359
        %v9361 = vcombine.high %v9353, %v9353
        %v9362 = vcombine.high %v9360, %v9360
        %v9363 = vcombine.high %v3471, %v3471
        %v9365 = vunpack.c.l.s4 1983009808
        %v9366 = vunpack.c.0.s8 %v9365
        %v9367 = vlaneseq
        %v9368 = vshrl.u32 %v9367, 7
        %v9369 = vsub.s32 %v9366, %v9368
        %v9370 = vrot.slane %v3471, %v9369
        %v9372 = vunpack.c.l.s4 1983009808
        %v9373 = vunpack.c.0.s8 %v9372
        %v9374 = vlaneseq
        %v9375 = vshrl.u32 %v9374, 7
        %v9376 = vsub.s32 %v9373, %v9375
        %v9377 = vrot.slane %v9363, %v9376
        %v9378 = vcombine.high %v9370, %v9370
        %v9379 = vcombine.high %v9377, %v9377
        %v9381 = vunpack.c.l.s4 1983009808
        %v9382 = vunpack.c.0.s8 %v9381
        %v9383 = vlaneseq
        %v9384 = vshrl.u32 %v9383, 7
        %v9385 = vsub.s32 %v9382, %v9384
        %v9386 = vrot.slane %v3472, %v9385
        %v9387 = vcombine.high %v3473, %v3473
        %v9389 = vunpack.c.l.s4 1983009808
        %v9390 = vunpack.c.0.s8 %v9389
        %v9391 = vlaneseq
        %v9392 = vshrl.u32 %v9391, 7
        %v9393 = vsub.s32 %v9390, %v9392
        %v9394 = vrot.slane %v3473, %v9393
        %v9396 = vunpack.c.l.s4 1983009808
        %v9397 = vunpack.c.0.s8 %v9396
        %v9398 = vlaneseq
        %v9399 = vshrl.u32 %v9398, 7
        %v9400 = vsub.s32 %v9397, %v9399
        %v9401 = vrot.slane %v9387, %v9400
        %v9402 = vcombine.high %v9394, %v9394
        %v9403 = vcombine.high %v9401, %v9401
        %v9404 = vcombine.high %v3474, %v3474
        %v9406 = vunpack.c.l.s4 1983009808
        %v9407 = vunpack.c.0.s8 %v9406
        %v9408 = vlaneseq
        %v9409 = vshrl.u32 %v9408, 7
        %v9410 = vsub.s32 %v9407, %v9409
        %v9411 = vrot.slane %v3474, %v9410
        %v9413 = vunpack.c.l.s4 1983009808
        %v9414 = vunpack.c.0.s8 %v9413
        %v9415 = vlaneseq
        %v9416 = vshrl.u32 %v9415, 7
        %v9417 = vsub.s32 %v9414, %v9416
        %v9418 = vrot.slane %v9404, %v9417
        %v9419 = vcombine.high %v9411, %v9411
        %v9420 = vcombine.high %v9418, %v9418
        %v9422 = vunpack.c.l.s4 1983009808
        %v9423 = vunpack.c.0.s8 %v9422
        %v9424 = vlaneseq
        %v9425 = vshrl.u32 %v9424, 7
        %v9426 = vsub.s32 %v9423, %v9425
        %v9427 = vrot.slane %v3475, %v9426
        %v9428 = vcombine.high %v3476, %v3476
        %v9430 = vunpack.c.l.s4 1983009808
        %v9431 = vunpack.c.0.s8 %v9430
        %v9432 = vlaneseq
        %v9433 = vshrl.u32 %v9432, 7
        %v9434 = vsub.s32 %v9431, %v9433
        %v9435 = vrot.slane %v3476, %v9434
        %v9437 = vunpack.c.l.s4 1983009808
        %v9438 = vunpack.c.0.s8 %v9437
        %v9439 = vlaneseq
        %v9440 = vshrl.u32 %v9439, 7
        %v9441 = vsub.s32 %v9438, %v9440
        %v9442 = vrot.slane %v9428, %v9441
        %v9443 = vcombine.high %v9435, %v9435
        %v9444 = vcombine.high %v9442, %v9442
        %v9445 = vcombine.high %v3477, %v3477
        %v9447 = vunpack.c.l.s4 1983009808
        %v9448 = vunpack.c.0.s8 %v9447
        %v9449 = vlaneseq
        %v9450 = vshrl.u32 %v9449, 7
        %v9451 = vsub.s32 %v9448, %v9450
        %v9452 = vrot.slane %v3477, %v9451
        %v9454 = vunpack.c.l.s4 1983009808
        %v9455 = vunpack.c.0.s8 %v9454
        %v9456 = vlaneseq
        %v9457 = vshrl.u32 %v9456, 7
        %v9458 = vsub.s32 %v9455, %v9457
        %v9459 = vrot.slane %v9445, %v9458
        %v9460 = vcombine.high %v9452, %v9452
        %v9461 = vcombine.high %v9459, %v9459
        %v9463 = vunpack.c.l.s4 1983009808
        %v9464 = vunpack.c.0.s8 %v9463
        %v9465 = vlaneseq
        %v9466 = vshrl.u32 %v9465, 7
        %v9467 = vsub.s32 %v9464, %v9466
        %v9468 = vrot.slane %v3478, %v9467
        %v9469 = vcombine.high %v3479, %v3479
        %v9471 = vunpack.c.l.s4 1983009808
        %v9472 = vunpack.c.0.s8 %v9471
        %v9473 = vlaneseq
        %v9474 = vshrl.u32 %v9473, 7
        %v9475 = vsub.s32 %v9472, %v9474
        %v9476 = vrot.slane %v3479, %v9475
        %v9478 = vunpack.c.l.s4 1983009808
        %v9479 = vunpack.c.0.s8 %v9478
        %v9480 = vlaneseq
        %v9481 = vshrl.u32 %v9480, 7
        %v9482 = vsub.s32 %v9479, %v9481
        %v9483 = vrot.slane %v9469, %v9482
        %v9484 = vcombine.high %v9476, %v9476
        %v9485 = vcombine.high %v9483, %v9483
        %v9486 = vcombine.high %v3480, %v3480
        %v9488 = vunpack.c.l.s4 1983009808
        %v9489 = vunpack.c.0.s8 %v9488
        %v9490 = vlaneseq
        %v9491 = vshrl.u32 %v9490, 7
        %v9492 = vsub.s32 %v9489, %v9491
        %v9493 = vrot.slane %v3480, %v9492
        %v9495 = vunpack.c.l.s4 1983009808
        %v9496 = vunpack.c.0.s8 %v9495
        %v9497 = vlaneseq
        %v9498 = vshrl.u32 %v9497, 7
        %v9499 = vsub.s32 %v9496, %v9498
        %v9500 = vrot.slane %v9486, %v9499
        %v9501 = vcombine.high %v9493, %v9493
        %v9502 = vcombine.high %v9500, %v9500
        %v9504 = vunpack.c.l.s4 1983009808
        %v9505 = vunpack.c.0.s8 %v9504
        %v9506 = vlaneseq
        %v9507 = vshrl.u32 %v9506, 7
        %v9508 = vsub.s32 %v9505, %v9507
        %v9509 = vrot.slane %v3481, %v9508
        %v9510 = vcombine.high %v3482, %v3482
        %v9512 = vunpack.c.l.s4 1983009808
        %v9513 = vunpack.c.0.s8 %v9512
        %v9514 = vlaneseq
        %v9515 = vshrl.u32 %v9514, 7
        %v9516 = vsub.s32 %v9513, %v9515
        %v9517 = vrot.slane %v3482, %v9516
        %v9519 = vunpack.c.l.s4 1983009808
        %v9520 = vunpack.c.0.s8 %v9519
        %v9521 = vlaneseq
        %v9522 = vshrl.u32 %v9521, 7
        %v9523 = vsub.s32 %v9520, %v9522
        %v9524 = vrot.slane %v9510, %v9523
        %v9525 = vcombine.high %v9517, %v9517
        %v9526 = vcombine.high %v9524, %v9524
        %v9527 = vcombine.high %v3483, %v3483
        %v9529 = vunpack.c.l.s4 1983009808
        %v9530 = vunpack.c.0.s8 %v9529
        %v9531 = vlaneseq
        %v9532 = vshrl.u32 %v9531, 7
        %v9533 = vsub.s32 %v9530, %v9532
        %v9534 = vrot.slane %v3483, %v9533
        %v9536 = vunpack.c.l.s4 1983009808
        %v9537 = vunpack.c.0.s8 %v9536
        %v9538 = vlaneseq
        %v9539 = vshrl.u32 %v9538, 7
        %v9540 = vsub.s32 %v9537, %v9539
        %v9541 = vrot.slane %v9527, %v9540
        %v9542 = vcombine.high %v9534, %v9534
        %v9543 = vcombine.high %v9541, %v9541
        %v9545 = vunpack.c.l.s4 1983009808
        %v9546 = vunpack.c.0.s8 %v9545
        %v9547 = vlaneseq
        %v9548 = vshrl.u32 %v9547, 7
        %v9549 = vsub.s32 %v9546, %v9548
        %v9550 = vrot.slane %v3484, %v9549
        %v9551 = vcombine.high %v3485, %v3485
        %v9553 = vunpack.c.l.s4 1983009808
        %v9554 = vunpack.c.0.s8 %v9553
        %v9555 = vlaneseq
        %v9556 = vshrl.u32 %v9555, 7
        %v9557 = vsub.s32 %v9554, %v9556
        %v9558 = vrot.slane %v3485, %v9557
        %v9560 = vunpack.c.l.s4 1983009808
        %v9561 = vunpack.c.0.s8 %v9560
        %v9562 = vlaneseq
        %v9563 = vshrl.u32 %v9562, 7
        %v9564 = vsub.s32 %v9561, %v9563
        %v9565 = vrot.slane %v9551, %v9564
        %v9566 = vcombine.high %v9558, %v9558
        %v9567 = vcombine.high %v9565, %v9565
        %v9568 = vcombine.high %v3486, %v3486
        %v9570 = vunpack.c.l.s4 1983009808
        %v9571 = vunpack.c.0.s8 %v9570
        %v9572 = vlaneseq
        %v9573 = vshrl.u32 %v9572, 7
        %v9574 = vsub.s32 %v9571, %v9573
        %v9575 = vrot.slane %v3486, %v9574
        %v9577 = vunpack.c.l.s4 1983009808
        %v9578 = vunpack.c.0.s8 %v9577
        %v9579 = vlaneseq
        %v9580 = vshrl.u32 %v9579, 7
        %v9581 = vsub.s32 %v9578, %v9580
        %v9582 = vrot.slane %v9568, %v9581
        %v9583 = vcombine.high %v9575, %v9575
        %v9584 = vcombine.high %v9582, %v9582
        %v9586 = vunpack.c.l.s4 1983009808
        %v9587 = vunpack.c.0.s8 %v9586
        %v9588 = vlaneseq
        %v9589 = vshrl.u32 %v9588, 7
        %v9590 = vsub.s32 %v9587, %v9589
        %v9591 = vrot.slane %v3487, %v9590
        %v9592 = vcombine.high %v3488, %v3488
        %v9594 = vunpack.c.l.s4 1983009808
        %v9595 = vunpack.c.0.s8 %v9594
        %v9596 = vlaneseq
        %v9597 = vshrl.u32 %v9596, 7
        %v9598 = vsub.s32 %v9595, %v9597
        %v9599 = vrot.slane %v3488, %v9598
        %v9601 = vunpack.c.l.s4 1983009808
        %v9602 = vunpack.c.0.s8 %v9601
        %v9603 = vlaneseq
        %v9604 = vshrl.u32 %v9603, 7
        %v9605 = vsub.s32 %v9602, %v9604
        %v9606 = vrot.slane %v9592, %v9605
        %v9607 = vcombine.high %v9599, %v9599
        %v9608 = vcombine.high %v9606, %v9606
        %v9609 = vcombine.high %v3489, %v3489
        %v9611 = vunpack.c.l.s4 1983009808
        %v9612 = vunpack.c.0.s8 %v9611
        %v9613 = vlaneseq
        %v9614 = vshrl.u32 %v9613, 7
        %v9615 = vsub.s32 %v9612, %v9614
        %v9616 = vrot.slane %v3489, %v9615
        %v9618 = vunpack.c.l.s4 1983009808
        %v9619 = vunpack.c.0.s8 %v9618
        %v9620 = vlaneseq
        %v9621 = vshrl.u32 %v9620, 7
        %v9622 = vsub.s32 %v9619, %v9621
        %v9623 = vrot.slane %v9609, %v9622
        %v9624 = vcombine.high %v9616, %v9616
        %v9625 = vcombine.high %v9623, %v9623
        %v9627 = vunpack.c.l.s4 1983009808
        %v9628 = vunpack.c.0.s8 %v9627
        %v9629 = vlaneseq
        %v9630 = vshrl.u32 %v9629, 7
        %v9631 = vsub.s32 %v9628, %v9630
        %v9632 = vrot.slane %v3490, %v9631
        %vm9697 = vcmask 58368
        %v9698 = vsel %vm9697, %v9320, -inf
        %v9699 = vrot.slane %v9698, 4
        %v9700 = vmax.f32 %v9698, %v9699
        %v9701 = vrot.slane %v9700, 2
        %v9702 = vmax.f32 %v9700, %v9701
        %v9703 = vrot.slane %v9702, 1
        %v9704 = vmax.f32 %v9702, %v9703
        %v9705 = vsel %vm9697, %v9319, -inf
        %v9706 = vrot.slane %v9705, 4
        %v9707 = vmax.f32 %v9705, %v9706
        %v9708 = vrot.slane %v9707, 2
        %v9709 = vmax.f32 %v9707, %v9708
        %v9710 = vrot.slane %v9709, 1
        %v9711 = vmax.f32 %v9709, %v9710
        %v9712 = vsel %vm9697, %v9321, -inf
        %v9713 = vrot.slane %v9712, 4
        %v9714 = vmax.f32 %v9712, %v9713
        %v9715 = vrot.slane %v9714, 2
        %v9716 = vmax.f32 %v9714, %v9715
        %v9717 = vrot.slane %v9716, 1
        %v9718 = vmax.f32 %v9716, %v9717
        %v9719 = vsel %vm9697, %v9329, -inf
        %v9720 = vrot.slane %v9719, 4
        %v9721 = vmax.f32 %v9719, %v9720
        %v9722 = vrot.slane %v9721, 2
        %v9723 = vmax.f32 %v9721, %v9722
        %v9724 = vrot.slane %v9723, 1
        %v9725 = vmax.f32 %v9723, %v9724
        %v9726 = vsel %vm9697, %v9337, -inf
        %v9727 = vrot.slane %v9726, 4
        %v9728 = vmax.f32 %v9726, %v9727
        %v9729 = vrot.slane %v9728, 2
        %v9730 = vmax.f32 %v9728, %v9729
        %v9731 = vrot.slane %v9730, 1
        %v9732 = vmax.f32 %v9730, %v9731
        %v9733 = vsel %vm9697, %v9336, -inf
        %v9734 = vrot.slane %v9733, 4
        %v9735 = vmax.f32 %v9733, %v9734
        %v9736 = vrot.slane %v9735, 2
        %v9737 = vmax.f32 %v9735, %v9736
        %v9738 = vrot.slane %v9737, 1
        %v9739 = vmax.f32 %v9737, %v9738
        %v9740 = vsel %vm9697, %v9338, -inf
        %v9741 = vrot.slane %v9740, 4
        %v9742 = vmax.f32 %v9740, %v9741
        %v9743 = vrot.slane %v9742, 2
        %v9744 = vmax.f32 %v9742, %v9743
        %v9745 = vrot.slane %v9744, 1
        %v9746 = vmax.f32 %v9744, %v9745
        %v9747 = vsel %vm9697, %v9345, -inf
        %v9748 = vrot.slane %v9747, 4
        %v9749 = vmax.f32 %v9747, %v9748
        %v9750 = vrot.slane %v9749, 2
        %v9751 = vmax.f32 %v9749, %v9750
        %v9752 = vrot.slane %v9751, 1
        %v9753 = vmax.f32 %v9751, %v9752
        %v9754 = vsel %vm9697, %v9361, -inf
        %v9755 = vrot.slane %v9754, 4
        %v9756 = vmax.f32 %v9754, %v9755
        %v9757 = vrot.slane %v9756, 2
        %v9758 = vmax.f32 %v9756, %v9757
        %v9759 = vrot.slane %v9758, 1
        %v9760 = vmax.f32 %v9758, %v9759
        %v9761 = vsel %vm9697, %v9360, -inf
        %v9762 = vrot.slane %v9761, 4
        %v9763 = vmax.f32 %v9761, %v9762
        %v9764 = vrot.slane %v9763, 2
        %v9765 = vmax.f32 %v9763, %v9764
        %v9766 = vrot.slane %v9765, 1
        %v9767 = vmax.f32 %v9765, %v9766
        %v9768 = vsel %vm9697, %v9362, -inf
        %v9769 = vrot.slane %v9768, 4
        %v9770 = vmax.f32 %v9768, %v9769
        %v9771 = vrot.slane %v9770, 2
        %v9772 = vmax.f32 %v9770, %v9771
        %v9773 = vrot.slane %v9772, 1
        %v9774 = vmax.f32 %v9772, %v9773
        %v9775 = vsel %vm9697, %v9370, -inf
        %v9776 = vrot.slane %v9775, 4
        %v9777 = vmax.f32 %v9775, %v9776
        %v9778 = vrot.slane %v9777, 2
        %v9779 = vmax.f32 %v9777, %v9778
        %v9780 = vrot.slane %v9779, 1
        %v9781 = vmax.f32 %v9779, %v9780
        %v9782 = vsel %vm9697, %v9378, -inf
        %v9783 = vrot.slane %v9782, 4
        %v9784 = vmax.f32 %v9782, %v9783
        %v9785 = vrot.slane %v9784, 2
        %v9786 = vmax.f32 %v9784, %v9785
        %v9787 = vrot.slane %v9786, 1
        %v9788 = vmax.f32 %v9786, %v9787
        %v9789 = vsel %vm9697, %v9377, -inf
        %v9790 = vrot.slane %v9789, 4
        %v9791 = vmax.f32 %v9789, %v9790
        %v9792 = vrot.slane %v9791, 2
        %v9793 = vmax.f32 %v9791, %v9792
        %v9794 = vrot.slane %v9793, 1
        %v9795 = vmax.f32 %v9793, %v9794
        %v9796 = vsel %vm9697, %v9379, -inf
        %v9797 = vrot.slane %v9796, 4
        %v9798 = vmax.f32 %v9796, %v9797
        %v9799 = vrot.slane %v9798, 2
        %v9800 = vmax.f32 %v9798, %v9799
        %v9801 = vrot.slane %v9800, 1
        %v9802 = vmax.f32 %v9800, %v9801
        %v9803 = vsel %vm9697, %v9386, -inf
        %v9804 = vrot.slane %v9803, 4
        %v9805 = vmax.f32 %v9803, %v9804
        %v9806 = vrot.slane %v9805, 2
        %v9807 = vmax.f32 %v9805, %v9806
        %v9808 = vrot.slane %v9807, 1
        %v9809 = vmax.f32 %v9807, %v9808
        %v9810 = vsel %vm9697, %v9402, -inf
        %v9811 = vrot.slane %v9810, 4
        %v9812 = vmax.f32 %v9810, %v9811
        %v9813 = vrot.slane %v9812, 2
        %v9814 = vmax.f32 %v9812, %v9813
        %v9815 = vrot.slane %v9814, 1
        %v9816 = vmax.f32 %v9814, %v9815
        %v9817 = vsel %vm9697, %v9401, -inf
        %v9818 = vrot.slane %v9817, 4
        %v9819 = vmax.f32 %v9817, %v9818
        %v9820 = vrot.slane %v9819, 2
        %v9821 = vmax.f32 %v9819, %v9820
        %v9822 = vrot.slane %v9821, 1
        %v9823 = vmax.f32 %v9821, %v9822
        %v9824 = vsel %vm9697, %v9403, -inf
        %v9825 = vrot.slane %v9824, 4
        %v9826 = vmax.f32 %v9824, %v9825
        %v9827 = vrot.slane %v9826, 2
        %v9828 = vmax.f32 %v9826, %v9827
        %v9829 = vrot.slane %v9828, 1
        %v9830 = vmax.f32 %v9828, %v9829
        %v9831 = vsel %vm9697, %v9411, -inf
        %v9832 = vrot.slane %v9831, 4
        %v9833 = vmax.f32 %v9831, %v9832
        %v9834 = vrot.slane %v9833, 2
        %v9835 = vmax.f32 %v9833, %v9834
        %v9836 = vrot.slane %v9835, 1
        %v9837 = vmax.f32 %v9835, %v9836
        %v9838 = vsel %vm9697, %v9419, -inf
        %v9839 = vrot.slane %v9838, 4
        %v9840 = vmax.f32 %v9838, %v9839
        %v9841 = vrot.slane %v9840, 2
        %v9842 = vmax.f32 %v9840, %v9841
        %v9843 = vrot.slane %v9842, 1
        %v9844 = vmax.f32 %v9842, %v9843
        %v9845 = vsel %vm9697, %v9418, -inf
        %v9846 = vrot.slane %v9845, 4
        %v9847 = vmax.f32 %v9845, %v9846
        %v9848 = vrot.slane %v9847, 2
        %v9849 = vmax.f32 %v9847, %v9848
        %v9850 = vrot.slane %v9849, 1
        %v9851 = vmax.f32 %v9849, %v9850
        %v9852 = vsel %vm9697, %v9420, -inf
        %v9853 = vrot.slane %v9852, 4
        %v9854 = vmax.f32 %v9852, %v9853
        %v9855 = vrot.slane %v9854, 2
        %v9856 = vmax.f32 %v9854, %v9855
        %v9857 = vrot.slane %v9856, 1
        %v9858 = vmax.f32 %v9856, %v9857
        %v9859 = vsel %vm9697, %v9427, -inf
        %v9860 = vrot.slane %v9859, 4
        %v9861 = vmax.f32 %v9859, %v9860
        %v9862 = vrot.slane %v9861, 2
        %v9863 = vmax.f32 %v9861, %v9862
        %v9864 = vrot.slane %v9863, 1
        %v9865 = vmax.f32 %v9863, %v9864
        %v9866 = vsel %vm9697, %v9443, -inf
        %v9867 = vrot.slane %v9866, 4
        %v9868 = vmax.f32 %v9866, %v9867
        %v9869 = vrot.slane %v9868, 2
        %v9870 = vmax.f32 %v9868, %v9869
        %v9871 = vrot.slane %v9870, 1
        %v9872 = vmax.f32 %v9870, %v9871
        %v9873 = vsel %vm9697, %v9442, -inf
        %v9874 = vrot.slane %v9873, 4
        %v9875 = vmax.f32 %v9873, %v9874
        %v9876 = vrot.slane %v9875, 2
        %v9877 = vmax.f32 %v9875, %v9876
        %v9878 = vrot.slane %v9877, 1
        %v9879 = vmax.f32 %v9877, %v9878
        %v9880 = vsel %vm9697, %v9444, -inf
        %v9881 = vrot.slane %v9880, 4
        %v9882 = vmax.f32 %v9880, %v9881
        %v9883 = vrot.slane %v9882, 2
        %v9884 = vmax.f32 %v9882, %v9883
        %v9885 = vrot.slane %v9884, 1
        %v9886 = vmax.f32 %v9884, %v9885
        %v9887 = vsel %vm9697, %v9452, -inf
        %v9888 = vrot.slane %v9887, 4
        %v9889 = vmax.f32 %v9887, %v9888
        %v9890 = vrot.slane %v9889, 2
        %v9891 = vmax.f32 %v9889, %v9890
        %v9892 = vrot.slane %v9891, 1
        %v9893 = vmax.f32 %v9891, %v9892
        %v9894 = vsel %vm9697, %v9460, -inf
        %v9895 = vrot.slane %v9894, 4
        %v9896 = vmax.f32 %v9894, %v9895
        %v9897 = vrot.slane %v9896, 2
        %v9898 = vmax.f32 %v9896, %v9897
        %v9899 = vrot.slane %v9898, 1
        %v9900 = vmax.f32 %v9898, %v9899
        %v9901 = vsel %vm9697, %v9459, -inf
        %v9902 = vrot.slane %v9901, 4
        %v9903 = vmax.f32 %v9901, %v9902
        %v9904 = vrot.slane %v9903, 2
        %v9905 = vmax.f32 %v9903, %v9904
        %v9906 = vrot.slane %v9905, 1
        %v9907 = vmax.f32 %v9905, %v9906
        %v9908 = vsel %vm9697, %v9461, -inf
        %v9909 = vrot.slane %v9908, 4
        %v9910 = vmax.f32 %v9908, %v9909
        %v9911 = vrot.slane %v9910, 2
        %v9912 = vmax.f32 %v9910, %v9911
        %v9913 = vrot.slane %v9912, 1
        %v9914 = vmax.f32 %v9912, %v9913
        %v9915 = vsel %vm9697, %v9468, -inf
        %v9916 = vrot.slane %v9915, 4
        %v9917 = vmax.f32 %v9915, %v9916
        %v9918 = vrot.slane %v9917, 2
        %v9919 = vmax.f32 %v9917, %v9918
        %v9920 = vrot.slane %v9919, 1
        %v9921 = vmax.f32 %v9919, %v9920
        %v9922 = vsel %vm9697, %v9484, -inf
        %v9923 = vrot.slane %v9922, 4
        %v9924 = vmax.f32 %v9922, %v9923
        %v9925 = vrot.slane %v9924, 2
        %v9926 = vmax.f32 %v9924, %v9925
        %v9927 = vrot.slane %v9926, 1
        %v9928 = vmax.f32 %v9926, %v9927
        %v9929 = vsel %vm9697, %v9483, -inf
        %v9930 = vrot.slane %v9929, 4
        %v9931 = vmax.f32 %v9929, %v9930
        %v9932 = vrot.slane %v9931, 2
        %v9933 = vmax.f32 %v9931, %v9932
        %v9934 = vrot.slane %v9933, 1
        %v9935 = vmax.f32 %v9933, %v9934
        %v9936 = vsel %vm9697, %v9485, -inf
        %v9937 = vrot.slane %v9936, 4
        %v9938 = vmax.f32 %v9936, %v9937
        %v9939 = vrot.slane %v9938, 2
        %v9940 = vmax.f32 %v9938, %v9939
        %v9941 = vrot.slane %v9940, 1
        %v9942 = vmax.f32 %v9940, %v9941
        %v9943 = vsel %vm9697, %v9493, -inf
        %v9944 = vrot.slane %v9943, 4
        %v9945 = vmax.f32 %v9943, %v9944
        %v9946 = vrot.slane %v9945, 2
        %v9947 = vmax.f32 %v9945, %v9946
        %v9948 = vrot.slane %v9947, 1
        %v9949 = vmax.f32 %v9947, %v9948
        %v9950 = vsel %vm9697, %v9501, -inf
        %v9951 = vrot.slane %v9950, 4
        %v9952 = vmax.f32 %v9950, %v9951
        %v9953 = vrot.slane %v9952, 2
        %v9954 = vmax.f32 %v9952, %v9953
        %v9955 = vrot.slane %v9954, 1
        %v9956 = vmax.f32 %v9954, %v9955
        %v9957 = vsel %vm9697, %v9500, -inf
        %v9958 = vrot.slane %v9957, 4
        %v9959 = vmax.f32 %v9957, %v9958
        %v9960 = vrot.slane %v9959, 2
        %v9961 = vmax.f32 %v9959, %v9960
        %v9962 = vrot.slane %v9961, 1
        %v9963 = vmax.f32 %v9961, %v9962
        %v9964 = vsel %vm9697, %v9502, -inf
        %v9965 = vrot.slane %v9964, 4
        %v9966 = vmax.f32 %v9964, %v9965
        %v9967 = vrot.slane %v9966, 2
        %v9968 = vmax.f32 %v9966, %v9967
        %v9969 = vrot.slane %v9968, 1
        %v9970 = vmax.f32 %v9968, %v9969
        %v9971 = vsel %vm9697, %v9509, -inf
        %v9972 = vrot.slane %v9971, 4
        %v9973 = vmax.f32 %v9971, %v9972
        %v9974 = vrot.slane %v9973, 2
        %v9975 = vmax.f32 %v9973, %v9974
        %v9976 = vrot.slane %v9975, 1
        %v9977 = vmax.f32 %v9975, %v9976
        %v9978 = vsel %vm9697, %v9525, -inf
        %v9979 = vrot.slane %v9978, 4
        %v9980 = vmax.f32 %v9978, %v9979
        %v9981 = vrot.slane %v9980, 2
        %v9982 = vmax.f32 %v9980, %v9981
        %v9983 = vrot.slane %v9982, 1
        %v9984 = vmax.f32 %v9982, %v9983
        %v9985 = vsel %vm9697, %v9524, -inf
        %v9986 = vrot.slane %v9985, 4
        %v9987 = vmax.f32 %v9985, %v9986
        %v9988 = vrot.slane %v9987, 2
        %v9989 = vmax.f32 %v9987, %v9988
        %v9990 = vrot.slane %v9989, 1
        %v9991 = vmax.f32 %v9989, %v9990
        %v9992 = vsel %vm9697, %v9526, -inf
        %v9993 = vrot.slane %v9992, 4
        %v9994 = vmax.f32 %v9992, %v9993
        %v9995 = vrot.slane %v9994, 2
        %v9996 = vmax.f32 %v9994, %v9995
        %v9997 = vrot.slane %v9996, 1
        %v9998 = vmax.f32 %v9996, %v9997
        %v9999 = vsel %vm9697, %v9534, -inf
        %v10000 = vrot.slane %v9999, 4
        %v10001 = vmax.f32 %v9999, %v10000
        %v10002 = vrot.slane %v10001, 2
        %v10003 = vmax.f32 %v10001, %v10002
        %v10004 = vrot.slane %v10003, 1
        %v10005 = vmax.f32 %v10003, %v10004
        %v10006 = vsel %vm9697, %v9542, -inf
        %v10007 = vrot.slane %v10006, 4
        %v10008 = vmax.f32 %v10006, %v10007
        %v10009 = vrot.slane %v10008, 2
        %v10010 = vmax.f32 %v10008, %v10009
        %v10011 = vrot.slane %v10010, 1
        %v10012 = vmax.f32 %v10010, %v10011
        %v10013 = vsel %vm9697, %v9541, -inf
        %v10014 = vrot.slane %v10013, 4
        %v10015 = vmax.f32 %v10013, %v10014
        %v10016 = vrot.slane %v10015, 2
        %v10017 = vmax.f32 %v10015, %v10016
        %v10018 = vrot.slane %v10017, 1
        %v10019 = vmax.f32 %v10017, %v10018
        %v10020 = vsel %vm9697, %v9543, -inf
        %v10021 = vrot.slane %v10020, 4
        %v10022 = vmax.f32 %v10020, %v10021
        %v10023 = vrot.slane %v10022, 2
        %v10024 = vmax.f32 %v10022, %v10023
        %v10025 = vrot.slane %v10024, 1
        %v10026 = vmax.f32 %v10024, %v10025
        %v10027 = vsel %vm9697, %v9550, -inf
        %v10028 = vrot.slane %v10027, 4
        %v10029 = vmax.f32 %v10027, %v10028
        %v10030 = vrot.slane %v10029, 2
        %v10031 = vmax.f32 %v10029, %v10030
        %v10032 = vrot.slane %v10031, 1
        %v10033 = vmax.f32 %v10031, %v10032
        %v10034 = vsel %vm9697, %v9566, -inf
        %v10035 = vrot.slane %v10034, 4
        %v10036 = vmax.f32 %v10034, %v10035
        %v10037 = vrot.slane %v10036, 2
        %v10038 = vmax.f32 %v10036, %v10037
        %v10039 = vrot.slane %v10038, 1
        %v10040 = vmax.f32 %v10038, %v10039
        %v10041 = vsel %vm9697, %v9565, -inf
        %v10042 = vrot.slane %v10041, 4
        %v10043 = vmax.f32 %v10041, %v10042
        %v10044 = vrot.slane %v10043, 2
        %v10045 = vmax.f32 %v10043, %v10044
        %v10046 = vrot.slane %v10045, 1
        %v10047 = vmax.f32 %v10045, %v10046
        %v10048 = vsel %vm9697, %v9567, -inf
        %v10049 = vrot.slane %v10048, 4
        %v10050 = vmax.f32 %v10048, %v10049
        %v10051 = vrot.slane %v10050, 2
        %v10052 = vmax.f32 %v10050, %v10051
        %v10053 = vrot.slane %v10052, 1
        %v10054 = vmax.f32 %v10052, %v10053
        %v10055 = vsel %vm9697, %v9575, -inf
        %v10056 = vrot.slane %v10055, 4
        %v10057 = vmax.f32 %v10055, %v10056
        %v10058 = vrot.slane %v10057, 2
        %v10059 = vmax.f32 %v10057, %v10058
        %v10060 = vrot.slane %v10059, 1
        %v10061 = vmax.f32 %v10059, %v10060
        %v10062 = vsel %vm9697, %v9583, -inf
        %v10063 = vrot.slane %v10062, 4
        %v10064 = vmax.f32 %v10062, %v10063
        %v10065 = vrot.slane %v10064, 2
        %v10066 = vmax.f32 %v10064, %v10065
        %v10067 = vrot.slane %v10066, 1
        %v10068 = vmax.f32 %v10066, %v10067
        %v10069 = vsel %vm9697, %v9582, -inf
        %v10070 = vrot.slane %v10069, 4
        %v10071 = vmax.f32 %v10069, %v10070
        %v10072 = vrot.slane %v10071, 2
        %v10073 = vmax.f32 %v10071, %v10072
        %v10074 = vrot.slane %v10073, 1
        %v10075 = vmax.f32 %v10073, %v10074
        %v10076 = vsel %vm9697, %v9584, -inf
        %v10077 = vrot.slane %v10076, 4
        %v10078 = vmax.f32 %v10076, %v10077
        %v10079 = vrot.slane %v10078, 2
        %v10080 = vmax.f32 %v10078, %v10079
        %v10081 = vrot.slane %v10080, 1
        %v10082 = vmax.f32 %v10080, %v10081
        %v10083 = vsel %vm9697, %v9591, -inf
        %v10084 = vrot.slane %v10083, 4
        %v10085 = vmax.f32 %v10083, %v10084
        %v10086 = vrot.slane %v10085, 2
        %v10087 = vmax.f32 %v10085, %v10086
        %v10088 = vrot.slane %v10087, 1
        %v10089 = vmax.f32 %v10087, %v10088
        %v10090 = vsel %vm9697, %v9607, -inf
        %v10091 = vrot.slane %v10090, 4
        %v10092 = vmax.f32 %v10090, %v10091
        %v10093 = vrot.slane %v10092, 2
        %v10094 = vmax.f32 %v10092, %v10093
        %v10095 = vrot.slane %v10094, 1
        %v10096 = vmax.f32 %v10094, %v10095
        %v10097 = vsel %vm9697, %v9606, -inf
        %v10098 = vrot.slane %v10097, 4
        %v10099 = vmax.f32 %v10097, %v10098
        %v10100 = vrot.slane %v10099, 2
        %v10101 = vmax.f32 %v10099, %v10100
        %v10102 = vrot.slane %v10101, 1
        %v10103 = vmax.f32 %v10101, %v10102
        %v10104 = vsel %vm9697, %v9608, -inf
        %v10105 = vrot.slane %v10104, 4
        %v10106 = vmax.f32 %v10104, %v10105
        %v10107 = vrot.slane %v10106, 2
        %v10108 = vmax.f32 %v10106, %v10107
        %v10109 = vrot.slane %v10108, 1
        %v10110 = vmax.f32 %v10108, %v10109
        %v10111 = vsel %vm9697, %v9616, -inf
        %v10112 = vrot.slane %v10111, 4
        %v10113 = vmax.f32 %v10111, %v10112
        %v10114 = vrot.slane %v10113, 2
        %v10115 = vmax.f32 %v10113, %v10114
        %v10116 = vrot.slane %v10115, 1
        %v10117 = vmax.f32 %v10115, %v10116
        %v10118 = vsel %vm9697, %v9624, -inf
        %v10119 = vrot.slane %v10118, 4
        %v10120 = vmax.f32 %v10118, %v10119
        %v10121 = vrot.slane %v10120, 2
        %v10122 = vmax.f32 %v10120, %v10121
        %v10123 = vrot.slane %v10122, 1
        %v10124 = vmax.f32 %v10122, %v10123
        %v10125 = vsel %vm9697, %v9623, -inf
        %v10126 = vrot.slane %v10125, 4
        %v10127 = vmax.f32 %v10125, %v10126
        %v10128 = vrot.slane %v10127, 2
        %v10129 = vmax.f32 %v10127, %v10128
        %v10130 = vrot.slane %v10129, 1
        %v10131 = vmax.f32 %v10129, %v10130
        %v10132 = vsel %vm9697, %v9625, -inf
        %v10133 = vrot.slane %v10132, 4
        %v10134 = vmax.f32 %v10132, %v10133
        %v10135 = vrot.slane %v10134, 2
        %v10136 = vmax.f32 %v10134, %v10135
        %v10137 = vrot.slane %v10136, 1
        %v10138 = vmax.f32 %v10136, %v10137
        %v10139 = vsel %vm9697, %v9632, -inf
        %v10140 = vrot.slane %v10139, 4
        %v10141 = vmax.f32 %v10139, %v10140
        %v10142 = vrot.slane %v10141, 2
        %v10143 = vmax.f32 %v10141, %v10142
        %v10144 = vrot.slane %v10143, 1
        %v10145 = vmax.f32 %v10143, %v10144
        %v10146 = vsel %vm9264, %v9704, -inf
        %v10147 = vsel %vm9264, %v9760, -inf
        %v10148 = vmax.f32 %v10146, %v10147
        %v10149 = vsel %vm9264, %v9711, -inf
        %v10150 = vsel %vm9264, %v9767, -inf
        %v10151 = vmax.f32 %v10149, %v10150
        %v10152 = vsel %vm9264, %v9718, -inf
        %v10153 = vsel %vm9264, %v9774, -inf
        %v10154 = vmax.f32 %v10152, %v10153
        %v10155 = vsel %vm9264, %v9725, -inf
        %v10156 = vsel %vm9264, %v9781, -inf
        %v10157 = vmax.f32 %v10155, %v10156
        %v10158 = vsel %vm9264, %v9732, -inf
        %v10159 = vsel %vm9264, %v9788, -inf
        %v10160 = vmax.f32 %v10158, %v10159
        %v10161 = vsel %vm9264, %v9739, -inf
        %v10162 = vsel %vm9264, %v9795, -inf
        %v10163 = vmax.f32 %v10161, %v10162
        %v10164 = vsel %vm9264, %v9746, -inf
        %v10165 = vsel %vm9264, %v9802, -inf
        %v10166 = vmax.f32 %v10164, %v10165
        %v10167 = vsel %vm9264, %v9753, -inf
        %v10168 = vsel %vm9264, %v9809, -inf
        %v10169 = vmax.f32 %v10167, %v10168
        %v10170 = vsel %vm9264, %v9816, -inf
        %v10171 = vsel %vm9264, %v9872, -inf
        %v10172 = vmax.f32 %v10170, %v10171
        %v10173 = vsel %vm9264, %v9823, -inf
        %v10174 = vsel %vm9264, %v9879, -inf
        %v10175 = vmax.f32 %v10173, %v10174
        %v10176 = vsel %vm9264, %v9830, -inf
        %v10177 = vsel %vm9264, %v9886, -inf
        %v10178 = vmax.f32 %v10176, %v10177
        %v10179 = vsel %vm9264, %v9837, -inf
        %v10180 = vsel %vm9264, %v9893, -inf
        %v10181 = vmax.f32 %v10179, %v10180
        %v10182 = vsel %vm9264, %v9844, -inf
        %v10183 = vsel %vm9264, %v9900, -inf
        %v10184 = vmax.f32 %v10182, %v10183
        %v10185 = vsel %vm9264, %v9851, -inf
        %v10186 = vsel %vm9264, %v9907, -inf
        %v10187 = vmax.f32 %v10185, %v10186
        %v10188 = vsel %vm9264, %v9858, -inf
        %v10189 = vsel %vm9264, %v9914, -inf
        %v10190 = vmax.f32 %v10188, %v10189
        %v10191 = vsel %vm9264, %v9865, -inf
        %v10192 = vsel %vm9264, %v9921, -inf
        %v10193 = vmax.f32 %v10191, %v10192
        %v10194 = vsel %vm9264, %v9928, -inf
        %v10195 = vsel %vm9264, %v9984, -inf
        %v10196 = vmax.f32 %v10194, %v10195
        %v10197 = vsel %vm9264, %v9935, -inf
        %v10198 = vsel %vm9264, %v9991, -inf
        %v10199 = vmax.f32 %v10197, %v10198
        %v10200 = vsel %vm9264, %v9942, -inf
        %v10201 = vsel %vm9264, %v9998, -inf
        %v10202 = vmax.f32 %v10200, %v10201
        %v10203 = vsel %vm9264, %v9949, -inf
        %v10204 = vsel %vm9264, %v10005, -inf
        %v10205 = vmax.f32 %v10203, %v10204
        %v10206 = vsel %vm9264, %v9956, -inf
        %v10207 = vsel %vm9264, %v10012, -inf
        %v10208 = vmax.f32 %v10206, %v10207
        %v10209 = vsel %vm9264, %v9963, -inf
        %v10210 = vsel %vm9264, %v10019, -inf
        %v10211 = vmax.f32 %v10209, %v10210
        %v10212 = vsel %vm9264, %v9970, -inf
        %v10213 = vsel %vm9264, %v10026, -inf
        %v10214 = vmax.f32 %v10212, %v10213
        %v10215 = vsel %vm9264, %v9977, -inf
        %v10216 = vsel %vm9264, %v10033, -inf
        %v10217 = vmax.f32 %v10215, %v10216
        %v10218 = vsel %vm9264, %v10040, -inf
        %v10219 = vsel %vm9264, %v10096, -inf
        %v10220 = vmax.f32 %v10218, %v10219
        %v10221 = vsel %vm9264, %v10047, -inf
        %v10222 = vsel %vm9264, %v10103, -inf
        %v10223 = vmax.f32 %v10221, %v10222
        %v10224 = vsel %vm9264, %v10054, -inf
        %v10225 = vsel %vm9264, %v10110, -inf
        %v10226 = vmax.f32 %v10224, %v10225
        %v10227 = vsel %vm9264, %v10061, -inf
        %v10228 = vsel %vm9264, %v10117, -inf
        %v10229 = vmax.f32 %v10227, %v10228
        %v10230 = vsel %vm9264, %v10068, -inf
        %v10231 = vsel %vm9264, %v10124, -inf
        %v10232 = vmax.f32 %v10230, %v10231
        %v10233 = vsel %vm9264, %v10075, -inf
        %v10234 = vsel %vm9264, %v10131, -inf
        %v10235 = vmax.f32 %v10233, %v10234
        %v10236 = vsel %vm9264, %v10082, -inf
        %v10237 = vsel %vm9264, %v10138, -inf
        %v10238 = vmax.f32 %v10236, %v10237
        %v10239 = vsel %vm9264, %v10089, -inf
        %v10240 = vsel %vm9264, %v10145, -inf
        %v10241 = vmax.f32 %v10239, %v10240
        %vm10274 = vcmask 1041409
        %v10275 = vsel %vm10274, %v10151, %v10148
        %vm10276 = vcmask 1042434
        %v10277 = vsel %vm10276, %v10154, %v10275
        %vm10278 = vcmask 1043459
        %v10279 = vsel %vm10278, %v10157, %v10277
        %vm10280 = vcmask 1044484
        %v10281 = vsel %vm10280, %v10160, %v10279
        %vm10282 = vcmask 1045509
        %v10283 = vsel %vm10282, %v10163, %v10281
        %vm10284 = vcmask 1046534
        %v10285 = vsel %vm10284, %v10166, %v10283
        %vm10286 = vcmask 1047559
        %v10287 = vsel %vm10286, %v10169, %v10285
        %v10288 = vsel %vm10274, %v10175, %v10172
        %v10289 = vsel %vm10276, %v10178, %v10288
        %v10290 = vsel %vm10278, %v10181, %v10289
        %v10291 = vsel %vm10280, %v10184, %v10290
        %v10292 = vsel %vm10282, %v10187, %v10291
        %v10293 = vsel %vm10284, %v10190, %v10292
        %v10294 = vsel %vm10286, %v10193, %v10293
        %v10295 = vsel %vm10274, %v10199, %v10196
        %v10296 = vsel %vm10276, %v10202, %v10295
        %v10297 = vsel %vm10278, %v10205, %v10296
        %v10298 = vsel %vm10280, %v10208, %v10297
        %v10299 = vsel %vm10282, %v10211, %v10298
        %v10300 = vsel %vm10284, %v10214, %v10299
        %v10301 = vsel %vm10286, %v10217, %v10300
        %v10302 = vsel %vm10274, %v10223, %v10220
        %v10303 = vsel %vm10276, %v10226, %v10302
        %v10304 = vsel %vm10278, %v10229, %v10303
        %v10305 = vsel %vm10280, %v10232, %v10304
        %v10306 = vsel %vm10282, %v10235, %v10305
        %v10307 = vsel %vm10284, %v10238, %v10306
        %v10308 = vsel %vm10286, %v10241, %v10307
        %10313 = vst.msk [vmem:[%s369] sm:$0xff] %vm9264, %v10287
        %10314 = vst.msk [vmem:[%s369 + $0x8] sm:$0xff] %vm9264, %v10294
        %10315 = vst.msk [vmem:[%s369 + $0x10] sm:$0xff] %vm9264, %v10301
        %10316 = vst.msk [vmem:[%s369 + $0x18] sm:$0xff] %vm9264, %v10308
        %v10333 = vcombine.high %v9248, %v9248
        %v10335 = vunpack.c.l.s4 1983009808
        %v10336 = vunpack.c.0.s8 %v10335
        %v10337 = vlaneseq
        %v10338 = vshrl.u32 %v10337, 7
        %v10339 = vsub.s32 %v10336, %v10338
        %v10340 = vrot.slane %v9248, %v10339
        %v10342 = vunpack.c.l.s4 1983009808
        %v10343 = vunpack.c.0.s8 %v10342
        %v10344 = vlaneseq
        %v10345 = vshrl.u32 %v10344, 7
        %v10346 = vsub.s32 %v10343, %v10345
        %v10347 = vrot.slane %v10333, %v10346
        %v10348 = vcombine.high %v10340, %v10340
        %v10349 = vcombine.high %v10347, %v10347
        %v10350 = vcombine.high %v9249, %v9249
        %v10352 = vunpack.c.l.s4 1983009808
        %v10353 = vunpack.c.0.s8 %v10352
        %v10354 = vlaneseq
        %v10355 = vshrl.u32 %v10354, 7
        %v10356 = vsub.s32 %v10353, %v10355
        %v10357 = vrot.slane %v9249, %v10356
        %v10359 = vunpack.c.l.s4 1983009808
        %v10360 = vunpack.c.0.s8 %v10359
        %v10361 = vlaneseq
        %v10362 = vshrl.u32 %v10361, 7
        %v10363 = vsub.s32 %v10360, %v10362
        %v10364 = vrot.slane %v10350, %v10363
        %v10365 = vcombine.high %v10357, %v10357
        %v10366 = vcombine.high %v10364, %v10364
        %v10367 = vcombine.high %v9250, %v9250
        %v10369 = vunpack.c.l.s4 1983009808
        %v10370 = vunpack.c.0.s8 %v10369
        %v10371 = vlaneseq
        %v10372 = vshrl.u32 %v10371, 7
        %v10373 = vsub.s32 %v10370, %v10372
        %v10374 = vrot.slane %v9250, %v10373
        %v10376 = vunpack.c.l.s4 1983009808
        %v10377 = vunpack.c.0.s8 %v10376
        %v10378 = vlaneseq
        %v10379 = vshrl.u32 %v10378, 7
        %v10380 = vsub.s32 %v10377, %v10379
        %v10381 = vrot.slane %v10367, %v10380
        %v10382 = vcombine.high %v10374, %v10374
        %v10383 = vcombine.high %v10381, %v10381
        %v10384 = vcombine.high %v9251, %v9251
        %v10386 = vunpack.c.l.s4 1983009808
        %v10387 = vunpack.c.0.s8 %v10386
        %v10388 = vlaneseq
        %v10389 = vshrl.u32 %v10388, 7
        %v10390 = vsub.s32 %v10387, %v10389
        %v10391 = vrot.slane %v9251, %v10390
        %v10393 = vunpack.c.l.s4 1983009808
        %v10394 = vunpack.c.0.s8 %v10393
        %v10395 = vlaneseq
        %v10396 = vshrl.u32 %v10395, 7
        %v10397 = vsub.s32 %v10394, %v10396
        %v10398 = vrot.slane %v10384, %v10397
        %v10399 = vcombine.high %v10391, %v10391
        %v10400 = vcombine.high %v10398, %v10398
        %v10401 = vcombine.high %v9252, %v9252
        %v10403 = vunpack.c.l.s4 1983009808
        %v10404 = vunpack.c.0.s8 %v10403
        %v10405 = vlaneseq
        %v10406 = vshrl.u32 %v10405, 7
        %v10407 = vsub.s32 %v10404, %v10406
        %v10408 = vrot.slane %v9252, %v10407
        %v10410 = vunpack.c.l.s4 1983009808
        %v10411 = vunpack.c.0.s8 %v10410
        %v10412 = vlaneseq
        %v10413 = vshrl.u32 %v10412, 7
        %v10414 = vsub.s32 %v10411, %v10413
        %v10415 = vrot.slane %v10401, %v10414
        %v10416 = vcombine.high %v10408, %v10408
        %v10417 = vcombine.high %v10415, %v10415
        %v10418 = vcombine.high %v9253, %v9253
        %v10420 = vunpack.c.l.s4 1983009808
        %v10421 = vunpack.c.0.s8 %v10420
        %v10422 = vlaneseq
        %v10423 = vshrl.u32 %v10422, 7
        %v10424 = vsub.s32 %v10421, %v10423
        %v10425 = vrot.slane %v9253, %v10424
        %v10427 = vunpack.c.l.s4 1983009808
        %v10428 = vunpack.c.0.s8 %v10427
        %v10429 = vlaneseq
        %v10430 = vshrl.u32 %v10429, 7
        %v10431 = vsub.s32 %v10428, %v10430
        %v10432 = vrot.slane %v10418, %v10431
        %v10433 = vcombine.high %v10425, %v10425
        %v10434 = vcombine.high %v10432, %v10432
        %v10435 = vcombine.high %v9254, %v9254
        %v10437 = vunpack.c.l.s4 1983009808
        %v10438 = vunpack.c.0.s8 %v10437
        %v10439 = vlaneseq
        %v10440 = vshrl.u32 %v10439, 7
        %v10441 = vsub.s32 %v10438, %v10440
        %v10442 = vrot.slane %v9254, %v10441
        %v10444 = vunpack.c.l.s4 1983009808
        %v10445 = vunpack.c.0.s8 %v10444
        %v10446 = vlaneseq
        %v10447 = vshrl.u32 %v10446, 7
        %v10448 = vsub.s32 %v10445, %v10447
        %v10449 = vrot.slane %v10435, %v10448
        %v10450 = vcombine.high %v10442, %v10442
        %v10451 = vcombine.high %v10449, %v10449
        %v10452 = vcombine.high %v9255, %v9255
        %v10454 = vunpack.c.l.s4 1983009808
        %v10455 = vunpack.c.0.s8 %v10454
        %v10456 = vlaneseq
        %v10457 = vshrl.u32 %v10456, 7
        %v10458 = vsub.s32 %v10455, %v10457
        %v10459 = vrot.slane %v9255, %v10458
        %v10461 = vunpack.c.l.s4 1983009808
        %v10462 = vunpack.c.0.s8 %v10461
        %v10463 = vlaneseq
        %v10464 = vshrl.u32 %v10463, 7
        %v10465 = vsub.s32 %v10462, %v10464
        %v10466 = vrot.slane %v10452, %v10465
        %v10467 = vcombine.high %v10459, %v10459
        %v10468 = vcombine.high %v10466, %v10466
        %v10469 = vcombine.high %v9256, %v9256
        %v10471 = vunpack.c.l.s4 1983009808
        %v10472 = vunpack.c.0.s8 %v10471
        %v10473 = vlaneseq
        %v10474 = vshrl.u32 %v10473, 7
        %v10475 = vsub.s32 %v10472, %v10474
        %v10476 = vrot.slane %v9256, %v10475
        %v10478 = vunpack.c.l.s4 1983009808
        %v10479 = vunpack.c.0.s8 %v10478
        %v10480 = vlaneseq
        %v10481 = vshrl.u32 %v10480, 7
        %v10482 = vsub.s32 %v10479, %v10481
        %v10483 = vrot.slane %v10469, %v10482
        %v10484 = vcombine.high %v10476, %v10476
        %v10485 = vcombine.high %v10483, %v10483
        %v10486 = vcombine.high %v9257, %v9257
        %v10488 = vunpack.c.l.s4 1983009808
        %v10489 = vunpack.c.0.s8 %v10488
        %v10490 = vlaneseq
        %v10491 = vshrl.u32 %v10490, 7
        %v10492 = vsub.s32 %v10489, %v10491
        %v10493 = vrot.slane %v9257, %v10492
        %v10495 = vunpack.c.l.s4 1983009808
        %v10496 = vunpack.c.0.s8 %v10495
        %v10497 = vlaneseq
        %v10498 = vshrl.u32 %v10497, 7
        %v10499 = vsub.s32 %v10496, %v10498
        %v10500 = vrot.slane %v10486, %v10499
        %v10501 = vcombine.high %v10493, %v10493
        %v10502 = vcombine.high %v10500, %v10500
        %v10503 = vcombine.high %v9258, %v9258
        %v10505 = vunpack.c.l.s4 1983009808
        %v10506 = vunpack.c.0.s8 %v10505
        %v10507 = vlaneseq
        %v10508 = vshrl.u32 %v10507, 7
        %v10509 = vsub.s32 %v10506, %v10508
        %v10510 = vrot.slane %v9258, %v10509
        %v10512 = vunpack.c.l.s4 1983009808
        %v10513 = vunpack.c.0.s8 %v10512
        %v10514 = vlaneseq
        %v10515 = vshrl.u32 %v10514, 7
        %v10516 = vsub.s32 %v10513, %v10515
        %v10517 = vrot.slane %v10503, %v10516
        %v10518 = vcombine.high %v10510, %v10510
        %v10519 = vcombine.high %v10517, %v10517
        %v10520 = vcombine.high %v9259, %v9259
        %v10522 = vunpack.c.l.s4 1983009808
        %v10523 = vunpack.c.0.s8 %v10522
        %v10524 = vlaneseq
        %v10525 = vshrl.u32 %v10524, 7
        %v10526 = vsub.s32 %v10523, %v10525
        %v10527 = vrot.slane %v9259, %v10526
        %v10529 = vunpack.c.l.s4 1983009808
        %v10530 = vunpack.c.0.s8 %v10529
        %v10531 = vlaneseq
        %v10532 = vshrl.u32 %v10531, 7
        %v10533 = vsub.s32 %v10530, %v10532
        %v10534 = vrot.slane %v10520, %v10533
        %v10535 = vcombine.high %v10527, %v10527
        %v10536 = vcombine.high %v10534, %v10534
        %v10537 = vcombine.high %v9260, %v9260
        %v10539 = vunpack.c.l.s4 1983009808
        %v10540 = vunpack.c.0.s8 %v10539
        %v10541 = vlaneseq
        %v10542 = vshrl.u32 %v10541, 7
        %v10543 = vsub.s32 %v10540, %v10542
        %v10544 = vrot.slane %v9260, %v10543
        %v10546 = vunpack.c.l.s4 1983009808
        %v10547 = vunpack.c.0.s8 %v10546
        %v10548 = vlaneseq
        %v10549 = vshrl.u32 %v10548, 7
        %v10550 = vsub.s32 %v10547, %v10549
        %v10551 = vrot.slane %v10537, %v10550
        %v10552 = vcombine.high %v10544, %v10544
        %v10553 = vcombine.high %v10551, %v10551
        %v10554 = vcombine.high %v9261, %v9261
        %v10556 = vunpack.c.l.s4 1983009808
        %v10557 = vunpack.c.0.s8 %v10556
        %v10558 = vlaneseq
        %v10559 = vshrl.u32 %v10558, 7
        %v10560 = vsub.s32 %v10557, %v10559
        %v10561 = vrot.slane %v9261, %v10560
        %v10563 = vunpack.c.l.s4 1983009808
        %v10564 = vunpack.c.0.s8 %v10563
        %v10565 = vlaneseq
        %v10566 = vshrl.u32 %v10565, 7
        %v10567 = vsub.s32 %v10564, %v10566
        %v10568 = vrot.slane %v10554, %v10567
        %v10569 = vcombine.high %v10561, %v10561
        %v10570 = vcombine.high %v10568, %v10568
        %v10571 = vcombine.high %v9262, %v9262
        %v10573 = vunpack.c.l.s4 1983009808
        %v10574 = vunpack.c.0.s8 %v10573
        %v10575 = vlaneseq
        %v10576 = vshrl.u32 %v10575, 7
        %v10577 = vsub.s32 %v10574, %v10576
        %v10578 = vrot.slane %v9262, %v10577
        %v10580 = vunpack.c.l.s4 1983009808
        %v10581 = vunpack.c.0.s8 %v10580
        %v10582 = vlaneseq
        %v10583 = vshrl.u32 %v10582, 7
        %v10584 = vsub.s32 %v10581, %v10583
        %v10585 = vrot.slane %v10571, %v10584
        %v10586 = vcombine.high %v10578, %v10578
        %v10587 = vcombine.high %v10585, %v10585
        %v10588 = vcombine.high %v9263, %v9263
        %v10590 = vunpack.c.l.s4 1983009808
        %v10591 = vunpack.c.0.s8 %v10590
        %v10592 = vlaneseq
        %v10593 = vshrl.u32 %v10592, 7
        %v10594 = vsub.s32 %v10591, %v10593
        %v10595 = vrot.slane %v9263, %v10594
        %v10597 = vunpack.c.l.s4 1983009808
        %v10598 = vunpack.c.0.s8 %v10597
        %v10599 = vlaneseq
        %v10600 = vshrl.u32 %v10599, 7
        %v10601 = vsub.s32 %v10598, %v10600
        %v10602 = vrot.slane %v10588, %v10601
        %v10603 = vcombine.high %v10595, %v10595
        %v10604 = vcombine.high %v10602, %v10602
        %v10669 = vsel %vm9697, %v10340, -inf
        %v10670 = vrot.slane %v10669, 4
        %v10671 = vmax.f32 %v10669, %v10670
        %v10672 = vrot.slane %v10671, 2
        %v10673 = vmax.f32 %v10671, %v10672
        %v10674 = vrot.slane %v10673, 1
        %v10675 = vmax.f32 %v10673, %v10674
        %v10676 = vsel %vm9697, %v10348, -inf
        %v10677 = vrot.slane %v10676, 4
        %v10678 = vmax.f32 %v10676, %v10677
        %v10679 = vrot.slane %v10678, 2
        %v10680 = vmax.f32 %v10678, %v10679
        %v10681 = vrot.slane %v10680, 1
        %v10682 = vmax.f32 %v10680, %v10681
        %v10683 = vsel %vm9697, %v10347, -inf
        %v10684 = vrot.slane %v10683, 4
        %v10685 = vmax.f32 %v10683, %v10684
        %v10686 = vrot.slane %v10685, 2
        %v10687 = vmax.f32 %v10685, %v10686
        %v10688 = vrot.slane %v10687, 1
        %v10689 = vmax.f32 %v10687, %v10688
        %v10690 = vsel %vm9697, %v10349, -inf
        %v10691 = vrot.slane %v10690, 4
        %v10692 = vmax.f32 %v10690, %v10691
        %v10693 = vrot.slane %v10692, 2
        %v10694 = vmax.f32 %v10692, %v10693
        %v10695 = vrot.slane %v10694, 1
        %v10696 = vmax.f32 %v10694, %v10695
        %v10697 = vsel %vm9697, %v10357, -inf
        %v10698 = vrot.slane %v10697, 4
        %v10699 = vmax.f32 %v10697, %v10698
        %v10700 = vrot.slane %v10699, 2
        %v10701 = vmax.f32 %v10699, %v10700
        %v10702 = vrot.slane %v10701, 1
        %v10703 = vmax.f32 %v10701, %v10702
        %v10704 = vsel %vm9697, %v10365, -inf
        %v10705 = vrot.slane %v10704, 4
        %v10706 = vmax.f32 %v10704, %v10705
        %v10707 = vrot.slane %v10706, 2
        %v10708 = vmax.f32 %v10706, %v10707
        %v10709 = vrot.slane %v10708, 1
        %v10710 = vmax.f32 %v10708, %v10709
        %v10711 = vsel %vm9697, %v10364, -inf
        %v10712 = vrot.slane %v10711, 4
        %v10713 = vmax.f32 %v10711, %v10712
        %v10714 = vrot.slane %v10713, 2
        %v10715 = vmax.f32 %v10713, %v10714
        %v10716 = vrot.slane %v10715, 1
        %v10717 = vmax.f32 %v10715, %v10716
        %v10718 = vsel %vm9697, %v10366, -inf
        %v10719 = vrot.slane %v10718, 4
        %v10720 = vmax.f32 %v10718, %v10719
        %v10721 = vrot.slane %v10720, 2
        %v10722 = vmax.f32 %v10720, %v10721
        %v10723 = vrot.slane %v10722, 1
        %v10724 = vmax.f32 %v10722, %v10723
        %v10725 = vsel %vm9697, %v10374, -inf
        %v10726 = vrot.slane %v10725, 4
        %v10727 = vmax.f32 %v10725, %v10726
        %v10728 = vrot.slane %v10727, 2
        %v10729 = vmax.f32 %v10727, %v10728
        %v10730 = vrot.slane %v10729, 1
        %v10731 = vmax.f32 %v10729, %v10730
        %v10732 = vsel %vm9697, %v10382, -inf
        %v10733 = vrot.slane %v10732, 4
        %v10734 = vmax.f32 %v10732, %v10733
        %v10735 = vrot.slane %v10734, 2
        %v10736 = vmax.f32 %v10734, %v10735
        %v10737 = vrot.slane %v10736, 1
        %v10738 = vmax.f32 %v10736, %v10737
        %v10739 = vsel %vm9697, %v10381, -inf
        %v10740 = vrot.slane %v10739, 4
        %v10741 = vmax.f32 %v10739, %v10740
        %v10742 = vrot.slane %v10741, 2
        %v10743 = vmax.f32 %v10741, %v10742
        %v10744 = vrot.slane %v10743, 1
        %v10745 = vmax.f32 %v10743, %v10744
        %v10746 = vsel %vm9697, %v10383, -inf
        %v10747 = vrot.slane %v10746, 4
        %v10748 = vmax.f32 %v10746, %v10747
        %v10749 = vrot.slane %v10748, 2
        %v10750 = vmax.f32 %v10748, %v10749
        %v10751 = vrot.slane %v10750, 1
        %v10752 = vmax.f32 %v10750, %v10751
        %v10753 = vsel %vm9697, %v10391, -inf
        %v10754 = vrot.slane %v10753, 4
        %v10755 = vmax.f32 %v10753, %v10754
        %v10756 = vrot.slane %v10755, 2
        %v10757 = vmax.f32 %v10755, %v10756
        %v10758 = vrot.slane %v10757, 1
        %v10759 = vmax.f32 %v10757, %v10758
        %v10760 = vsel %vm9697, %v10399, -inf
        %v10761 = vrot.slane %v10760, 4
        %v10762 = vmax.f32 %v10760, %v10761
        %v10763 = vrot.slane %v10762, 2
        %v10764 = vmax.f32 %v10762, %v10763
        %v10765 = vrot.slane %v10764, 1
        %v10766 = vmax.f32 %v10764, %v10765
        %v10767 = vsel %vm9697, %v10398, -inf
        %v10768 = vrot.slane %v10767, 4
        %v10769 = vmax.f32 %v10767, %v10768
        %v10770 = vrot.slane %v10769, 2
        %v10771 = vmax.f32 %v10769, %v10770
        %v10772 = vrot.slane %v10771, 1
        %v10773 = vmax.f32 %v10771, %v10772
        %v10774 = vsel %vm9697, %v10400, -inf
        %v10775 = vrot.slane %v10774, 4
        %v10776 = vmax.f32 %v10774, %v10775
        %v10777 = vrot.slane %v10776, 2
        %v10778 = vmax.f32 %v10776, %v10777
        %v10779 = vrot.slane %v10778, 1
        %v10780 = vmax.f32 %v10778, %v10779
        %v10781 = vsel %vm9697, %v10408, -inf
        %v10782 = vrot.slane %v10781, 4
        %v10783 = vmax.f32 %v10781, %v10782
        %v10784 = vrot.slane %v10783, 2
        %v10785 = vmax.f32 %v10783, %v10784
        %v10786 = vrot.slane %v10785, 1
        %v10787 = vmax.f32 %v10785, %v10786
        %v10788 = vsel %vm9697, %v10416, -inf
        %v10789 = vrot.slane %v10788, 4
        %v10790 = vmax.f32 %v10788, %v10789
        %v10791 = vrot.slane %v10790, 2
        %v10792 = vmax.f32 %v10790, %v10791
        %v10793 = vrot.slane %v10792, 1
        %v10794 = vmax.f32 %v10792, %v10793
        %v10795 = vsel %vm9697, %v10415, -inf
        %v10796 = vrot.slane %v10795, 4
        %v10797 = vmax.f32 %v10795, %v10796
        %v10798 = vrot.slane %v10797, 2
        %v10799 = vmax.f32 %v10797, %v10798
        %v10800 = vrot.slane %v10799, 1
        %v10801 = vmax.f32 %v10799, %v10800
        %v10802 = vsel %vm9697, %v10417, -inf
        %v10803 = vrot.slane %v10802, 4
        %v10804 = vmax.f32 %v10802, %v10803
        %v10805 = vrot.slane %v10804, 2
        %v10806 = vmax.f32 %v10804, %v10805
        %v10807 = vrot.slane %v10806, 1
        %v10808 = vmax.f32 %v10806, %v10807
        %v10809 = vsel %vm9697, %v10425, -inf
        %v10810 = vrot.slane %v10809, 4
        %v10811 = vmax.f32 %v10809, %v10810
        %v10812 = vrot.slane %v10811, 2
        %v10813 = vmax.f32 %v10811, %v10812
        %v10814 = vrot.slane %v10813, 1
        %v10815 = vmax.f32 %v10813, %v10814
        %v10816 = vsel %vm9697, %v10433, -inf
        %v10817 = vrot.slane %v10816, 4
        %v10818 = vmax.f32 %v10816, %v10817
        %v10819 = vrot.slane %v10818, 2
        %v10820 = vmax.f32 %v10818, %v10819
        %v10821 = vrot.slane %v10820, 1
        %v10822 = vmax.f32 %v10820, %v10821
        %v10823 = vsel %vm9697, %v10432, -inf
        %v10824 = vrot.slane %v10823, 4
        %v10825 = vmax.f32 %v10823, %v10824
        %v10826 = vrot.slane %v10825, 2
        %v10827 = vmax.f32 %v10825, %v10826
        %v10828 = vrot.slane %v10827, 1
        %v10829 = vmax.f32 %v10827, %v10828
        %v10830 = vsel %vm9697, %v10434, -inf
        %v10831 = vrot.slane %v10830, 4
        %v10832 = vmax.f32 %v10830, %v10831
        %v10833 = vrot.slane %v10832, 2
        %v10834 = vmax.f32 %v10832, %v10833
        %v10835 = vrot.slane %v10834, 1
        %v10836 = vmax.f32 %v10834, %v10835
        %v10837 = vsel %vm9697, %v10442, -inf
        %v10838 = vrot.slane %v10837, 4
        %v10839 = vmax.f32 %v10837, %v10838
        %v10840 = vrot.slane %v10839, 2
        %v10841 = vmax.f32 %v10839, %v10840
        %v10842 = vrot.slane %v10841, 1
        %v10843 = vmax.f32 %v10841, %v10842
        %v10844 = vsel %vm9697, %v10450, -inf
        %v10845 = vrot.slane %v10844, 4
        %v10846 = vmax.f32 %v10844, %v10845
        %v10847 = vrot.slane %v10846, 2
        %v10848 = vmax.f32 %v10846, %v10847
        %v10849 = vrot.slane %v10848, 1
        %v10850 = vmax.f32 %v10848, %v10849
        %v10851 = vsel %vm9697, %v10449, -inf
        %v10852 = vrot.slane %v10851, 4
        %v10853 = vmax.f32 %v10851, %v10852
        %v10854 = vrot.slane %v10853, 2
        %v10855 = vmax.f32 %v10853, %v10854
        %v10856 = vrot.slane %v10855, 1
        %v10857 = vmax.f32 %v10855, %v10856
        %v10858 = vsel %vm9697, %v10451, -inf
        %v10859 = vrot.slane %v10858, 4
        %v10860 = vmax.f32 %v10858, %v10859
        %v10861 = vrot.slane %v10860, 2
        %v10862 = vmax.f32 %v10860, %v10861
        %v10863 = vrot.slane %v10862, 1
        %v10864 = vmax.f32 %v10862, %v10863
        %v10865 = vsel %vm9697, %v10459, -inf
        %v10866 = vrot.slane %v10865, 4
        %v10867 = vmax.f32 %v10865, %v10866
        %v10868 = vrot.slane %v10867, 2
        %v10869 = vmax.f32 %v10867, %v10868
        %v10870 = vrot.slane %v10869, 1
        %v10871 = vmax.f32 %v10869, %v10870
        %v10872 = vsel %vm9697, %v10467, -inf
        %v10873 = vrot.slane %v10872, 4
        %v10874 = vmax.f32 %v10872, %v10873
        %v10875 = vrot.slane %v10874, 2
        %v10876 = vmax.f32 %v10874, %v10875
        %v10877 = vrot.slane %v10876, 1
        %v10878 = vmax.f32 %v10876, %v10877
        %v10879 = vsel %vm9697, %v10466, -inf
        %v10880 = vrot.slane %v10879, 4
        %v10881 = vmax.f32 %v10879, %v10880
        %v10882 = vrot.slane %v10881, 2
        %v10883 = vmax.f32 %v10881, %v10882
        %v10884 = vrot.slane %v10883, 1
        %v10885 = vmax.f32 %v10883, %v10884
        %v10886 = vsel %vm9697, %v10468, -inf
        %v10887 = vrot.slane %v10886, 4
        %v10888 = vmax.f32 %v10886, %v10887
        %v10889 = vrot.slane %v10888, 2
        %v10890 = vmax.f32 %v10888, %v10889
        %v10891 = vrot.slane %v10890, 1
        %v10892 = vmax.f32 %v10890, %v10891
        %v10893 = vsel %vm9697, %v10476, -inf
        %v10894 = vrot.slane %v10893, 4
        %v10895 = vmax.f32 %v10893, %v10894
        %v10896 = vrot.slane %v10895, 2
        %v10897 = vmax.f32 %v10895, %v10896
        %v10898 = vrot.slane %v10897, 1
        %v10899 = vmax.f32 %v10897, %v10898
        %v10900 = vsel %vm9697, %v10484, -inf
        %v10901 = vrot.slane %v10900, 4
        %v10902 = vmax.f32 %v10900, %v10901
        %v10903 = vrot.slane %v10902, 2
        %v10904 = vmax.f32 %v10902, %v10903
        %v10905 = vrot.slane %v10904, 1
        %v10906 = vmax.f32 %v10904, %v10905
        %v10907 = vsel %vm9697, %v10483, -inf
        %v10908 = vrot.slane %v10907, 4
        %v10909 = vmax.f32 %v10907, %v10908
        %v10910 = vrot.slane %v10909, 2
        %v10911 = vmax.f32 %v10909, %v10910
        %v10912 = vrot.slane %v10911, 1
        %v10913 = vmax.f32 %v10911, %v10912
        %v10914 = vsel %vm9697, %v10485, -inf
        %v10915 = vrot.slane %v10914, 4
        %v10916 = vmax.f32 %v10914, %v10915
        %v10917 = vrot.slane %v10916, 2
        %v10918 = vmax.f32 %v10916, %v10917
        %v10919 = vrot.slane %v10918, 1
        %v10920 = vmax.f32 %v10918, %v10919
        %v10921 = vsel %vm9697, %v10493, -inf
        %v10922 = vrot.slane %v10921, 4
        %v10923 = vmax.f32 %v10921, %v10922
        %v10924 = vrot.slane %v10923, 2
        %v10925 = vmax.f32 %v10923, %v10924
        %v10926 = vrot.slane %v10925, 1
        %v10927 = vmax.f32 %v10925, %v10926
        %v10928 = vsel %vm9697, %v10501, -inf
        %v10929 = vrot.slane %v10928, 4
        %v10930 = vmax.f32 %v10928, %v10929
        %v10931 = vrot.slane %v10930, 2
        %v10932 = vmax.f32 %v10930, %v10931
        %v10933 = vrot.slane %v10932, 1
        %v10934 = vmax.f32 %v10932, %v10933
        %v10935 = vsel %vm9697, %v10500, -inf
        %v10936 = vrot.slane %v10935, 4
        %v10937 = vmax.f32 %v10935, %v10936
        %v10938 = vrot.slane %v10937, 2
        %v10939 = vmax.f32 %v10937, %v10938
        %v10940 = vrot.slane %v10939, 1
        %v10941 = vmax.f32 %v10939, %v10940
        %v10942 = vsel %vm9697, %v10502, -inf
        %v10943 = vrot.slane %v10942, 4
        %v10944 = vmax.f32 %v10942, %v10943
        %v10945 = vrot.slane %v10944, 2
        %v10946 = vmax.f32 %v10944, %v10945
        %v10947 = vrot.slane %v10946, 1
        %v10948 = vmax.f32 %v10946, %v10947
        %v10949 = vsel %vm9697, %v10510, -inf
        %v10950 = vrot.slane %v10949, 4
        %v10951 = vmax.f32 %v10949, %v10950
        %v10952 = vrot.slane %v10951, 2
        %v10953 = vmax.f32 %v10951, %v10952
        %v10954 = vrot.slane %v10953, 1
        %v10955 = vmax.f32 %v10953, %v10954
        %v10956 = vsel %vm9697, %v10518, -inf
        %v10957 = vrot.slane %v10956, 4
        %v10958 = vmax.f32 %v10956, %v10957
        %v10959 = vrot.slane %v10958, 2
        %v10960 = vmax.f32 %v10958, %v10959
        %v10961 = vrot.slane %v10960, 1
        %v10962 = vmax.f32 %v10960, %v10961
        %v10963 = vsel %vm9697, %v10517, -inf
        %v10964 = vrot.slane %v10963, 4
        %v10965 = vmax.f32 %v10963, %v10964
        %v10966 = vrot.slane %v10965, 2
        %v10967 = vmax.f32 %v10965, %v10966
        %v10968 = vrot.slane %v10967, 1
        %v10969 = vmax.f32 %v10967, %v10968
        %v10970 = vsel %vm9697, %v10519, -inf
        %v10971 = vrot.slane %v10970, 4
        %v10972 = vmax.f32 %v10970, %v10971
        %v10973 = vrot.slane %v10972, 2
        %v10974 = vmax.f32 %v10972, %v10973
        %v10975 = vrot.slane %v10974, 1
        %v10976 = vmax.f32 %v10974, %v10975
        %v10977 = vsel %vm9697, %v10527, -inf
        %v10978 = vrot.slane %v10977, 4
        %v10979 = vmax.f32 %v10977, %v10978
        %v10980 = vrot.slane %v10979, 2
        %v10981 = vmax.f32 %v10979, %v10980
        %v10982 = vrot.slane %v10981, 1
        %v10983 = vmax.f32 %v10981, %v10982
        %v10984 = vsel %vm9697, %v10535, -inf
        %v10985 = vrot.slane %v10984, 4
        %v10986 = vmax.f32 %v10984, %v10985
        %v10987 = vrot.slane %v10986, 2
        %v10988 = vmax.f32 %v10986, %v10987
        %v10989 = vrot.slane %v10988, 1
        %v10990 = vmax.f32 %v10988, %v10989
        %v10991 = vsel %vm9697, %v10534, -inf
        %v10992 = vrot.slane %v10991, 4
        %v10993 = vmax.f32 %v10991, %v10992
        %v10994 = vrot.slane %v10993, 2
        %v10995 = vmax.f32 %v10993, %v10994
        %v10996 = vrot.slane %v10995, 1
        %v10997 = vmax.f32 %v10995, %v10996
        %v10998 = vsel %vm9697, %v10536, -inf
        %v10999 = vrot.slane %v10998, 4
        %v11000 = vmax.f32 %v10998, %v10999
        %v11001 = vrot.slane %v11000, 2
        %v11002 = vmax.f32 %v11000, %v11001
        %v11003 = vrot.slane %v11002, 1
        %v11004 = vmax.f32 %v11002, %v11003
        %v11005 = vsel %vm9697, %v10544, -inf
        %v11006 = vrot.slane %v11005, 4
        %v11007 = vmax.f32 %v11005, %v11006
        %v11008 = vrot.slane %v11007, 2
        %v11009 = vmax.f32 %v11007, %v11008
        %v11010 = vrot.slane %v11009, 1
        %v11011 = vmax.f32 %v11009, %v11010
        %v11012 = vsel %vm9697, %v10552, -inf
        %v11013 = vrot.slane %v11012, 4
        %v11014 = vmax.f32 %v11012, %v11013
        %v11015 = vrot.slane %v11014, 2
        %v11016 = vmax.f32 %v11014, %v11015
        %v11017 = vrot.slane %v11016, 1
        %v11018 = vmax.f32 %v11016, %v11017
        %v11019 = vsel %vm9697, %v10551, -inf
        %v11020 = vrot.slane %v11019, 4
        %v11021 = vmax.f32 %v11019, %v11020
        %v11022 = vrot.slane %v11021, 2
        %v11023 = vmax.f32 %v11021, %v11022
        %v11024 = vrot.slane %v11023, 1
        %v11025 = vmax.f32 %v11023, %v11024
        %v11026 = vsel %vm9697, %v10553, -inf
        %v11027 = vrot.slane %v11026, 4
        %v11028 = vmax.f32 %v11026, %v11027
        %v11029 = vrot.slane %v11028, 2
        %v11030 = vmax.f32 %v11028, %v11029
        %v11031 = vrot.slane %v11030, 1
        %v11032 = vmax.f32 %v11030, %v11031
        %v11033 = vsel %vm9697, %v10561, -inf
        %v11034 = vrot.slane %v11033, 4
        %v11035 = vmax.f32 %v11033, %v11034
        %v11036 = vrot.slane %v11035, 2
        %v11037 = vmax.f32 %v11035, %v11036
        %v11038 = vrot.slane %v11037, 1
        %v11039 = vmax.f32 %v11037, %v11038
        %v11040 = vsel %vm9697, %v10569, -inf
        %v11041 = vrot.slane %v11040, 4
        %v11042 = vmax.f32 %v11040, %v11041
        %v11043 = vrot.slane %v11042, 2
        %v11044 = vmax.f32 %v11042, %v11043
        %v11045 = vrot.slane %v11044, 1
        %v11046 = vmax.f32 %v11044, %v11045
        %v11047 = vsel %vm9697, %v10568, -inf
        %v11048 = vrot.slane %v11047, 4
        %v11049 = vmax.f32 %v11047, %v11048
        %v11050 = vrot.slane %v11049, 2
        %v11051 = vmax.f32 %v11049, %v11050
        %v11052 = vrot.slane %v11051, 1
        %v11053 = vmax.f32 %v11051, %v11052
        %v11054 = vsel %vm9697, %v10570, -inf
        %v11055 = vrot.slane %v11054, 4
        %v11056 = vmax.f32 %v11054, %v11055
        %v11057 = vrot.slane %v11056, 2
        %v11058 = vmax.f32 %v11056, %v11057
        %v11059 = vrot.slane %v11058, 1
        %v11060 = vmax.f32 %v11058, %v11059
        %v11061 = vsel %vm9697, %v10578, -inf
        %v11062 = vrot.slane %v11061, 4
        %v11063 = vmax.f32 %v11061, %v11062
        %v11064 = vrot.slane %v11063, 2
        %v11065 = vmax.f32 %v11063, %v11064
        %v11066 = vrot.slane %v11065, 1
        %v11067 = vmax.f32 %v11065, %v11066
        %v11068 = vsel %vm9697, %v10586, -inf
        %v11069 = vrot.slane %v11068, 4
        %v11070 = vmax.f32 %v11068, %v11069
        %v11071 = vrot.slane %v11070, 2
        %v11072 = vmax.f32 %v11070, %v11071
        %v11073 = vrot.slane %v11072, 1
        %v11074 = vmax.f32 %v11072, %v11073
        %v11075 = vsel %vm9697, %v10585, -inf
        %v11076 = vrot.slane %v11075, 4
        %v11077 = vmax.f32 %v11075, %v11076
        %v11078 = vrot.slane %v11077, 2
        %v11079 = vmax.f32 %v11077, %v11078
        %v11080 = vrot.slane %v11079, 1
        %v11081 = vmax.f32 %v11079, %v11080
        %v11082 = vsel %vm9697, %v10587, -inf
        %v11083 = vrot.slane %v11082, 4
        %v11084 = vmax.f32 %v11082, %v11083
        %v11085 = vrot.slane %v11084, 2
        %v11086 = vmax.f32 %v11084, %v11085
        %v11087 = vrot.slane %v11086, 1
        %v11088 = vmax.f32 %v11086, %v11087
        %v11089 = vsel %vm9697, %v10595, -inf
        %v11090 = vrot.slane %v11089, 4
        %v11091 = vmax.f32 %v11089, %v11090
        %v11092 = vrot.slane %v11091, 2
        %v11093 = vmax.f32 %v11091, %v11092
        %v11094 = vrot.slane %v11093, 1
        %v11095 = vmax.f32 %v11093, %v11094
        %v11096 = vsel %vm9697, %v10603, -inf
        %v11097 = vrot.slane %v11096, 4
        %v11098 = vmax.f32 %v11096, %v11097
        %v11099 = vrot.slane %v11098, 2
        %v11100 = vmax.f32 %v11098, %v11099
        %v11101 = vrot.slane %v11100, 1
        %v11102 = vmax.f32 %v11100, %v11101
        %v11103 = vsel %vm9697, %v10602, -inf
        %v11104 = vrot.slane %v11103, 4
        %v11105 = vmax.f32 %v11103, %v11104
        %v11106 = vrot.slane %v11105, 2
        %v11107 = vmax.f32 %v11105, %v11106
        %v11108 = vrot.slane %v11107, 1
        %v11109 = vmax.f32 %v11107, %v11108
        %v11110 = vsel %vm9697, %v10604, -inf
        %v11111 = vrot.slane %v11110, 4
        %v11112 = vmax.f32 %v11110, %v11111
        %v11113 = vrot.slane %v11112, 2
        %v11114 = vmax.f32 %v11112, %v11113
        %v11115 = vrot.slane %v11114, 1
        %v11116 = vmax.f32 %v11114, %v11115
        %v11117 = vsel %vm9264, %v10675, -inf
        %v11118 = vsel %vm9264, %v10731, -inf
        %v11119 = vmax.f32 %v11117, %v11118
        %v11120 = vsel %vm9264, %v10682, -inf
        %v11121 = vsel %vm9264, %v10738, -inf
        %v11122 = vmax.f32 %v11120, %v11121
        %v11123 = vsel %vm9264, %v10689, -inf
        %v11124 = vsel %vm9264, %v10745, -inf
        %v11125 = vmax.f32 %v11123, %v11124
        %v11126 = vsel %vm9264, %v10696, -inf
        %v11127 = vsel %vm9264, %v10752, -inf
        %v11128 = vmax.f32 %v11126, %v11127
        %v11129 = vsel %vm9264, %v10703, -inf
        %v11130 = vsel %vm9264, %v10759, -inf
        %v11131 = vmax.f32 %v11129, %v11130
        %v11132 = vsel %vm9264, %v10710, -inf
        %v11133 = vsel %vm9264, %v10766, -inf
        %v11134 = vmax.f32 %v11132, %v11133
        %v11135 = vsel %vm9264, %v10717, -inf
        %v11136 = vsel %vm9264, %v10773, -inf
        %v11137 = vmax.f32 %v11135, %v11136
        %v11138 = vsel %vm9264, %v10724, -inf
        %v11139 = vsel %vm9264, %v10780, -inf
        %v11140 = vmax.f32 %v11138, %v11139
        %v11141 = vsel %vm9264, %v10787, -inf
        %v11142 = vsel %vm9264, %v10843, -inf
        %v11143 = vmax.f32 %v11141, %v11142
        %v11144 = vsel %vm9264, %v10794, -inf
        %v11145 = vsel %vm9264, %v10850, -inf
        %v11146 = vmax.f32 %v11144, %v11145
        %v11147 = vsel %vm9264, %v10801, -inf
        %v11148 = vsel %vm9264, %v10857, -inf
        %v11149 = vmax.f32 %v11147, %v11148
        %v11150 = vsel %vm9264, %v10808, -inf
        %v11151 = vsel %vm9264, %v10864, -inf
        %v11152 = vmax.f32 %v11150, %v11151
        %v11153 = vsel %vm9264, %v10815, -inf
        %v11154 = vsel %vm9264, %v10871, -inf
        %v11155 = vmax.f32 %v11153, %v11154
        %v11156 = vsel %vm9264, %v10822, -inf
        %v11157 = vsel %vm9264, %v10878, -inf
        %v11158 = vmax.f32 %v11156, %v11157
        %v11159 = vsel %vm9264, %v10829, -inf
        %v11160 = vsel %vm9264, %v10885, -inf
        %v11161 = vmax.f32 %v11159, %v11160
        %v11162 = vsel %vm9264, %v10836, -inf
        %v11163 = vsel %vm9264, %v10892, -inf
        %v11164 = vmax.f32 %v11162, %v11163
        %v11165 = vsel %vm9264, %v10899, -inf
        %v11166 = vsel %vm9264, %v10955, -inf
        %v11167 = vmax.f32 %v11165, %v11166
        %v11168 = vsel %vm9264, %v10906, -inf
        %v11169 = vsel %vm9264, %v10962, -inf
        %v11170 = vmax.f32 %v11168, %v11169
        %v11171 = vsel %vm9264, %v10913, -inf
        %v11172 = vsel %vm9264, %v10969, -inf
        %v11173 = vmax.f32 %v11171, %v11172
        %v11174 = vsel %vm9264, %v10920, -inf
        %v11175 = vsel %vm9264, %v10976, -inf
        %v11176 = vmax.f32 %v11174, %v11175
        %v11177 = vsel %vm9264, %v10927, -inf
        %v11178 = vsel %vm9264, %v10983, -inf
        %v11179 = vmax.f32 %v11177, %v11178
        %v11180 = vsel %vm9264, %v10934, -inf
        %v11181 = vsel %vm9264, %v10990, -inf
        %v11182 = vmax.f32 %v11180, %v11181
        %v11183 = vsel %vm9264, %v10941, -inf
        %v11184 = vsel %vm9264, %v10997, -inf
        %v11185 = vmax.f32 %v11183, %v11184
        %v11186 = vsel %vm9264, %v10948, -inf
        %v11187 = vsel %vm9264, %v11004, -inf
        %v11188 = vmax.f32 %v11186, %v11187
        %v11189 = vsel %vm9264, %v11011, -inf
        %v11190 = vsel %vm9264, %v11067, -inf
        %v11191 = vmax.f32 %v11189, %v11190
        %v11192 = vsel %vm9264, %v11018, -inf
        %v11193 = vsel %vm9264, %v11074, -inf
        %v11194 = vmax.f32 %v11192, %v11193
        %v11195 = vsel %vm9264, %v11025, -inf
        %v11196 = vsel %vm9264, %v11081, -inf
        %v11197 = vmax.f32 %v11195, %v11196
        %v11198 = vsel %vm9264, %v11032, -inf
        %v11199 = vsel %vm9264, %v11088, -inf
        %v11200 = vmax.f32 %v11198, %v11199
        %v11201 = vsel %vm9264, %v11039, -inf
        %v11202 = vsel %vm9264, %v11095, -inf
        %v11203 = vmax.f32 %v11201, %v11202
        %v11204 = vsel %vm9264, %v11046, -inf
        %v11205 = vsel %vm9264, %v11102, -inf
        %v11206 = vmax.f32 %v11204, %v11205
        %v11207 = vsel %vm9264, %v11053, -inf
        %v11208 = vsel %vm9264, %v11109, -inf
        %v11209 = vmax.f32 %v11207, %v11208
        %v11210 = vsel %vm9264, %v11060, -inf
        %v11211 = vsel %vm9264, %v11116, -inf
        %v11212 = vmax.f32 %v11210, %v11211
        %v11245 = vsel %vm10274, %v11122, %v11119
        %v11246 = vsel %vm10276, %v11125, %v11245
        %v11247 = vsel %vm10278, %v11128, %v11246
        %v11248 = vsel %vm10280, %v11131, %v11247
        %v11249 = vsel %vm10282, %v11134, %v11248
        %v11250 = vsel %vm10284, %v11137, %v11249
        %v11251 = vsel %vm10286, %v11140, %v11250
        %v11252 = vsel %vm10274, %v11146, %v11143
        %v11253 = vsel %vm10276, %v11149, %v11252
        %v11254 = vsel %vm10278, %v11152, %v11253
        %v11255 = vsel %vm10280, %v11155, %v11254
        %v11256 = vsel %vm10282, %v11158, %v11255
        %v11257 = vsel %vm10284, %v11161, %v11256
        %v11258 = vsel %vm10286, %v11164, %v11257
        %v11259 = vsel %vm10274, %v11170, %v11167
        %v11260 = vsel %vm10276, %v11173, %v11259
        %v11261 = vsel %vm10278, %v11176, %v11260
        %v11262 = vsel %vm10280, %v11179, %v11261
        %v11263 = vsel %vm10282, %v11182, %v11262
        %v11264 = vsel %vm10284, %v11185, %v11263
        %v11265 = vsel %vm10286, %v11188, %v11264
        %v11266 = vsel %vm10274, %v11194, %v11191
        %v11267 = vsel %vm10276, %v11197, %v11266
        %v11268 = vsel %vm10278, %v11200, %v11267
        %v11269 = vsel %vm10280, %v11203, %v11268
        %v11270 = vsel %vm10282, %v11206, %v11269
        %v11271 = vsel %vm10284, %v11209, %v11270
        %v11272 = vsel %vm10286, %v11212, %v11271
        %11273 = vrot.lane.b32.xlu0 %v11251, 8
        %v11274 = vpop.permute.xlu0 %11273
        %11275 = vrot.lane.b32.xlu0 %v11258, 8
        %v11276 = vpop.permute.xlu0 %11275
        %11277 = vrot.lane.b32.xlu0 %v11265, 8
        %v11278 = vpop.permute.xlu0 %11277
        %11279 = vrot.lane.b32.xlu0 %v11272, 8
        %v11280 = vpop.permute.xlu0 %11279
        %vm11285 = vcmask 130112
        %11286 = vst.msk [vmem:[%s369] sm:$0xff] %vm11285, %v11274
        %11287 = vst.msk [vmem:[%s369 + $0x8] sm:$0xff] %vm11285, %v11276
        %11288 = vst.msk [vmem:[%s369 + $0x10] sm:$0xff] %vm11285, %v11278
        %11289 = vst.msk [vmem:[%s369 + $0x18] sm:$0xff] %vm11285, %v11280
        %s11290 = sand.u32 %s241, 1
        %s11291 = scalar_lea.sflag [#allocation6], %s11290
        %s11292 = sand.u32 %s241, 1
        %s11293 = smul.addr %s11292, 32
        %s11294 = scalar_lea.vmem [#allocation5], %s11293
        %s11295 = smul.u32 8, %s30
        %p11296 = scmp.lt.s32.totalorder %s29, 1
        %s11297 = scalar_select %p11296, %s29, 1
        %p11298 = scmp.lt.s32.totalorder %s11295, 15
        %s11299 = scalar_select %p11298, %s11295, 15
        %s11300 = smul.addr %s11299, 2
        %s11301 = smul.addr %s11297, 32
        %s11302 = sadd.s32 %s11300, %s11301
        %s11303 = smul.addr %s11302, 8
        %s11304 = scalar_lea.vmem %s10, %s11303
        // Predicated region
        $region57: #{csp_darknet_tiny_block.1} parent=55 // pred_check
          %p11305 = pneg %p251
        $region58: #{csp_darknet_tiny_block.1} parent=55 // pred_check_branch
          %11307 = sbr.rel (%p11305) target = $region60
        $region59: #{csp_darknet_tiny_block.1} parent=55 // pred_region
          %s11308 = smul.u32 4, %s30
          %s11310 = ssub.s32 512, 512
          %11311 = vsyncadd %s11291, %s11310
          %s11312 = smul.addr %s29, 8
          %s11313 = sadd.s32 %s11308, %s11312
          %s11314 = smul.addr %s11313, 128
          %s11315 = scalar_lea.hbm %s9, %s11314
          %s11316 = sshll.u32 %s11294, 4
          %s11317 = int_to_ptr.vmem [resolvable:$true] %s11316
          %11322 = dma.vmem_to_hbm [thread:$0]  %s11317, 512, %s11315, %s11291, 128, 128, 8
        $region60: #{csp_darknet_tiny_block.1} parent=55 // pred_fallthru
          _
        // Predicated region
        $region61: #{csp_darknet_tiny_block.1} parent=55 // pred_check
          %p11323 = pneg %p279
        $region62: #{csp_darknet_tiny_block.1} parent=55 // pred_check_branch
          %11325 = sbr.rel (%p11323) target = $region64
        $region63: #{csp_darknet_tiny_block.1} parent=55 // pred_region
          %s11326 = smul.u32 8, %s30
        $region64: #{csp_darknet_tiny_block.1} parent=55 // pred_fallthru
          _
      $region56: #{csp_darknet_tiny_block.1} parent=5 // pred_fallthru
        _
      %p11327 = scmp.le.s32.totalorder 2, %s20
      // Predicated region
      $region65: #{csp_darknet_tiny_block.1} parent=5 // pred_check
        %p11328 = pneg %p11327
      $region66: #{csp_darknet_tiny_block.1} parent=5 // pred_check_branch
        %11330 = sbr.rel (%p11328) target = $region68
      $region67: #{csp_darknet_tiny_block.1} parent=5 // pred_region
        %s11331 = ssub.s32 %s20, 2
        // Predicated region
        $region69: #{csp_darknet_tiny_block.1} parent=67 // pred_check
          %p11332 = pneg %p257
        $region70: #{csp_darknet_tiny_block.1} parent=67 // pred_check_branch
          %11334 = sbr.rel (%p11332) target = $region72
        $region71: #{csp_darknet_tiny_block.1} parent=67 // pred_region
          %s11335 = sand.u32 %s242, 1
          %s11336 = scalar_lea.sflag [#allocation6], %s11335
          %s11337 = sand.u32 %s242, 1
          %s11338 = smul.addr %s11337, 32
          %s11339 = scalar_lea.vmem [#allocation5], %s11338
          %11340 = dma.done %s11336, 512
        $region72: #{csp_darknet_tiny_block.1} parent=67 // pred_fallthru
          _
        // Predicated region
        $region73: #{csp_darknet_tiny_block.1} parent=67 // pred_check
          %p11341 = pneg %p285
        $region74: #{csp_darknet_tiny_block.1} parent=67 // pred_check_branch
          %11343 = sbr.rel (%p11341) target = $region76
        $region75: #{csp_darknet_tiny_block.1} parent=67 // pred_region
          %s11344 = smul.u32 8, %s32
          %p11345 = scmp.lt.s32.totalorder %s31, 1
          %s11346 = scalar_select %p11345, %s31, 1
          %p11347 = scmp.lt.s32.totalorder %s11344, 15
          %s11348 = scalar_select %p11347, %s11344, 15
          %s11349 = smul.addr %s11348, 2
          %s11350 = smul.addr %s11346, 32
          %s11351 = sadd.s32 %s11349, %s11350
          %s11352 = smul.addr %s11351, 8
          %s11353 = scalar_lea.vmem %s10, %s11352
        $region76: #{csp_darknet_tiny_block.1} parent=67 // pred_fallthru
          _
      $region68: #{csp_darknet_tiny_block.1} parent=5 // pred_fallthru
        _
    $region6: #{csp_darknet_tiny_block.1} parent=1 // loop_footer
      %s24 = sadd.s32 1, %s20
    $region7: #{csp_darknet_tiny_block.1} parent=1 // loop_footer_branch
      %19 = sbr.rel target = $region3
    $region8: #{csp_darknet_tiny_block.1} parent=1 // loop_exit
      _
    %11354 = vsyncpa [#allocation6], 1
    %s11355 = scalar_lea.sflag [#allocation6], 1
    %11356 = vsyncpa %s11355, 1

</llo_original>
